<compile_context>
chip_gen: v6e
topology: v6e:2x2x1
jax: 0.10.0
libtpu: 0.0.40
codegen_flags: <defaults>
</compile_context>

<pallas_src>
import functools

import numpy as np
import jax
import jax.numpy as jnp
from jax import lax
from jax.experimental import pallas as pl
from jax.experimental.pallas import tpu as pltpu


# ----------------------------------------------------------------------------
# Model config (small but lane-aligned; shape-consistent with DeepseekV2Attention)
# ----------------------------------------------------------------------------
HIDDEN_SIZE = 256
NUM_HEADS = 4
QK_NOPE_HEAD_DIM = 128
QK_ROPE_HEAD_DIM = 64
QK_HEAD_DIM = QK_NOPE_HEAD_DIM + QK_ROPE_HEAD_DIM        # 192
V_HEAD_DIM = 128
Q_LORA_RANK = 128
KV_LORA_RANK = 128
ROPE_THETA = 10000.0
RMS_NORM_EPS = 1e-6
SCALING = QK_HEAD_DIM ** (-0.5)                          # rope_scaling=None -> no mscale
SEQ_LEN = 256

BLOCK_T = 128          # token tile for projection / o_proj kernels
BLOCK_Q = 128          # flash-attention query tile
BLOCK_KV = 128         # flash-attention key/value tile


# ----------------------------------------------------------------------------
# Pallas kernels
# ----------------------------------------------------------------------------
def _q_proj_kernel(x_ref, wqa_ref, g_ref, wlat_ref, wpe_ref, wpe_rot_ref,
                   cos_ref, sin_ref, qlat_ref, qpe_ref, *, eps, num_heads, rope_dim):
    """q_a_proj -> RMSNorm -> absorbed q_lat (packed) + RoPE'd q_pe, all wide matmuls."""
    x = x_ref[...]                                                     # bf16 (tq, hidden)
    q_a = jnp.dot(x, wqa_ref[...], preferred_element_type=jnp.float32)  # (tq, q_lora)
    var = jnp.mean(q_a * q_a, axis=-1, keepdims=True)
    q_a = (q_a * lax.rsqrt(var + eps) * g_ref[...]).astype(jnp.bfloat16)

    # Absorbed "nope" query: q_lat[h] = (q_a @ W_qb_nope[h]) @ W_kvb_k[h]^T, packed on lanes.
    qlat_ref[...] = jnp.dot(q_a, wlat_ref[...],
                            preferred_element_type=jnp.float32).astype(qlat_ref.dtype)

    # RoPE query (packed over heads).  The interleaved pair-swap permutation is folded
    # offline into wpe_rot, so RoPE is just two matmuls + cos/sin elementwise (VPU).
    pe = jnp.dot(q_a, wpe_ref[...], preferred_element_type=jnp.float32)
    pe_rot = jnp.dot(q_a, wpe_rot_ref[...], preferred_element_type=jnp.float32)
    pe = (pe * cos_ref[...] + pe_rot * sin_ref[...]).astype(qpe_ref.dtype)
    for h in range(num_heads):                                          # tiny static unpack
        qpe_ref[h] = pe[:, h * rope_dim:(h + 1) * rope_dim]


def _kv_proj_kernel(x_ref, wkva_ref, g_ref, wkpe_rot_ref, cos_ref, sin_ref,
                    kvc_ref, *, eps, kv_lora):
    """kv_a_proj_with_mqa -> RMSNorm(kv_a) + RoPE(k_pe) -> packed latent cache (T, kv_lora+rope)."""
    x = x_ref[...]                                                      # bf16 (tk, hidden)
    lat = jnp.dot(x, wkva_ref[...], preferred_element_type=jnp.float32)  # (tk, kv_lora+rope)
    kv_a = lat[:, :kv_lora]
    k_pe = lat[:, kv_lora:]

    var = jnp.mean(kv_a * kv_a, axis=-1, keepdims=True)
    kv_a = kv_a * lax.rsqrt(var + eps) * g_ref[...]

    k_pe_rot = jnp.dot(x, wkpe_rot_ref[...], preferred_element_type=jnp.float32)
    k_pe = k_pe * cos_ref[...] + k_pe_rot * sin_ref[...]

    kvc_ref[:, :kv_lora] = kv_a.astype(kvc_ref.dtype)
    kvc_ref[:, kv_lora:] = k_pe.astype(kvc_ref.dtype)


def _mla_flash_kernel(qlat_ref, qpe_ref, kvc_ref, o_ref, m_ref, l_ref, acc_ref,
                      *, scale, kv_lora, block_q, block_kv):
    """Causal MLA flash attention over the latent cache.

    grid = (head "parallel", q tile "parallel", kv tile "arbitrary").
    score = q_lat @ kv_a^T + q_pe @ k_pe^T  (weight-absorbed, deep-K contraction);
    PV accumulates the latent kv_a; kv tiles fully above the diagonal are skipped.
    """
    qi = pl.program_id(1)
    ki = pl.program_id(2)

    @pl.when(ki == 0)
    def _init():
        m_ref[...] = jnp.full_like(m_ref, -1e30)
        l_ref[...] = jnp.zeros_like(l_ref)
        acc_ref[...] = jnp.zeros_like(acc_ref)

    q_start = qi * block_q
    kv_start = ki * block_kv

    @pl.when(kv_start <= q_start + (block_q - 1))          # skip fully-masked causal tiles
    def _compute():
        kv = kvc_ref[...]                                   # bf16 (tk, kv_lora+rope)
        kv_a = kv[:, :kv_lora]                              # latent "keys" and "values"
        k_pe = kv[:, kv_lora:]

        dims = (((1,), (1,)), ((), ()))                     # contract last dims (A @ B^T)
        s = lax.dot_general(qlat_ref[...], kv_a, dims,
                            preferred_element_type=jnp.float32)
        s = s + lax.dot_general(qpe_ref[0], k_pe, dims,
                                preferred_element_type=jnp.float32)
        s = s * scale                                       # (tq, tk) f32

        q_pos = q_start + lax.broadcasted_iota(jnp.int32, (block_q, block_kv), 0)
        k_pos = kv_start + lax.broadcasted_iota(jnp.int32, (block_q, block_kv), 1)
        s = jnp.where(k_pos <= q_pos, s, -1e30)

        m_prev = m_ref[...]
        m_new = jnp.maximum(m_prev, jnp.max(s, axis=-1, keepdims=True))
        alpha = jnp.exp(m_prev - m_new)
        p = jnp.exp(s - m_new)
        l_ref[...] = alpha * l_ref[...] + jnp.sum(p, axis=-1, keepdims=True)
        acc_ref[...] = alpha * acc_ref[...] + jnp.dot(
            p.astype(jnp.bfloat16), kv_a, preferred_element_type=jnp.float32)
        m_ref[...] = m_new

    @pl.when(ki == pl.num_programs(2) - 1)
    def _finalize():
        # exact division (perf-review correctness concern re: approx reciprocal)
        o_ref[...] = (acc_ref[...] / l_ref[...]).astype(o_ref.dtype)


def _o_proj_kernel(a_ref, w_ref, o_ref):
    """Head-flattened o_proj: one K-tiled matmul, accumulate directly into the f32 output block."""
    k = pl.program_id(1)

    @pl.when(k == 0)
    def _zero():
        o_ref[...] = jnp.zeros_like(o_ref)

    o_ref[...] += jnp.dot(a_ref[...], w_ref[...], preferred_element_type=jnp.float32)


# ----------------------------------------------------------------------------
# Wrappers around pallas_call
# ----------------------------------------------------------------------------
def _q_projection(x, p, cos_q, sin_q):
    T = x.shape[0]
    H = NUM_HEADS
    kernel = functools.partial(_q_proj_kernel, eps=RMS_NORM_EPS,
                               num_heads=H, rope_dim=QK_ROPE_HEAD_DIM)
    return pl.pallas_call(
        kernel,
        out_shape=(jax.ShapeDtypeStruct((T, H * KV_LORA_RANK), jnp.bfloat16),
                   jax.ShapeDtypeStruct((H, T, QK_ROPE_HEAD_DIM), jnp.bfloat16)),
        grid=(T // BLOCK_T,),
        in_specs=[
            pl.BlockSpec((BLOCK_T, HIDDEN_SIZE), lambda i: (i, 0)),
            pl.BlockSpec(p["w_qa"].shape, lambda i: (0, 0)),
            pl.BlockSpec(p["g_qa"].shape, lambda i: (0, 0)),
            pl.BlockSpec(p["w_q_lat"].shape, lambda i: (0, 0)),
            pl.BlockSpec(p["w_q_pe"].shape, lambda i: (0, 0)),
            pl.BlockSpec(p["w_q_pe_rot"].shape, lambda i: (0, 0)),
            pl.BlockSpec((BLOCK_T, H * QK_ROPE_HEAD_DIM), lambda i: (i, 0)),
            pl.BlockSpec((BLOCK_T, H * QK_ROPE_HEAD_DIM), lambda i: (i, 0)),
        ],
        out_specs=(
            pl.BlockSpec((BLOCK_T, H * KV_LORA_RANK), lambda i: (i, 0)),
            pl.BlockSpec((H, BLOCK_T, QK_ROPE_HEAD_DIM), lambda i: (0, i, 0)),
        ),
        compiler_params=pltpu.CompilerParams(dimension_semantics=("parallel",)),
    )(x, p["w_qa"], p["g_qa"], p["w_q_lat"], p["w_q_pe"], p["w_q_pe_rot"], cos_q, sin_q)


def _kv_projection(x, p, cos_k, sin_k):
    T = x.shape[0]
    kernel = functools.partial(_kv_proj_kernel, eps=RMS_NORM_EPS, kv_lora=KV_LORA_RANK)
    return pl.pallas_call(
        kernel,
        out_shape=jax.ShapeDtypeStruct((T, KV_LORA_RANK + QK_ROPE_HEAD_DIM), jnp.bfloat16),
        grid=(T // BLOCK_T,),
        in_specs=[
            pl.BlockSpec((BLOCK_T, HIDDEN_SIZE), lambda i: (i, 0)),
            pl.BlockSpec(p["w_kva"].shape, lambda i: (0, 0)),
            pl.BlockSpec(p["g_kva"].shape, lambda i: (0, 0)),
            pl.BlockSpec(p["w_kpe_rot"].shape, lambda i: (0, 0)),
            pl.BlockSpec((BLOCK_T, QK_ROPE_HEAD_DIM), lambda i: (i, 0)),
            pl.BlockSpec((BLOCK_T, QK_ROPE_HEAD_DIM), lambda i: (i, 0)),
        ],
        out_specs=pl.BlockSpec((BLOCK_T, KV_LORA_RANK + QK_ROPE_HEAD_DIM),
                               lambda i: (i, 0)),
        compiler_params=pltpu.CompilerParams(dimension_semantics=("parallel",)),
    )(x, p["w_kva"], p["g_kva"], p["w_kpe_rot"], cos_k, sin_k)


def _mla_flash_attention(q_lat, q_pe, kv_c, scale):
    T = kv_c.shape[0]
    H = q_pe.shape[0]
    num_q = T // BLOCK_Q
    num_kv = T // BLOCK_KV
    kernel = functools.partial(_mla_flash_kernel, scale=scale, kv_lora=KV_LORA_RANK,
                               block_q=BLOCK_Q, block_kv=BLOCK_KV)
    flops = 2 * H * T * T * (2 * KV_LORA_RANK + QK_ROPE_HEAD_DIM)
    bytes_accessed = 2 * (q_lat.size + q_pe.size + kv_c.size + T * H * KV_LORA_RANK)
    return pl.pallas_call(
        kernel,
        out_shape=jax.ShapeDtypeStruct((T, H * KV_LORA_RANK), jnp.bfloat16),
        grid=(H, num_q, num_kv),
        in_specs=[
            pl.BlockSpec((BLOCK_Q, KV_LORA_RANK), lambda h, i, k: (i, h)),
            pl.BlockSpec((1, BLOCK_Q, QK_ROPE_HEAD_DIM), lambda h, i, k: (h, i, 0)),
            pl.BlockSpec((BLOCK_KV, KV_LORA_RANK + QK_ROPE_HEAD_DIM),
                         lambda h, i, k: (k, 0)),
        ],
        out_specs=pl.BlockSpec((BLOCK_Q, KV_LORA_RANK), lambda h, i, k: (i, h)),
        scratch_shapes=[pltpu.VMEM((BLOCK_Q, 1), jnp.float32),
                        pltpu.VMEM((BLOCK_Q, 1), jnp.float32),
                        pltpu.VMEM((BLOCK_Q, KV_LORA_RANK), jnp.float32)],
        compiler_params=pltpu.CompilerParams(
            dimension_semantics=("parallel", "parallel", "arbitrary")),
        cost_estimate=pl.CostEstimate(flops=int(flops), transcendentals=int(H * T * T),
                                      bytes_accessed=int(bytes_accessed)),
    )(q_lat, q_pe, kv_c)


def _o_projection(attn_lat, w_o_abs):
    T, HK = attn_lat.shape
    hidden = w_o_abs.shape[1]
    tk = 128
    return pl.pallas_call(
        _o_proj_kernel,
        out_shape=jax.ShapeDtypeStruct((T, hidden), jnp.float32),
        grid=(T // BLOCK_T, HK // tk),
        in_specs=[pl.BlockSpec((BLOCK_T, tk), lambda m, k: (m, k)),
                  pl.BlockSpec((tk, hidden), lambda m, k: (k, 0))],
        out_specs=pl.BlockSpec((BLOCK_T, hidden), lambda m, k: (m, 0)),
        compiler_params=pltpu.CompilerParams(
            dimension_semantics=("parallel", "arbitrary")),
    )(attn_lat, w_o_abs)


# ----------------------------------------------------------------------------
# Parameter / RoPE-table preparation (one-time, plain JAX / numpy, f32)
# ----------------------------------------------------------------------------
def _rot_matrix(rope_dim):
    # interleaved (non-neox) rotation: rot(x)[2i] = -x[2i+1], rot(x)[2i+1] = x[2i]
    p = np.zeros((rope_dim, rope_dim), np.float32)
    for i in range(rope_dim // 2):
        p[2 * i + 1, 2 * i] = -1.0
        p[2 * i, 2 * i + 1] = 1.0
    return jnp.asarray(p)


def _prep_params(params):
    H = NUM_HEADS
    rot = _rot_matrix(QK_ROPE_HEAD_DIM)
    bf = lambda a: a.astype(jnp.bfloat16)

    w_qb = params["q_b_proj"].reshape(Q_LORA_RANK, H, QK_HEAD_DIM)
    w_qb_nope = w_qb[:, :, :QK_NOPE_HEAD_DIM]                    # (q_lora, H, nope)
    w_qb_pe = w_qb[:, :, QK_NOPE_HEAD_DIM:]                      # (q_lora, H, rope)

    w_kvb = params["kv_b_proj"].reshape(KV_LORA_RANK, H, QK_NOPE_HEAD_DIM + V_HEAD_DIM)
    w_kvb_k = w_kvb[:, :, :QK_NOPE_HEAD_DIM]                     # (kv_lora, H, nope)
    w_kvb_v = w_kvb[:, :, QK_NOPE_HEAD_DIM:]                     # (kv_lora, H, v)

    # MLA weight absorption (offline, f32 -> bf16), packed head-major on lanes.
    w_q_lat = jnp.einsum("qhn,khn->qhk", w_qb_nope, w_kvb_k,
                         precision="highest").reshape(Q_LORA_RANK, H * KV_LORA_RANK)
    w_o = params["o_proj"].reshape(H, V_HEAD_DIM, HIDDEN_SIZE)
    w_o_abs = jnp.einsum("khv,hvd->hkd", w_kvb_v, w_o,
                         precision="highest").reshape(H * KV_LORA_RANK, HIDDEN_SIZE)

    w_q_pe = w_qb_pe.reshape(Q_LORA_RANK, H * QK_ROPE_HEAD_DIM)
    w_q_pe_rot = jnp.einsum("qhr,rs->qhs", w_qb_pe, rot,
                            precision="highest").reshape(Q_LORA_RANK, H * QK_ROPE_HEAD_DIM)

    w_kva = params["kv_a_proj_with_mqa"]                         # (hidden, kv_lora+rope)
    w_kpe_rot = jnp.matmul(w_kva[:, KV_LORA_RANK:], rot, precision="highest")

    return {
        "w_qa": bf(params["q_a_proj"]),
        "g_qa": params["q_a_layernorm"].reshape(1, -1),
        "w_q_lat": bf(w_q_lat),
        "w_q_pe": bf(w_q_pe),
        "w_q_pe_rot": bf(w_q_pe_rot),
        "w_kva": bf(w_kva),
        "g_kva": params["kv_a_layernorm"].reshape(1, -1),
        "w_kpe_rot": bf(w_kpe_rot),
        "w_o_abs": bf(w_o_abs),
    }


def _rope_tables(positions, rope_dim, base, num_heads):
    """Interleaved cos/sin tables: (T, rope_dim) for the shared k_pe, tiled (T, H*rope) for q."""
    half = rope_dim // 2
    inv_freq = 1.0 / (base ** (jnp.arange(half, dtype=jnp.float32) * 2.0 / rope_dim))
    freqs = positions.astype(jnp.float32)[:, None] * inv_freq[None, :]   # (T, half)
    cos = jnp.repeat(jnp.cos(freqs), 2, axis=-1)                         # (T, rope_dim)
    sin = jnp.repeat(jnp.sin(freqs), 2, axis=-1)
    return cos, sin, jnp.tile(cos, (1, num_heads)), jnp.tile(sin, (1, num_heads))


# ----------------------------------------------------------------------------
# Forward pass
# ----------------------------------------------------------------------------
def deepseek_v2_attention_forward(params, positions, hidden_states):
    prepped = _prep_params(params)
    cos_k, sin_k, cos_q, sin_q = _rope_tables(positions, QK_ROPE_HEAD_DIM,
                                              ROPE_THETA, NUM_HEADS)
    x = hidden_states.astype(jnp.bfloat16)          # bf16 into the kernels: half the DMA bytes

    q_lat, q_pe = _q_projection(x, prepped, cos_q, sin_q)
    kv_c = _kv_projection(x, prepped, cos_k, sin_k)
    attn_lat = _mla_flash_attention(q_lat, q_pe, kv_c, SCALING)
    return _o_projection(attn_lat, prepped["w_o_abs"])


# ----------------------------------------------------------------------------
# Params + pure-JAX f32 reference (correctness check)
# ----------------------------------------------------------------------------
def init_params(key):
    ks = jax.random.split(key, 6)
    def w(k, shape):
        return 0.02 * jax.random.normal(k, shape, dtype=jnp.float32)
    return {
        "q_a_proj": w(ks[0], (HIDDEN_SIZE, Q_LORA_RANK)),
        "q_a_layernorm": jnp.ones((Q_LORA_RANK,), jnp.float32),
        "q_b_proj": w(ks[1], (Q_LORA_RANK, NUM_HEADS * QK_HEAD_DIM)),
        "kv_a_proj_with_mqa": w(ks[2], (HIDDEN_SIZE, KV_LORA_RANK + QK_ROPE_HEAD_DIM)),
        "kv_a_layernorm": jnp.ones((KV_LORA_RANK,), jnp.float32),
        "kv_b_proj": w(ks[3], (KV_LORA_RANK, NUM_HEADS * (QK_NOPE_HEAD_DIM + V_HEAD_DIM))),
        "o_proj": w(ks[4], (NUM_HEADS * V_HEAD_DIM, HIDDEN_SIZE)),
    }


def _ref_rmsnorm(x, w, eps):
    var = jnp.mean(x * x, axis=-1, keepdims=True)
    return x * lax.rsqrt(var + eps) * w


def _ref_rope_interleaved(x, positions, rope_dim, base):
    half = rope_dim // 2
    inv_freq = 1.0 / (base ** (jnp.arange(half, dtype=jnp.float32) * 2.0 / rope_dim))
    freqs = positions.astype(jnp.float32)[:, None] * inv_freq[None, :]
    cos = jnp.cos(freqs)[:, None, :]
    sin = jnp.sin(freqs)[:, None, :]
    x1, x2 = x[..., 0::2], x[..., 1::2]
    return jnp.stack([x1 * cos - x2 * sin, x2 * cos + x1 * sin], axis=-1).reshape(x.shape)


def reference_forward(params, positions, hidden_states):
    T = hidden_states.shape[0]
    H = NUM_HEADS
    mm = functools.partial(jnp.matmul, precision="highest")

    q_a = _ref_rmsnorm(mm(hidden_states, params["q_a_proj"]),
                       params["q_a_layernorm"], RMS_NORM_EPS)
    q = mm(q_a, params["q_b_proj"]).reshape(T, H, QK_HEAD_DIM)
    q_nope, q_pe = q[..., :QK_NOPE_HEAD_DIM], q[..., QK_NOPE_HEAD_DIM:]

    latent = mm(hidden_states, params["kv_a_proj_with_mqa"])
    kv_a = _ref_rmsnorm(latent[:, :KV_LORA_RANK], params["kv_a_layernorm"], RMS_NORM_EPS)
    k_pe = latent[:, None, KV_LORA_RANK:]
    kv = mm(kv_a, params["kv_b_proj"]).reshape(T, H, QK_NOPE_HEAD_DIM + V_HEAD_DIM)
    k_nope, v = kv[..., :QK_NOPE_HEAD_DIM], kv[..., QK_NOPE_HEAD_DIM:]

    q_pe = _ref_rope_interleaved(q_pe, positions, QK_ROPE_HEAD_DIM, ROPE_THETA)
    k_pe = _ref_rope_interleaved(k_pe, positions, QK_ROPE_HEAD_DIM, ROPE_THETA)

    q_full = jnp.concatenate([q_nope, q_pe], axis=-1)
    k_full = jnp.concatenate(
        [k_nope, jnp.broadcast_to(k_pe, (T, H, QK_ROPE_HEAD_DIM))], axis=-1)

    s = jnp.einsum("qhd,khd->hqk", q_full, k_full, precision="highest") * SCALING
    mask = jnp.tril(jnp.ones((T, T), dtype=bool))
    s = jnp.where(mask[None], s, -1e30)
    p = jax.nn.softmax(s, axis=-1)
    o = jnp.einsum("hqk,khd->qhd", p, v, precision="highest").reshape(T, H * V_HEAD_DIM)
    return mm(o, params["o_proj"])


# ----------------------------------------------------------------------------
if __name__ == "__main__":
    key = jax.random.PRNGKey(0)
    k_param, k_h = jax.random.split(key)

    params = init_params(k_param)
    positions = jnp.arange(SEQ_LEN, dtype=jnp.int32)                    # (T,)
    hidden_states = jax.random.normal(k_h, (SEQ_LEN, HIDDEN_SIZE), jnp.float32)

    fwd = jax.jit(deepseek_v2_attention_forward)
    out = jax.block_until_ready(fwd(params, positions, hidden_states))

    ref = reference_forward(params, positions, hidden_states)
    assert out.shape == (SEQ_LEN, HIDDEN_SIZE), out.shape
    max_err = float(jnp.max(jnp.abs(out - ref)))
    assert max_err < 5e-3, f"mismatch vs f32 reference: {max_err}"

    print("KERNEL_OK")
</pallas_src>

<mosaic_0001>
module attributes {stable_mosaic.version = 11 : i64} {
  func.func @_kv_proj_kernel(%arg0: i32, %arg1: memref<128x256xbf16, #tpu.memory_space<vmem>>, %arg2: memref<256x192xbf16, #tpu.memory_space<vmem>>, %arg3: memref<1x128xf32, #tpu.memory_space<vmem>>, %arg4: memref<256x64xbf16, #tpu.memory_space<vmem>>, %arg5: memref<128x64xf32, #tpu.memory_space<vmem>>, %arg6: memref<128x64xf32, #tpu.memory_space<vmem>>, %arg7: memref<128x192xbf16, #tpu.memory_space<vmem>>) attributes {dimension_semantics = [#tpu.dimension_semantics<parallel>], iteration_bounds = array<i64: 2>, scalar_prefetch = 0 : i64, scratch_operands = 0 : i64, tpu.core_type = #tpu.core_type<tc>, window_params = [{transform_indices = @transform_0, window_bounds = array<i64: 128, 256>}, {pipeline_mode = #tpu.pipeline_mode<synchronous>, transform_indices = @transform_1, window_bounds = array<i64: 256, 192>}, {pipeline_mode = #tpu.pipeline_mode<synchronous>, transform_indices = @transform_2, window_bounds = array<i64: 1, 128>}, {pipeline_mode = #tpu.pipeline_mode<synchronous>, transform_indices = @transform_3, window_bounds = array<i64: 256, 64>}, {transform_indices = @transform_4, window_bounds = array<i64: 128, 64>}, {transform_indices = @transform_5, window_bounds = array<i64: 128, 64>}, {transform_indices = @transform_6, window_bounds = array<i64: 128, 192>}]} {
    %c0 = arith.constant 0 : index
    %c0_0 = arith.constant 0 : index
    %0 = vector.load %arg1[%c0, %c0_0] : memref<128x256xbf16, #tpu.memory_space<vmem>>, vector<128x256xbf16>
    %c0_1 = arith.constant 0 : index
    %c0_2 = arith.constant 0 : index
    %1 = vector.load %arg2[%c0_1, %c0_2] : memref<256x192xbf16, #tpu.memory_space<vmem>>, vector<256x192xbf16>
    %cst = arith.constant dense<0.000000e+00> : vector<128x192xf32>
    %2 = tpu.matmul %0, %1, %cst {dimension_numbers = #tpu.dot_dimension_numbers<[1], [0], [0], [1], [0, 0, 1, 1], [], []>} : vector<128x256xbf16>, vector<256x192xbf16>, vector<128x192xf32> -> vector<128x192xf32>
    %3 = vector.extract_strided_slice %2 {offsets = [0, 0], sizes = [128, 128], strides = [1, 1]} : vector<128x192xf32> to vector<128x128xf32>
    %4 = vector.extract_strided_slice %2 {offsets = [0, 128], sizes = [128, 64], strides = [1, 1]} : vector<128x192xf32> to vector<128x64xf32>
    %5 = arith.mulf %3, %3 : vector<128x128xf32>
    %cst_3 = arith.constant dense<0.000000e+00> : vector<128xf32>
    %6 = vector.multi_reduction <add>, %5, %cst_3 [1] : vector<128x128xf32> to vector<128xf32>
    %7 = vector.shape_cast %6 : vector<128xf32> to vector<128x1xf32>
    %cst_4 = arith.constant 1.280000e+02 : f32
    %8 = vector.broadcast %cst_4 : f32 to vector<128x1xf32>
    %9 = arith.divf %7, %8 : vector<128x1xf32>
    %cst_5 = arith.constant 9.99999997E-7 : f32
    %10 = vector.broadcast %cst_5 : f32 to vector<128x1xf32>
    %11 = arith.addf %9, %10 : vector<128x1xf32>
    %12 = math.rsqrt %11 : vector<128x1xf32>
    %13 = vector.broadcast %12 : vector<128x1xf32> to vector<128x128xf32>
    %14 = arith.mulf %3, %13 : vector<128x128xf32>
    %c0_6 = arith.constant 0 : index
    %c0_7 = arith.constant 0 : index
    %15 = vector.load %arg3[%c0_6, %c0_7] : memref<1x128xf32, #tpu.memory_space<vmem>>, vector<1x128xf32>
    %16 = vector.broadcast %15 : vector<1x128xf32> to vector<128x128xf32>
    %17 = arith.mulf %14, %16 : vector<128x128xf32>
    %c0_8 = arith.constant 0 : index
    %c0_9 = arith.constant 0 : index
    %18 = vector.load %arg4[%c0_8, %c0_9] : memref<256x64xbf16, #tpu.memory_space<vmem>>, vector<256x64xbf16>
    %cst_10 = arith.constant dense<0.000000e+00> : vector<128x64xf32>
    %19 = tpu.matmul %0, %18, %cst_10 {dimension_numbers = #tpu.dot_dimension_numbers<[1], [0], [0], [1], [0, 0, 1, 1], [], []>} : vector<128x256xbf16>, vector<256x64xbf16>, vector<128x64xf32> -> vector<128x64xf32>
    %c0_11 = arith.constant 0 : index
    %c0_12 = arith.constant 0 : index
    %20 = vector.load %arg5[%c0_11, %c0_12] : memref<128x64xf32, #tpu.memory_space<vmem>>, vector<128x64xf32>
    %21 = arith.mulf %4, %20 : vector<128x64xf32>
    %c0_13 = arith.constant 0 : index
    %c0_14 = arith.constant 0 : index
    %22 = vector.load %arg6[%c0_13, %c0_14] : memref<128x64xf32, #tpu.memory_space<vmem>>, vector<128x64xf32>
    %23 = arith.mulf %19, %22 : vector<128x64xf32>
    %24 = arith.addf %21, %23 : vector<128x64xf32>
    %25 = arith.truncf %17 : vector<128x128xf32> to vector<128x128xbf16>
    %c0_15 = arith.constant 0 : index
    %c0_16 = arith.constant 0 : index
    %26 = vector.load %arg7[%c0_15, %c0_16] : memref<128x192xbf16, #tpu.memory_space<vmem>>, vector<128x128xbf16>
    tpu.vector_store %arg7[%c0_15, %c0_16], %25 {strides = array<i32>} : memref<128x192xbf16, #tpu.memory_space<vmem>>, vector<128x128xbf16>,
    %27 = arith.truncf %24 : vector<128x64xf32> to vector<128x64xbf16>
    %c0_17 = arith.constant 0 : index
    %c128 = arith.constant 128 : index
    %28 = vector.load %arg7[%c0_17, %c128] : memref<128x192xbf16, #tpu.memory_space<vmem>>, vector<128x64xbf16>
    tpu.vector_store %arg7[%c0_17, %c128], %27 {strides = array<i32>} : memref<128x192xbf16, #tpu.memory_space<vmem>>, vector<128x64xbf16>,
    return
  }
  func.func @transform_0(%arg0: i32) -> (i32, i32) {
    %c0_i32 = arith.constant 0 : i32
    %c0_i32_0 = arith.constant 0 : i32
    return %arg0, %c0_i32 : i32, i32
  }
  func.func @transform_1(%arg0: i32) -> (i32, i32) {
    %c0_i32 = arith.constant 0 : i32
    %c0_i32_0 = arith.constant 0 : i32
    %c0_i32_1 = arith.constant 0 : i32
    return %c0_i32, %c0_i32_0 : i32, i32
  }
  func.func @transform_2(%arg0: i32) -> (i32, i32) {
    %c0_i32 = arith.constant 0 : i32
    %c0_i32_0 = arith.constant 0 : i32
    %c0_i32_1 = arith.constant 0 : i32
    return %c0_i32, %c0_i32_0 : i32, i32
  }
  func.func @transform_3(%arg0: i32) -> (i32, i32) {
    %c0_i32 = arith.constant 0 : i32
    %c0_i32_0 = arith.constant 0 : i32
    %c0_i32_1 = arith.constant 0 : i32
    return %c0_i32, %c0_i32_0 : i32, i32
  }
  func.func @transform_4(%arg0: i32) -> (i32, i32) {
    %c0_i32 = arith.constant 0 : i32
    %c0_i32_0 = arith.constant 0 : i32
    return %arg0, %c0_i32 : i32, i32
  }
  func.func @transform_5(%arg0: i32) -> (i32, i32) {
    %c0_i32 = arith.constant 0 : i32
    %c0_i32_0 = arith.constant 0 : i32
    return %arg0, %c0_i32 : i32, i32
  }
  func.func @transform_6(%arg0: i32) -> (i32, i32) {
    %c0_i32 = arith.constant 0 : i32
    %c0_i32_0 = arith.constant 0 : i32
    return %arg0, %c0_i32 : i32, i32
  }
}

module attributes {stable_mosaic.version = 11 : i64} {
  func.func @_mla_flash_kernel(%arg0: i32, %arg1: i32, %arg2: i32, %arg3: memref<128x128xbf16, #tpu.memory_space<vmem>>, %arg4: memref<1x128x64xbf16, #tpu.memory_space<vmem>>, %arg5: memref<128x192xbf16, #tpu.memory_space<vmem>>, %arg6: memref<128x128xbf16, #tpu.memory_space<vmem>>, %arg7: memref<128x1xf32, #tpu.memory_space<vmem>>, %arg8: memref<128x1xf32, #tpu.memory_space<vmem>>, %arg9: memref<128x128xf32, #tpu.memory_space<vmem>>) attributes {dimension_semantics = [#tpu.dimension_semantics<parallel>, #tpu.dimension_semantics<parallel>, #tpu.dimension_semantics<arbitrary>], iteration_bounds = array<i64: 4, 2, 2>, scalar_prefetch = 0 : i64, scratch_operands = 3 : i64, tpu.core_type = #tpu.core_type<tc>, window_params = [{transform_indices = @transform_0, window_bounds = array<i64: 128, 128>}, {transform_indices = @transform_1, window_bounds = array<i64: 1, 128, 64>}, {transform_indices = @transform_2, window_bounds = array<i64: 128, 192>}, {transform_indices = @transform_3, window_bounds = array<i64: 128, 128>}]} {
    %c0_i32 = arith.constant 0 : i32
    %0 = arith.cmpi eq, %arg2, %c0_i32 : i32
    %1 = arith.extui %0 : i1 to i32
    %c0_i32_0 = arith.constant 0 : i32
    %2 = arith.cmpi ne, %1, %c0_i32_0 : i32
    scf.if %2 {
      %cst = arith.constant -1.000000e+30 : f32
      %12 = vector.broadcast %cst : f32 to vector<128x1xf32>
      %c0 = arith.constant 0 : index
      %c0_4 = arith.constant 0 : index
      %13 = vector.load %arg7[%c0, %c0_4] : memref<128x1xf32, #tpu.memory_space<vmem>>, vector<128x1xf32>
      tpu.vector_store %arg7[%c0, %c0_4], %12 {strides = array<i32>} : memref<128x1xf32, #tpu.memory_space<vmem>>, vector<128x1xf32>,
      %cst_5 = arith.constant 0.000000e+00 : f32
      %14 = vector.broadcast %cst_5 : f32 to vector<128x1xf32>
      %c0_6 = arith.constant 0 : index
      %c0_7 = arith.constant 0 : index
      %15 = vector.load %arg8[%c0_6, %c0_7] : memref<128x1xf32, #tpu.memory_space<vmem>>, vector<128x1xf32>
      tpu.vector_store %arg8[%c0_6, %c0_7], %14 {strides = array<i32>} : memref<128x1xf32, #tpu.memory_space<vmem>>, vector<128x1xf32>,
      %cst_8 = arith.constant 0.000000e+00 : f32
      %16 = vector.broadcast %cst_8 : f32 to vector<128x128xf32>
      %c0_9 = arith.constant 0 : index
      %c0_10 = arith.constant 0 : index
      %17 = vector.load %arg9[%c0_9, %c0_10] : memref<128x128xf32, #tpu.memory_space<vmem>>, vector<128x128xf32>
      tpu.vector_store %arg9[%c0_9, %c0_10], %16 {strides = array<i32>} : memref<128x128xf32, #tpu.memory_space<vmem>>, vector<128x128xf32>,
    } else {
    }
    %c128_i32 = arith.constant 128 : i32
    %3 = arith.muli %arg1, %c128_i32 : i32
    %c128_i32_1 = arith.constant 128 : i32
    %4 = arith.muli %arg2, %c128_i32_1 : i32
    %c127_i32 = arith.constant 127 : i32
    %5 = arith.addi %3, %c127_i32 : i32
    %6 = arith.cmpi sle, %4, %5 : i32
    %7 = arith.extui %6 : i1 to i32
    %c0_i32_2 = arith.constant 0 : i32
    %8 = arith.cmpi ne, %7, %c0_i32_2 : i32
    scf.if %8 {
      %c0 = arith.constant 0 : index
      %c0_4 = arith.constant 0 : index
      %12 = vector.load %arg5[%c0, %c0_4] : memref<128x192xbf16, #tpu.memory_space<vmem>>, vector<128x192xbf16>
      %13 = vector.extract_strided_slice %12 {offsets = [0, 0], sizes = [128, 128], strides = [1, 1]} : vector<128x192xbf16> to vector<128x128xbf16>
      %14 = vector.extract_strided_slice %12 {offsets = [0, 128], sizes = [128, 64], strides = [1, 1]} : vector<128x192xbf16> to vector<128x64xbf16>
      %c0_5 = arith.constant 0 : index
      %c0_6 = arith.constant 0 : index
      %15 = vector.load %arg3[%c0_5, %c0_6] : memref<128x128xbf16, #tpu.memory_space<vmem>>, vector<128x128xbf16>
      %cst = arith.constant dense<0.000000e+00> : vector<128x128xf32>
      %16 = tpu.matmul %15, %13, %cst {dimension_numbers = #tpu.dot_dimension_numbers<[1], [1], [0], [0], [0, 0, 1, 0], [], []>} : vector<128x128xbf16>, vector<128x128xbf16>, vector<128x128xf32> -> vector<128x128xf32>
      %c0_7 = arith.constant 0 : index
      %c0_8 = arith.constant 0 : index
      %c0_9 = arith.constant 0 : index
      %17 = vector.load %arg4[%c0_7, %c0_8, %c0_9] : memref<1x128x64xbf16, #tpu.memory_space<vmem>>, vector<1x128x64xbf16>
      %18 = vector.shape_cast %17 : vector<1x128x64xbf16> to vector<128x64xbf16>
      %cst_10 = arith.constant dense<0.000000e+00> : vector<128x128xf32>
      %19 = tpu.matmul %18, %14, %cst_10 {dimension_numbers = #tpu.dot_dimension_numbers<[1], [1], [0], [0], [0, 0, 1, 0], [], []>} : vector<128x64xbf16>, vector<128x64xbf16>, vector<128x128xf32> -> vector<128x128xf32>
      %20 = arith.addf %16, %19 : vector<128x128xf32>
      %cst_11 = arith.constant 0.0721687824 : f32
      %21 = vector.broadcast %cst_11 : f32 to vector<128x128xf32>
      %22 = arith.mulf %20, %21 : vector<128x128xf32>
      %23 = tpu.iota {dimensions = array<i32: 0>} : vector<128x128xi32>
      %24 = vector.broadcast %3 : i32 to vector<128x128xi32>
      %25 = arith.addi %24, %23 : vector<128x128xi32>
      %26 = tpu.iota {dimensions = array<i32: 1>} : vector<128x128xi32>
      %27 = vector.broadcast %4 : i32 to vector<128x128xi32>
      %28 = arith.addi %27, %26 : vector<128x128xi32>
      %29 = arith.cmpi sle, %28, %25 : vector<128x128xi32>
      %cst_12 = arith.constant -1.000000e+30 : f32
      %30 = vector.broadcast %cst_12 : f32 to vector<128x128xf32>
      %31 = arith.select %29, %22, %30 : vector<128x128xi1>, vector<128x128xf32>
      %c0_13 = arith.constant 0 : index
      %c0_14 = arith.constant 0 : index
      %32 = vector.load %arg7[%c0_13, %c0_14] : memref<128x1xf32, #tpu.memory_space<vmem>>, vector<128x1xf32>
      %cst_15 = arith.constant dense<0xFF800000> : vector<128xf32>
      %33 = vector.multi_reduction <maximumf>, %31, %cst_15 [1] : vector<128x128xf32> to vector<128xf32>
      %34 = vector.shape_cast %33 : vector<128xf32> to vector<128x1xf32>
      %35 = arith.maximumf %32, %34 : vector<128x1xf32>
      %36 = arith.subf %32, %35 : vector<128x1xf32>
      %37 = math.exp %36 : vector<128x1xf32>
      %38 = vector.broadcast %35 : vector<128x1xf32> to vector<128x128xf32>
      %39 = arith.subf %31, %38 : vector<128x128xf32>
      %40 = math.exp %39 : vector<128x128xf32>
      %c0_16 = arith.constant 0 : index
      %c0_17 = arith.constant 0 : index
      %41 = vector.load %arg8[%c0_16, %c0_17] : memref<128x1xf32, #tpu.memory_space<vmem>>, vector<128x1xf32>
      %42 = arith.mulf %37, %41 : vector<128x1xf32>
      %cst_18 = arith.constant dense<0.000000e+00> : vector<128xf32>
      %43 = vector.multi_reduction <add>, %40, %cst_18 [1] : vector<128x128xf32> to vector<128xf32>
      %44 = vector.shape_cast %43 : vector<128xf32> to vector<128x1xf32>
      %45 = arith.addf %42, %44 : vector<128x1xf32>
      %c0_19 = arith.constant 0 : index
      %c0_20 = arith.constant 0 : index
      %46 = vector.load %arg8[%c0_19, %c0_20] : memref<128x1xf32, #tpu.memory_space<vmem>>, vector<128x1xf32>
      tpu.vector_store %arg8[%c0_19, %c0_20], %45 {strides = array<i32>} : memref<128x1xf32, #tpu.memory_space<vmem>>, vector<128x1xf32>,
      %c0_21 = arith.constant 0 : index
      %c0_22 = arith.constant 0 : index
      %47 = vector.load %arg9[%c0_21, %c0_22] : memref<128x128xf32, #tpu.memory_space<vmem>>, vector<128x128xf32>
      %48 = vector.broadcast %37 : vector<128x1xf32> to vector<128x128xf32>
      %49 = arith.mulf %48, %47 : vector<128x128xf32>
      %50 = arith.truncf %40 : vector<128x128xf32> to vector<128x128xbf16>
      %cst_23 = arith.constant dense<0.000000e+00> : vector<128x128xf32>
      %51 = tpu.matmul %50, %13, %cst_23 {dimension_numbers = #tpu.dot_dimension_numbers<[1], [0], [0], [1], [0, 0, 1, 1], [], []>} : vector<128x128xbf16>, vector<128x128xbf16>, vector<128x128xf32> -> vector<128x128xf32>
      %52 = arith.addf %49, %51 : vector<128x128xf32>
      %c0_24 = arith.constant 0 : index
      %c0_25 = arith.constant 0 : index
      %53 = vector.load %arg9[%c0_24, %c0_25] : memref<128x128xf32, #tpu.memory_space<vmem>>, vector<128x128xf32>
      tpu.vector_store %arg9[%c0_24, %c0_25], %52 {strides = array<i32>} : memref<128x128xf32, #tpu.memory_space<vmem>>, vector<128x128xf32>,
      %c0_26 = arith.constant 0 : index
      %c0_27 = arith.constant 0 : index
      %54 = vector.load %arg7[%c0_26, %c0_27] : memref<128x1xf32, #tpu.memory_space<vmem>>, vector<128x1xf32>
      tpu.vector_store %arg7[%c0_26, %c0_27], %35 {strides = array<i32>} : memref<128x1xf32, #tpu.memory_space<vmem>>, vector<128x1xf32>,
    } else {
    }
    %c1_i32 = arith.constant 1 : i32
    %9 = arith.cmpi eq, %arg2, %c1_i32 : i32
    %10 = arith.extui %9 : i1 to i32
    %c0_i32_3 = arith.constant 0 : i32
    %11 = arith.cmpi ne, %10, %c0_i32_3 : i32
    scf.if %11 {
      %c0 = arith.constant 0 : index
      %c0_4 = arith.constant 0 : index
      %12 = vector.load %arg9[%c0, %c0_4] : memref<128x128xf32, #tpu.memory_space<vmem>>, vector<128x128xf32>
      %c0_5 = arith.constant 0 : index
      %c0_6 = arith.constant 0 : index
      %13 = vector.load %arg8[%c0_5, %c0_6] : memref<128x1xf32, #tpu.memory_space<vmem>>, vector<128x1xf32>
      %14 = vector.broadcast %13 : vector<128x1xf32> to vector<128x128xf32>
      %15 = arith.divf %12, %14 : vector<128x128xf32>
      %16 = arith.truncf %15 : vector<128x128xf32> to vector<128x128xbf16>
      %c0_7 = arith.constant 0 : index
      %c0_8 = arith.constant 0 : index
      %17 = vector.load %arg6[%c0_7, %c0_8] : memref<128x128xbf16, #tpu.memory_space<vmem>>, vector<128x128xbf16>
      tpu.vector_store %arg6[%c0_7, %c0_8], %16 {strides = array<i32>} : memref<128x128xbf16, #tpu.memory_space<vmem>>, vector<128x128xbf16>,
    } else {
    }
    return
  }
  func.func @transform_0(%arg0: i32, %arg1: i32, %arg2: i32) -> (i32, i32) {
    %c0_i32 = arith.constant 0 : i32
    return %arg1, %arg0 : i32, i32
  }
  func.func @transform_1(%arg0: i32, %arg1: i32, %arg2: i32) -> (i32, i32, i32) {
    %c0_i32 = arith.constant 0 : i32
    %c0_i32_0 = arith.constant 0 : i32
    return %arg0, %arg1, %c0_i32 : i32, i32, i32
  }
  func.func @transform_2(%arg0: i32, %arg1: i32, %arg2: i32) -> (i32, i32) {
    %c0_i32 = arith.constant 0 : i32
    %c0_i32_0 = arith.constant 0 : i32
    return %arg2, %c0_i32 : i32, i32
  }
  func.func @transform_3(%arg0: i32, %arg1: i32, %arg2: i32) -> (i32, i32) {
    %c0_i32 = arith.constant 0 : i32
    return %arg1, %arg0 : i32, i32
  }
}

module attributes {stable_mosaic.version = 11 : i64} {
  func.func @_q_proj_kernel(%arg0: i32, %arg1: memref<128x256xbf16, #tpu.memory_space<vmem>>, %arg2: memref<256x128xbf16, #tpu.memory_space<vmem>>, %arg3: memref<1x128xf32, #tpu.memory_space<vmem>>, %arg4: memref<128x512xbf16, #tpu.memory_space<vmem>>, %arg5: memref<128x256xbf16, #tpu.memory_space<vmem>>, %arg6: memref<128x256xbf16, #tpu.memory_space<vmem>>, %arg7: memref<128x256xf32, #tpu.memory_space<vmem>>, %arg8: memref<128x256xf32, #tpu.memory_space<vmem>>, %arg9: memref<128x512xbf16, #tpu.memory_space<vmem>>, %arg10: memref<4x128x64xbf16, #tpu.memory_space<vmem>>) attributes {dimension_semantics = [#tpu.dimension_semantics<parallel>], iteration_bounds = array<i64: 2>, scalar_prefetch = 0 : i64, scratch_operands = 0 : i64, tpu.core_type = #tpu.core_type<tc>, window_params = [{transform_indices = @transform_0, window_bounds = array<i64: 128, 256>}, {pipeline_mode = #tpu.pipeline_mode<synchronous>, transform_indices = @transform_1, window_bounds = array<i64: 256, 128>}, {pipeline_mode = #tpu.pipeline_mode<synchronous>, transform_indices = @transform_2, window_bounds = array<i64: 1, 128>}, {pipeline_mode = #tpu.pipeline_mode<synchronous>, transform_indices = @transform_3, window_bounds = array<i64: 128, 512>}, {pipeline_mode = #tpu.pipeline_mode<synchronous>, transform_indices = @transform_4, window_bounds = array<i64: 128, 256>}, {pipeline_mode = #tpu.pipeline_mode<synchronous>, transform_indices = @transform_5, window_bounds = array<i64: 128, 256>}, {transform_indices = @transform_6, window_bounds = array<i64: 128, 256>}, {transform_indices = @transform_7, window_bounds = array<i64: 128, 256>}, {transform_indices = @transform_8, window_bounds = array<i64: 128, 512>}, {transform_indices = @transform_9, window_bounds = array<i64: 4, 128, 64>}]} {
    %c0 = arith.constant 0 : index
    %c0_0 = arith.constant 0 : index
    %0 = vector.load %arg1[%c0, %c0_0] : memref<128x256xbf16, #tpu.memory_space<vmem>>, vector<128x256xbf16>
    %c0_1 = arith.constant 0 : index
    %c0_2 = arith.constant 0 : index
    %1 = vector.load %arg2[%c0_1, %c0_2] : memref<256x128xbf16, #tpu.memory_space<vmem>>, vector<256x128xbf16>
    %cst = arith.constant dense<0.000000e+00> : vector<128x128xf32>
    %2 = tpu.matmul %0, %1, %cst {dimension_numbers = #tpu.dot_dimension_numbers<[1], [0], [0], [1], [0, 0, 1, 1], [], []>} : vector<128x256xbf16>, vector<256x128xbf16>, vector<128x128xf32> -> vector<128x128xf32>
    %3 = arith.mulf %2, %2 : vector<128x128xf32>
    %cst_3 = arith.constant dense<0.000000e+00> : vector<128xf32>
    %4 = vector.multi_reduction <add>, %3, %cst_3 [1] : vector<128x128xf32> to vector<128xf32>
    %5 = vector.shape_cast %4 : vector<128xf32> to vector<128x1xf32>
    %cst_4 = arith.constant 1.280000e+02 : f32
    %6 = vector.broadcast %cst_4 : f32 to vector<128x1xf32>
    %7 = arith.divf %5, %6 : vector<128x1xf32>
    %cst_5 = arith.constant 9.99999997E-7 : f32
    %8 = vector.broadcast %cst_5 : f32 to vector<128x1xf32>
    %9 = arith.addf %7, %8 : vector<128x1xf32>
    %10 = math.rsqrt %9 : vector<128x1xf32>
    %11 = vector.broadcast %10 : vector<128x1xf32> to vector<128x128xf32>
    %12 = arith.mulf %2, %11 : vector<128x128xf32>
    %c0_6 = arith.constant 0 : index
    %c0_7 = arith.constant 0 : index
    %13 = vector.load %arg3[%c0_6, %c0_7] : memref<1x128xf32, #tpu.memory_space<vmem>>, vector<1x128xf32>
    %14 = vector.broadcast %13 : vector<1x128xf32> to vector<128x128xf32>
    %15 = arith.mulf %12, %14 : vector<128x128xf32>
    %16 = arith.truncf %15 : vector<128x128xf32> to vector<128x128xbf16>
    %c0_8 = arith.constant 0 : index
    %c0_9 = arith.constant 0 : index
    %17 = vector.load %arg4[%c0_8, %c0_9] : memref<128x512xbf16, #tpu.memory_space<vmem>>, vector<128x512xbf16>
    %cst_10 = arith.constant dense<0.000000e+00> : vector<128x512xf32>
    %18 = tpu.matmul %16, %17, %cst_10 {dimension_numbers = #tpu.dot_dimension_numbers<[1], [0], [0], [1], [0, 0, 1, 1], [], []>} : vector<128x128xbf16>, vector<128x512xbf16>, vector<128x512xf32> -> vector<128x512xf32>
    %19 = arith.truncf %18 : vector<128x512xf32> to vector<128x512xbf16>
    %c0_11 = arith.constant 0 : index
    %c0_12 = arith.constant 0 : index
    %20 = vector.load %arg9[%c0_11, %c0_12] : memref<128x512xbf16, #tpu.memory_space<vmem>>, vector<128x512xbf16>
    tpu.vector_store %arg9[%c0_11, %c0_12], %19 {strides = array<i32>} : memref<128x512xbf16, #tpu.memory_space<vmem>>, vector<128x512xbf16>,
    %c0_13 = arith.constant 0 : index
    %c0_14 = arith.constant 0 : index
    %21 = vector.load %arg5[%c0_13, %c0_14] : memref<128x256xbf16, #tpu.memory_space<vmem>>, vector<128x256xbf16>
    %cst_15 = arith.constant dense<0.000000e+00> : vector<128x256xf32>
    %22 = tpu.matmul %16, %21, %cst_15 {dimension_numbers = #tpu.dot_dimension_numbers<[1], [0], [0], [1], [0, 0, 1, 1], [], []>} : vector<128x128xbf16>, vector<128x256xbf16>, vector<128x256xf32> -> vector<128x256xf32>
    %c0_16 = arith.constant 0 : index
    %c0_17 = arith.constant 0 : index
    %23 = vector.load %arg6[%c0_16, %c0_17] : memref<128x256xbf16, #tpu.memory_space<vmem>>, vector<128x256xbf16>
    %cst_18 = arith.constant dense<0.000000e+00> : vector<128x256xf32>
    %24 = tpu.matmul %16, %23, %cst_18 {dimension_numbers = #tpu.dot_dimension_numbers<[1], [0], [0], [1], [0, 0, 1, 1], [], []>} : vector<128x128xbf16>, vector<128x256xbf16>, vector<128x256xf32> -> vector<128x256xf32>
    %c0_19 = arith.constant 0 : index
    %c0_20 = arith.constant 0 : index
    %25 = vector.load %arg7[%c0_19, %c0_20] : memref<128x256xf32, #tpu.memory_space<vmem>>, vector<128x256xf32>
    %26 = arith.mulf %22, %25 : vector<128x256xf32>
    %c0_21 = arith.constant 0 : index
    %c0_22 = arith.constant 0 : index
    %27 = vector.load %arg8[%c0_21, %c0_22] : memref<128x256xf32, #tpu.memory_space<vmem>>, vector<128x256xf32>
    %28 = arith.mulf %24, %27 : vector<128x256xf32>
    %29 = arith.addf %26, %28 : vector<128x256xf32>
    %30 = arith.truncf %29 : vector<128x256xf32> to vector<128x256xbf16>
    %31 = vector.extract_strided_slice %30 {offsets = [0, 0], sizes = [128, 64], strides = [1, 1]} : vector<128x256xbf16> to vector<128x64xbf16>
    %c0_23 = arith.constant 0 : index
    %c0_24 = arith.constant 0 : index
    %c0_25 = arith.constant 0 : index
    %32 = vector.load %arg10[%c0_23, %c0_24, %c0_25] : memref<4x128x64xbf16, #tpu.memory_space<vmem>>, vector<1x128x64xbf16>
    %33 = vector.shape_cast %32 : vector<1x128x64xbf16> to vector<128x64xbf16>
    %34 = vector.shape_cast %31 : vector<128x64xbf16> to vector<1x128x64xbf16>
    tpu.vector_store %arg10[%c0_23, %c0_24, %c0_25], %34 {strides = array<i32>} : memref<4x128x64xbf16, #tpu.memory_space<vmem>>, vector<1x128x64xbf16>,
    %35 = vector.extract_strided_slice %30 {offsets = [0, 64], sizes = [128, 64], strides = [1, 1]} : vector<128x256xbf16> to vector<128x64xbf16>
    %c1 = arith.constant 1 : index
    %c0_26 = arith.constant 0 : index
    %c0_27 = arith.constant 0 : index
    %36 = vector.load %arg10[%c1, %c0_26, %c0_27] : memref<4x128x64xbf16, #tpu.memory_space<vmem>>, vector<1x128x64xbf16>
    %37 = vector.shape_cast %36 : vector<1x128x64xbf16> to vector<128x64xbf16>
    %38 = vector.shape_cast %35 : vector<128x64xbf16> to vector<1x128x64xbf16>
    tpu.vector_store %arg10[%c1, %c0_26, %c0_27], %38 {strides = array<i32>} : memref<4x128x64xbf16, #tpu.memory_space<vmem>>, vector<1x128x64xbf16>,
    %39 = vector.extract_strided_slice %30 {offsets = [0, 128], sizes = [128, 64], strides = [1, 1]} : vector<128x256xbf16> to vector<128x64xbf16>
    %c2 = arith.constant 2 : index
    %c0_28 = arith.constant 0 : index
    %c0_29 = arith.constant 0 : index
    %40 = vector.load %arg10[%c2, %c0_28, %c0_29] : memref<4x128x64xbf16, #tpu.memory_space<vmem>>, vector<1x128x64xbf16>
    %41 = vector.shape_cast %40 : vector<1x128x64xbf16> to vector<128x64xbf16>
    %42 = vector.shape_cast %39 : vector<128x64xbf16> to vector<1x128x64xbf16>
    tpu.vector_store %arg10[%c2, %c0_28, %c0_29], %42 {strides = array<i32>} : memref<4x128x64xbf16, #tpu.memory_space<vmem>>, vector<1x128x64xbf16>,
    %43 = vector.extract_strided_slice %30 {offsets = [0, 192], sizes = [128, 64], strides = [1, 1]} : vector<128x256xbf16> to vector<128x64xbf16>
    %c3 = arith.constant 3 : index
    %c0_30 = arith.constant 0 : index
    %c0_31 = arith.constant 0 : index
    %44 = vector.load %arg10[%c3, %c0_30, %c0_31] : memref<4x128x64xbf16, #tpu.memory_space<vmem>>, vector<1x128x64xbf16>
    %45 = vector.shape_cast %44 : vector<1x128x64xbf16> to vector<128x64xbf16>
    %46 = vector.shape_cast %43 : vector<128x64xbf16> to vector<1x128x64xbf16>
    tpu.vector_store %arg10[%c3, %c0_30, %c0_31], %46 {strides = array<i32>} : memref<4x128x64xbf16, #tpu.memory_space<vmem>>, vector<1x128x64xbf16>,
    return
  }
  func.func @transform_0(%arg0: i32) -> (i32, i32) {
    %c0_i32 = arith.constant 0 : i32
    %c0_i32_0 = arith.constant 0 : i32
    return %arg0, %c0_i32 : i32, i32
  }
  func.func @transform_1(%arg0: i32) -> (i32, i32) {
    %c0_i32 = arith.constant 0 : i32
    %c0_i32_0 = arith.constant 0 : i32
    %c0_i32_1 = arith.constant 0 : i32
    return %c0_i32, %c0_i32_0 : i32, i32
  }
  func.func @transform_2(%arg0: i32) -> (i32, i32) {
    %c0_i32 = arith.constant 0 : i32
    %c0_i32_0 = arith.constant 0 : i32
    %c0_i32_1 = arith.constant 0 : i32
    return %c0_i32, %c0_i32_0 : i32, i32
  }
  func.func @transform_3(%arg0: i32) -> (i32, i32) {
    %c0_i32 = arith.constant 0 : i32
    %c0_i32_0 = arith.constant 0 : i32
    %c0_i32_1 = arith.constant 0 : i32
    return %c0_i32, %c0_i32_0 : i32, i32
  }
  func.func @transform_4(%arg0: i32) -> (i32, i32) {
    %c0_i32 = arith.constant 0 : i32
    %c0_i32_0 = arith.constant 0 : i32
    %c0_i32_1 = arith.constant 0 : i32
    return %c0_i32, %c0_i32_0 : i32, i32
  }
  func.func @transform_5(%arg0: i32) -> (i32, i32) {
    %c0_i32 = arith.constant 0 : i32
    %c0_i32_0 = arith.constant 0 : i32
    %c0_i32_1 = arith.constant 0 : i32
    return %c0_i32, %c0_i32_0 : i32, i32
  }
  func.func @transform_6(%arg0: i32) -> (i32, i32) {
    %c0_i32 = arith.constant 0 : i32
    %c0_i32_0 = arith.constant 0 : i32
    return %arg0, %c0_i32 : i32, i32
  }
  func.func @transform_7(%arg0: i32) -> (i32, i32) {
    %c0_i32 = arith.constant 0 : i32
    %c0_i32_0 = arith.constant 0 : i32
    return %arg0, %c0_i32 : i32, i32
  }
  func.func @transform_8(%arg0: i32) -> (i32, i32) {
    %c0_i32 = arith.constant 0 : i32
    %c0_i32_0 = arith.constant 0 : i32
    return %arg0, %c0_i32 : i32, i32
  }
  func.func @transform_9(%arg0: i32) -> (i32, i32, i32) {
    %c0_i32 = arith.constant 0 : i32
    %c0_i32_0 = arith.constant 0 : i32
    %c0_i32_1 = arith.constant 0 : i32
    return %c0_i32, %arg0, %c0_i32_0 : i32, i32, i32
  }
}

module attributes {stable_mosaic.version = 11 : i64} {
  func.func @_o_proj_kernel(%arg0: i32, %arg1: i32, %arg2: memref<128x128xbf16, #tpu.memory_space<vmem>>, %arg3: memref<128x256xbf16, #tpu.memory_space<vmem>>, %arg4: memref<128x256xf32, #tpu.memory_space<vmem>>) attributes {dimension_semantics = [#tpu.dimension_semantics<parallel>, #tpu.dimension_semantics<arbitrary>], iteration_bounds = array<i64: 2, 4>, scalar_prefetch = 0 : i64, scratch_operands = 0 : i64, tpu.core_type = #tpu.core_type<tc>, window_params = [{transform_indices = @transform_0, window_bounds = array<i64: 128, 128>}, {transform_indices = @transform_1, window_bounds = array<i64: 128, 256>}, {transform_indices = @transform_2, window_bounds = array<i64: 128, 256>}]} {
    %c0_i32 = arith.constant 0 : i32
    %0 = arith.cmpi eq, %arg1, %c0_i32 : i32
    %1 = arith.extui %0 : i1 to i32
    %c0_i32_0 = arith.constant 0 : i32
    %2 = arith.cmpi ne, %1, %c0_i32_0 : i32
    scf.if %2 {
      %cst_8 = arith.constant 0.000000e+00 : f32
      %9 = vector.broadcast %cst_8 : f32 to vector<128x256xf32>
      %c0_9 = arith.constant 0 : index
      %c0_10 = arith.constant 0 : index
      %10 = vector.load %arg4[%c0_9, %c0_10] : memref<128x256xf32, #tpu.memory_space<vmem>>, vector<128x256xf32>
      tpu.vector_store %arg4[%c0_9, %c0_10], %9 {strides = array<i32>} : memref<128x256xf32, #tpu.memory_space<vmem>>, vector<128x256xf32>,
    } else {
    }
    %c0 = arith.constant 0 : index
    %c0_1 = arith.constant 0 : index
    %3 = vector.load %arg4[%c0, %c0_1] : memref<128x256xf32, #tpu.memory_space<vmem>>, vector<128x256xf32>
    %c0_2 = arith.constant 0 : index
    %c0_3 = arith.constant 0 : index
    %4 = vector.load %arg2[%c0_2, %c0_3] : memref<128x128xbf16, #tpu.memory_space<vmem>>, vector<128x128xbf16>
    %c0_4 = arith.constant 0 : index
    %c0_5 = arith.constant 0 : index
    %5 = vector.load %arg3[%c0_4, %c0_5] : memref<128x256xbf16, #tpu.memory_space<vmem>>, vector<128x256xbf16>
    %cst = arith.constant dense<0.000000e+00> : vector<128x256xf32>
    %6 = tpu.matmul %4, %5, %cst {dimension_numbers = #tpu.dot_dimension_numbers<[1], [0], [0], [1], [0, 0, 1, 1], [], []>} : vector<128x128xbf16>, vector<128x256xbf16>, vector<128x256xf32> -> vector<128x256xf32>
    %7 = arith.addf %3, %6 : vector<128x256xf32>
    %c0_6 = arith.constant 0 : index
    %c0_7 = arith.constant 0 : index
    %8 = vector.load %arg4[%c0_6, %c0_7] : memref<128x256xf32, #tpu.memory_space<vmem>>, vector<128x256xf32>
    tpu.vector_store %arg4[%c0_6, %c0_7], %7 {strides = array<i32>} : memref<128x256xf32, #tpu.memory_space<vmem>>, vector<128x256xf32>,
    return
  }
  func.func @transform_0(%arg0: i32, %arg1: i32) -> (i32, i32) {
    %c0_i32 = arith.constant 0 : i32
    return %arg0, %arg1 : i32, i32
  }
  func.func @transform_1(%arg0: i32, %arg1: i32) -> (i32, i32) {
    %c0_i32 = arith.constant 0 : i32
    %c0_i32_0 = arith.constant 0 : i32
    return %arg1, %c0_i32 : i32, i32
  }
  func.func @transform_2(%arg0: i32, %arg1: i32) -> (i32, i32) {
    %c0_i32 = arith.constant 0 : i32
    %c0_i32_0 = arith.constant 0 : i32
    return %arg0, %c0_i32 : i32, i32
  }
}

</mosaic_0001>

<llo_original>
// kernel: deepseek_v2_attention_forward.5
$region0: #{deepseek_v2_attention_forward.5}
  #allocation0 [shape = 'u32[]', space=smem, size = 0x4, offset = 0x4, fixed_abs, tag = 'smem constant byte address 0x4 - core index']
  #allocation1 [shape = 'u32[144,128]{1,0:T(1,128)}', space=vmem, size = 0x12000, scoped, tag = 'internal scratch']
  %s0 = inlined_call_operand.vmem [shape: bf16[256,256], index: 0, kind: input, shape index: {}]
  %s1 = inlined_call_operand.vmem [shape: bf16[256,192], index: 1, kind: input, shape index: {}]
  %s2 = inlined_call_operand.vmem [shape: f32[1,128], index: 2, kind: input, shape index: {}]
  %s3 = inlined_call_operand.vmem [shape: bf16[256,64], index: 3, kind: input, shape index: {}]
  %s4 = inlined_call_operand.vmem [shape: f32[256,64], index: 4, kind: input, shape index: {}]
  %s5 = inlined_call_operand.vmem [shape: f32[256,64], index: 5, kind: input, shape index: {}]
  %s6 = inlined_call_operand.vmem [shape: bf16[256,192], index: 6, kind: output, shape index: {}]
  %s7 = sld [smem:[#allocation0]]
  $region57: #{deepseek_v2_attention_forward.5} parent=0
    _
  %s9 = ssub.s32 1, %s7
  %s10 = scalar_select 0, %s9, %s7
  loop: start=0, step=1, limit=4
  $region2: #{deepseek_v2_attention_forward.5} parent=0 // loop_pre_header
    _
  $region3: #{deepseek_v2_attention_forward.5} parent=0 // loop_header
    %s12 = sphi 0, %s16
    %p13 = scmp.ge.s32.totalorder %s12, 4
    %s22 = sphi 0, %s24
    %s25 = sphi 0, %s22
    %s26 = sphi 0, %s25
    %s42 = sphi 0, %s26
    %s46 = sphi 0, %s46
    %s48 = sphi 0, %s46
    %s49 = sphi 0, %s48
    %s63 = sphi 0, %s49
    %s67 = sphi 0, %s67
    %s69 = sphi 0, %s67
    %s70 = sphi 0, %s69
    %s84 = sphi 0, %s70
    %s88 = sphi 0, %s88
    %s90 = sphi 0, %s88
    %s91 = sphi 0, %s90
    %s105 = sphi 0, %s91
    %s111 = sphi 0, %s113
    %s114 = sphi 0, %s111
    %s115 = sphi 0, %s114
    %s131 = sphi 0, %s115
    %s137 = sphi 0, %s139
    %s140 = sphi 0, %s137
    %s141 = sphi 0, %s140
    %s157 = sphi 0, %s141
    %s163 = sphi 0, %s165
    %s166 = sphi 0, %s163
    %s167 = sphi 0, %s166
    %s183 = sphi 0, %s167
  $region4: #{deepseek_v2_attention_forward.5} parent=0 // loop_header_branch
    %15 = sbr.rel (%p13) target = $region8
  $region5: #{deepseek_v2_attention_forward.5} parent=0 // loop_body
    %s17 = ssub.s32 %s12, 1
    %s18 = ssub.s32 %s12, 2
    %s19 = sadd.s32 %s12, 1
    %s20 = ssub.s32 %s12, %s19
    %p21 = scmp.eq.s32.totalorder %s20, 0
    %s23 = sadd.s32 %s22, 1
    %s24 = scalar_select %p21, %s22, %s23
    %p27 = pneg %p21
    %p28 = scmp.eq.s32.totalorder %s12, 1
    %p29 = por %p27, %p28
    %p30 = scmp.ne.s32.totalorder %s22, %s25
    %p31 = scmp.eq.s32.totalorder %s12, 0
    %p32 = por %p30, %p31
    %p33 = scmp.ne.s32.totalorder %s22, %s25
    %p34 = scmp.eq.s32.totalorder %s17, 1
    %p35 = por %p33, %p34
    %p36 = scmp.ne.s32.totalorder %s25, %s26
    %p37 = scmp.eq.s32.totalorder %s17, 0
    %p38 = por %p36, %p37
    %p39 = scmp.ne.s32.totalorder %s25, %s26
    %p40 = scmp.eq.s32.totalorder %s18, 1
    %p41 = por %p39, %p40
    %p43 = scmp.ne.s32.totalorder %s26, %s42
    %p44 = scmp.eq.s32.totalorder %s18, 0
    %p45 = por %p43, %p44
    %s47 = sadd.s32 %s46, 1
    %p50 = scmp.eq.s32.totalorder %s12, 1
    %p51 = scmp.ne.s32.totalorder %s46, %s48
    %p52 = scmp.eq.s32.totalorder %s12, 0
    %p53 = por %p51, %p52
    %p54 = scmp.ne.s32.totalorder %s46, %s48
    %p55 = scmp.eq.s32.totalorder %s17, 1
    %p56 = por %p54, %p55
    %p57 = scmp.ne.s32.totalorder %s48, %s49
    %p58 = scmp.eq.s32.totalorder %s17, 0
    %p59 = por %p57, %p58
    %p60 = scmp.ne.s32.totalorder %s48, %s49
    %p61 = scmp.eq.s32.totalorder %s18, 1
    %p62 = por %p60, %p61
    %p64 = scmp.ne.s32.totalorder %s49, %s63
    %p65 = scmp.eq.s32.totalorder %s18, 0
    %p66 = por %p64, %p65
    %s68 = sadd.s32 %s67, 1
    %p71 = scmp.eq.s32.totalorder %s12, 1
    %p72 = scmp.ne.s32.totalorder %s67, %s69
    %p73 = scmp.eq.s32.totalorder %s12, 0
    %p74 = por %p72, %p73
    %p75 = scmp.ne.s32.totalorder %s67, %s69
    %p76 = scmp.eq.s32.totalorder %s17, 1
    %p77 = por %p75, %p76
    %p78 = scmp.ne.s32.totalorder %s69, %s70
    %p79 = scmp.eq.s32.totalorder %s17, 0
    %p80 = por %p78, %p79
    %p81 = scmp.ne.s32.totalorder %s69, %s70
    %p82 = scmp.eq.s32.totalorder %s18, 1
    %p83 = por %p81, %p82
    %p85 = scmp.ne.s32.totalorder %s70, %s84
    %p86 = scmp.eq.s32.totalorder %s18, 0
    %p87 = por %p85, %p86
    %s89 = sadd.s32 %s88, 1
    %p92 = scmp.eq.s32.totalorder %s12, 1
    %p93 = scmp.ne.s32.totalorder %s88, %s90
    %p94 = scmp.eq.s32.totalorder %s12, 0
    %p95 = por %p93, %p94
    %p96 = scmp.ne.s32.totalorder %s88, %s90
    %p97 = scmp.eq.s32.totalorder %s17, 1
    %p98 = por %p96, %p97
    %p99 = scmp.ne.s32.totalorder %s90, %s91
    %p100 = scmp.eq.s32.totalorder %s17, 0
    %p101 = por %p99, %p100
    %p102 = scmp.ne.s32.totalorder %s90, %s91
    %p103 = scmp.eq.s32.totalorder %s18, 1
    %p104 = por %p102, %p103
    %p106 = scmp.ne.s32.totalorder %s91, %s105
    %p107 = scmp.eq.s32.totalorder %s18, 0
    %p108 = por %p106, %p107
    %s109 = ssub.s32 %s12, %s19
    %p110 = scmp.eq.s32.totalorder %s109, 0
    %s112 = sadd.s32 %s111, 1
    %s113 = scalar_select %p110, %s111, %s112
    %p116 = pneg %p110
    %p117 = scmp.eq.s32.totalorder %s12, 1
    %p118 = por %p116, %p117
    %p119 = scmp.ne.s32.totalorder %s111, %s114
    %p120 = scmp.eq.s32.totalorder %s12, 0
    %p121 = por %p119, %p120
    %p122 = scmp.ne.s32.totalorder %s111, %s114
    %p123 = scmp.eq.s32.totalorder %s17, 1
    %p124 = por %p122, %p123
    %p125 = scmp.ne.s32.totalorder %s114, %s115
    %p126 = scmp.eq.s32.totalorder %s17, 0
    %p127 = por %p125, %p126
    %p128 = scmp.ne.s32.totalorder %s114, %s115
    %p129 = scmp.eq.s32.totalorder %s18, 1
    %p130 = por %p128, %p129
    %p132 = scmp.ne.s32.totalorder %s115, %s131
    %p133 = scmp.eq.s32.totalorder %s18, 0
    %p134 = por %p132, %p133
    %s135 = ssub.s32 %s12, %s19
    %p136 = scmp.eq.s32.totalorder %s135, 0
    %s138 = sadd.s32 %s137, 1
    %s139 = scalar_select %p136, %s137, %s138
    %p142 = pneg %p136
    %p143 = scmp.eq.s32.totalorder %s12, 1
    %p144 = por %p142, %p143
    %p145 = scmp.ne.s32.totalorder %s137, %s140
    %p146 = scmp.eq.s32.totalorder %s12, 0
    %p147 = por %p145, %p146
    %p148 = scmp.ne.s32.totalorder %s137, %s140
    %p149 = scmp.eq.s32.totalorder %s17, 1
    %p150 = por %p148, %p149
    %p151 = scmp.ne.s32.totalorder %s140, %s141
    %p152 = scmp.eq.s32.totalorder %s17, 0
    %p153 = por %p151, %p152
    %p154 = scmp.ne.s32.totalorder %s140, %s141
    %p155 = scmp.eq.s32.totalorder %s18, 1
    %p156 = por %p154, %p155
    %p158 = scmp.ne.s32.totalorder %s141, %s157
    %p159 = scmp.eq.s32.totalorder %s18, 0
    %p160 = por %p158, %p159
    %s161 = ssub.s32 %s12, %s19
    %p162 = scmp.eq.s32.totalorder %s161, 0
    %s164 = sadd.s32 %s163, 1
    %s165 = scalar_select %p162, %s163, %s164
    %p168 = pneg %p162
    %p169 = scmp.eq.s32.totalorder %s12, 1
    %p170 = por %p168, %p169
    %p171 = scmp.ne.s32.totalorder %s163, %s166
    %p172 = scmp.eq.s32.totalorder %s12, 0
    %p173 = por %p171, %p172
    %p174 = scmp.ne.s32.totalorder %s163, %s166
    %p175 = scmp.eq.s32.totalorder %s17, 1
    %p176 = por %p174, %p175
    %p177 = scmp.ne.s32.totalorder %s166, %s167
    %p178 = scmp.eq.s32.totalorder %s17, 0
    %p179 = por %p177, %p178
    %p180 = scmp.ne.s32.totalorder %s166, %s167
    %p181 = scmp.eq.s32.totalorder %s18, 1
    %p182 = por %p180, %p181
    %p184 = scmp.ne.s32.totalorder %s167, %s183
    %p185 = scmp.eq.s32.totalorder %s18, 0
    %p186 = por %p184, %p185
    %p187 = scmp.le.s32.totalorder 1, %s12
    %p188 = scmp.lt.s32.totalorder %s12, 3
    %p189 = pnand %p187, %p188
    %p190 = pneg %p189
    // Predicated region
    $region9: #{deepseek_v2_attention_forward.5} parent=5 // pred_check
      _
    $region10: #{deepseek_v2_attention_forward.5} parent=5 // pred_check_branch
      %192 = sbr.rel (%p189) target = $region12
    $region11: #{deepseek_v2_attention_forward.5} parent=5 // pred_region
      %s193 = ssub.s32 %s12, 1
      // Predicated region
      $region13: #{deepseek_v2_attention_forward.5} parent=11 // pred_check
        %p194 = pneg %p59
      $region14: #{deepseek_v2_attention_forward.5} parent=11 // pred_check_branch
        %196 = sbr.rel (%p194) target = $region16
      $region15: #{deepseek_v2_attention_forward.5} parent=11 // pred_region
        _
      $region16: #{deepseek_v2_attention_forward.5} parent=11 // pred_fallthru
        _
      // Predicated region
      $region17: #{deepseek_v2_attention_forward.5} parent=11 // pred_check
        %p197 = pneg %p80
      $region18: #{deepseek_v2_attention_forward.5} parent=11 // pred_check_branch
        %199 = sbr.rel (%p197) target = $region20
      $region19: #{deepseek_v2_attention_forward.5} parent=11 // pred_region
        _
      $region20: #{deepseek_v2_attention_forward.5} parent=11 // pred_fallthru
        _
      // Predicated region
      $region21: #{deepseek_v2_attention_forward.5} parent=11 // pred_check
        %p200 = pneg %p101
      $region22: #{deepseek_v2_attention_forward.5} parent=11 // pred_check_branch
        %202 = sbr.rel (%p200) target = $region24
      $region23: #{deepseek_v2_attention_forward.5} parent=11 // pred_region
        _
      $region24: #{deepseek_v2_attention_forward.5} parent=11 // pred_fallthru
        _
    $region12: #{deepseek_v2_attention_forward.5} parent=5 // pred_fallthru
      _
    %p203 = scmp.lt.s32.totalorder %s12, 2
    // Predicated region
    $region25: #{deepseek_v2_attention_forward.5} parent=5 // pred_check
      %p204 = pneg %p203
    $region26: #{deepseek_v2_attention_forward.5} parent=5 // pred_check_branch
      %206 = sbr.rel (%p204) target = $region28
    $region27: #{deepseek_v2_attention_forward.5} parent=5 // pred_region
      // Predicated region
      $region29: #{deepseek_v2_attention_forward.5} parent=27 // pred_check
        %p207 = pneg %p32
      $region30: #{deepseek_v2_attention_forward.5} parent=27 // pred_check_branch
        %209 = sbr.rel (%p207) target = $region32
      $region31: #{deepseek_v2_attention_forward.5} parent=27 // pred_region
        %s210 = smul.u32 16, %s12
        %p211 = scmp.lt.s32.totalorder %s210, 31
        %s212 = scalar_select %p211, %s210, 31
        %s213 = smul.addr %s212, 2
        %s214 = smul.addr %s213, 4
        %s215 = scalar_lea.vmem %s0, %s214
        %s216 = smul.u32 16, %s12
      $region32: #{deepseek_v2_attention_forward.5} parent=27 // pred_fallthru
        _
      // Predicated region
      $region33: #{deepseek_v2_attention_forward.5} parent=27 // pred_check
        %p217 = pneg %p121
      $region34: #{deepseek_v2_attention_forward.5} parent=27 // pred_check_branch
        %219 = sbr.rel (%p217) target = $region36
      $region35: #{deepseek_v2_attention_forward.5} parent=27 // pred_region
        %s220 = smul.u32 16, %s12
        %p221 = scmp.lt.s32.totalorder %s220, 31
        %s222 = scalar_select %p221, %s220, 31
        %s223 = smul.addr %s222, 8
        %s224 = scalar_lea.vmem %s4, %s223
        %s225 = smul.u32 16, %s12
      $region36: #{deepseek_v2_attention_forward.5} parent=27 // pred_fallthru
        _
      // Predicated region
      $region37: #{deepseek_v2_attention_forward.5} parent=27 // pred_check
        %p226 = pneg %p147
      $region38: #{deepseek_v2_attention_forward.5} parent=27 // pred_check_branch
        %228 = sbr.rel (%p226) target = $region40
      $region39: #{deepseek_v2_attention_forward.5} parent=27 // pred_region
        %s229 = smul.u32 16, %s12
        %p230 = scmp.lt.s32.totalorder %s229, 31
        %s231 = scalar_select %p230, %s229, 31
        %s232 = smul.addr %s231, 8
        %s233 = scalar_lea.vmem %s5, %s232
        %s234 = smul.u32 16, %s12
      $region40: #{deepseek_v2_attention_forward.5} parent=27 // pred_fallthru
        _
    $region28: #{deepseek_v2_attention_forward.5} parent=5 // pred_fallthru
      _
    %p235 = scmp.le.s32.totalorder 1, %s12
    %p236 = scmp.lt.s32.totalorder %s12, 3
    %p237 = pnand %p235, %p236
    %p238 = pneg %p237
    // Predicated region
    $region41: #{deepseek_v2_attention_forward.5} parent=5 // pred_check
      _
    $region42: #{deepseek_v2_attention_forward.5} parent=5 // pred_check_branch
      %240 = sbr.rel (%p237) target = $region44
    $region43: #{deepseek_v2_attention_forward.5} parent=5 // pred_region
      %s241 = ssub.s32 %s12, 1
      %s242 = smul.u32 16, %s17
      %p243 = scmp.lt.s32.totalorder %s242, 31
      %s244 = scalar_select %p243, %s242, 31
      %s245 = smul.addr %s244, 2
      %s246 = smul.addr %s245, 4
      %s247 = scalar_lea.vmem %s0, %s246
      %p248 = pneg %p38
      %p249 = pneg %p35
      %p250 = pneg %p59
      %p251 = pneg %p56
      %p252 = pneg %p80
      %p253 = pneg %p77
      %p254 = pneg %p101
      %p255 = pneg %p98
      %s256 = smul.u32 16, %s17
      %p257 = scmp.lt.s32.totalorder %s256, 31
      %s258 = scalar_select %p257, %s256, 31
      %s259 = smul.addr %s258, 8
      %s260 = scalar_lea.vmem %s4, %s259
      %p261 = pneg %p127
      %p262 = pneg %p124
      %s263 = smul.u32 16, %s17
      %p264 = scmp.lt.s32.totalorder %s263, 31
      %s265 = scalar_select %p264, %s263, 31
      %s266 = smul.addr %s265, 8
      %s267 = scalar_lea.vmem %s5, %s266
      %p268 = pneg %p153
      %p269 = pneg %p150
      %p270 = pneg %p179
      %p271 = pneg %p176
      %s272 = smul.u32 16, %s17
      %p273 = scmp.lt.s32.totalorder %s272, 31
      %s274 = scalar_select %p273, %s272, 31
      %s275 = smul.addr %s274, 2
      %s276 = smul.addr %s275, 4
      %s277 = scalar_lea.vmem %s6, %s276
      %s278 = smul.u32 16, %s17
      %p279 = scmp.lt.s32.totalorder %s278, 31
      %s280 = scalar_select %p279, %s278, 31
      %s281 = smul.addr %s280, 2
      %s282 = smul.addr %s281, 4
      %s283 = scalar_lea.vmem %s0, %s282
      %s284 = smul.u32 16, %s17
      %s285 = smul.u32 16, %s17
      %p286 = scmp.lt.s32.totalorder %s285, 31
      %s287 = scalar_select %p286, %s285, 31
      %s288 = smul.addr %s287, 8
      %s289 = scalar_lea.vmem %s4, %s288
      %s290 = smul.u32 16, %s17
      %s291 = smul.u32 16, %s17
      %p292 = scmp.lt.s32.totalorder %s291, 31
      %s293 = scalar_select %p292, %s291, 31
      %s294 = smul.addr %s293, 8
      %s295 = scalar_lea.vmem %s5, %s294
      %s296 = smul.u32 16, %s17
      %s297 = smul.u32 16, %s17
      %p298 = scmp.lt.s32.totalorder %s297, 31
      %s299 = scalar_select %p298, %s297, 31
      %s300 = smul.addr %s299, 2
      %s301 = smul.addr %s300, 4
      %s302 = scalar_lea.vmem %s6, %s301
      %s303 = smul.u32 16, %s17
      %v305 = vld [vmem:[%s283] sm:$0xff]
      %v306 = vld [vmem:[%s283 + $0x8] sm:$0xff]
      %v307 = vld [vmem:[%s283 + $0x10] sm:$0xff]
      %v308 = vld [vmem:[%s283 + $0x18] sm:$0xff]
      %v309 = vld [vmem:[%s283 + $0x20] sm:$0xff]
      %v310 = vld [vmem:[%s283 + $0x28] sm:$0xff]
      %v311 = vld [vmem:[%s283 + $0x30] sm:$0xff]
      %v312 = vld [vmem:[%s283 + $0x38] sm:$0xff]
      %v313 = vld [vmem:[%s283 + $0x40] sm:$0xff]
      %v314 = vld [vmem:[%s283 + $0x48] sm:$0xff]
      %v315 = vld [vmem:[%s283 + $0x50] sm:$0xff]
      %v316 = vld [vmem:[%s283 + $0x58] sm:$0xff]
      %v317 = vld [vmem:[%s283 + $0x60] sm:$0xff]
      %v318 = vld [vmem:[%s283 + $0x68] sm:$0xff]
      %v319 = vld [vmem:[%s283 + $0x70] sm:$0xff]
      %v320 = vld [vmem:[%s283 + $0x78] sm:$0xff]
      %v321 = vld [vmem:[%s1] sm:$0xff]
      %v322 = vld [vmem:[%s1 + $0x8] sm:$0xff]
      %v323 = vld [vmem:[%s1 + $0x10] sm:$0xff]
      %v324 = vld [vmem:[%s1 + $0x18] sm:$0xff]
      %v325 = vld [vmem:[%s1 + $0x20] sm:$0xff]
      %v326 = vld [vmem:[%s1 + $0x28] sm:$0xff]
      %v327 = vld [vmem:[%s1 + $0x30] sm:$0xff]
      %v328 = vld [vmem:[%s1 + $0x38] sm:$0xff]
      %v329 = vld [vmem:[%s1 + $0x40] sm:$0xff]
      %v330 = vld [vmem:[%s1 + $0x48] sm:$0xff]
      %v331 = vld [vmem:[%s1 + $0x50] sm:$0xff]
      %v332 = vld [vmem:[%s1 + $0x58] sm:$0xff]
      %v333 = vld [vmem:[%s1 + $0x60] sm:$0xff]
      %v334 = vld [vmem:[%s1 + $0x68] sm:$0xff]
      %v335 = vld [vmem:[%s1 + $0x70] sm:$0xff]
      %v336 = vld [vmem:[%s1 + $0x78] sm:$0xff]
      %v337 = vld [vmem:[%s1 + $0x80] sm:$0xff]
      %v338 = vld [vmem:[%s1 + $0x88] sm:$0xff]
      %v339 = vld [vmem:[%s1 + $0x90] sm:$0xff]
      %v340 = vld [vmem:[%s1 + $0x98] sm:$0xff]
      %v341 = vld [vmem:[%s1 + $0xa0] sm:$0xff]
      %v342 = vld [vmem:[%s1 + $0xa8] sm:$0xff]
      %v343 = vld [vmem:[%s1 + $0xb0] sm:$0xff]
      %v344 = vld [vmem:[%s1 + $0xb8] sm:$0xff]
      %v345 = vld [vmem:[%s1 + $0xc0] sm:$0xff]
      %v346 = vld [vmem:[%s1 + $0xc8] sm:$0xff]
      %v347 = vld [vmem:[%s1 + $0xd0] sm:$0xff]
      %v348 = vld [vmem:[%s1 + $0xd8] sm:$0xff]
      %v349 = vld [vmem:[%s1 + $0xe0] sm:$0xff]
      %v350 = vld [vmem:[%s1 + $0xe8] sm:$0xff]
      %v351 = vld [vmem:[%s1 + $0xf0] sm:$0xff]
      %v352 = vld [vmem:[%s1 + $0xf8] sm:$0xff]
      %v369 = vunpack.c.l.b16 %v305
      %v370 = vunpack.c.h.b16 %v305
      %v371 = vunpack.c.l.b16 %v306
      %v372 = vunpack.c.h.b16 %v306
      %v373 = vunpack.c.l.b16 %v307
      %v374 = vunpack.c.h.b16 %v307
      %v375 = vunpack.c.l.b16 %v308
      %v376 = vunpack.c.h.b16 %v308
      %v377 = vunpack.c.l.b16 %v309
      %v378 = vunpack.c.h.b16 %v309
      %v379 = vunpack.c.l.b16 %v310
      %v380 = vunpack.c.h.b16 %v310
      %v381 = vunpack.c.l.b16 %v311
      %v382 = vunpack.c.h.b16 %v311
      %v383 = vunpack.c.l.b16 %v312
      %v384 = vunpack.c.h.b16 %v312
      %v385 = vunpack.c.l.b16 %v313
      %v386 = vunpack.c.h.b16 %v313
      %v387 = vunpack.c.l.b16 %v314
      %v388 = vunpack.c.h.b16 %v314
      %v389 = vunpack.c.l.b16 %v315
      %v390 = vunpack.c.h.b16 %v315
      %v391 = vunpack.c.l.b16 %v316
      %v392 = vunpack.c.h.b16 %v316
      %v393 = vunpack.c.l.b16 %v317
      %v394 = vunpack.c.h.b16 %v317
      %v395 = vunpack.c.l.b16 %v318
      %v396 = vunpack.c.h.b16 %v318
      %v397 = vunpack.c.l.b16 %v319
      %v398 = vunpack.c.h.b16 %v319
      %v399 = vunpack.c.l.b16 %v320
      %v400 = vunpack.c.h.b16 %v320
      %v401 = vpack.c.b16 %v371, %v369
      %v402 = vpack.c.b16 %v372, %v370
      %v403 = vpack.c.b16 %v375, %v373
      %v404 = vpack.c.b16 %v376, %v374
      %v405 = vpack.c.b16 %v379, %v377
      %v406 = vpack.c.b16 %v380, %v378
      %v407 = vpack.c.b16 %v383, %v381
      %v408 = vpack.c.b16 %v384, %v382
      %v409 = vpack.c.b16 %v387, %v385
      %v410 = vpack.c.b16 %v388, %v386
      %v411 = vpack.c.b16 %v391, %v389
      %v412 = vpack.c.b16 %v392, %v390
      %v413 = vpack.c.b16 %v395, %v393
      %v414 = vpack.c.b16 %v396, %v394
      %v415 = vpack.c.b16 %v399, %v397
      %v416 = vpack.c.b16 %v400, %v398
      %v465 = vunpack.c.l.b16 %v321
      %v466 = vunpack.c.h.b16 %v321
      %v467 = vunpack.c.l.b16 %v322
      %v468 = vunpack.c.h.b16 %v322
      %v469 = vunpack.c.l.b16 %v323
      %v470 = vunpack.c.h.b16 %v323
      %v471 = vunpack.c.l.b16 %v324
      %v472 = vunpack.c.h.b16 %v324
      %v473 = vunpack.c.l.b16 %v325
      %v474 = vunpack.c.h.b16 %v325
      %v475 = vunpack.c.l.b16 %v326
      %v476 = vunpack.c.h.b16 %v326
      %v477 = vunpack.c.l.b16 %v327
      %v478 = vunpack.c.h.b16 %v327
      %v479 = vunpack.c.l.b16 %v328
      %v480 = vunpack.c.h.b16 %v328
      %v481 = vunpack.c.l.b16 %v329
      %v482 = vunpack.c.h.b16 %v329
      %v483 = vunpack.c.l.b16 %v330
      %v484 = vunpack.c.h.b16 %v330
      %v485 = vunpack.c.l.b16 %v331
      %v486 = vunpack.c.h.b16 %v331
      %v487 = vunpack.c.l.b16 %v332
      %v488 = vunpack.c.h.b16 %v332
      %v489 = vunpack.c.l.b16 %v333
      %v490 = vunpack.c.h.b16 %v333
      %v491 = vunpack.c.l.b16 %v334
      %v492 = vunpack.c.h.b16 %v334
      %v493 = vunpack.c.l.b16 %v335
      %v494 = vunpack.c.h.b16 %v335
      %v495 = vunpack.c.l.b16 %v336
      %v496 = vunpack.c.h.b16 %v336
      %v497 = vunpack.c.l.b16 %v337
      %v498 = vunpack.c.h.b16 %v337
      %v499 = vunpack.c.l.b16 %v338
      %v500 = vunpack.c.h.b16 %v338
      %v501 = vunpack.c.l.b16 %v339
      %v502 = vunpack.c.h.b16 %v339
      %v503 = vunpack.c.l.b16 %v340
      %v504 = vunpack.c.h.b16 %v340
      %v505 = vunpack.c.l.b16 %v341
      %v506 = vunpack.c.h.b16 %v341
      %v507 = vunpack.c.l.b16 %v342
      %v508 = vunpack.c.h.b16 %v342
      %v509 = vunpack.c.l.b16 %v343
      %v510 = vunpack.c.h.b16 %v343
      %v511 = vunpack.c.l.b16 %v344
      %v512 = vunpack.c.h.b16 %v344
      %v513 = vunpack.c.l.b16 %v345
      %v514 = vunpack.c.h.b16 %v345
      %v515 = vunpack.c.l.b16 %v346
      %v516 = vunpack.c.h.b16 %v346
      %v517 = vunpack.c.l.b16 %v347
      %v518 = vunpack.c.h.b16 %v347
      %v519 = vunpack.c.l.b16 %v348
      %v520 = vunpack.c.h.b16 %v348
      %v521 = vunpack.c.l.b16 %v349
      %v522 = vunpack.c.h.b16 %v349
      %v523 = vunpack.c.l.b16 %v350
      %v524 = vunpack.c.h.b16 %v350
      %v525 = vunpack.c.l.b16 %v351
      %v526 = vunpack.c.h.b16 %v351
      %v527 = vunpack.c.l.b16 %v352
      %v528 = vunpack.c.h.b16 %v352
      %v529 = vpack.c.b16 %v467, %v465
      %v530 = vpack.c.b16 %v468, %v466
      %v531 = vpack.c.b16 %v471, %v469
      %v532 = vpack.c.b16 %v472, %v470
      %v533 = vpack.c.b16 %v475, %v473
      %v534 = vpack.c.b16 %v476, %v474
      %v535 = vpack.c.b16 %v479, %v477
      %v536 = vpack.c.b16 %v480, %v478
      %v537 = vpack.c.b16 %v483, %v481
      %v538 = vpack.c.b16 %v484, %v482
      %v539 = vpack.c.b16 %v487, %v485
      %v540 = vpack.c.b16 %v488, %v486
      %v541 = vpack.c.b16 %v491, %v489
      %v542 = vpack.c.b16 %v492, %v490
      %v543 = vpack.c.b16 %v495, %v493
      %v544 = vpack.c.b16 %v496, %v494
      %v545 = vpack.c.b16 %v499, %v497
      %v546 = vpack.c.b16 %v500, %v498
      %v547 = vpack.c.b16 %v503, %v501
      %v548 = vpack.c.b16 %v504, %v502
      %v549 = vpack.c.b16 %v507, %v505
      %v550 = vpack.c.b16 %v508, %v506
      %v551 = vpack.c.b16 %v511, %v509
      %v552 = vpack.c.b16 %v512, %v510
      %v553 = vpack.c.b16 %v515, %v513
      %v554 = vpack.c.b16 %v516, %v514
      %v555 = vpack.c.b16 %v519, %v517
      %v556 = vpack.c.b16 %v520, %v518
      %v557 = vpack.c.b16 %v523, %v521
      %v558 = vpack.c.b16 %v524, %v522
      %v559 = vpack.c.b16 %v527, %v525
      %v560 = vpack.c.b16 %v528, %v526
      %593 = vmatprep.subr.bf16.mxu0 %v544
      %594 = vmatpush1.bf16.msra.mxu0 %v543
      %595 = vmatprep.subr.bf16.mxu0 %v542
      %596 = vmatpush1.bf16.msra.mxu0 %v541
      %597 = vmatprep.subr.bf16.mxu0 %v540
      %598 = vmatpush1.bf16.msra.mxu0 %v539
      %599 = vmatprep.subr.bf16.mxu0 %v538
      %600 = vmatpush1.bf16.msra.mxu0 %v537
      %601 = vmatprep.subr.bf16.mxu0 %v536
      %602 = vmatpush1.bf16.msra.mxu0 %v535
      %603 = vmatprep.subr.bf16.mxu0 %v534
      %604 = vmatpush1.bf16.msra.mxu0 %v533
      %605 = vmatprep.subr.bf16.mxu0 %v532
      %606 = vmatpush1.bf16.msra.mxu0 %v531
      %607 = vmatprep.subr.bf16.mxu0 %v530
      %608 = vmatpush1.bf16.msra.mxu0 %v529
      %609 = vmatprep.subr.bf16.mxu0 %v560
      %610 = vmatpush2.bf16.msra.mxu0 %v559
      %611 = vmatprep.subr.bf16.mxu0 %v558
      %612 = vmatpush2.bf16.msra.mxu0 %v557
      %613 = vmatprep.subr.bf16.mxu0 %v556
      %614 = vmatpush2.bf16.msra.mxu0 %v555
      %615 = vmatprep.subr.bf16.mxu0 %v554
      %616 = vmatpush2.bf16.msra.mxu0 %v553
      %617 = vmatprep.subr.bf16.mxu0 %v552
      %618 = vmatpush2.bf16.msra.mxu0 %v551
      %619 = vmatprep.subr.bf16.mxu0 %v550
      %620 = vmatpush2.bf16.msra.mxu0 %v549
      %621 = vmatprep.subr.bf16.mxu0 %v548
      %622 = vmatpush2.bf16.msra.mxu0 %v547
      %623 = vmatprep.subr.bf16.mxu0 %v546
      %624 = vmatpush2.bf16.msra.mxu0 %v545
      %625 = vmatprep.mubr.bf16.mxu0 %v402
      %626 = vmatmul.mubr.bf16.gmra.mxu0 %v401
      %v627 = vpop.f32.mrf.mxu0
      %v628 = vadd.f32 0.0, %v627
      %v629 = vpop.f32.mrf.mxu0
      %v630 = vadd.f32 0.0, %v629
      %v631 = vpop.f32.mrf.mxu0
      %v632 = vadd.f32 0.0, %v631
      %v633 = vpop.f32.mrf.mxu0
      %v634 = vadd.f32 0.0, %v633
      %635 = vmatprep.mubr.bf16.mxu0 %v404
      %636 = vmatmul.mubr.bf16.gmra.mxu0 %v403
      %v637 = vpop.f32.mrf.mxu0
      %v638 = vadd.f32 0.0, %v637
      %v639 = vpop.f32.mrf.mxu0
      %v640 = vadd.f32 0.0, %v639
      %v641 = vpop.f32.mrf.mxu0
      %v642 = vadd.f32 0.0, %v641
      %v643 = vpop.f32.mrf.mxu0
      %v644 = vadd.f32 0.0, %v643
      %645 = vmatprep.mubr.bf16.mxu0 %v406
      %646 = vmatmul.mubr.bf16.gmra.mxu0 %v405
      %v647 = vpop.f32.mrf.mxu0
      %v648 = vadd.f32 0.0, %v647
      %v649 = vpop.f32.mrf.mxu0
      %v650 = vadd.f32 0.0, %v649
      %v651 = vpop.f32.mrf.mxu0
      %v652 = vadd.f32 0.0, %v651
      %v653 = vpop.f32.mrf.mxu0
      %v654 = vadd.f32 0.0, %v653
      %655 = vmatprep.mubr.bf16.mxu0 %v408
      %656 = vmatmul.mubr.bf16.gmra.mxu0 %v407
      %v657 = vpop.f32.mrf.mxu0
      %v658 = vadd.f32 0.0, %v657
      %v659 = vpop.f32.mrf.mxu0
      %v660 = vadd.f32 0.0, %v659
      %v661 = vpop.f32.mrf.mxu0
      %v662 = vadd.f32 0.0, %v661
      %v663 = vpop.f32.mrf.mxu0
      %v664 = vadd.f32 0.0, %v663
      %665 = vmatprep.mubr.bf16.mxu0 %v410
      %666 = vmatmul.mubr.bf16.gmra.mxu0 %v409
      %v667 = vpop.f32.mrf.mxu0
      %v668 = vadd.f32 0.0, %v667
      %v669 = vpop.f32.mrf.mxu0
      %v670 = vadd.f32 0.0, %v669
      %v671 = vpop.f32.mrf.mxu0
      %v672 = vadd.f32 0.0, %v671
      %v673 = vpop.f32.mrf.mxu0
      %v674 = vadd.f32 0.0, %v673
      %675 = vmatprep.mubr.bf16.mxu0 %v412
      %676 = vmatmul.mubr.bf16.gmra.mxu0 %v411
      %v677 = vpop.f32.mrf.mxu0
      %v678 = vadd.f32 0.0, %v677
      %v679 = vpop.f32.mrf.mxu0
      %v680 = vadd.f32 0.0, %v679
      %v681 = vpop.f32.mrf.mxu0
      %v682 = vadd.f32 0.0, %v681
      %v683 = vpop.f32.mrf.mxu0
      %v684 = vadd.f32 0.0, %v683
      %685 = vmatprep.mubr.bf16.mxu0 %v414
      %686 = vmatmul.mubr.bf16.gmra.mxu0 %v413
      %v687 = vpop.f32.mrf.mxu0
      %v688 = vadd.f32 0.0, %v687
      %v689 = vpop.f32.mrf.mxu0
      %v690 = vadd.f32 0.0, %v689
      %v691 = vpop.f32.mrf.mxu0
      %v692 = vadd.f32 0.0, %v691
      %v693 = vpop.f32.mrf.mxu0
      %v694 = vadd.f32 0.0, %v693
      %695 = vmatprep.mubr.bf16.mxu0 %v416
      %696 = vmatmul.mubr.bf16.gmra.mxu0 %v415
      %v697 = vpop.f32.mrf.mxu0
      %v698 = vadd.f32 0.0, %v697
      %v699 = vpop.f32.mrf.mxu0
      %v700 = vadd.f32 0.0, %v699
      %v701 = vpop.f32.mrf.mxu0
      %v702 = vadd.f32 0.0, %v701
      %v703 = vpop.f32.mrf.mxu0
      %v704 = vadd.f32 0.0, %v703
      %705 = vdwg.mxu0
      %v706 = vmul.f32 %v628, %v628
      %v707 = vmul.f32 %v632, %v632
      %v708 = vmul.f32 %v638, %v638
      %v709 = vmul.f32 %v642, %v642
      %v710 = vmul.f32 %v648, %v648
      %v711 = vmul.f32 %v652, %v652
      %v712 = vmul.f32 %v658, %v658
      %v713 = vmul.f32 %v662, %v662
      %v714 = vmul.f32 %v668, %v668
      %v715 = vmul.f32 %v672, %v672
      %v716 = vmul.f32 %v678, %v678
      %v717 = vmul.f32 %v682, %v682
      %v718 = vmul.f32 %v688, %v688
      %v719 = vmul.f32 %v692, %v692
      %v720 = vmul.f32 %v698, %v698
      %v721 = vmul.f32 %v702, %v702
      %722 = vadd.xlane.f32.xlu0 %v706
      %v723 = vpop.xlane.xlu0 %722
      %724 = vadd.xlane.f32.xlu0 %v707
      %v725 = vpop.xlane.xlu0 %724
      %726 = vadd.xlane.f32.xlu0 %v708
      %v727 = vpop.xlane.xlu0 %726
      %728 = vadd.xlane.f32.xlu0 %v709
      %v729 = vpop.xlane.xlu0 %728
      %730 = vadd.xlane.f32.xlu0 %v710
      %v731 = vpop.xlane.xlu0 %730
      %732 = vadd.xlane.f32.xlu0 %v711
      %v733 = vpop.xlane.xlu0 %732
      %734 = vadd.xlane.f32.xlu0 %v712
      %v735 = vpop.xlane.xlu0 %734
      %736 = vadd.xlane.f32.xlu0 %v713
      %v737 = vpop.xlane.xlu0 %736
      %738 = vadd.xlane.f32.xlu0 %v714
      %v739 = vpop.xlane.xlu0 %738
      %740 = vadd.xlane.f32.xlu0 %v715
      %v741 = vpop.xlane.xlu0 %740
      %742 = vadd.xlane.f32.xlu0 %v716
      %v743 = vpop.xlane.xlu0 %742
      %744 = vadd.xlane.f32.xlu0 %v717
      %v745 = vpop.xlane.xlu0 %744
      %746 = vadd.xlane.f32.xlu0 %v718
      %v747 = vpop.xlane.xlu0 %746
      %748 = vadd.xlane.f32.xlu0 %v719
      %v749 = vpop.xlane.xlu0 %748
      %750 = vadd.xlane.f32.xlu0 %v720
      %v751 = vpop.xlane.xlu0 %750
      %752 = vadd.xlane.f32.xlu0 %v721
      %v753 = vpop.xlane.xlu0 %752
      %v754 = vrcp.pop 128.0
      %v755 = vmul.f32 %v723, %v754
      %v756 = vmul.f32 %v725, %v754
      %v757 = vmul.f32 %v727, %v754
      %v758 = vmul.f32 %v729, %v754
      %v759 = vmul.f32 %v731, %v754
      %v760 = vmul.f32 %v733, %v754
      %v761 = vmul.f32 %v735, %v754
      %v762 = vmul.f32 %v737, %v754
      %v763 = vmul.f32 %v739, %v754
      %v764 = vmul.f32 %v741, %v754
      %v765 = vmul.f32 %v743, %v754
      %v766 = vmul.f32 %v745, %v754
      %v767 = vmul.f32 %v747, %v754
      %v768 = vmul.f32 %v749, %v754
      %v769 = vmul.f32 %v751, %v754
      %v770 = vmul.f32 %v753, %v754
      %v771 = vadd.f32 %v755, 1e-06
      %v772 = vadd.f32 %v756, 1e-06
      %v773 = vadd.f32 %v757, 1e-06
      %v774 = vadd.f32 %v758, 1e-06
      %v775 = vadd.f32 %v759, 1e-06
      %v776 = vadd.f32 %v760, 1e-06
      %v777 = vadd.f32 %v761, 1e-06
      %v778 = vadd.f32 %v762, 1e-06
      %v779 = vadd.f32 %v763, 1e-06
      %v780 = vadd.f32 %v764, 1e-06
      %v781 = vadd.f32 %v765, 1e-06
      %v782 = vadd.f32 %v766, 1e-06
      %v783 = vadd.f32 %v767, 1e-06
      %v784 = vadd.f32 %v768, 1e-06
      %v785 = vadd.f32 %v769, 1e-06
      %v786 = vadd.f32 %v770, 1e-06
      %v787 = vrsqrt.pop %v771
      %v788 = vrsqrt.pop %v772
      %v789 = vrsqrt.pop %v773
      %v790 = vrsqrt.pop %v774
      %v791 = vrsqrt.pop %v775
      %v792 = vrsqrt.pop %v776
      %v793 = vrsqrt.pop %v777
      %v794 = vrsqrt.pop %v778
      %v795 = vrsqrt.pop %v779
      %v796 = vrsqrt.pop %v780
      %v797 = vrsqrt.pop %v781
      %v798 = vrsqrt.pop %v782
      %v799 = vrsqrt.pop %v783
      %v800 = vrsqrt.pop %v784
      %v801 = vrsqrt.pop %v785
      %v802 = vrsqrt.pop %v786
      %v803 = vmul.f32 %v628, %v787
      %v804 = vmul.f32 %v632, %v788
      %v805 = vmul.f32 %v638, %v789
      %v806 = vmul.f32 %v642, %v790
      %v807 = vmul.f32 %v648, %v791
      %v808 = vmul.f32 %v652, %v792
      %v809 = vmul.f32 %v658, %v793
      %v810 = vmul.f32 %v662, %v794
      %v811 = vmul.f32 %v668, %v795
      %v812 = vmul.f32 %v672, %v796
      %v813 = vmul.f32 %v678, %v797
      %v814 = vmul.f32 %v682, %v798
      %v815 = vmul.f32 %v688, %v799
      %v816 = vmul.f32 %v692, %v800
      %v817 = vmul.f32 %v698, %v801
      %v818 = vmul.f32 %v702, %v802
      %v819 = vld [vmem:[%s2] sm:$0x1]
      %v821 = vlaneseq
      %v822 = vshrl.u32 %v821, 7
      %v823 = vsub.s32 0, %v822
      %v824 = vrot.slane %v819, %v823
      %v826 = vmul.f32 %v803, %v824
      %v827 = vmul.f32 %v804, %v824
      %v828 = vmul.f32 %v805, %v824
      %v829 = vmul.f32 %v806, %v824
      %v830 = vmul.f32 %v807, %v824
      %v831 = vmul.f32 %v808, %v824
      %v832 = vmul.f32 %v809, %v824
      %v833 = vmul.f32 %v810, %v824
      %v834 = vmul.f32 %v811, %v824
      %v835 = vmul.f32 %v812, %v824
      %v836 = vmul.f32 %v813, %v824
      %v837 = vmul.f32 %v814, %v824
      %v838 = vmul.f32 %v815, %v824
      %v839 = vmul.f32 %v816, %v824
      %v840 = vmul.f32 %v817, %v824
      %v841 = vmul.f32 %v818, %v824
      %v842 = vld [vmem:[%s3] sm:$0xf]
      %v843 = vld [vmem:[%s3 + $0x4] sm:$0xf]
      %v844 = vld [vmem:[%s3 + $0x8] sm:$0xf]
      %v845 = vld [vmem:[%s3 + $0xc] sm:$0xf]
      %v846 = vld [vmem:[%s3 + $0x10] sm:$0xf]
      %v847 = vld [vmem:[%s3 + $0x14] sm:$0xf]
      %v848 = vld [vmem:[%s3 + $0x18] sm:$0xf]
      %v849 = vld [vmem:[%s3 + $0x1c] sm:$0xf]
      %v850 = vld [vmem:[%s3 + $0x20] sm:$0xf]
      %v851 = vld [vmem:[%s3 + $0x24] sm:$0xf]
      %v852 = vld [vmem:[%s3 + $0x28] sm:$0xf]
      %v853 = vld [vmem:[%s3 + $0x2c] sm:$0xf]
      %v854 = vld [vmem:[%s3 + $0x30] sm:$0xf]
      %v855 = vld [vmem:[%s3 + $0x34] sm:$0xf]
      %v856 = vld [vmem:[%s3 + $0x38] sm:$0xf]
      %v857 = vld [vmem:[%s3 + $0x3c] sm:$0xf]
      %v858 = vld [vmem:[%s3 + $0x40] sm:$0xf]
      %v859 = vld [vmem:[%s3 + $0x44] sm:$0xf]
      %v860 = vld [vmem:[%s3 + $0x48] sm:$0xf]
      %v861 = vld [vmem:[%s3 + $0x4c] sm:$0xf]
      %v862 = vld [vmem:[%s3 + $0x50] sm:$0xf]
      %v863 = vld [vmem:[%s3 + $0x54] sm:$0xf]
      %v864 = vld [vmem:[%s3 + $0x58] sm:$0xf]
      %v865 = vld [vmem:[%s3 + $0x5c] sm:$0xf]
      %v866 = vld [vmem:[%s3 + $0x60] sm:$0xf]
      %v867 = vld [vmem:[%s3 + $0x64] sm:$0xf]
      %v868 = vld [vmem:[%s3 + $0x68] sm:$0xf]
      %v869 = vld [vmem:[%s3 + $0x6c] sm:$0xf]
      %v870 = vld [vmem:[%s3 + $0x70] sm:$0xf]
      %v871 = vld [vmem:[%s3 + $0x74] sm:$0xf]
      %v872 = vld [vmem:[%s3 + $0x78] sm:$0xf]
      %v873 = vld [vmem:[%s3 + $0x7c] sm:$0xf]
      %v906 = vunpack.c.l.b16 %v842
      %v907 = vunpack.c.l.b16 %v843
      %v908 = vunpack.c.l.b16 %v844
      %v909 = vunpack.c.l.b16 %v845
      %v910 = vunpack.c.l.b16 %v846
      %v911 = vunpack.c.l.b16 %v847
      %v912 = vunpack.c.l.b16 %v848
      %v913 = vunpack.c.l.b16 %v849
      %v914 = vunpack.c.l.b16 %v850
      %v915 = vunpack.c.l.b16 %v851
      %v916 = vunpack.c.l.b16 %v852
      %v917 = vunpack.c.l.b16 %v853
      %v918 = vunpack.c.l.b16 %v854
      %v919 = vunpack.c.l.b16 %v855
      %v920 = vunpack.c.l.b16 %v856
      %v921 = vunpack.c.l.b16 %v857
      %v922 = vunpack.c.l.b16 %v858
      %v923 = vunpack.c.l.b16 %v859
      %v924 = vunpack.c.l.b16 %v860
      %v925 = vunpack.c.l.b16 %v861
      %v926 = vunpack.c.l.b16 %v862
      %v927 = vunpack.c.l.b16 %v863
      %v928 = vunpack.c.l.b16 %v864
      %v929 = vunpack.c.l.b16 %v865
      %v930 = vunpack.c.l.b16 %v866
      %v931 = vunpack.c.l.b16 %v867
      %v932 = vunpack.c.l.b16 %v868
      %v933 = vunpack.c.l.b16 %v869
      %v934 = vunpack.c.l.b16 %v870
      %v935 = vunpack.c.l.b16 %v871
      %v936 = vunpack.c.l.b16 %v872
      %v937 = vunpack.c.l.b16 %v873
      %v938 = vpack.c.b16 %v907, %v906
      %v939 = vpack.c.b16 %v909, %v908
      %v940 = vpack.c.b16 %v911, %v910
      %v941 = vpack.c.b16 %v913, %v912
      %v942 = vpack.c.b16 %v915, %v914
      %v943 = vpack.c.b16 %v917, %v916
      %v944 = vpack.c.b16 %v919, %v918
      %v945 = vpack.c.b16 %v921, %v920
      %v946 = vpack.c.b16 %v923, %v922
      %v947 = vpack.c.b16 %v925, %v924
      %v948 = vpack.c.b16 %v927, %v926
      %v949 = vpack.c.b16 %v929, %v928
      %v950 = vpack.c.b16 %v931, %v930
      %v951 = vpack.c.b16 %v933, %v932
      %v952 = vpack.c.b16 %v935, %v934
      %v953 = vpack.c.b16 %v937, %v936
      %970 = vmatprep.subr.bf16.mxu0 0
      %971 = vmatpush1.bf16.msra.mxu0 %v945
      %972 = vmatprep.subr.bf16.mxu0 0
      %973 = vmatpush1.bf16.msra.mxu0 %v944
      %974 = vmatprep.subr.bf16.mxu0 0
      %975 = vmatpush1.bf16.msra.mxu0 %v943
      %976 = vmatprep.subr.bf16.mxu0 0
      %977 = vmatpush1.bf16.msra.mxu0 %v942
      %978 = vmatprep.subr.bf16.mxu0 0
      %979 = vmatpush1.bf16.msra.mxu0 %v941
      %980 = vmatprep.subr.bf16.mxu0 0
      %981 = vmatpush1.bf16.msra.mxu0 %v940
      %982 = vmatprep.subr.bf16.mxu0 0
      %983 = vmatpush1.bf16.msra.mxu0 %v939
      %984 = vmatprep.subr.bf16.mxu0 0
      %985 = vmatpush1.bf16.msra.mxu0 %v938
      %986 = vmatprep.subr.bf16.mxu0 0
      %987 = vmatpush2.bf16.msra.mxu0 %v953
      %988 = vmatprep.subr.bf16.mxu0 0
      %989 = vmatpush2.bf16.msra.mxu0 %v952
      %990 = vmatprep.subr.bf16.mxu0 0
      %991 = vmatpush2.bf16.msra.mxu0 %v951
      %992 = vmatprep.subr.bf16.mxu0 0
      %993 = vmatpush2.bf16.msra.mxu0 %v950
      %994 = vmatprep.subr.bf16.mxu0 0
      %995 = vmatpush2.bf16.msra.mxu0 %v949
      %996 = vmatprep.subr.bf16.mxu0 0
      %997 = vmatpush2.bf16.msra.mxu0 %v948
      %998 = vmatprep.subr.bf16.mxu0 0
      %999 = vmatpush2.bf16.msra.mxu0 %v947
      %1000 = vmatprep.subr.bf16.mxu0 0
      %1001 = vmatpush2.bf16.msra.mxu0 %v946
      %1002 = vmatprep.mubr.bf16.mxu0 %v402
      %1003 = vmatmul.mubr.bf16.gmra.mxu0 %v401
      %v1004 = vpop.f32.mrf.mxu0
      %v1005 = vadd.f32 0.0, %v1004
      %v1006 = vpop.f32.mrf.mxu0
      %v1007 = vpop.f32.mrf.mxu0
      %v1008 = vadd.f32 0.0, %v1007
      %v1009 = vpop.f32.mrf.mxu0
      %1010 = vmatprep.mubr.bf16.mxu0 %v404
      %1011 = vmatmul.mubr.bf16.gmra.mxu0 %v403
      %v1012 = vpop.f32.mrf.mxu0
      %v1013 = vadd.f32 0.0, %v1012
      %v1014 = vpop.f32.mrf.mxu0
      %v1015 = vpop.f32.mrf.mxu0
      %v1016 = vadd.f32 0.0, %v1015
      %v1017 = vpop.f32.mrf.mxu0
      %1018 = vmatprep.mubr.bf16.mxu0 %v406
      %1019 = vmatmul.mubr.bf16.gmra.mxu0 %v405
      %v1020 = vpop.f32.mrf.mxu0
      %v1021 = vadd.f32 0.0, %v1020
      %v1022 = vpop.f32.mrf.mxu0
      %v1023 = vpop.f32.mrf.mxu0
      %v1024 = vadd.f32 0.0, %v1023
      %v1025 = vpop.f32.mrf.mxu0
      %1026 = vmatprep.mubr.bf16.mxu0 %v408
      %1027 = vmatmul.mubr.bf16.gmra.mxu0 %v407
      %v1028 = vpop.f32.mrf.mxu0
      %v1029 = vadd.f32 0.0, %v1028
      %v1030 = vpop.f32.mrf.mxu0
      %v1031 = vpop.f32.mrf.mxu0
      %v1032 = vadd.f32 0.0, %v1031
      %v1033 = vpop.f32.mrf.mxu0
      %1034 = vmatprep.mubr.bf16.mxu0 %v410
      %1035 = vmatmul.mubr.bf16.gmra.mxu0 %v409
      %v1036 = vpop.f32.mrf.mxu0
      %v1037 = vadd.f32 0.0, %v1036
      %v1038 = vpop.f32.mrf.mxu0
      %v1039 = vpop.f32.mrf.mxu0
      %v1040 = vadd.f32 0.0, %v1039
      %v1041 = vpop.f32.mrf.mxu0
      %1042 = vmatprep.mubr.bf16.mxu0 %v412
      %1043 = vmatmul.mubr.bf16.gmra.mxu0 %v411
      %v1044 = vpop.f32.mrf.mxu0
      %v1045 = vadd.f32 0.0, %v1044
      %v1046 = vpop.f32.mrf.mxu0
      %v1047 = vpop.f32.mrf.mxu0
      %v1048 = vadd.f32 0.0, %v1047
      %v1049 = vpop.f32.mrf.mxu0
      %1050 = vmatprep.mubr.bf16.mxu0 %v414
      %1051 = vmatmul.mubr.bf16.gmra.mxu0 %v413
      %v1052 = vpop.f32.mrf.mxu0
      %v1053 = vadd.f32 0.0, %v1052
      %v1054 = vpop.f32.mrf.mxu0
      %v1055 = vpop.f32.mrf.mxu0
      %v1056 = vadd.f32 0.0, %v1055
      %v1057 = vpop.f32.mrf.mxu0
      %1058 = vmatprep.mubr.bf16.mxu0 %v416
      %1059 = vmatmul.mubr.bf16.gmra.mxu0 %v415
      %v1060 = vpop.f32.mrf.mxu0
      %v1061 = vadd.f32 0.0, %v1060
      %v1062 = vpop.f32.mrf.mxu0
      %v1063 = vpop.f32.mrf.mxu0
      %v1064 = vadd.f32 0.0, %v1063
      %v1065 = vpop.f32.mrf.mxu0
      %1066 = vdwg.mxu0
      %v1067 = vld [vmem:[%s289] sm:$0xff]
      %v1068 = vld [vmem:[%s289 + $0x8] sm:$0xff]
      %v1069 = vld [vmem:[%s289 + $0x10] sm:$0xff]
      %v1070 = vld [vmem:[%s289 + $0x18] sm:$0xff]
      %v1071 = vld [vmem:[%s289 + $0x20] sm:$0xff]
      %v1072 = vld [vmem:[%s289 + $0x28] sm:$0xff]
      %v1073 = vld [vmem:[%s289 + $0x30] sm:$0xff]
      %v1074 = vld [vmem:[%s289 + $0x38] sm:$0xff]
      %v1075 = vld [vmem:[%s289 + $0x40] sm:$0xff]
      %v1076 = vld [vmem:[%s289 + $0x48] sm:$0xff]
      %v1077 = vld [vmem:[%s289 + $0x50] sm:$0xff]
      %v1078 = vld [vmem:[%s289 + $0x58] sm:$0xff]
      %v1079 = vld [vmem:[%s289 + $0x60] sm:$0xff]
      %v1080 = vld [vmem:[%s289 + $0x68] sm:$0xff]
      %v1081 = vld [vmem:[%s289 + $0x70] sm:$0xff]
      %v1082 = vld [vmem:[%s289 + $0x78] sm:$0xff]
      %v1083 = vmul.f32 %v630, %v1067
      %v1084 = vmul.f32 %v634, %v1068
      %v1085 = vmul.f32 %v640, %v1069
      %v1086 = vmul.f32 %v644, %v1070
      %v1087 = vmul.f32 %v650, %v1071
      %v1088 = vmul.f32 %v654, %v1072
      %v1089 = vmul.f32 %v660, %v1073
      %v1090 = vmul.f32 %v664, %v1074
      %v1091 = vmul.f32 %v670, %v1075
      %v1092 = vmul.f32 %v674, %v1076
      %v1093 = vmul.f32 %v680, %v1077
      %v1094 = vmul.f32 %v684, %v1078
      %v1095 = vmul.f32 %v690, %v1079
      %v1096 = vmul.f32 %v694, %v1080
      %v1097 = vmul.f32 %v700, %v1081
      %v1098 = vmul.f32 %v704, %v1082
      %v1099 = vld [vmem:[%s295] sm:$0xff]
      %v1100 = vld [vmem:[%s295 + $0x8] sm:$0xff]
      %v1101 = vld [vmem:[%s295 + $0x10] sm:$0xff]
      %v1102 = vld [vmem:[%s295 + $0x18] sm:$0xff]
      %v1103 = vld [vmem:[%s295 + $0x20] sm:$0xff]
      %v1104 = vld [vmem:[%s295 + $0x28] sm:$0xff]
      %v1105 = vld [vmem:[%s295 + $0x30] sm:$0xff]
      %v1106 = vld [vmem:[%s295 + $0x38] sm:$0xff]
      %v1107 = vld [vmem:[%s295 + $0x40] sm:$0xff]
      %v1108 = vld [vmem:[%s295 + $0x48] sm:$0xff]
      %v1109 = vld [vmem:[%s295 + $0x50] sm:$0xff]
      %v1110 = vld [vmem:[%s295 + $0x58] sm:$0xff]
      %v1111 = vld [vmem:[%s295 + $0x60] sm:$0xff]
      %v1112 = vld [vmem:[%s295 + $0x68] sm:$0xff]
      %v1113 = vld [vmem:[%s295 + $0x70] sm:$0xff]
      %v1114 = vld [vmem:[%s295 + $0x78] sm:$0xff]
      %v1115 = vmul.f32 %v1005, %v1099
      %v1116 = vmul.f32 %v1008, %v1100
      %v1117 = vmul.f32 %v1013, %v1101
      %v1118 = vmul.f32 %v1016, %v1102
      %v1119 = vmul.f32 %v1021, %v1103
      %v1120 = vmul.f32 %v1024, %v1104
      %v1121 = vmul.f32 %v1029, %v1105
      %v1122 = vmul.f32 %v1032, %v1106
      %v1123 = vmul.f32 %v1037, %v1107
      %v1124 = vmul.f32 %v1040, %v1108
      %v1125 = vmul.f32 %v1045, %v1109
      %v1126 = vmul.f32 %v1048, %v1110
      %v1127 = vmul.f32 %v1053, %v1111
      %v1128 = vmul.f32 %v1056, %v1112
      %v1129 = vmul.f32 %v1061, %v1113
      %v1130 = vmul.f32 %v1064, %v1114
      %v1131 = vadd.f32 %v1083, %v1115
      %v1132 = vadd.f32 %v1084, %v1116
      %v1133 = vadd.f32 %v1085, %v1117
      %v1134 = vadd.f32 %v1086, %v1118
      %v1135 = vadd.f32 %v1087, %v1119
      %v1136 = vadd.f32 %v1088, %v1120
      %v1137 = vadd.f32 %v1089, %v1121
      %v1138 = vadd.f32 %v1090, %v1122
      %v1139 = vadd.f32 %v1091, %v1123
      %v1140 = vadd.f32 %v1092, %v1124
      %v1141 = vadd.f32 %v1093, %v1125
      %v1142 = vadd.f32 %v1094, %v1126
      %v1143 = vadd.f32 %v1095, %v1127
      %v1144 = vadd.f32 %v1096, %v1128
      %v1145 = vadd.f32 %v1097, %v1129
      %v1146 = vadd.f32 %v1098, %v1130
      %v1147 = vpack.c.bf16 %v827, %v826
      %v1148 = vpack.c.bf16 %v829, %v828
      %v1149 = vpack.c.bf16 %v831, %v830
      %v1150 = vpack.c.bf16 %v833, %v832
      %v1151 = vpack.c.bf16 %v835, %v834
      %v1152 = vpack.c.bf16 %v837, %v836
      %v1153 = vpack.c.bf16 %v839, %v838
      %v1154 = vpack.c.bf16 %v841, %v840
      %v1163 = vunpack.c.l.b16 %v1147
      %v1164 = vunpack.c.h.b16 %v1147
      %v1165 = vunpack.c.l.b16 %v1148
      %v1166 = vunpack.c.h.b16 %v1148
      %v1167 = vunpack.c.l.b16 %v1149
      %v1168 = vunpack.c.h.b16 %v1149
      %v1169 = vunpack.c.l.b16 %v1150
      %v1170 = vunpack.c.h.b16 %v1150
      %v1171 = vunpack.c.l.b16 %v1151
      %v1172 = vunpack.c.h.b16 %v1151
      %v1173 = vunpack.c.l.b16 %v1152
      %v1174 = vunpack.c.h.b16 %v1152
      %v1175 = vunpack.c.l.b16 %v1153
      %v1176 = vunpack.c.h.b16 %v1153
      %v1177 = vunpack.c.l.b16 %v1154
      %v1178 = vunpack.c.h.b16 %v1154
      %v1179 = vpack.c.b16 %v1163, %v1163
      %v1180 = vpack.c.b16 %v1164, %v1164
      %v1181 = vpack.c.b16 %v1165, %v1165
      %v1182 = vpack.c.b16 %v1166, %v1166
      %v1183 = vpack.c.b16 %v1167, %v1167
      %v1184 = vpack.c.b16 %v1168, %v1168
      %v1185 = vpack.c.b16 %v1169, %v1169
      %v1186 = vpack.c.b16 %v1170, %v1170
      %v1187 = vpack.c.b16 %v1171, %v1171
      %v1188 = vpack.c.b16 %v1172, %v1172
      %v1189 = vpack.c.b16 %v1173, %v1173
      %v1190 = vpack.c.b16 %v1174, %v1174
      %v1191 = vpack.c.b16 %v1175, %v1175
      %v1192 = vpack.c.b16 %v1176, %v1176
      %v1193 = vpack.c.b16 %v1177, %v1177
      %v1194 = vpack.c.b16 %v1178, %v1178
      %1211 = vst [vmem:[%s302] sm:$0xf] %v1179
      %1212 = vst [vmem:[%s302 + $0x8] sm:$0xf] %v1180
      %1213 = vst [vmem:[%s302 + $0x10] sm:$0xf] %v1181
      %1214 = vst [vmem:[%s302 + $0x18] sm:$0xf] %v1182
      %1215 = vst [vmem:[%s302 + $0x20] sm:$0xf] %v1183
      %1216 = vst [vmem:[%s302 + $0x28] sm:$0xf] %v1184
      %1217 = vst [vmem:[%s302 + $0x30] sm:$0xf] %v1185
      %1218 = vst [vmem:[%s302 + $0x38] sm:$0xf] %v1186
      %1219 = vst [vmem:[%s302 + $0x40] sm:$0xf] %v1187
      %1220 = vst [vmem:[%s302 + $0x48] sm:$0xf] %v1188
      %1221 = vst [vmem:[%s302 + $0x50] sm:$0xf] %v1189
      %1222 = vst [vmem:[%s302 + $0x58] sm:$0xf] %v1190
      %1223 = vst [vmem:[%s302 + $0x60] sm:$0xf] %v1191
      %1224 = vst [vmem:[%s302 + $0x68] sm:$0xf] %v1192
      %1225 = vst [vmem:[%s302 + $0x70] sm:$0xf] %v1193
      %1226 = vst [vmem:[%s302 + $0x78] sm:$0xf] %v1194
      %v1227 = vpack.c.bf16 %v1132, %v1131
      %v1228 = vpack.c.bf16 %v1134, %v1133
      %v1229 = vpack.c.bf16 %v1136, %v1135
      %v1230 = vpack.c.bf16 %v1138, %v1137
      %v1231 = vpack.c.bf16 %v1140, %v1139
      %v1232 = vpack.c.bf16 %v1142, %v1141
      %v1233 = vpack.c.bf16 %v1144, %v1143
      %v1234 = vpack.c.bf16 %v1146, %v1145
      %v1243 = vunpack.c.l.b16 %v1227
      %v1244 = vunpack.c.h.b16 %v1227
      %v1245 = vunpack.c.l.b16 %v1228
      %v1246 = vunpack.c.h.b16 %v1228
      %v1247 = vunpack.c.l.b16 %v1229
      %v1248 = vunpack.c.h.b16 %v1229
      %v1249 = vunpack.c.l.b16 %v1230
      %v1250 = vunpack.c.h.b16 %v1230
      %v1251 = vunpack.c.l.b16 %v1231
      %v1252 = vunpack.c.h.b16 %v1231
      %v1253 = vunpack.c.l.b16 %v1232
      %v1254 = vunpack.c.h.b16 %v1232
      %v1255 = vunpack.c.l.b16 %v1233
      %v1256 = vunpack.c.h.b16 %v1233
      %v1257 = vunpack.c.l.b16 %v1234
      %v1258 = vunpack.c.h.b16 %v1234
      %v1259 = vpack.c.b16 %v1243, %v1243
      %v1260 = vpack.c.b16 %v1244, %v1244
      %v1261 = vpack.c.b16 %v1245, %v1245
      %v1262 = vpack.c.b16 %v1246, %v1246
      %v1263 = vpack.c.b16 %v1247, %v1247
      %v1264 = vpack.c.b16 %v1248, %v1248
      %v1265 = vpack.c.b16 %v1249, %v1249
      %v1266 = vpack.c.b16 %v1250, %v1250
      %v1267 = vpack.c.b16 %v1251, %v1251
      %v1268 = vpack.c.b16 %v1252, %v1252
      %v1269 = vpack.c.b16 %v1253, %v1253
      %v1270 = vpack.c.b16 %v1254, %v1254
      %v1271 = vpack.c.b16 %v1255, %v1255
      %v1272 = vpack.c.b16 %v1256, %v1256
      %v1273 = vpack.c.b16 %v1257, %v1257
      %v1274 = vpack.c.b16 %v1258, %v1258
      %vm1291 = vcmask 519168
      %1292 = vst.msk [vmem:[%s302 + $0x4] sm:$0xf] %vm1291, %v1259
      %1293 = vst.msk [vmem:[%s302 + $0xc] sm:$0xf] %vm1291, %v1260
      %1294 = vst.msk [vmem:[%s302 + $0x14] sm:$0xf] %vm1291, %v1261
      %1295 = vst.msk [vmem:[%s302 + $0x1c] sm:$0xf] %vm1291, %v1262
      %1296 = vst.msk [vmem:[%s302 + $0x24] sm:$0xf] %vm1291, %v1263
      %1297 = vst.msk [vmem:[%s302 + $0x2c] sm:$0xf] %vm1291, %v1264
      %1298 = vst.msk [vmem:[%s302 + $0x34] sm:$0xf] %vm1291, %v1265
      %1299 = vst.msk [vmem:[%s302 + $0x3c] sm:$0xf] %vm1291, %v1266
      %1300 = vst.msk [vmem:[%s302 + $0x44] sm:$0xf] %vm1291, %v1267
      %1301 = vst.msk [vmem:[%s302 + $0x4c] sm:$0xf] %vm1291, %v1268
      %1302 = vst.msk [vmem:[%s302 + $0x54] sm:$0xf] %vm1291, %v1269
      %1303 = vst.msk [vmem:[%s302 + $0x5c] sm:$0xf] %vm1291, %v1270
      %1304 = vst.msk [vmem:[%s302 + $0x64] sm:$0xf] %vm1291, %v1271
      %1305 = vst.msk [vmem:[%s302 + $0x6c] sm:$0xf] %vm1291, %v1272
      %1306 = vst.msk [vmem:[%s302 + $0x74] sm:$0xf] %vm1291, %v1273
      %1307 = vst.msk [vmem:[%s302 + $0x7c] sm:$0xf] %vm1291, %v1274
      %s1308 = smul.u32 16, %s17
      %p1309 = scmp.lt.s32.totalorder %s1308, 31
      %s1310 = scalar_select %p1309, %s1308, 31
      %s1311 = smul.addr %s1310, 2
      %s1312 = smul.addr %s1311, 4
      %s1313 = scalar_lea.vmem %s6, %s1312
      // Predicated region
      $region45: #{deepseek_v2_attention_forward.5} parent=43 // pred_check
        %p1314 = pneg %p176
      $region46: #{deepseek_v2_attention_forward.5} parent=43 // pred_check_branch
        %1316 = sbr.rel (%p1314) target = $region48
      $region47: #{deepseek_v2_attention_forward.5} parent=43 // pred_region
        %s1317 = smul.u32 16, %s17
      $region48: #{deepseek_v2_attention_forward.5} parent=43 // pred_fallthru
        _
    $region44: #{deepseek_v2_attention_forward.5} parent=5 // pred_fallthru
      _
    %p1318 = scmp.le.s32.totalorder 2, %s12
    // Predicated region
    $region49: #{deepseek_v2_attention_forward.5} parent=5 // pred_check
      %p1319 = pneg %p1318
    $region50: #{deepseek_v2_attention_forward.5} parent=5 // pred_check_branch
      %1321 = sbr.rel (%p1319) target = $region52
    $region51: #{deepseek_v2_attention_forward.5} parent=5 // pred_region
      %s1322 = ssub.s32 %s12, 2
      // Predicated region
      $region53: #{deepseek_v2_attention_forward.5} parent=51 // pred_check
        %p1323 = pneg %p182
      $region54: #{deepseek_v2_attention_forward.5} parent=51 // pred_check_branch
        %1325 = sbr.rel (%p1323) target = $region56
      $region55: #{deepseek_v2_attention_forward.5} parent=51 // pred_region
        %s1326 = smul.u32 16, %s18
        %p1327 = scmp.lt.s32.totalorder %s1326, 31
        %s1328 = scalar_select %p1327, %s1326, 31
        %s1329 = smul.addr %s1328, 2
        %s1330 = smul.addr %s1329, 4
        %s1331 = scalar_lea.vmem %s6, %s1330
      $region56: #{deepseek_v2_attention_forward.5} parent=51 // pred_fallthru
        _
    $region52: #{deepseek_v2_attention_forward.5} parent=5 // pred_fallthru
      _
  $region6: #{deepseek_v2_attention_forward.5} parent=0 // loop_footer
    %s16 = sadd.s32 1, %s12
  $region7: #{deepseek_v2_attention_forward.5} parent=0 // loop_footer_branch
    %11 = sbr.rel target = $region3
  $region8: #{deepseek_v2_attention_forward.5} parent=0 // loop_exit
    _

// kernel: deepseek_v2_attention_forward.6
$region0: #{deepseek_v2_attention_forward.6}
  #allocation0 [shape = 'u32[]', space=smem, size = 0x4, offset = 0x4, fixed_abs, tag = 'smem constant byte address 0x4 - core index']
  #allocation1 [shape = 'u32[144,128]{1,0:T(1,128)}', space=vmem, size = 0x12000, scoped, tag = 'internal scratch']
  #allocation2 [shape = 'f32[128,1]{1,0:T(8,128)}', space=vmem, size = 0x10000, scoped, tag = 'scratch operand']
  #allocation3 [shape = 'f32[128,1]{1,0:T(8,128)}', space=vmem, size = 0x10000, scoped, tag = 'scratch operand']
  #allocation4 [shape = 'f32[128,128]{1,0:T(8,128)}', space=vmem, size = 0x10000, scoped, tag = 'scratch operand']
  %s0 = inlined_call_operand.vmem [shape: bf16[256,512], index: 0, kind: input, shape index: {}]
  %s1 = inlined_call_operand.vmem [shape: bf16[4,256,64], index: 1, kind: input, shape index: {}]
  %s2 = inlined_call_operand.vmem [shape: bf16[256,192], index: 2, kind: input, shape index: {}]
  %s3 = inlined_call_operand.vmem [shape: bf16[256,512], index: 3, kind: output, shape index: {}]
  %s4 = sld [smem:[#allocation0]]
  $region135: #{deepseek_v2_attention_forward.6} parent=0
    _
  %s6 = ssub.s32 1, %s4
  %s7 = scalar_select 0, %s6, %s4
  $region1: #{deepseek_v2_attention_forward.6} parent=0
    #allocation5 [shape = 'u8[65536]{0}', space=vmem, size = 0x10000, scoped, tag = 'input window, operand 0']
    #allocation6 [shape = 'u8[65536]{0}', space=vmem, size = 0x10000, scoped, tag = 'output window, operand 0']
    loop: start=0, step=1, limit=18
    $region2: #{deepseek_v2_attention_forward.6} parent=1 // loop_pre_header
      _
    $region3: #{deepseek_v2_attention_forward.6} parent=1 // loop_header
      %s9 = sphi 0, %s13
      %p10 = scmp.ge.s32.totalorder %s9, 18
      %s16 = sphi 0, %s35
      %s17 = sphi 0, %s31
      %s18 = sphi 0, %s27
      %s19 = sphi 0, %s16
      %s20 = sphi 0, %s17
      %s21 = sphi 0, %s18
      %s22 = sphi 0, %s19
      %s23 = sphi 0, %s20
      %s24 = sphi 0, %s21
      %s40 = sphi 0, %s42
      %s43 = sphi 0, %s40
      %s44 = sphi 0, %s43
      %s60 = sphi 0, %s44
      %s68 = sphi 0, %s70
      %s71 = sphi 0, %s68
      %s72 = sphi 0, %s71
      %s88 = sphi 0, %s72
      %s94 = sphi 0, %s96
      %s97 = sphi 0, %s94
      %s98 = sphi 0, %s97
      %s114 = sphi 0, %s98
      %s122 = sphi 0, %s124
      %s125 = sphi 0, %s122
      %s126 = sphi 0, %s125
      %s142 = sphi 0, %s126
    $region4: #{deepseek_v2_attention_forward.6} parent=1 // loop_header_branch
      %12 = sbr.rel (%p10) target = $region8
    $region5: #{deepseek_v2_attention_forward.6} parent=1 // loop_body
      %s14 = ssub.s32 %s9, 1
      %s15 = ssub.s32 %s9, 2
      %s25 = sadd.s32 1, %s18
      %p26 = scmp.ge.s32.totalorder %s25, 2
      %s27 = scalar_select %p26, 0, %s25
      %s28 = sadd.s32 1, %s17
      %s29 = scalar_select %p26, %s28, %s17
      %p30 = scmp.ge.s32.totalorder %s29, 2
      %s31 = scalar_select %p30, 0, %s29
      %s32 = sadd.s32 1, %s16
      %s33 = scalar_select %p30, %s32, %s16
      %p34 = scmp.ge.s32.totalorder %s33, 4
      %s35 = scalar_select %p34, 0, %s33
      %s36 = ssub.s32 %s17, %s31
      %s37 = ssub.s32 %s16, %s35
      %s38 = sor.u32 %s36, %s37
      %p39 = scmp.eq.s32.totalorder %s38, 0
      %s41 = sadd.s32 %s40, 1
      %s42 = scalar_select %p39, %s40, %s41
      %p45 = pneg %p39
      %p46 = scmp.eq.s32.totalorder %s9, 15
      %p47 = por %p45, %p46
      %p48 = scmp.ne.s32.totalorder %s40, %s43
      %p49 = scmp.eq.s32.totalorder %s9, 0
      %p50 = por %p48, %p49
      %p51 = scmp.ne.s32.totalorder %s40, %s43
      %p52 = scmp.eq.s32.totalorder %s14, 15
      %p53 = por %p51, %p52
      %p54 = scmp.ne.s32.totalorder %s43, %s44
      %p55 = scmp.eq.s32.totalorder %s14, 0
      %p56 = por %p54, %p55
      %p57 = scmp.ne.s32.totalorder %s43, %s44
      %p58 = scmp.eq.s32.totalorder %s15, 15
      %p59 = por %p57, %p58
      %p61 = scmp.ne.s32.totalorder %s44, %s60
      %p62 = scmp.eq.s32.totalorder %s15, 0
      %p63 = por %p61, %p62
      %s64 = ssub.s32 %s16, %s35
      %s65 = ssub.s32 %s17, %s31
      %s66 = sor.u32 %s64, %s65
      %p67 = scmp.eq.s32.totalorder %s66, 0
      %s69 = sadd.s32 %s68, 1
      %s70 = scalar_select %p67, %s68, %s69
      %p73 = pneg %p67
      %p74 = scmp.eq.s32.totalorder %s9, 15
      %p75 = por %p73, %p74
      %p76 = scmp.ne.s32.totalorder %s68, %s71
      %p77 = scmp.eq.s32.totalorder %s9, 0
      %p78 = por %p76, %p77
      %p79 = scmp.ne.s32.totalorder %s68, %s71
      %p80 = scmp.eq.s32.totalorder %s14, 15
      %p81 = por %p79, %p80
      %p82 = scmp.ne.s32.totalorder %s71, %s72
      %p83 = scmp.eq.s32.totalorder %s14, 0
      %p84 = por %p82, %p83
      %p85 = scmp.ne.s32.totalorder %s71, %s72
      %p86 = scmp.eq.s32.totalorder %s15, 15
      %p87 = por %p85, %p86
      %p89 = scmp.ne.s32.totalorder %s72, %s88
      %p90 = scmp.eq.s32.totalorder %s15, 0
      %p91 = por %p89, %p90
      %s92 = ssub.s32 %s18, %s27
      %p93 = scmp.eq.s32.totalorder %s92, 0
      %s95 = sadd.s32 %s94, 1
      %s96 = scalar_select %p93, %s94, %s95
      %p99 = pneg %p93
      %p100 = scmp.eq.s32.totalorder %s9, 15
      %p101 = por %p99, %p100
      %p102 = scmp.ne.s32.totalorder %s94, %s97
      %p103 = scmp.eq.s32.totalorder %s9, 0
      %p104 = por %p102, %p103
      %p105 = scmp.ne.s32.totalorder %s94, %s97
      %p106 = scmp.eq.s32.totalorder %s14, 15
      %p107 = por %p105, %p106
      %p108 = scmp.ne.s32.totalorder %s97, %s98
      %p109 = scmp.eq.s32.totalorder %s14, 0
      %p110 = por %p108, %p109
      %p111 = scmp.ne.s32.totalorder %s97, %s98
      %p112 = scmp.eq.s32.totalorder %s15, 15
      %p113 = por %p111, %p112
      %p115 = scmp.ne.s32.totalorder %s98, %s114
      %p116 = scmp.eq.s32.totalorder %s15, 0
      %p117 = por %p115, %p116
      %s118 = ssub.s32 %s17, %s31
      %s119 = ssub.s32 %s16, %s35
      %s120 = sor.u32 %s118, %s119
      %p121 = scmp.eq.s32.totalorder %s120, 0
      %s123 = sadd.s32 %s122, 1
      %s124 = scalar_select %p121, %s122, %s123
      %p127 = pneg %p121
      %p128 = scmp.eq.s32.totalorder %s9, 15
      %p129 = por %p127, %p128
      %p130 = scmp.ne.s32.totalorder %s122, %s125
      %p131 = scmp.eq.s32.totalorder %s9, 0
      %p132 = por %p130, %p131
      %p133 = scmp.ne.s32.totalorder %s122, %s125
      %p134 = scmp.eq.s32.totalorder %s14, 15
      %p135 = por %p133, %p134
      %p136 = scmp.ne.s32.totalorder %s125, %s126
      %p137 = scmp.eq.s32.totalorder %s14, 0
      %p138 = por %p136, %p137
      %p139 = scmp.ne.s32.totalorder %s125, %s126
      %p140 = scmp.eq.s32.totalorder %s15, 15
      %p141 = por %p139, %p140
      %p143 = scmp.ne.s32.totalorder %s126, %s142
      %p144 = scmp.eq.s32.totalorder %s15, 0
      %p145 = por %p143, %p144
      %p146 = scmp.le.s32.totalorder 1, %s9
      %p147 = scmp.lt.s32.totalorder %s9, 17
      %p148 = pnand %p146, %p147
      %p149 = pneg %p148
      // Predicated region
      $region9: #{deepseek_v2_attention_forward.6} parent=5 // pred_check
        _
      $region10: #{deepseek_v2_attention_forward.6} parent=5 // pred_check_branch
        %151 = sbr.rel (%p148) target = $region12
      $region11: #{deepseek_v2_attention_forward.6} parent=5 // pred_region
        %s152 = ssub.s32 %s9, 1
      $region12: #{deepseek_v2_attention_forward.6} parent=5 // pred_fallthru
        _
      %p153 = scmp.lt.s32.totalorder %s9, 16
      // Predicated region
      $region13: #{deepseek_v2_attention_forward.6} parent=5 // pred_check
        %p154 = pneg %p153
      $region14: #{deepseek_v2_attention_forward.6} parent=5 // pred_check_branch
        %156 = sbr.rel (%p154) target = $region16
      $region15: #{deepseek_v2_attention_forward.6} parent=5 // pred_region
        // Predicated region
        $region17: #{deepseek_v2_attention_forward.6} parent=15 // pred_check
          %p157 = pneg %p50
        $region18: #{deepseek_v2_attention_forward.6} parent=15 // pred_check_branch
          %159 = sbr.rel (%p157) target = $region20
        $region19: #{deepseek_v2_attention_forward.6} parent=15 // pred_region
          %s160 = sand.u32 %s40, 1
          %s161 = sand.u32 %s40, 1
          %s162 = smul.addr %s161, 64
          %s163 = scalar_lea.vmem [#allocation5], %s162
          %s164 = smul.u32 16, %s17
          %s165 = smul.addr %s164, 4
          %s166 = sadd.s32 %s16, %s165
          %s167 = smul.addr %s166, 4
          %s168 = scalar_lea.vmem %s0, %s167
          // Predicated region
          $region21: #{deepseek_v2_attention_forward.6} parent=19 // pred_check
            _
          $region22: #{deepseek_v2_attention_forward.6} parent=19 // pred_check_branch
            %170 = sbr.rel (0) target = $region24
          $region23: #{deepseek_v2_attention_forward.6} parent=19 // pred_region
            // Predicated region
            $region25: #{deepseek_v2_attention_forward.6} parent=23 // pred_check
              _
            $region26: #{deepseek_v2_attention_forward.6} parent=23 // pred_check_branch
              %172 = sbr.rel target = $region28
            $region27: #{deepseek_v2_attention_forward.6} parent=23 // pred_region
              // Predicated region
              $region40: #{deepseek_v2_attention_forward.6} parent=27 // pred_check
                _
              $region41: #{deepseek_v2_attention_forward.6} parent=27 // pred_check_branch
                %218 = sbr.rel (0) target = $region43
              $region42: #{deepseek_v2_attention_forward.6} parent=27 // pred_region
                loop: start=0, step=1, limit=1
                $region44: #{deepseek_v2_attention_forward.6} parent=42 // loop_pre_header
                  _
                $region45: #{deepseek_v2_attention_forward.6} parent=42 // loop_header
                  %s220 = sphi 0, %s224
                  %p221 = scmp.ge.s32.totalorder %s220, 1
                  %s225 = sphi %s168, %s168
                  %s226 = sphi %s163, %s163
                $region46: #{deepseek_v2_attention_forward.6} parent=42 // loop_header_branch
                  %223 = sbr.rel (%p221) target = $region50
                $region47: #{deepseek_v2_attention_forward.6} parent=42 // loop_body
                  _
                $region48: #{deepseek_v2_attention_forward.6} parent=42 // loop_footer
                  %s224 = sadd.s32 1, %s220
                $region49: #{deepseek_v2_attention_forward.6} parent=42 // loop_footer_branch
                  %219 = sbr.rel target = $region45
                $region50: #{deepseek_v2_attention_forward.6} parent=42 // loop_exit
                  _
                %s228 = ssub.s32 16, 1
                loop: start=0, step=1, limit=1
                $region51: #{deepseek_v2_attention_forward.6} parent=42 // loop_pre_header
                  _
                $region52: #{deepseek_v2_attention_forward.6} parent=42 // loop_header
                  %s230 = sphi 0, %s234
                  %p231 = scmp.ge.s32.totalorder %s230, 1
                  %s235 = sphi %s168, %s168
                  %s236 = sphi %s163, %s163
                $region53: #{deepseek_v2_attention_forward.6} parent=42 // loop_header_branch
                  %233 = sbr.rel (%p231) target = $region57
                $region54: #{deepseek_v2_attention_forward.6} parent=42 // loop_body
                  %v237 = vld [vmem:[%s235] sm:%s228]
                  %238 = vst [vmem:[%s236] sm:%s228] %v237
                  %v239 = vld [vmem:[%s235 + $0x10] sm:%s228]
                  %240 = vst [vmem:[%s236 + $0x4] sm:%s228] %v239
                  %v241 = vld [vmem:[%s235 + $0x20] sm:%s228]
                  %242 = vst [vmem:[%s236 + $0x8] sm:%s228] %v241
                  %v243 = vld [vmem:[%s235 + $0x30] sm:%s228]
                  %244 = vst [vmem:[%s236 + $0xc] sm:%s228] %v243
                  %v245 = vld [vmem:[%s235 + $0x40] sm:%s228]
                  %246 = vst [vmem:[%s236 + $0x10] sm:%s228] %v245
                  %v247 = vld [vmem:[%s235 + $0x50] sm:%s228]
                  %248 = vst [vmem:[%s236 + $0x14] sm:%s228] %v247
                  %v249 = vld [vmem:[%s235 + $0x60] sm:%s228]
                  %250 = vst [vmem:[%s236 + $0x18] sm:%s228] %v249
                  %v251 = vld [vmem:[%s235 + $0x70] sm:%s228]
                  %252 = vst [vmem:[%s236 + $0x1c] sm:%s228] %v251
                  %v253 = vld [vmem:[%s235 + $0x80] sm:%s228]
                  %254 = vst [vmem:[%s236 + $0x20] sm:%s228] %v253
                  %v255 = vld [vmem:[%s235 + $0x90] sm:%s228]
                  %256 = vst [vmem:[%s236 + $0x24] sm:%s228] %v255
                  %v257 = vld [vmem:[%s235 + $0xa0] sm:%s228]
                  %258 = vst [vmem:[%s236 + $0x28] sm:%s228] %v257
                  %v259 = vld [vmem:[%s235 + $0xb0] sm:%s228]
                  %260 = vst [vmem:[%s236 + $0x2c] sm:%s228] %v259
                  %v261 = vld [vmem:[%s235 + $0xc0] sm:%s228]
                  %262 = vst [vmem:[%s236 + $0x30] sm:%s228] %v261
                  %v263 = vld [vmem:[%s235 + $0xd0] sm:%s228]
                  %264 = vst [vmem:[%s236 + $0x34] sm:%s228] %v263
                  %v265 = vld [vmem:[%s235 + $0xe0] sm:%s228]
                  %266 = vst [vmem:[%s236 + $0x38] sm:%s228] %v265
                  %v267 = vld [vmem:[%s235 + $0xf0] sm:%s228]
                  %268 = vst [vmem:[%s236 + $0x3c] sm:%s228] %v267
                $region55: #{deepseek_v2_attention_forward.6} parent=42 // loop_footer
                  %s234 = sadd.s32 1, %s230
                $region56: #{deepseek_v2_attention_forward.6} parent=42 // loop_footer_branch
                  %229 = sbr.rel target = $region52
                $region57: #{deepseek_v2_attention_forward.6} parent=42 // loop_exit
                  _
              $region43: #{deepseek_v2_attention_forward.6} parent=27 // pred_fallthru
                _
            $region28: #{deepseek_v2_attention_forward.6} parent=23 // pred_fallthru
              _
            // Predicated region
            $region29: #{deepseek_v2_attention_forward.6} parent=23 // pred_check
              _
            $region30: #{deepseek_v2_attention_forward.6} parent=23 // pred_check_branch
              %174 = sbr.rel (0) target = $region32
            $region31: #{deepseek_v2_attention_forward.6} parent=23 // pred_region
              %s176 = ssub.s32 16, 1
              loop: start=0, step=1, limit=1
              $region33: #{deepseek_v2_attention_forward.6} parent=31 // loop_pre_header
                _
              $region34: #{deepseek_v2_attention_forward.6} parent=31 // loop_header
                %s178 = sphi 0, %s182
                %p179 = scmp.ge.s32.totalorder %s178, 1
                %s183 = sphi %s168, %s168
                %s184 = sphi %s163, %s163
              $region35: #{deepseek_v2_attention_forward.6} parent=31 // loop_header_branch
                %181 = sbr.rel (%p179) target = $region39
              $region36: #{deepseek_v2_attention_forward.6} parent=31 // loop_body
                %v185 = vld [vmem:[%s183] sm:%s176]
                %186 = vst [vmem:[%s184] sm:%s176] %v185
                %v187 = vld [vmem:[%s183 + $0x10] sm:%s176]
                %188 = vst [vmem:[%s184 + $0x4] sm:%s176] %v187
                %v189 = vld [vmem:[%s183 + $0x20] sm:%s176]
                %190 = vst [vmem:[%s184 + $0x8] sm:%s176] %v189
                %v191 = vld [vmem:[%s183 + $0x30] sm:%s176]
                %192 = vst [vmem:[%s184 + $0xc] sm:%s176] %v191
                %v193 = vld [vmem:[%s183 + $0x40] sm:%s176]
                %194 = vst [vmem:[%s184 + $0x10] sm:%s176] %v193
                %v195 = vld [vmem:[%s183 + $0x50] sm:%s176]
                %196 = vst [vmem:[%s184 + $0x14] sm:%s176] %v195
                %v197 = vld [vmem:[%s183 + $0x60] sm:%s176]
                %198 = vst [vmem:[%s184 + $0x18] sm:%s176] %v197
                %v199 = vld [vmem:[%s183 + $0x70] sm:%s176]
                %200 = vst [vmem:[%s184 + $0x1c] sm:%s176] %v199
                %v201 = vld [vmem:[%s183 + $0x80] sm:%s176]
                %202 = vst [vmem:[%s184 + $0x20] sm:%s176] %v201
                %v203 = vld [vmem:[%s183 + $0x90] sm:%s176]
                %204 = vst [vmem:[%s184 + $0x24] sm:%s176] %v203
                %v205 = vld [vmem:[%s183 + $0xa0] sm:%s176]
                %206 = vst [vmem:[%s184 + $0x28] sm:%s176] %v205
                %v207 = vld [vmem:[%s183 + $0xb0] sm:%s176]
                %208 = vst [vmem:[%s184 + $0x2c] sm:%s176] %v207
                %v209 = vld [vmem:[%s183 + $0xc0] sm:%s176]
                %210 = vst [vmem:[%s184 + $0x30] sm:%s176] %v209
                %v211 = vld [vmem:[%s183 + $0xd0] sm:%s176]
                %212 = vst [vmem:[%s184 + $0x34] sm:%s176] %v211
                %v213 = vld [vmem:[%s183 + $0xe0] sm:%s176]
                %214 = vst [vmem:[%s184 + $0x38] sm:%s176] %v213
                %v215 = vld [vmem:[%s183 + $0xf0] sm:%s176]
                %216 = vst [vmem:[%s184 + $0x3c] sm:%s176] %v215
              $region37: #{deepseek_v2_attention_forward.6} parent=31 // loop_footer
                %s182 = sadd.s32 1, %s178
              $region38: #{deepseek_v2_attention_forward.6} parent=31 // loop_footer_branch
                %177 = sbr.rel target = $region34
              $region39: #{deepseek_v2_attention_forward.6} parent=31 // loop_exit
                _
            $region32: #{deepseek_v2_attention_forward.6} parent=23 // pred_fallthru
              _
          $region24: #{deepseek_v2_attention_forward.6} parent=19 // pred_fallthru
            _
          %269 = vnop
        $region20: #{deepseek_v2_attention_forward.6} parent=15 // pred_fallthru
          _
        // Predicated region
        $region58: #{deepseek_v2_attention_forward.6} parent=15 // pred_check
          %p270 = pneg %p78
        $region59: #{deepseek_v2_attention_forward.6} parent=15 // pred_check_branch
          %272 = sbr.rel (%p270) target = $region61
        $region60: #{deepseek_v2_attention_forward.6} parent=15 // pred_region
          %s273 = smul.u32 16, %s17
          %p274 = scmp.lt.s32.totalorder %s16, 3
          %s275 = scalar_select %p274, %s16, 3
          %p276 = scmp.lt.s32.totalorder %s273, 31
          %s277 = scalar_select %p276, %s273, 31
          %s278 = smul.addr %s275, 32
          %s279 = sadd.s32 %s277, %s278
          %s280 = smul.addr %s279, 4
          %s281 = scalar_lea.vmem %s1, %s280
          %s282 = smul.u32 16, %s17
        $region61: #{deepseek_v2_attention_forward.6} parent=15 // pred_fallthru
          _
        // Predicated region
        $region62: #{deepseek_v2_attention_forward.6} parent=15 // pred_check
          %p283 = pneg %p104
        $region63: #{deepseek_v2_attention_forward.6} parent=15 // pred_check_branch
          %285 = sbr.rel (%p283) target = $region65
        $region64: #{deepseek_v2_attention_forward.6} parent=15 // pred_region
          %s286 = smul.u32 16, %s18
          %p287 = scmp.lt.s32.totalorder %s286, 31
          %s288 = scalar_select %p287, %s286, 31
          %s289 = smul.addr %s288, 2
          %s290 = smul.addr %s289, 4
          %s291 = scalar_lea.vmem %s2, %s290
          %s292 = smul.u32 16, %s18
        $region65: #{deepseek_v2_attention_forward.6} parent=15 // pred_fallthru
          _
      $region16: #{deepseek_v2_attention_forward.6} parent=5 // pred_fallthru
        _
      %p293 = scmp.le.s32.totalorder 1, %s9
      %p294 = scmp.lt.s32.totalorder %s9, 17
      %p295 = pnand %p293, %p294
      %p296 = pneg %p295
      // Predicated region
      $region66: #{deepseek_v2_attention_forward.6} parent=5 // pred_check
        _
      $region67: #{deepseek_v2_attention_forward.6} parent=5 // pred_check_branch
        %298 = sbr.rel (%p295) target = $region69
      $region68: #{deepseek_v2_attention_forward.6} parent=5 // pred_region
        %s299 = ssub.s32 %s9, 1
        %s300 = sand.u32 %s43, 1
        %s301 = sand.u32 %s43, 1
        %s302 = smul.addr %s301, 64
        %s303 = scalar_lea.vmem [#allocation5], %s302
        // Predicated region
        $region70: #{deepseek_v2_attention_forward.6} parent=68 // pred_check
          %p304 = pneg %p56
        $region71: #{deepseek_v2_attention_forward.6} parent=68 // pred_check_branch
          %306 = sbr.rel (%p304) target = $region73
        $region72: #{deepseek_v2_attention_forward.6} parent=68 // pred_region
          _
        $region73: #{deepseek_v2_attention_forward.6} parent=68 // pred_fallthru
          _
        %s307 = sand.u32 %s43, 1
        %s308 = sand.u32 %s43, 1
        %s309 = smul.addr %s308, 64
        %s310 = scalar_lea.vmem [#allocation5], %s309
        %p311 = pneg %p56
        %p312 = pneg %p53
        %s313 = smul.u32 16, %s20
        %p314 = scmp.lt.s32.totalorder %s19, 3
        %s315 = scalar_select %p314, %s19, 3
        %p316 = scmp.lt.s32.totalorder %s313, 31
        %s317 = scalar_select %p316, %s313, 31
        %s318 = smul.addr %s315, 32
        %s319 = sadd.s32 %s317, %s318
        %s320 = smul.addr %s319, 4
        %s321 = scalar_lea.vmem %s1, %s320
        %p322 = pneg %p84
        %p323 = pneg %p81
        %s324 = smul.u32 16, %s21
        %p325 = scmp.lt.s32.totalorder %s324, 31
        %s326 = scalar_select %p325, %s324, 31
        %s327 = smul.addr %s326, 2
        %s328 = smul.addr %s327, 4
        %s329 = scalar_lea.vmem %s2, %s328
        %p330 = pneg %p110
        %p331 = pneg %p107
        %p332 = pneg %p138
        %p333 = pneg %p135
        %s334 = sand.u32 %s125, 1
        %s335 = sand.u32 %s125, 1
        %s336 = smul.addr %s335, 64
        %s337 = scalar_lea.vmem [#allocation6], %s336
        %s338 = smul.u32 16, %s20
        %s339 = smul.u32 16, %s20
        %p340 = scmp.lt.s32.totalorder %s19, 3
        %s341 = scalar_select %p340, %s19, 3
        %p342 = scmp.lt.s32.totalorder %s339, 31
        %s343 = scalar_select %p342, %s339, 31
        %s344 = smul.addr %s341, 32
        %s345 = sadd.s32 %s343, %s344
        %s346 = smul.addr %s345, 4
        %s347 = scalar_lea.vmem %s1, %s346
        %s348 = smul.u32 16, %s20
        %s349 = smul.u32 16, %s21
        %p350 = scmp.lt.s32.totalorder %s349, 31
        %s351 = scalar_select %p350, %s349, 31
        %s352 = smul.addr %s351, 2
        %s353 = smul.addr %s352, 4
        %s354 = scalar_lea.vmem %s2, %s353
        %s355 = smul.u32 16, %s21
        %s356 = smul.u32 16, %s20
        %p358 = scmp.eq.s32.totalorder %s21, 0
        // Predicated region
        $region74: #{deepseek_v2_attention_forward.6} parent=68 // pred_check
          %p359 = pneg %p358
        $region75: #{deepseek_v2_attention_forward.6} parent=68 // pred_check_branch
          %361 = sbr.rel (%p359) target = $region77
        $region76: #{deepseek_v2_attention_forward.6} parent=68 // pred_region
          %vm362 = vcmask 7168
          %363 = vst.msk [vmem:[#allocation2] sm:$0xff] %vm362, -1e+30
          %364 = vst.msk [vmem:[#allocation2 + $0x8] sm:$0xff] %vm362, -1e+30
          %365 = vst.msk [vmem:[#allocation2 + $0x10] sm:$0xff] %vm362, -1e+30
          %366 = vst.msk [vmem:[#allocation2 + $0x18] sm:$0xff] %vm362, -1e+30
          %367 = vst.msk [vmem:[#allocation2 + $0x20] sm:$0xff] %vm362, -1e+30
          %368 = vst.msk [vmem:[#allocation2 + $0x28] sm:$0xff] %vm362, -1e+30
          %369 = vst.msk [vmem:[#allocation2 + $0x30] sm:$0xff] %vm362, -1e+30
          %370 = vst.msk [vmem:[#allocation2 + $0x38] sm:$0xff] %vm362, -1e+30
          %371 = vst.msk [vmem:[#allocation2 + $0x40] sm:$0xff] %vm362, -1e+30
          %372 = vst.msk [vmem:[#allocation2 + $0x48] sm:$0xff] %vm362, -1e+30
          %373 = vst.msk [vmem:[#allocation2 + $0x50] sm:$0xff] %vm362, -1e+30
          %374 = vst.msk [vmem:[#allocation2 + $0x58] sm:$0xff] %vm362, -1e+30
          %375 = vst.msk [vmem:[#allocation2 + $0x60] sm:$0xff] %vm362, -1e+30
          %376 = vst.msk [vmem:[#allocation2 + $0x68] sm:$0xff] %vm362, -1e+30
          %377 = vst.msk [vmem:[#allocation2 + $0x70] sm:$0xff] %vm362, -1e+30
          %378 = vst.msk [vmem:[#allocation2 + $0x78] sm:$0xff] %vm362, -1e+30
          %379 = vst.msk [vmem:[#allocation3] sm:$0xff] %vm362, 0.0
          %380 = vst.msk [vmem:[#allocation3 + $0x8] sm:$0xff] %vm362, 0.0
          %381 = vst.msk [vmem:[#allocation3 + $0x10] sm:$0xff] %vm362, 0.0
          %382 = vst.msk [vmem:[#allocation3 + $0x18] sm:$0xff] %vm362, 0.0
          %383 = vst.msk [vmem:[#allocation3 + $0x20] sm:$0xff] %vm362, 0.0
          %384 = vst.msk [vmem:[#allocation3 + $0x28] sm:$0xff] %vm362, 0.0
          %385 = vst.msk [vmem:[#allocation3 + $0x30] sm:$0xff] %vm362, 0.0
          %386 = vst.msk [vmem:[#allocation3 + $0x38] sm:$0xff] %vm362, 0.0
          %387 = vst.msk [vmem:[#allocation3 + $0x40] sm:$0xff] %vm362, 0.0
          %388 = vst.msk [vmem:[#allocation3 + $0x48] sm:$0xff] %vm362, 0.0
          %389 = vst.msk [vmem:[#allocation3 + $0x50] sm:$0xff] %vm362, 0.0
          %390 = vst.msk [vmem:[#allocation3 + $0x58] sm:$0xff] %vm362, 0.0
          %391 = vst.msk [vmem:[#allocation3 + $0x60] sm:$0xff] %vm362, 0.0
          %392 = vst.msk [vmem:[#allocation3 + $0x68] sm:$0xff] %vm362, 0.0
          %393 = vst.msk [vmem:[#allocation3 + $0x70] sm:$0xff] %vm362, 0.0
          %394 = vst.msk [vmem:[#allocation3 + $0x78] sm:$0xff] %vm362, 0.0
          %395 = vst [vmem:[#allocation4] sm:$0xff] 0.0
          %396 = vst [vmem:[#allocation4 + $0x8] sm:$0xff] 0.0
          %397 = vst [vmem:[#allocation4 + $0x10] sm:$0xff] 0.0
          %398 = vst [vmem:[#allocation4 + $0x18] sm:$0xff] 0.0
          %399 = vst [vmem:[#allocation4 + $0x20] sm:$0xff] 0.0
          %400 = vst [vmem:[#allocation4 + $0x28] sm:$0xff] 0.0
          %401 = vst [vmem:[#allocation4 + $0x30] sm:$0xff] 0.0
          %402 = vst [vmem:[#allocation4 + $0x38] sm:$0xff] 0.0
          %403 = vst [vmem:[#allocation4 + $0x40] sm:$0xff] 0.0
          %404 = vst [vmem:[#allocation4 + $0x48] sm:$0xff] 0.0
          %405 = vst [vmem:[#allocation4 + $0x50] sm:$0xff] 0.0
          %406 = vst [vmem:[#allocation4 + $0x58] sm:$0xff] 0.0
          %407 = vst [vmem:[#allocation4 + $0x60] sm:$0xff] 0.0
          %408 = vst [vmem:[#allocation4 + $0x68] sm:$0xff] 0.0
          %409 = vst [vmem:[#allocation4 + $0x70] sm:$0xff] 0.0
          %410 = vst [vmem:[#allocation4 + $0x78] sm:$0xff] 0.0
        $region77: #{deepseek_v2_attention_forward.6} parent=68 // pred_fallthru
          _
        %s411 = smul.u32 %s20, 128
        %s412 = smul.u32 %s21, 128
        %s413 = sadd.s32 %s411, 127
        %p414 = scmp.le.s32.totalorder %s412, %s413
        // Predicated region
        $region78: #{deepseek_v2_attention_forward.6} parent=68 // pred_check
          %p415 = pneg %p414
        $region79: #{deepseek_v2_attention_forward.6} parent=68 // pred_check_branch
          %417 = sbr.rel (%p415) target = $region81
        $region80: #{deepseek_v2_attention_forward.6} parent=68 // pred_region
          %v418 = vld [vmem:[%s354] sm:$0xff]
          %v419 = vld [vmem:[%s354 + $0x8] sm:$0xff]
          %v420 = vld [vmem:[%s354 + $0x10] sm:$0xff]
          %v421 = vld [vmem:[%s354 + $0x18] sm:$0xff]
          %v422 = vld [vmem:[%s354 + $0x20] sm:$0xff]
          %v423 = vld [vmem:[%s354 + $0x28] sm:$0xff]
          %v424 = vld [vmem:[%s354 + $0x30] sm:$0xff]
          %v425 = vld [vmem:[%s354 + $0x38] sm:$0xff]
          %v426 = vld [vmem:[%s354 + $0x40] sm:$0xff]
          %v427 = vld [vmem:[%s354 + $0x48] sm:$0xff]
          %v428 = vld [vmem:[%s354 + $0x50] sm:$0xff]
          %v429 = vld [vmem:[%s354 + $0x58] sm:$0xff]
          %v430 = vld [vmem:[%s354 + $0x60] sm:$0xff]
          %v431 = vld [vmem:[%s354 + $0x68] sm:$0xff]
          %v432 = vld [vmem:[%s354 + $0x70] sm:$0xff]
          %v433 = vld [vmem:[%s354 + $0x78] sm:$0xff]
          %v434 = vld [vmem:[%s303] sm:$0xf]
          %v435 = vld [vmem:[%s303 + $0x4] sm:$0xf]
          %v436 = vld [vmem:[%s303 + $0x8] sm:$0xf]
          %v437 = vld [vmem:[%s303 + $0xc] sm:$0xf]
          %v438 = vld [vmem:[%s303 + $0x10] sm:$0xf]
          %v439 = vld [vmem:[%s303 + $0x14] sm:$0xf]
          %v440 = vld [vmem:[%s303 + $0x18] sm:$0xf]
          %v441 = vld [vmem:[%s303 + $0x1c] sm:$0xf]
          %v442 = vld [vmem:[%s303 + $0x20] sm:$0xf]
          %v443 = vld [vmem:[%s303 + $0x24] sm:$0xf]
          %v444 = vld [vmem:[%s303 + $0x28] sm:$0xf]
          %v445 = vld [vmem:[%s303 + $0x2c] sm:$0xf]
          %v446 = vld [vmem:[%s303 + $0x30] sm:$0xf]
          %v447 = vld [vmem:[%s303 + $0x34] sm:$0xf]
          %v448 = vld [vmem:[%s303 + $0x38] sm:$0xf]
          %v449 = vld [vmem:[%s303 + $0x3c] sm:$0xf]
          %v450 = vld [vmem:[%s347] sm:$0xf]
          %v451 = vld [vmem:[%s347 + $0x4] sm:$0xf]
          %v452 = vld [vmem:[%s347 + $0x8] sm:$0xf]
          %v453 = vld [vmem:[%s347 + $0xc] sm:$0xf]
          %v454 = vld [vmem:[%s347 + $0x10] sm:$0xf]
          %v455 = vld [vmem:[%s347 + $0x14] sm:$0xf]
          %v456 = vld [vmem:[%s347 + $0x18] sm:$0xf]
          %v457 = vld [vmem:[%s347 + $0x1c] sm:$0xf]
          %v458 = vld [vmem:[%s347 + $0x20] sm:$0xf]
          %v459 = vld [vmem:[%s347 + $0x24] sm:$0xf]
          %v460 = vld [vmem:[%s347 + $0x28] sm:$0xf]
          %v461 = vld [vmem:[%s347 + $0x2c] sm:$0xf]
          %v462 = vld [vmem:[%s347 + $0x30] sm:$0xf]
          %v463 = vld [vmem:[%s347 + $0x34] sm:$0xf]
          %v464 = vld [vmem:[%s347 + $0x38] sm:$0xf]
          %v465 = vld [vmem:[%s347 + $0x3c] sm:$0xf]
          %v482 = vunpack.c.l.b16 %v450
          %v483 = vunpack.c.l.b16 %v451
          %v484 = vunpack.c.l.b16 %v452
          %v485 = vunpack.c.l.b16 %v453
          %v486 = vunpack.c.l.b16 %v454
          %v487 = vunpack.c.l.b16 %v455
          %v488 = vunpack.c.l.b16 %v456
          %v489 = vunpack.c.l.b16 %v457
          %v490 = vunpack.c.l.b16 %v458
          %v491 = vunpack.c.l.b16 %v459
          %v492 = vunpack.c.l.b16 %v460
          %v493 = vunpack.c.l.b16 %v461
          %v494 = vunpack.c.l.b16 %v462
          %v495 = vunpack.c.l.b16 %v463
          %v496 = vunpack.c.l.b16 %v464
          %v497 = vunpack.c.l.b16 %v465
          %v498 = vpack.c.b16 %v483, %v482
          %v499 = vpack.c.b16 %v485, %v484
          %v500 = vpack.c.b16 %v487, %v486
          %v501 = vpack.c.b16 %v489, %v488
          %v502 = vpack.c.b16 %v491, %v490
          %v503 = vpack.c.b16 %v493, %v492
          %v504 = vpack.c.b16 %v495, %v494
          %v505 = vpack.c.b16 %v497, %v496
          %v522 = vunpack.c.h.b16 %v418
          %v523 = vunpack.c.h.b16 %v419
          %v524 = vunpack.c.h.b16 %v420
          %v525 = vunpack.c.h.b16 %v421
          %v526 = vunpack.c.h.b16 %v422
          %v527 = vunpack.c.h.b16 %v423
          %v528 = vunpack.c.h.b16 %v424
          %v529 = vunpack.c.h.b16 %v425
          %v530 = vunpack.c.h.b16 %v426
          %v531 = vunpack.c.h.b16 %v427
          %v532 = vunpack.c.h.b16 %v428
          %v533 = vunpack.c.h.b16 %v429
          %v534 = vunpack.c.h.b16 %v430
          %v535 = vunpack.c.h.b16 %v431
          %v536 = vunpack.c.h.b16 %v432
          %v537 = vunpack.c.h.b16 %v433
          %v538 = vpack.c.b16 %v523, %v522
          %v539 = vpack.c.b16 %v525, %v524
          %v540 = vpack.c.b16 %v527, %v526
          %v541 = vpack.c.b16 %v529, %v528
          %v542 = vpack.c.b16 %v531, %v530
          %v543 = vpack.c.b16 %v533, %v532
          %v544 = vpack.c.b16 %v535, %v534
          %v545 = vpack.c.b16 %v537, %v536
          %vm546 = vcmask 523264
          %v548 = vsel %vm546, %v498, 0
          %v551 = vsel %vm546, %v499, 0
          %v554 = vsel %vm546, %v500, 0
          %v557 = vsel %vm546, %v501, 0
          %v560 = vsel %vm546, %v502, 0
          %v563 = vsel %vm546, %v503, 0
          %v566 = vsel %vm546, %v504, 0
          %v569 = vsel %vm546, %v505, 0
          %v572 = vsel %vm546, %v538, 0
          %v575 = vsel %vm546, %v539, 0
          %v578 = vsel %vm546, %v540, 0
          %v581 = vsel %vm546, %v541, 0
          %v584 = vsel %vm546, %v542, 0
          %v587 = vsel %vm546, %v543, 0
          %v590 = vsel %vm546, %v544, 0
          %v593 = vsel %vm546, %v545, 0
          %595 = vmatprep.subr.bf16.mxu0 0
          %596 = vmatpush1.bf16.xpose.msra.mxu0 %v593
          %597 = vmatprep.subr.bf16.mxu0 0
          %598 = vmatpush1.bf16.xpose.msra.mxu0 %v590
          %599 = vmatprep.subr.bf16.mxu0 0
          %600 = vmatpush1.bf16.xpose.msra.mxu0 %v587
          %601 = vmatprep.subr.bf16.mxu0 0
          %602 = vmatpush1.bf16.xpose.msra.mxu0 %v584
          %603 = vmatprep.subr.bf16.mxu0 0
          %604 = vmatpush1.bf16.xpose.msra.mxu0 %v581
          %605 = vmatprep.subr.bf16.mxu0 0
          %606 = vmatpush1.bf16.xpose.msra.mxu0 %v578
          %607 = vmatprep.subr.bf16.mxu0 0
          %608 = vmatpush1.bf16.xpose.msra.mxu0 %v575
          %609 = vmatprep.subr.bf16.mxu0 0
          %610 = vmatpush1.bf16.xpose.msra.mxu0 %v572
          %611 = vmatprep.subr.bf16.mxu0 0
          %612 = vmatpush2.bf16.xpose.msra.mxu0 0
          %613 = vmatprep.subr.bf16.mxu0 0
          %614 = vmatpush2.bf16.xpose.msra.mxu0 0
          %615 = vmatprep.subr.bf16.mxu0 0
          %616 = vmatpush2.bf16.xpose.msra.mxu0 0
          %617 = vmatprep.subr.bf16.mxu0 0
          %618 = vmatpush2.bf16.xpose.msra.mxu0 0
          %619 = vmatprep.subr.bf16.mxu0 0
          %620 = vmatpush2.bf16.xpose.msra.mxu0 0
          %621 = vmatprep.subr.bf16.mxu0 0
          %622 = vmatpush2.bf16.xpose.msra.mxu0 0
          %623 = vmatprep.subr.bf16.mxu0 0
          %624 = vmatpush2.bf16.xpose.msra.mxu0 0
          %625 = vmatprep.subr.bf16.mxu0 0
          %626 = vmatpush2.bf16.xpose.msra.mxu0 0
          %627 = vmatprep.mubr.bf16.mxu0 0
          %628 = vmatmul.mubr.bf16.gmra.mxu0 %v548
          %v629 = vpop.f32.mrf.mxu0
          %v630 = vadd.f32 0.0, %v629
          %v631 = vpop.f32.mrf.mxu0
          %v632 = vpop.f32.mrf.mxu0
          %v633 = vadd.f32 0.0, %v632
          %v634 = vpop.f32.mrf.mxu0
          %635 = vmatprep.mubr.bf16.mxu0 0
          %636 = vmatmul.mubr.bf16.gmra.mxu0 %v551
          %v637 = vpop.f32.mrf.mxu0
          %v638 = vadd.f32 0.0, %v637
          %v639 = vpop.f32.mrf.mxu0
          %v640 = vpop.f32.mrf.mxu0
          %v641 = vadd.f32 0.0, %v640
          %v642 = vpop.f32.mrf.mxu0
          %643 = vmatprep.mubr.bf16.mxu0 0
          %644 = vmatmul.mubr.bf16.gmra.mxu0 %v554
          %v645 = vpop.f32.mrf.mxu0
          %v646 = vadd.f32 0.0, %v645
          %v647 = vpop.f32.mrf.mxu0
          %v648 = vpop.f32.mrf.mxu0
          %v649 = vadd.f32 0.0, %v648
          %v650 = vpop.f32.mrf.mxu0
          %651 = vmatprep.mubr.bf16.mxu0 0
          %652 = vmatmul.mubr.bf16.gmra.mxu0 %v557
          %v653 = vpop.f32.mrf.mxu0
          %v654 = vadd.f32 0.0, %v653
          %v655 = vpop.f32.mrf.mxu0
          %v656 = vpop.f32.mrf.mxu0
          %v657 = vadd.f32 0.0, %v656
          %v658 = vpop.f32.mrf.mxu0
          %659 = vmatprep.mubr.bf16.mxu0 0
          %660 = vmatmul.mubr.bf16.gmra.mxu0 %v560
          %v661 = vpop.f32.mrf.mxu0
          %v662 = vadd.f32 0.0, %v661
          %v663 = vpop.f32.mrf.mxu0
          %v664 = vpop.f32.mrf.mxu0
          %v665 = vadd.f32 0.0, %v664
          %v666 = vpop.f32.mrf.mxu0
          %667 = vmatprep.mubr.bf16.mxu0 0
          %668 = vmatmul.mubr.bf16.gmra.mxu0 %v563
          %v669 = vpop.f32.mrf.mxu0
          %v670 = vadd.f32 0.0, %v669
          %v671 = vpop.f32.mrf.mxu0
          %v672 = vpop.f32.mrf.mxu0
          %v673 = vadd.f32 0.0, %v672
          %v674 = vpop.f32.mrf.mxu0
          %675 = vmatprep.mubr.bf16.mxu0 0
          %676 = vmatmul.mubr.bf16.gmra.mxu0 %v566
          %v677 = vpop.f32.mrf.mxu0
          %v678 = vadd.f32 0.0, %v677
          %v679 = vpop.f32.mrf.mxu0
          %v680 = vpop.f32.mrf.mxu0
          %v681 = vadd.f32 0.0, %v680
          %v682 = vpop.f32.mrf.mxu0
          %683 = vmatprep.mubr.bf16.mxu0 0
          %684 = vmatmul.mubr.bf16.gmra.mxu0 %v569
          %v685 = vpop.f32.mrf.mxu0
          %v686 = vadd.f32 0.0, %v685
          %v687 = vpop.f32.mrf.mxu0
          %v688 = vpop.f32.mrf.mxu0
          %v689 = vadd.f32 0.0, %v688
          %v690 = vpop.f32.mrf.mxu0
          %691 = vdwg.mxu0
          %v708 = vunpack.c.l.b16 %v434
          %v709 = vunpack.c.l.b16 %v435
          %v710 = vunpack.c.l.b16 %v436
          %v711 = vunpack.c.l.b16 %v437
          %v712 = vunpack.c.l.b16 %v438
          %v713 = vunpack.c.l.b16 %v439
          %v714 = vunpack.c.l.b16 %v440
          %v715 = vunpack.c.l.b16 %v441
          %v716 = vunpack.c.l.b16 %v442
          %v717 = vunpack.c.l.b16 %v443
          %v718 = vunpack.c.l.b16 %v444
          %v719 = vunpack.c.l.b16 %v445
          %v720 = vunpack.c.l.b16 %v446
          %v721 = vunpack.c.l.b16 %v447
          %v722 = vunpack.c.l.b16 %v448
          %v723 = vunpack.c.l.b16 %v449
          %v724 = vpack.c.b16 %v709, %v708
          %v725 = vpack.c.b16 %v711, %v710
          %v726 = vpack.c.b16 %v713, %v712
          %v727 = vpack.c.b16 %v715, %v714
          %v728 = vpack.c.b16 %v717, %v716
          %v729 = vpack.c.b16 %v719, %v718
          %v730 = vpack.c.b16 %v721, %v720
          %v731 = vpack.c.b16 %v723, %v722
          %v740 = vunpack.c.l.b16 %v418
          %v741 = vunpack.c.l.b16 %v419
          %v742 = vunpack.c.l.b16 %v420
          %v743 = vunpack.c.l.b16 %v421
          %v744 = vunpack.c.l.b16 %v422
          %v745 = vunpack.c.l.b16 %v423
          %v746 = vunpack.c.l.b16 %v424
          %v747 = vunpack.c.l.b16 %v425
          %v748 = vunpack.c.l.b16 %v426
          %v749 = vunpack.c.l.b16 %v427
          %v750 = vunpack.c.l.b16 %v428
          %v751 = vunpack.c.l.b16 %v429
          %v752 = vunpack.c.l.b16 %v430
          %v753 = vunpack.c.l.b16 %v431
          %v754 = vunpack.c.l.b16 %v432
          %v755 = vunpack.c.l.b16 %v433
          %v756 = vpack.c.b16 %v741, %v740
          %v757 = vpack.c.b16 %v743, %v742
          %v758 = vpack.c.b16 %v745, %v744
          %v759 = vpack.c.b16 %v747, %v746
          %v760 = vpack.c.b16 %v749, %v748
          %v761 = vpack.c.b16 %v751, %v750
          %v762 = vpack.c.b16 %v753, %v752
          %v763 = vpack.c.b16 %v755, %v754
          %772 = vmatprep.subr.bf16.mxu0 0
          %773 = vmatpush1.bf16.xpose.msra.mxu0 %v763
          %774 = vmatprep.subr.bf16.mxu0 0
          %775 = vmatpush1.bf16.xpose.msra.mxu0 %v762
          %776 = vmatprep.subr.bf16.mxu0 0
          %777 = vmatpush1.bf16.xpose.msra.mxu0 %v761
          %778 = vmatprep.subr.bf16.mxu0 0
          %779 = vmatpush1.bf16.xpose.msra.mxu0 %v760
          %780 = vmatprep.subr.bf16.mxu0 0
          %781 = vmatpush1.bf16.xpose.msra.mxu0 %v759
          %782 = vmatprep.subr.bf16.mxu0 0
          %783 = vmatpush1.bf16.xpose.msra.mxu0 %v758
          %784 = vmatprep.subr.bf16.mxu0 0
          %785 = vmatpush1.bf16.xpose.msra.mxu0 %v757
          %786 = vmatprep.subr.bf16.mxu0 0
          %787 = vmatpush1.bf16.xpose.msra.mxu0 %v756
          %788 = vmatprep.subr.bf16.mxu0 0
          %789 = vmatpush2.bf16.xpose.msra.mxu0 0
          %790 = vmatprep.subr.bf16.mxu0 0
          %791 = vmatpush2.bf16.xpose.msra.mxu0 0
          %792 = vmatprep.subr.bf16.mxu0 0
          %793 = vmatpush2.bf16.xpose.msra.mxu0 0
          %794 = vmatprep.subr.bf16.mxu0 0
          %795 = vmatpush2.bf16.xpose.msra.mxu0 0
          %796 = vmatprep.subr.bf16.mxu0 0
          %797 = vmatpush2.bf16.xpose.msra.mxu0 0
          %798 = vmatprep.subr.bf16.mxu0 0
          %799 = vmatpush2.bf16.xpose.msra.mxu0 0
          %800 = vmatprep.subr.bf16.mxu0 0
          %801 = vmatpush2.bf16.xpose.msra.mxu0 0
          %802 = vmatprep.subr.bf16.mxu0 0
          %803 = vmatpush2.bf16.xpose.msra.mxu0 0
          %804 = vmatprep.mubr.bf16.mxu0 0
          %805 = vmatmul.mubr.bf16.gmra.mxu0 %v724
          %v806 = vpop.f32.mrf.mxu0
          %v807 = vadd.f32 %v630, %v806
          %v808 = vpop.f32.mrf.mxu0
          %v809 = vpop.f32.mrf.mxu0
          %v810 = vadd.f32 %v633, %v809
          %v811 = vpop.f32.mrf.mxu0
          %812 = vmatprep.mubr.bf16.mxu0 0
          %813 = vmatmul.mubr.bf16.gmra.mxu0 %v725
          %v814 = vpop.f32.mrf.mxu0
          %v815 = vadd.f32 %v638, %v814
          %v816 = vpop.f32.mrf.mxu0
          %v817 = vpop.f32.mrf.mxu0
          %v818 = vadd.f32 %v641, %v817
          %v819 = vpop.f32.mrf.mxu0
          %820 = vmatprep.mubr.bf16.mxu0 0
          %821 = vmatmul.mubr.bf16.gmra.mxu0 %v726
          %v822 = vpop.f32.mrf.mxu0
          %v823 = vadd.f32 %v646, %v822
          %v824 = vpop.f32.mrf.mxu0
          %v825 = vpop.f32.mrf.mxu0
          %v826 = vadd.f32 %v649, %v825
          %v827 = vpop.f32.mrf.mxu0
          %828 = vmatprep.mubr.bf16.mxu0 0
          %829 = vmatmul.mubr.bf16.gmra.mxu0 %v727
          %v830 = vpop.f32.mrf.mxu0
          %v831 = vadd.f32 %v654, %v830
          %v832 = vpop.f32.mrf.mxu0
          %v833 = vpop.f32.mrf.mxu0
          %v834 = vadd.f32 %v657, %v833
          %v835 = vpop.f32.mrf.mxu0
          %836 = vmatprep.mubr.bf16.mxu0 0
          %837 = vmatmul.mubr.bf16.gmra.mxu0 %v728
          %v838 = vpop.f32.mrf.mxu0
          %v839 = vadd.f32 %v662, %v838
          %v840 = vpop.f32.mrf.mxu0
          %v841 = vpop.f32.mrf.mxu0
          %v842 = vadd.f32 %v665, %v841
          %v843 = vpop.f32.mrf.mxu0
          %844 = vmatprep.mubr.bf16.mxu0 0
          %845 = vmatmul.mubr.bf16.gmra.mxu0 %v729
          %v846 = vpop.f32.mrf.mxu0
          %v847 = vadd.f32 %v670, %v846
          %v848 = vpop.f32.mrf.mxu0
          %v849 = vpop.f32.mrf.mxu0
          %v850 = vadd.f32 %v673, %v849
          %v851 = vpop.f32.mrf.mxu0
          %852 = vmatprep.mubr.bf16.mxu0 0
          %853 = vmatmul.mubr.bf16.gmra.mxu0 %v730
          %v854 = vpop.f32.mrf.mxu0
          %v855 = vadd.f32 %v678, %v854
          %v856 = vpop.f32.mrf.mxu0
          %v857 = vpop.f32.mrf.mxu0
          %v858 = vadd.f32 %v681, %v857
          %v859 = vpop.f32.mrf.mxu0
          %860 = vmatprep.mubr.bf16.mxu0 0
          %861 = vmatmul.mubr.bf16.gmra.mxu0 %v731
          %v862 = vpop.f32.mrf.mxu0
          %v863 = vadd.f32 %v686, %v862
          %v864 = vpop.f32.mrf.mxu0
          %v865 = vpop.f32.mrf.mxu0
          %v866 = vadd.f32 %v689, %v865
          %v867 = vpop.f32.mrf.mxu0
          %868 = vdwg.mxu0
          %v869 = vmul.f32 %v807, 0.07216878
          %v870 = vmul.f32 %v810, 0.07216878
          %v871 = vmul.f32 %v815, 0.07216878
          %v872 = vmul.f32 %v818, 0.07216878
          %v873 = vmul.f32 %v823, 0.07216878
          %v874 = vmul.f32 %v826, 0.07216878
          %v875 = vmul.f32 %v831, 0.07216878
          %v876 = vmul.f32 %v834, 0.07216878
          %v877 = vmul.f32 %v839, 0.07216878
          %v878 = vmul.f32 %v842, 0.07216878
          %v879 = vmul.f32 %v847, 0.07216878
          %v880 = vmul.f32 %v850, 0.07216878
          %v881 = vmul.f32 %v855, 0.07216878
          %v882 = vmul.f32 %v858, 0.07216878
          %v883 = vmul.f32 %v863, 0.07216878
          %v884 = vmul.f32 %v866, 0.07216878
          %v885 = vlaneseq
          %v886 = vshrl.u32 %v885, 7
          %v887 = vadd.s32 %v886, 8
          %v888 = vadd.s32 %v886, 16
          %v889 = vadd.s32 %v886, 24
          %v890 = vadd.s32 %v886, 32
          %v891 = vadd.s32 %v886, 40
          %v892 = vadd.s32 %v886, 48
          %v893 = vadd.s32 %v886, 56
          %v894 = vadd.s32 %v886, 64
          %v895 = vadd.s32 %v886, 72
          %v896 = vadd.s32 %v886, 80
          %v897 = vadd.s32 %v886, 88
          %v898 = vadd.s32 %v886, 96
          %v899 = vadd.s32 %v886, 104
          %v900 = vadd.s32 %v886, 112
          %v901 = vadd.s32 %v886, 120
          %v902 = vstv %s411
          %v903 = vadd.s32 %v902, %v886
          %v904 = vadd.s32 %v902, %v887
          %v905 = vadd.s32 %v902, %v888
          %v906 = vadd.s32 %v902, %v889
          %v907 = vadd.s32 %v902, %v890
          %v908 = vadd.s32 %v902, %v891
          %v909 = vadd.s32 %v902, %v892
          %v910 = vadd.s32 %v902, %v893
          %v911 = vadd.s32 %v902, %v894
          %v912 = vadd.s32 %v902, %v895
          %v913 = vadd.s32 %v902, %v896
          %v914 = vadd.s32 %v902, %v897
          %v915 = vadd.s32 %v902, %v898
          %v916 = vadd.s32 %v902, %v899
          %v917 = vadd.s32 %v902, %v900
          %v918 = vadd.s32 %v902, %v901
          %v919 = vlaneseq
          %v920 = vand.u32 %v919, 127
          %v921 = vstv %s412
          %v922 = vadd.s32 %v921, %v920
          %vm923 = vcmp.le.s32.totalorder %v922, %v903
          %vm924 = vcmp.le.s32.totalorder %v922, %v904
          %vm925 = vcmp.le.s32.totalorder %v922, %v905
          %vm926 = vcmp.le.s32.totalorder %v922, %v906
          %vm927 = vcmp.le.s32.totalorder %v922, %v907
          %vm928 = vcmp.le.s32.totalorder %v922, %v908
          %vm929 = vcmp.le.s32.totalorder %v922, %v909
          %vm930 = vcmp.le.s32.totalorder %v922, %v910
          %vm931 = vcmp.le.s32.totalorder %v922, %v911
          %vm932 = vcmp.le.s32.totalorder %v922, %v912
          %vm933 = vcmp.le.s32.totalorder %v922, %v913
          %vm934 = vcmp.le.s32.totalorder %v922, %v914
          %vm935 = vcmp.le.s32.totalorder %v922, %v915
          %vm936 = vcmp.le.s32.totalorder %v922, %v916
          %vm937 = vcmp.le.s32.totalorder %v922, %v917
          %vm938 = vcmp.le.s32.totalorder %v922, %v918
          %v939 = vsel %vm923, %v869, -1e+30
          %v940 = vsel %vm924, %v870, -1e+30
          %v941 = vsel %vm925, %v871, -1e+30
          %v942 = vsel %vm926, %v872, -1e+30
          %v943 = vsel %vm927, %v873, -1e+30
          %v944 = vsel %vm928, %v874, -1e+30
          %v945 = vsel %vm929, %v875, -1e+30
          %v946 = vsel %vm930, %v876, -1e+30
          %v947 = vsel %vm931, %v877, -1e+30
          %v948 = vsel %vm932, %v878, -1e+30
          %v949 = vsel %vm933, %v879, -1e+30
          %v950 = vsel %vm934, %v880, -1e+30
          %v951 = vsel %vm935, %v881, -1e+30
          %v952 = vsel %vm936, %v882, -1e+30
          %v953 = vsel %vm937, %v883, -1e+30
          %v954 = vsel %vm938, %v884, -1e+30
          %v955 = vld [vmem:[#allocation2] sm:$0xff]
          %v956 = vld [vmem:[#allocation2 + $0x8] sm:$0xff]
          %v957 = vld [vmem:[#allocation2 + $0x10] sm:$0xff]
          %v958 = vld [vmem:[#allocation2 + $0x18] sm:$0xff]
          %v959 = vld [vmem:[#allocation2 + $0x20] sm:$0xff]
          %v960 = vld [vmem:[#allocation2 + $0x28] sm:$0xff]
          %v961 = vld [vmem:[#allocation2 + $0x30] sm:$0xff]
          %v962 = vld [vmem:[#allocation2 + $0x38] sm:$0xff]
          %v963 = vld [vmem:[#allocation2 + $0x40] sm:$0xff]
          %v964 = vld [vmem:[#allocation2 + $0x48] sm:$0xff]
          %v965 = vld [vmem:[#allocation2 + $0x50] sm:$0xff]
          %v966 = vld [vmem:[#allocation2 + $0x58] sm:$0xff]
          %v967 = vld [vmem:[#allocation2 + $0x60] sm:$0xff]
          %v968 = vld [vmem:[#allocation2 + $0x68] sm:$0xff]
          %v969 = vld [vmem:[#allocation2 + $0x70] sm:$0xff]
          %v970 = vld [vmem:[#allocation2 + $0x78] sm:$0xff]
          %971 = vmax.xlane.f32.xlu0 %v939
          %v972 = vpop.xlane.xlu0 %971
          %973 = vmax.xlane.f32.xlu0 %v940
          %v974 = vpop.xlane.xlu0 %973
          %975 = vmax.xlane.f32.xlu0 %v941
          %v976 = vpop.xlane.xlu0 %975
          %977 = vmax.xlane.f32.xlu0 %v942
          %v978 = vpop.xlane.xlu0 %977
          %979 = vmax.xlane.f32.xlu0 %v943
          %v980 = vpop.xlane.xlu0 %979
          %981 = vmax.xlane.f32.xlu0 %v944
          %v982 = vpop.xlane.xlu0 %981
          %983 = vmax.xlane.f32.xlu0 %v945
          %v984 = vpop.xlane.xlu0 %983
          %985 = vmax.xlane.f32.xlu0 %v946
          %v986 = vpop.xlane.xlu0 %985
          %987 = vmax.xlane.f32.xlu0 %v947
          %v988 = vpop.xlane.xlu0 %987
          %989 = vmax.xlane.f32.xlu0 %v948
          %v990 = vpop.xlane.xlu0 %989
          %991 = vmax.xlane.f32.xlu0 %v949
          %v992 = vpop.xlane.xlu0 %991
          %993 = vmax.xlane.f32.xlu0 %v950
          %v994 = vpop.xlane.xlu0 %993
          %995 = vmax.xlane.f32.xlu0 %v951
          %v996 = vpop.xlane.xlu0 %995
          %997 = vmax.xlane.f32.xlu0 %v952
          %v998 = vpop.xlane.xlu0 %997
          %999 = vmax.xlane.f32.xlu0 %v953
          %v1000 = vpop.xlane.xlu0 %999
          %1001 = vmax.xlane.f32.xlu0 %v954
          %v1002 = vpop.xlane.xlu0 %1001
          %v1003 = vmax.f32 %v955, %v972
          %v1004 = vmax.f32 %v956, %v974
          %v1005 = vmax.f32 %v957, %v976
          %v1006 = vmax.f32 %v958, %v978
          %v1007 = vmax.f32 %v959, %v980
          %v1008 = vmax.f32 %v960, %v982
          %v1009 = vmax.f32 %v961, %v984
          %v1010 = vmax.f32 %v962, %v986
          %v1011 = vmax.f32 %v963, %v988
          %v1012 = vmax.f32 %v964, %v990
          %v1013 = vmax.f32 %v965, %v992
          %v1014 = vmax.f32 %v966, %v994
          %v1015 = vmax.f32 %v967, %v996
          %v1016 = vmax.f32 %v968, %v998
          %v1017 = vmax.f32 %v969, %v1000
          %v1018 = vmax.f32 %v970, %v1002
          %v1019 = vsub.f32 %v955, %v1003
          %v1020 = vsub.f32 %v956, %v1004
          %v1021 = vsub.f32 %v957, %v1005
          %v1022 = vsub.f32 %v958, %v1006
          %v1023 = vsub.f32 %v959, %v1007
          %v1024 = vsub.f32 %v960, %v1008
          %v1025 = vsub.f32 %v961, %v1009
          %v1026 = vsub.f32 %v962, %v1010
          %v1027 = vsub.f32 %v963, %v1011
          %v1028 = vsub.f32 %v964, %v1012
          %v1029 = vsub.f32 %v965, %v1013
          %v1030 = vsub.f32 %v966, %v1014
          %v1031 = vsub.f32 %v967, %v1015
          %v1032 = vsub.f32 %v968, %v1016
          %v1033 = vsub.f32 %v969, %v1017
          %v1034 = vsub.f32 %v970, %v1018
          %v1035 = vmul.f32 %v1019, 1.442695
          %v1036 = vpow.pop %v1035
          %v1037 = vmul.f32 %v1020, 1.442695
          %v1038 = vpow.pop %v1037
          %v1039 = vmul.f32 %v1021, 1.442695
          %v1040 = vpow.pop %v1039
          %v1041 = vmul.f32 %v1022, 1.442695
          %v1042 = vpow.pop %v1041
          %v1043 = vmul.f32 %v1023, 1.442695
          %v1044 = vpow.pop %v1043
          %v1045 = vmul.f32 %v1024, 1.442695
          %v1046 = vpow.pop %v1045
          %v1047 = vmul.f32 %v1025, 1.442695
          %v1048 = vpow.pop %v1047
          %v1049 = vmul.f32 %v1026, 1.442695
          %v1050 = vpow.pop %v1049
          %v1051 = vmul.f32 %v1027, 1.442695
          %v1052 = vpow.pop %v1051
          %v1053 = vmul.f32 %v1028, 1.442695
          %v1054 = vpow.pop %v1053
          %v1055 = vmul.f32 %v1029, 1.442695
          %v1056 = vpow.pop %v1055
          %v1057 = vmul.f32 %v1030, 1.442695
          %v1058 = vpow.pop %v1057
          %v1059 = vmul.f32 %v1031, 1.442695
          %v1060 = vpow.pop %v1059
          %v1061 = vmul.f32 %v1032, 1.442695
          %v1062 = vpow.pop %v1061
          %v1063 = vmul.f32 %v1033, 1.442695
          %v1064 = vpow.pop %v1063
          %v1065 = vmul.f32 %v1034, 1.442695
          %v1066 = vpow.pop %v1065
          %1068 = vset.pattern.permute.xlu0 0
          %1069 = vperm.xlu0 %1068, %v1003
          %v1070 = vpop.permute.xlu0 %1069
          %1073 = vset.pattern.permute.xlu0 0
          %1074 = vperm.xlu0 %1073, %v1004
          %v1075 = vpop.permute.xlu0 %1074
          %1078 = vset.pattern.permute.xlu0 0
          %1079 = vperm.xlu0 %1078, %v1005
          %v1080 = vpop.permute.xlu0 %1079
          %1083 = vset.pattern.permute.xlu0 0
          %1084 = vperm.xlu0 %1083, %v1006
          %v1085 = vpop.permute.xlu0 %1084
          %1088 = vset.pattern.permute.xlu0 0
          %1089 = vperm.xlu0 %1088, %v1007
          %v1090 = vpop.permute.xlu0 %1089
          %1093 = vset.pattern.permute.xlu0 0
          %1094 = vperm.xlu0 %1093, %v1008
          %v1095 = vpop.permute.xlu0 %1094
          %1098 = vset.pattern.permute.xlu0 0
          %1099 = vperm.xlu0 %1098, %v1009
          %v1100 = vpop.permute.xlu0 %1099
          %1103 = vset.pattern.permute.xlu0 0
          %1104 = vperm.xlu0 %1103, %v1010
          %v1105 = vpop.permute.xlu0 %1104
          %1108 = vset.pattern.permute.xlu0 0
          %1109 = vperm.xlu0 %1108, %v1011
          %v1110 = vpop.permute.xlu0 %1109
          %1113 = vset.pattern.permute.xlu0 0
          %1114 = vperm.xlu0 %1113, %v1012
          %v1115 = vpop.permute.xlu0 %1114
          %1118 = vset.pattern.permute.xlu0 0
          %1119 = vperm.xlu0 %1118, %v1013
          %v1120 = vpop.permute.xlu0 %1119
          %1123 = vset.pattern.permute.xlu0 0
          %1124 = vperm.xlu0 %1123, %v1014
          %v1125 = vpop.permute.xlu0 %1124
          %1128 = vset.pattern.permute.xlu0 0
          %1129 = vperm.xlu0 %1128, %v1015
          %v1130 = vpop.permute.xlu0 %1129
          %1133 = vset.pattern.permute.xlu0 0
          %1134 = vperm.xlu0 %1133, %v1016
          %v1135 = vpop.permute.xlu0 %1134
          %1138 = vset.pattern.permute.xlu0 0
          %1139 = vperm.xlu0 %1138, %v1017
          %v1140 = vpop.permute.xlu0 %1139
          %1143 = vset.pattern.permute.xlu0 0
          %1144 = vperm.xlu0 %1143, %v1018
          %v1145 = vpop.permute.xlu0 %1144
          %v1147 = vsub.f32 %v939, %v1070
          %v1148 = vsub.f32 %v940, %v1075
          %v1149 = vsub.f32 %v941, %v1080
          %v1150 = vsub.f32 %v942, %v1085
          %v1151 = vsub.f32 %v943, %v1090
          %v1152 = vsub.f32 %v944, %v1095
          %v1153 = vsub.f32 %v945, %v1100
          %v1154 = vsub.f32 %v946, %v1105
          %v1155 = vsub.f32 %v947, %v1110
          %v1156 = vsub.f32 %v948, %v1115
          %v1157 = vsub.f32 %v949, %v1120
          %v1158 = vsub.f32 %v950, %v1125
          %v1159 = vsub.f32 %v951, %v1130
          %v1160 = vsub.f32 %v952, %v1135
          %v1161 = vsub.f32 %v953, %v1140
          %v1162 = vsub.f32 %v954, %v1145
          %v1163 = vmul.f32 %v1147, 1.442695
          %v1164 = vpow.pop %v1163
          %v1165 = vmul.f32 %v1148, 1.442695
          %v1166 = vpow.pop %v1165
          %v1167 = vmul.f32 %v1149, 1.442695
          %v1168 = vpow.pop %v1167
          %v1169 = vmul.f32 %v1150, 1.442695
          %v1170 = vpow.pop %v1169
          %v1171 = vmul.f32 %v1151, 1.442695
          %v1172 = vpow.pop %v1171
          %v1173 = vmul.f32 %v1152, 1.442695
          %v1174 = vpow.pop %v1173
          %v1175 = vmul.f32 %v1153, 1.442695
          %v1176 = vpow.pop %v1175
          %v1177 = vmul.f32 %v1154, 1.442695
          %v1178 = vpow.pop %v1177
          %v1179 = vmul.f32 %v1155, 1.442695
          %v1180 = vpow.pop %v1179
          %v1181 = vmul.f32 %v1156, 1.442695
          %v1182 = vpow.pop %v1181
          %v1183 = vmul.f32 %v1157, 1.442695
          %v1184 = vpow.pop %v1183
          %v1185 = vmul.f32 %v1158, 1.442695
          %v1186 = vpow.pop %v1185
          %v1187 = vmul.f32 %v1159, 1.442695
          %v1188 = vpow.pop %v1187
          %v1189 = vmul.f32 %v1160, 1.442695
          %v1190 = vpow.pop %v1189
          %v1191 = vmul.f32 %v1161, 1.442695
          %v1192 = vpow.pop %v1191
          %v1193 = vmul.f32 %v1162, 1.442695
          %v1194 = vpow.pop %v1193
          %v1195 = vld [vmem:[#allocation3] sm:$0xff]
          %v1196 = vld [vmem:[#allocation3 + $0x8] sm:$0xff]
          %v1197 = vld [vmem:[#allocation3 + $0x10] sm:$0xff]
          %v1198 = vld [vmem:[#allocation3 + $0x18] sm:$0xff]
          %v1199 = vld [vmem:[#allocation3 + $0x20] sm:$0xff]
          %v1200 = vld [vmem:[#allocation3 + $0x28] sm:$0xff]
          %v1201 = vld [vmem:[#allocation3 + $0x30] sm:$0xff]
          %v1202 = vld [vmem:[#allocation3 + $0x38] sm:$0xff]
          %v1203 = vld [vmem:[#allocation3 + $0x40] sm:$0xff]
          %v1204 = vld [vmem:[#allocation3 + $0x48] sm:$0xff]
          %v1205 = vld [vmem:[#allocation3 + $0x50] sm:$0xff]
          %v1206 = vld [vmem:[#allocation3 + $0x58] sm:$0xff]
          %v1207 = vld [vmem:[#allocation3 + $0x60] sm:$0xff]
          %v1208 = vld [vmem:[#allocation3 + $0x68] sm:$0xff]
          %v1209 = vld [vmem:[#allocation3 + $0x70] sm:$0xff]
          %v1210 = vld [vmem:[#allocation3 + $0x78] sm:$0xff]
          %v1211 = vmul.f32 %v1036, %v1195
          %v1212 = vmul.f32 %v1038, %v1196
          %v1213 = vmul.f32 %v1040, %v1197
          %v1214 = vmul.f32 %v1042, %v1198
          %v1215 = vmul.f32 %v1044, %v1199
          %v1216 = vmul.f32 %v1046, %v1200
          %v1217 = vmul.f32 %v1048, %v1201
          %v1218 = vmul.f32 %v1050, %v1202
          %v1219 = vmul.f32 %v1052, %v1203
          %v1220 = vmul.f32 %v1054, %v1204
          %v1221 = vmul.f32 %v1056, %v1205
          %v1222 = vmul.f32 %v1058, %v1206
          %v1223 = vmul.f32 %v1060, %v1207
          %v1224 = vmul.f32 %v1062, %v1208
          %v1225 = vmul.f32 %v1064, %v1209
          %v1226 = vmul.f32 %v1066, %v1210
          %1227 = vadd.xlane.f32.xlu0 %v1164
          %v1228 = vpop.xlane.xlu0 %1227
          %1229 = vadd.xlane.f32.xlu0 %v1166
          %v1230 = vpop.xlane.xlu0 %1229
          %1231 = vadd.xlane.f32.xlu0 %v1168
          %v1232 = vpop.xlane.xlu0 %1231
          %1233 = vadd.xlane.f32.xlu0 %v1170
          %v1234 = vpop.xlane.xlu0 %1233
          %1235 = vadd.xlane.f32.xlu0 %v1172
          %v1236 = vpop.xlane.xlu0 %1235
          %1237 = vadd.xlane.f32.xlu0 %v1174
          %v1238 = vpop.xlane.xlu0 %1237
          %1239 = vadd.xlane.f32.xlu0 %v1176
          %v1240 = vpop.xlane.xlu0 %1239
          %1241 = vadd.xlane.f32.xlu0 %v1178
          %v1242 = vpop.xlane.xlu0 %1241
          %1243 = vadd.xlane.f32.xlu0 %v1180
          %v1244 = vpop.xlane.xlu0 %1243
          %1245 = vadd.xlane.f32.xlu0 %v1182
          %v1246 = vpop.xlane.xlu0 %1245
          %1247 = vadd.xlane.f32.xlu0 %v1184
          %v1248 = vpop.xlane.xlu0 %1247
          %1249 = vadd.xlane.f32.xlu0 %v1186
          %v1250 = vpop.xlane.xlu0 %1249
          %1251 = vadd.xlane.f32.xlu0 %v1188
          %v1252 = vpop.xlane.xlu0 %1251
          %1253 = vadd.xlane.f32.xlu0 %v1190
          %v1254 = vpop.xlane.xlu0 %1253
          %1255 = vadd.xlane.f32.xlu0 %v1192
          %v1256 = vpop.xlane.xlu0 %1255
          %1257 = vadd.xlane.f32.xlu0 %v1194
          %v1258 = vpop.xlane.xlu0 %1257
          %v1259 = vadd.f32 %v1211, %v1228
          %v1260 = vadd.f32 %v1212, %v1230
          %v1261 = vadd.f32 %v1213, %v1232
          %v1262 = vadd.f32 %v1214, %v1234
          %v1263 = vadd.f32 %v1215, %v1236
          %v1264 = vadd.f32 %v1216, %v1238
          %v1265 = vadd.f32 %v1217, %v1240
          %v1266 = vadd.f32 %v1218, %v1242
          %v1267 = vadd.f32 %v1219, %v1244
          %v1268 = vadd.f32 %v1220, %v1246
          %v1269 = vadd.f32 %v1221, %v1248
          %v1270 = vadd.f32 %v1222, %v1250
          %v1271 = vadd.f32 %v1223, %v1252
          %v1272 = vadd.f32 %v1224, %v1254
          %v1273 = vadd.f32 %v1225, %v1256
          %v1274 = vadd.f32 %v1226, %v1258
          %vm1275 = vcmask 7168
          %1276 = vst.msk [vmem:[#allocation3] sm:$0xff] %vm1275, %v1259
          %1277 = vst.msk [vmem:[#allocation3 + $0x8] sm:$0xff] %vm1275, %v1260
          %1278 = vst.msk [vmem:[#allocation3 + $0x10] sm:$0xff] %vm1275, %v1261
          %1279 = vst.msk [vmem:[#allocation3 + $0x18] sm:$0xff] %vm1275, %v1262
          %1280 = vst.msk [vmem:[#allocation3 + $0x20] sm:$0xff] %vm1275, %v1263
          %1281 = vst.msk [vmem:[#allocation3 + $0x28] sm:$0xff] %vm1275, %v1264
          %1282 = vst.msk [vmem:[#allocation3 + $0x30] sm:$0xff] %vm1275, %v1265
          %1283 = vst.msk [vmem:[#allocation3 + $0x38] sm:$0xff] %vm1275, %v1266
          %1284 = vst.msk [vmem:[#allocation3 + $0x40] sm:$0xff] %vm1275, %v1267
          %1285 = vst.msk [vmem:[#allocation3 + $0x48] sm:$0xff] %vm1275, %v1268
          %1286 = vst.msk [vmem:[#allocation3 + $0x50] sm:$0xff] %vm1275, %v1269
          %1287 = vst.msk [vmem:[#allocation3 + $0x58] sm:$0xff] %vm1275, %v1270
          %1288 = vst.msk [vmem:[#allocation3 + $0x60] sm:$0xff] %vm1275, %v1271
          %1289 = vst.msk [vmem:[#allocation3 + $0x68] sm:$0xff] %vm1275, %v1272
          %1290 = vst.msk [vmem:[#allocation3 + $0x70] sm:$0xff] %vm1275, %v1273
          %1291 = vst.msk [vmem:[#allocation3 + $0x78] sm:$0xff] %vm1275, %v1274
          %v1292 = vld [vmem:[#allocation4] sm:$0xff]
          %v1293 = vld [vmem:[#allocation4 + $0x8] sm:$0xff]
          %v1294 = vld [vmem:[#allocation4 + $0x10] sm:$0xff]
          %v1295 = vld [vmem:[#allocation4 + $0x18] sm:$0xff]
          %v1296 = vld [vmem:[#allocation4 + $0x20] sm:$0xff]
          %v1297 = vld [vmem:[#allocation4 + $0x28] sm:$0xff]
          %v1298 = vld [vmem:[#allocation4 + $0x30] sm:$0xff]
          %v1299 = vld [vmem:[#allocation4 + $0x38] sm:$0xff]
          %v1300 = vld [vmem:[#allocation4 + $0x40] sm:$0xff]
          %v1301 = vld [vmem:[#allocation4 + $0x48] sm:$0xff]
          %v1302 = vld [vmem:[#allocation4 + $0x50] sm:$0xff]
          %v1303 = vld [vmem:[#allocation4 + $0x58] sm:$0xff]
          %v1304 = vld [vmem:[#allocation4 + $0x60] sm:$0xff]
          %v1305 = vld [vmem:[#allocation4 + $0x68] sm:$0xff]
          %v1306 = vld [vmem:[#allocation4 + $0x70] sm:$0xff]
          %v1307 = vld [vmem:[#allocation4 + $0x78] sm:$0xff]
          %1309 = vset.pattern.permute.xlu0 0
          %1310 = vperm.xlu0 %1309, %v1036
          %v1311 = vpop.permute.xlu0 %1310
          %1314 = vset.pattern.permute.xlu0 0
          %1315 = vperm.xlu0 %1314, %v1038
          %v1316 = vpop.permute.xlu0 %1315
          %1319 = vset.pattern.permute.xlu0 0
          %1320 = vperm.xlu0 %1319, %v1040
          %v1321 = vpop.permute.xlu0 %1320
          %1324 = vset.pattern.permute.xlu0 0
          %1325 = vperm.xlu0 %1324, %v1042
          %v1326 = vpop.permute.xlu0 %1325
          %1329 = vset.pattern.permute.xlu0 0
          %1330 = vperm.xlu0 %1329, %v1044
          %v1331 = vpop.permute.xlu0 %1330
          %1334 = vset.pattern.permute.xlu0 0
          %1335 = vperm.xlu0 %1334, %v1046
          %v1336 = vpop.permute.xlu0 %1335
          %1339 = vset.pattern.permute.xlu0 0
          %1340 = vperm.xlu0 %1339, %v1048
          %v1341 = vpop.permute.xlu0 %1340
          %1344 = vset.pattern.permute.xlu0 0
          %1345 = vperm.xlu0 %1344, %v1050
          %v1346 = vpop.permute.xlu0 %1345
          %1349 = vset.pattern.permute.xlu0 0
          %1350 = vperm.xlu0 %1349, %v1052
          %v1351 = vpop.permute.xlu0 %1350
          %1354 = vset.pattern.permute.xlu0 0
          %1355 = vperm.xlu0 %1354, %v1054
          %v1356 = vpop.permute.xlu0 %1355
          %1359 = vset.pattern.permute.xlu0 0
          %1360 = vperm.xlu0 %1359, %v1056
          %v1361 = vpop.permute.xlu0 %1360
          %1364 = vset.pattern.permute.xlu0 0
          %1365 = vperm.xlu0 %1364, %v1058
          %v1366 = vpop.permute.xlu0 %1365
          %1369 = vset.pattern.permute.xlu0 0
          %1370 = vperm.xlu0 %1369, %v1060
          %v1371 = vpop.permute.xlu0 %1370
          %1374 = vset.pattern.permute.xlu0 0
          %1375 = vperm.xlu0 %1374, %v1062
          %v1376 = vpop.permute.xlu0 %1375
          %1379 = vset.pattern.permute.xlu0 0
          %1380 = vperm.xlu0 %1379, %v1064
          %v1381 = vpop.permute.xlu0 %1380
          %1384 = vset.pattern.permute.xlu0 0
          %1385 = vperm.xlu0 %1384, %v1066
          %v1386 = vpop.permute.xlu0 %1385
          %v1388 = vmul.f32 %v1311, %v1292
          %v1389 = vmul.f32 %v1316, %v1293
          %v1390 = vmul.f32 %v1321, %v1294
          %v1391 = vmul.f32 %v1326, %v1295
          %v1392 = vmul.f32 %v1331, %v1296
          %v1393 = vmul.f32 %v1336, %v1297
          %v1394 = vmul.f32 %v1341, %v1298
          %v1395 = vmul.f32 %v1346, %v1299
          %v1396 = vmul.f32 %v1351, %v1300
          %v1397 = vmul.f32 %v1356, %v1301
          %v1398 = vmul.f32 %v1361, %v1302
          %v1399 = vmul.f32 %v1366, %v1303
          %v1400 = vmul.f32 %v1371, %v1304
          %v1401 = vmul.f32 %v1376, %v1305
          %v1402 = vmul.f32 %v1381, %v1306
          %v1403 = vmul.f32 %v1386, %v1307
          %v1404 = vpack.c.bf16 %v1166, %v1164
          %v1405 = vpack.c.bf16 %v1170, %v1168
          %v1406 = vpack.c.bf16 %v1174, %v1172
          %v1407 = vpack.c.bf16 %v1178, %v1176
          %v1408 = vpack.c.bf16 %v1182, %v1180
          %v1409 = vpack.c.bf16 %v1186, %v1184
          %v1410 = vpack.c.bf16 %v1190, %v1188
          %v1411 = vpack.c.bf16 %v1194, %v1192
          %1412 = vmatprep.subr.bf16.mxu0 0
          %1413 = vmatpush1.bf16.msra.mxu0 %v763
          %1414 = vmatprep.subr.bf16.mxu0 0
          %1415 = vmatpush1.bf16.msra.mxu0 %v762
          %1416 = vmatprep.subr.bf16.mxu0 0
          %1417 = vmatpush1.bf16.msra.mxu0 %v761
          %1418 = vmatprep.subr.bf16.mxu0 0
          %1419 = vmatpush1.bf16.msra.mxu0 %v760
          %1420 = vmatprep.subr.bf16.mxu0 0
          %1421 = vmatpush1.bf16.msra.mxu0 %v759
          %1422 = vmatprep.subr.bf16.mxu0 0
          %1423 = vmatpush1.bf16.msra.mxu0 %v758
          %1424 = vmatprep.subr.bf16.mxu0 0
          %1425 = vmatpush1.bf16.msra.mxu0 %v757
          %1426 = vmatprep.subr.bf16.mxu0 0
          %1427 = vmatpush1.bf16.msra.mxu0 %v756
          %1428 = vmatprep.subr.bf16.mxu0 0
          %1429 = vmatpush2.bf16.msra.mxu0 0
          %1430 = vmatprep.subr.bf16.mxu0 0
          %1431 = vmatpush2.bf16.msra.mxu0 0
          %1432 = vmatprep.subr.bf16.mxu0 0
          %1433 = vmatpush2.bf16.msra.mxu0 0
          %1434 = vmatprep.subr.bf16.mxu0 0
          %1435 = vmatpush2.bf16.msra.mxu0 0
          %1436 = vmatprep.subr.bf16.mxu0 0
          %1437 = vmatpush2.bf16.msra.mxu0 0
          %1438 = vmatprep.subr.bf16.mxu0 0
          %1439 = vmatpush2.bf16.msra.mxu0 0
          %1440 = vmatprep.subr.bf16.mxu0 0
          %1441 = vmatpush2.bf16.msra.mxu0 0
          %1442 = vmatprep.subr.bf16.mxu0 0
          %1443 = vmatpush2.bf16.msra.mxu0 0
          %1444 = vmatprep.mubr.bf16.mxu0 0
          %1445 = vmatmul.mubr.bf16.gmra.mxu0 %v1404
          %v1446 = vpop.f32.mrf.mxu0
          %v1447 = vadd.f32 0.0, %v1446
          %v1448 = vpop.f32.mrf.mxu0
          %v1449 = vpop.f32.mrf.mxu0
          %v1450 = vadd.f32 0.0, %v1449
          %v1451 = vpop.f32.mrf.mxu0
          %1452 = vmatprep.mubr.bf16.mxu0 0
          %1453 = vmatmul.mubr.bf16.gmra.mxu0 %v1405
          %v1454 = vpop.f32.mrf.mxu0
          %v1455 = vadd.f32 0.0, %v1454
          %v1456 = vpop.f32.mrf.mxu0
          %v1457 = vpop.f32.mrf.mxu0
          %v1458 = vadd.f32 0.0, %v1457
          %v1459 = vpop.f32.mrf.mxu0
          %1460 = vmatprep.mubr.bf16.mxu0 0
          %1461 = vmatmul.mubr.bf16.gmra.mxu0 %v1406
          %v1462 = vpop.f32.mrf.mxu0
          %v1463 = vadd.f32 0.0, %v1462
          %v1464 = vpop.f32.mrf.mxu0
          %v1465 = vpop.f32.mrf.mxu0
          %v1466 = vadd.f32 0.0, %v1465
          %v1467 = vpop.f32.mrf.mxu0
          %1468 = vmatprep.mubr.bf16.mxu0 0
          %1469 = vmatmul.mubr.bf16.gmra.mxu0 %v1407
          %v1470 = vpop.f32.mrf.mxu0
          %v1471 = vadd.f32 0.0, %v1470
          %v1472 = vpop.f32.mrf.mxu0
          %v1473 = vpop.f32.mrf.mxu0
          %v1474 = vadd.f32 0.0, %v1473
          %v1475 = vpop.f32.mrf.mxu0
          %1476 = vmatprep.mubr.bf16.mxu0 0
          %1477 = vmatmul.mubr.bf16.gmra.mxu0 %v1408
          %v1478 = vpop.f32.mrf.mxu0
          %v1479 = vadd.f32 0.0, %v1478
          %v1480 = vpop.f32.mrf.mxu0
          %v1481 = vpop.f32.mrf.mxu0
          %v1482 = vadd.f32 0.0, %v1481
          %v1483 = vpop.f32.mrf.mxu0
          %1484 = vmatprep.mubr.bf16.mxu0 0
          %1485 = vmatmul.mubr.bf16.gmra.mxu0 %v1409
          %v1486 = vpop.f32.mrf.mxu0
          %v1487 = vadd.f32 0.0, %v1486
          %v1488 = vpop.f32.mrf.mxu0
          %v1489 = vpop.f32.mrf.mxu0
          %v1490 = vadd.f32 0.0, %v1489
          %v1491 = vpop.f32.mrf.mxu0
          %1492 = vmatprep.mubr.bf16.mxu0 0
          %1493 = vmatmul.mubr.bf16.gmra.mxu0 %v1410
          %v1494 = vpop.f32.mrf.mxu0
          %v1495 = vadd.f32 0.0, %v1494
          %v1496 = vpop.f32.mrf.mxu0
          %v1497 = vpop.f32.mrf.mxu0
          %v1498 = vadd.f32 0.0, %v1497
          %v1499 = vpop.f32.mrf.mxu0
          %1500 = vmatprep.mubr.bf16.mxu0 0
          %1501 = vmatmul.mubr.bf16.gmra.mxu0 %v1411
          %v1502 = vpop.f32.mrf.mxu0
          %v1503 = vadd.f32 0.0, %v1502
          %v1504 = vpop.f32.mrf.mxu0
          %v1505 = vpop.f32.mrf.mxu0
          %v1506 = vadd.f32 0.0, %v1505
          %v1507 = vpop.f32.mrf.mxu0
          %1508 = vdwg.mxu0
          %v1509 = vadd.f32 %v1388, %v1447
          %v1510 = vadd.f32 %v1389, %v1450
          %v1511 = vadd.f32 %v1390, %v1455
          %v1512 = vadd.f32 %v1391, %v1458
          %v1513 = vadd.f32 %v1392, %v1463
          %v1514 = vadd.f32 %v1393, %v1466
          %v1515 = vadd.f32 %v1394, %v1471
          %v1516 = vadd.f32 %v1395, %v1474
          %v1517 = vadd.f32 %v1396, %v1479
          %v1518 = vadd.f32 %v1397, %v1482
          %v1519 = vadd.f32 %v1398, %v1487
          %v1520 = vadd.f32 %v1399, %v1490
          %v1521 = vadd.f32 %v1400, %v1495
          %v1522 = vadd.f32 %v1401, %v1498
          %v1523 = vadd.f32 %v1402, %v1503
          %v1524 = vadd.f32 %v1403, %v1506
          %1525 = vst [vmem:[#allocation4] sm:$0xff] %v1509
          %1526 = vst [vmem:[#allocation4 + $0x8] sm:$0xff] %v1510
          %1527 = vst [vmem:[#allocation4 + $0x10] sm:$0xff] %v1511
          %1528 = vst [vmem:[#allocation4 + $0x18] sm:$0xff] %v1512
          %1529 = vst [vmem:[#allocation4 + $0x20] sm:$0xff] %v1513
          %1530 = vst [vmem:[#allocation4 + $0x28] sm:$0xff] %v1514
          %1531 = vst [vmem:[#allocation4 + $0x30] sm:$0xff] %v1515
          %1532 = vst [vmem:[#allocation4 + $0x38] sm:$0xff] %v1516
          %1533 = vst [vmem:[#allocation4 + $0x40] sm:$0xff] %v1517
          %1534 = vst [vmem:[#allocation4 + $0x48] sm:$0xff] %v1518
          %1535 = vst [vmem:[#allocation4 + $0x50] sm:$0xff] %v1519
          %1536 = vst [vmem:[#allocation4 + $0x58] sm:$0xff] %v1520
          %1537 = vst [vmem:[#allocation4 + $0x60] sm:$0xff] %v1521
          %1538 = vst [vmem:[#allocation4 + $0x68] sm:$0xff] %v1522
          %1539 = vst [vmem:[#allocation4 + $0x70] sm:$0xff] %v1523
          %1540 = vst [vmem:[#allocation4 + $0x78] sm:$0xff] %v1524
          %1541 = vst.msk [vmem:[#allocation2] sm:$0xff] %vm1275, %v1003
          %1542 = vst.msk [vmem:[#allocation2 + $0x8] sm:$0xff] %vm1275, %v1004
          %1543 = vst.msk [vmem:[#allocation2 + $0x10] sm:$0xff] %vm1275, %v1005
          %1544 = vst.msk [vmem:[#allocation2 + $0x18] sm:$0xff] %vm1275, %v1006
          %1545 = vst.msk [vmem:[#allocation2 + $0x20] sm:$0xff] %vm1275, %v1007
          %1546 = vst.msk [vmem:[#allocation2 + $0x28] sm:$0xff] %vm1275, %v1008
          %1547 = vst.msk [vmem:[#allocation2 + $0x30] sm:$0xff] %vm1275, %v1009
          %1548 = vst.msk [vmem:[#allocation2 + $0x38] sm:$0xff] %vm1275, %v1010
          %1549 = vst.msk [vmem:[#allocation2 + $0x40] sm:$0xff] %vm1275, %v1011
          %1550 = vst.msk [vmem:[#allocation2 + $0x48] sm:$0xff] %vm1275, %v1012
          %1551 = vst.msk [vmem:[#allocation2 + $0x50] sm:$0xff] %vm1275, %v1013
          %1552 = vst.msk [vmem:[#allocation2 + $0x58] sm:$0xff] %vm1275, %v1014
          %1553 = vst.msk [vmem:[#allocation2 + $0x60] sm:$0xff] %vm1275, %v1015
          %1554 = vst.msk [vmem:[#allocation2 + $0x68] sm:$0xff] %vm1275, %v1016
          %1555 = vst.msk [vmem:[#allocation2 + $0x70] sm:$0xff] %vm1275, %v1017
          %1556 = vst.msk [vmem:[#allocation2 + $0x78] sm:$0xff] %vm1275, %v1018
        $region81: #{deepseek_v2_attention_forward.6} parent=68 // pred_fallthru
          _
        %p1557 = scmp.eq.s32.totalorder %s21, 1
        // Predicated region
        $region82: #{deepseek_v2_attention_forward.6} parent=68 // pred_check
          %p1558 = pneg %p1557
        $region83: #{deepseek_v2_attention_forward.6} parent=68 // pred_check_branch
          %1560 = sbr.rel (%p1558) target = $region85
        $region84: #{deepseek_v2_attention_forward.6} parent=68 // pred_region
          %v1561 = vld [vmem:[#allocation4] sm:$0xff]
          %v1562 = vld [vmem:[#allocation4 + $0x8] sm:$0xff]
          %v1563 = vld [vmem:[#allocation4 + $0x10] sm:$0xff]
          %v1564 = vld [vmem:[#allocation4 + $0x18] sm:$0xff]
          %v1565 = vld [vmem:[#allocation4 + $0x20] sm:$0xff]
          %v1566 = vld [vmem:[#allocation4 + $0x28] sm:$0xff]
          %v1567 = vld [vmem:[#allocation4 + $0x30] sm:$0xff]
          %v1568 = vld [vmem:[#allocation4 + $0x38] sm:$0xff]
          %v1569 = vld [vmem:[#allocation4 + $0x40] sm:$0xff]
          %v1570 = vld [vmem:[#allocation4 + $0x48] sm:$0xff]
          %v1571 = vld [vmem:[#allocation4 + $0x50] sm:$0xff]
          %v1572 = vld [vmem:[#allocation4 + $0x58] sm:$0xff]
          %v1573 = vld [vmem:[#allocation4 + $0x60] sm:$0xff]
          %v1574 = vld [vmem:[#allocation4 + $0x68] sm:$0xff]
          %v1575 = vld [vmem:[#allocation4 + $0x70] sm:$0xff]
          %v1576 = vld [vmem:[#allocation4 + $0x78] sm:$0xff]
          %v1577 = vld [vmem:[#allocation3] sm:$0xff]
          %v1578 = vld [vmem:[#allocation3 + $0x8] sm:$0xff]
          %v1579 = vld [vmem:[#allocation3 + $0x10] sm:$0xff]
          %v1580 = vld [vmem:[#allocation3 + $0x18] sm:$0xff]
          %v1581 = vld [vmem:[#allocation3 + $0x20] sm:$0xff]
          %v1582 = vld [vmem:[#allocation3 + $0x28] sm:$0xff]
          %v1583 = vld [vmem:[#allocation3 + $0x30] sm:$0xff]
          %v1584 = vld [vmem:[#allocation3 + $0x38] sm:$0xff]
          %v1585 = vld [vmem:[#allocation3 + $0x40] sm:$0xff]
          %v1586 = vld [vmem:[#allocation3 + $0x48] sm:$0xff]
          %v1587 = vld [vmem:[#allocation3 + $0x50] sm:$0xff]
          %v1588 = vld [vmem:[#allocation3 + $0x58] sm:$0xff]
          %v1589 = vld [vmem:[#allocation3 + $0x60] sm:$0xff]
          %v1590 = vld [vmem:[#allocation3 + $0x68] sm:$0xff]
          %v1591 = vld [vmem:[#allocation3 + $0x70] sm:$0xff]
          %v1592 = vld [vmem:[#allocation3 + $0x78] sm:$0xff]
          %1594 = vset.pattern.permute.xlu0 0
          %1595 = vperm.xlu0 %1594, %v1577
          %v1596 = vpop.permute.xlu0 %1595
          %1599 = vset.pattern.permute.xlu0 0
          %1600 = vperm.xlu0 %1599, %v1578
          %v1601 = vpop.permute.xlu0 %1600
          %1604 = vset.pattern.permute.xlu0 0
          %1605 = vperm.xlu0 %1604, %v1579
          %v1606 = vpop.permute.xlu0 %1605
          %1609 = vset.pattern.permute.xlu0 0
          %1610 = vperm.xlu0 %1609, %v1580
          %v1611 = vpop.permute.xlu0 %1610
          %1614 = vset.pattern.permute.xlu0 0
          %1615 = vperm.xlu0 %1614, %v1581
          %v1616 = vpop.permute.xlu0 %1615
          %1619 = vset.pattern.permute.xlu0 0
          %1620 = vperm.xlu0 %1619, %v1582
          %v1621 = vpop.permute.xlu0 %1620
          %1624 = vset.pattern.permute.xlu0 0
          %1625 = vperm.xlu0 %1624, %v1583
          %v1626 = vpop.permute.xlu0 %1625
          %1629 = vset.pattern.permute.xlu0 0
          %1630 = vperm.xlu0 %1629, %v1584
          %v1631 = vpop.permute.xlu0 %1630
          %1634 = vset.pattern.permute.xlu0 0
          %1635 = vperm.xlu0 %1634, %v1585
          %v1636 = vpop.permute.xlu0 %1635
          %1639 = vset.pattern.permute.xlu0 0
          %1640 = vperm.xlu0 %1639, %v1586
          %v1641 = vpop.permute.xlu0 %1640
          %1644 = vset.pattern.permute.xlu0 0
          %1645 = vperm.xlu0 %1644, %v1587
          %v1646 = vpop.permute.xlu0 %1645
          %1649 = vset.pattern.permute.xlu0 0
          %1650 = vperm.xlu0 %1649, %v1588
          %v1651 = vpop.permute.xlu0 %1650
          %1654 = vset.pattern.permute.xlu0 0
          %1655 = vperm.xlu0 %1654, %v1589
          %v1656 = vpop.permute.xlu0 %1655
          %1659 = vset.pattern.permute.xlu0 0
          %1660 = vperm.xlu0 %1659, %v1590
          %v1661 = vpop.permute.xlu0 %1660
          %1664 = vset.pattern.permute.xlu0 0
          %1665 = vperm.xlu0 %1664, %v1591
          %v1666 = vpop.permute.xlu0 %1665
          %1669 = vset.pattern.permute.xlu0 0
          %1670 = vperm.xlu0 %1669, %v1592
          %v1671 = vpop.permute.xlu0 %1670
          %v1673 = vrcp.pop %v1596
          %v1674 = vmul.f32 %v1561, %v1673
          %v1675 = vrcp.pop %v1601
          %v1676 = vmul.f32 %v1562, %v1675
          %v1677 = vrcp.pop %v1606
          %v1678 = vmul.f32 %v1563, %v1677
          %v1679 = vrcp.pop %v1611
          %v1680 = vmul.f32 %v1564, %v1679
          %v1681 = vrcp.pop %v1616
          %v1682 = vmul.f32 %v1565, %v1681
          %v1683 = vrcp.pop %v1621
          %v1684 = vmul.f32 %v1566, %v1683
          %v1685 = vrcp.pop %v1626
          %v1686 = vmul.f32 %v1567, %v1685
          %v1687 = vrcp.pop %v1631
          %v1688 = vmul.f32 %v1568, %v1687
          %v1689 = vrcp.pop %v1636
          %v1690 = vmul.f32 %v1569, %v1689
          %v1691 = vrcp.pop %v1641
          %v1692 = vmul.f32 %v1570, %v1691
          %v1693 = vrcp.pop %v1646
          %v1694 = vmul.f32 %v1571, %v1693
          %v1695 = vrcp.pop %v1651
          %v1696 = vmul.f32 %v1572, %v1695
          %v1697 = vrcp.pop %v1656
          %v1698 = vmul.f32 %v1573, %v1697
          %v1699 = vrcp.pop %v1661
          %v1700 = vmul.f32 %v1574, %v1699
          %v1701 = vrcp.pop %v1666
          %v1702 = vmul.f32 %v1575, %v1701
          %v1703 = vrcp.pop %v1671
          %v1704 = vmul.f32 %v1576, %v1703
          %v1705 = vpack.c.bf16 %v1676, %v1674
          %v1706 = vpack.c.bf16 %v1680, %v1678
          %v1707 = vpack.c.bf16 %v1684, %v1682
          %v1708 = vpack.c.bf16 %v1688, %v1686
          %v1709 = vpack.c.bf16 %v1692, %v1690
          %v1710 = vpack.c.bf16 %v1696, %v1694
          %v1711 = vpack.c.bf16 %v1700, %v1698
          %v1712 = vpack.c.bf16 %v1704, %v1702
          %v1721 = vunpack.c.l.b16 %v1705
          %v1722 = vunpack.c.h.b16 %v1705
          %v1723 = vunpack.c.l.b16 %v1706
          %v1724 = vunpack.c.h.b16 %v1706
          %v1725 = vunpack.c.l.b16 %v1707
          %v1726 = vunpack.c.h.b16 %v1707
          %v1727 = vunpack.c.l.b16 %v1708
          %v1728 = vunpack.c.h.b16 %v1708
          %v1729 = vunpack.c.l.b16 %v1709
          %v1730 = vunpack.c.h.b16 %v1709
          %v1731 = vunpack.c.l.b16 %v1710
          %v1732 = vunpack.c.h.b16 %v1710
          %v1733 = vunpack.c.l.b16 %v1711
          %v1734 = vunpack.c.h.b16 %v1711
          %v1735 = vunpack.c.l.b16 %v1712
          %v1736 = vunpack.c.h.b16 %v1712
          %v1737 = vpack.c.b16 %v1721, %v1721
          %v1738 = vpack.c.b16 %v1722, %v1722
          %v1739 = vpack.c.b16 %v1723, %v1723
          %v1740 = vpack.c.b16 %v1724, %v1724
          %v1741 = vpack.c.b16 %v1725, %v1725
          %v1742 = vpack.c.b16 %v1726, %v1726
          %v1743 = vpack.c.b16 %v1727, %v1727
          %v1744 = vpack.c.b16 %v1728, %v1728
          %v1745 = vpack.c.b16 %v1729, %v1729
          %v1746 = vpack.c.b16 %v1730, %v1730
          %v1747 = vpack.c.b16 %v1731, %v1731
          %v1748 = vpack.c.b16 %v1732, %v1732
          %v1749 = vpack.c.b16 %v1733, %v1733
          %v1750 = vpack.c.b16 %v1734, %v1734
          %v1751 = vpack.c.b16 %v1735, %v1735
          %v1752 = vpack.c.b16 %v1736, %v1736
          %1769 = vst [vmem:[%s337] sm:$0xf] %v1737
          %1770 = vst [vmem:[%s337 + $0x4] sm:$0xf] %v1738
          %1771 = vst [vmem:[%s337 + $0x8] sm:$0xf] %v1739
          %1772 = vst [vmem:[%s337 + $0xc] sm:$0xf] %v1740
          %1773 = vst [vmem:[%s337 + $0x10] sm:$0xf] %v1741
          %1774 = vst [vmem:[%s337 + $0x14] sm:$0xf] %v1742
          %1775 = vst [vmem:[%s337 + $0x18] sm:$0xf] %v1743
          %1776 = vst [vmem:[%s337 + $0x1c] sm:$0xf] %v1744
          %1777 = vst [vmem:[%s337 + $0x20] sm:$0xf] %v1745
          %1778 = vst [vmem:[%s337 + $0x24] sm:$0xf] %v1746
          %1779 = vst [vmem:[%s337 + $0x28] sm:$0xf] %v1747
          %1780 = vst [vmem:[%s337 + $0x2c] sm:$0xf] %v1748
          %1781 = vst [vmem:[%s337 + $0x30] sm:$0xf] %v1749
          %1782 = vst [vmem:[%s337 + $0x34] sm:$0xf] %v1750
          %1783 = vst [vmem:[%s337 + $0x38] sm:$0xf] %v1751
          %1784 = vst [vmem:[%s337 + $0x3c] sm:$0xf] %v1752
        $region85: #{deepseek_v2_attention_forward.6} parent=68 // pred_fallthru
          _
        %s1785 = sand.u32 %s125, 1
        %s1786 = sand.u32 %s125, 1
        %s1787 = smul.addr %s1786, 64
        %s1788 = scalar_lea.vmem [#allocation6], %s1787
        // Predicated region
        $region86: #{deepseek_v2_attention_forward.6} parent=68 // pred_check
          %p1789 = pneg %p135
        $region87: #{deepseek_v2_attention_forward.6} parent=68 // pred_check_branch
          %1791 = sbr.rel (%p1789) target = $region89
        $region88: #{deepseek_v2_attention_forward.6} parent=68 // pred_region
          %s1792 = smul.u32 16, %s20
          %s1793 = smul.addr %s1792, 4
          %s1794 = sadd.s32 %s19, %s1793
          %s1795 = smul.addr %s1794, 4
          %s1796 = scalar_lea.vmem %s3, %s1795
          // Predicated region
          $region90: #{deepseek_v2_attention_forward.6} parent=88 // pred_check
            _
          $region91: #{deepseek_v2_attention_forward.6} parent=88 // pred_check_branch
            %1798 = sbr.rel (0) target = $region93
          $region92: #{deepseek_v2_attention_forward.6} parent=88 // pred_region
            // Predicated region
            $region94: #{deepseek_v2_attention_forward.6} parent=92 // pred_check
              _
            $region95: #{deepseek_v2_attention_forward.6} parent=92 // pred_check_branch
              %1800 = sbr.rel target = $region97
            $region96: #{deepseek_v2_attention_forward.6} parent=92 // pred_region
              // Predicated region
              $region109: #{deepseek_v2_attention_forward.6} parent=96 // pred_check
                _
              $region110: #{deepseek_v2_attention_forward.6} parent=96 // pred_check_branch
                %1846 = sbr.rel (0) target = $region112
              $region111: #{deepseek_v2_attention_forward.6} parent=96 // pred_region
                loop: start=0, step=1, limit=1
                $region113: #{deepseek_v2_attention_forward.6} parent=111 // loop_pre_header
                  _
                $region114: #{deepseek_v2_attention_forward.6} parent=111 // loop_header
                  %s1848 = sphi 0, %s1852
                  %p1849 = scmp.ge.s32.totalorder %s1848, 1
                  %s1853 = sphi %s1788, %s1788
                  %s1854 = sphi %s1796, %s1796
                $region115: #{deepseek_v2_attention_forward.6} parent=111 // loop_header_branch
                  %1851 = sbr.rel (%p1849) target = $region119
                $region116: #{deepseek_v2_attention_forward.6} parent=111 // loop_body
                  _
                $region117: #{deepseek_v2_attention_forward.6} parent=111 // loop_footer
                  %s1852 = sadd.s32 1, %s1848
                $region118: #{deepseek_v2_attention_forward.6} parent=111 // loop_footer_branch
                  %1847 = sbr.rel target = $region114
                $region119: #{deepseek_v2_attention_forward.6} parent=111 // loop_exit
                  _
                %s1856 = ssub.s32 16, 1
                loop: start=0, step=1, limit=1
                $region120: #{deepseek_v2_attention_forward.6} parent=111 // loop_pre_header
                  _
                $region121: #{deepseek_v2_attention_forward.6} parent=111 // loop_header
                  %s1858 = sphi 0, %s1862
                  %p1859 = scmp.ge.s32.totalorder %s1858, 1
                  %s1863 = sphi %s1788, %s1788
                  %s1864 = sphi %s1796, %s1796
                $region122: #{deepseek_v2_attention_forward.6} parent=111 // loop_header_branch
                  %1861 = sbr.rel (%p1859) target = $region126
                $region123: #{deepseek_v2_attention_forward.6} parent=111 // loop_body
                  %v1865 = vld [vmem:[%s1863] sm:%s1856]
                  %1866 = vst [vmem:[%s1864] sm:%s1856] %v1865
                  %v1867 = vld [vmem:[%s1863 + $0x4] sm:%s1856]
                  %1868 = vst [vmem:[%s1864 + $0x10] sm:%s1856] %v1867
                  %v1869 = vld [vmem:[%s1863 + $0x8] sm:%s1856]
                  %1870 = vst [vmem:[%s1864 + $0x20] sm:%s1856] %v1869
                  %v1871 = vld [vmem:[%s1863 + $0xc] sm:%s1856]
                  %1872 = vst [vmem:[%s1864 + $0x30] sm:%s1856] %v1871
                  %v1873 = vld [vmem:[%s1863 + $0x10] sm:%s1856]
                  %1874 = vst [vmem:[%s1864 + $0x40] sm:%s1856] %v1873
                  %v1875 = vld [vmem:[%s1863 + $0x14] sm:%s1856]
                  %1876 = vst [vmem:[%s1864 + $0x50] sm:%s1856] %v1875
                  %v1877 = vld [vmem:[%s1863 + $0x18] sm:%s1856]
                  %1878 = vst [vmem:[%s1864 + $0x60] sm:%s1856] %v1877
                  %v1879 = vld [vmem:[%s1863 + $0x1c] sm:%s1856]
                  %1880 = vst [vmem:[%s1864 + $0x70] sm:%s1856] %v1879
                  %v1881 = vld [vmem:[%s1863 + $0x20] sm:%s1856]
                  %1882 = vst [vmem:[%s1864 + $0x80] sm:%s1856] %v1881
                  %v1883 = vld [vmem:[%s1863 + $0x24] sm:%s1856]
                  %1884 = vst [vmem:[%s1864 + $0x90] sm:%s1856] %v1883
                  %v1885 = vld [vmem:[%s1863 + $0x28] sm:%s1856]
                  %1886 = vst [vmem:[%s1864 + $0xa0] sm:%s1856] %v1885
                  %v1887 = vld [vmem:[%s1863 + $0x2c] sm:%s1856]
                  %1888 = vst [vmem:[%s1864 + $0xb0] sm:%s1856] %v1887
                  %v1889 = vld [vmem:[%s1863 + $0x30] sm:%s1856]
                  %1890 = vst [vmem:[%s1864 + $0xc0] sm:%s1856] %v1889
                  %v1891 = vld [vmem:[%s1863 + $0x34] sm:%s1856]
                  %1892 = vst [vmem:[%s1864 + $0xd0] sm:%s1856] %v1891
                  %v1893 = vld [vmem:[%s1863 + $0x38] sm:%s1856]
                  %1894 = vst [vmem:[%s1864 + $0xe0] sm:%s1856] %v1893
                  %v1895 = vld [vmem:[%s1863 + $0x3c] sm:%s1856]
                  %1896 = vst [vmem:[%s1864 + $0xf0] sm:%s1856] %v1895
                $region124: #{deepseek_v2_attention_forward.6} parent=111 // loop_footer
                  %s1862 = sadd.s32 1, %s1858
                $region125: #{deepseek_v2_attention_forward.6} parent=111 // loop_footer_branch
                  %1857 = sbr.rel target = $region121
                $region126: #{deepseek_v2_attention_forward.6} parent=111 // loop_exit
                  _
              $region112: #{deepseek_v2_attention_forward.6} parent=96 // pred_fallthru
                _
            $region97: #{deepseek_v2_attention_forward.6} parent=92 // pred_fallthru
              _
            // Predicated region
            $region98: #{deepseek_v2_attention_forward.6} parent=92 // pred_check
              _
            $region99: #{deepseek_v2_attention_forward.6} parent=92 // pred_check_branch
              %1802 = sbr.rel (0) target = $region101
            $region100: #{deepseek_v2_attention_forward.6} parent=92 // pred_region
              %s1804 = ssub.s32 16, 1
              loop: start=0, step=1, limit=1
              $region102: #{deepseek_v2_attention_forward.6} parent=100 // loop_pre_header
                _
              $region103: #{deepseek_v2_attention_forward.6} parent=100 // loop_header
                %s1806 = sphi 0, %s1810
                %p1807 = scmp.ge.s32.totalorder %s1806, 1
                %s1811 = sphi %s1788, %s1788
                %s1812 = sphi %s1796, %s1796
              $region104: #{deepseek_v2_attention_forward.6} parent=100 // loop_header_branch
                %1809 = sbr.rel (%p1807) target = $region108
              $region105: #{deepseek_v2_attention_forward.6} parent=100 // loop_body
                %v1813 = vld [vmem:[%s1811] sm:%s1804]
                %1814 = vst [vmem:[%s1812] sm:%s1804] %v1813
                %v1815 = vld [vmem:[%s1811 + $0x4] sm:%s1804]
                %1816 = vst [vmem:[%s1812 + $0x10] sm:%s1804] %v1815
                %v1817 = vld [vmem:[%s1811 + $0x8] sm:%s1804]
                %1818 = vst [vmem:[%s1812 + $0x20] sm:%s1804] %v1817
                %v1819 = vld [vmem:[%s1811 + $0xc] sm:%s1804]
                %1820 = vst [vmem:[%s1812 + $0x30] sm:%s1804] %v1819
                %v1821 = vld [vmem:[%s1811 + $0x10] sm:%s1804]
                %1822 = vst [vmem:[%s1812 + $0x40] sm:%s1804] %v1821
                %v1823 = vld [vmem:[%s1811 + $0x14] sm:%s1804]
                %1824 = vst [vmem:[%s1812 + $0x50] sm:%s1804] %v1823
                %v1825 = vld [vmem:[%s1811 + $0x18] sm:%s1804]
                %1826 = vst [vmem:[%s1812 + $0x60] sm:%s1804] %v1825
                %v1827 = vld [vmem:[%s1811 + $0x1c] sm:%s1804]
                %1828 = vst [vmem:[%s1812 + $0x70] sm:%s1804] %v1827
                %v1829 = vld [vmem:[%s1811 + $0x20] sm:%s1804]
                %1830 = vst [vmem:[%s1812 + $0x80] sm:%s1804] %v1829
                %v1831 = vld [vmem:[%s1811 + $0x24] sm:%s1804]
                %1832 = vst [vmem:[%s1812 + $0x90] sm:%s1804] %v1831
                %v1833 = vld [vmem:[%s1811 + $0x28] sm:%s1804]
                %1834 = vst [vmem:[%s1812 + $0xa0] sm:%s1804] %v1833
                %v1835 = vld [vmem:[%s1811 + $0x2c] sm:%s1804]
                %1836 = vst [vmem:[%s1812 + $0xb0] sm:%s1804] %v1835
                %v1837 = vld [vmem:[%s1811 + $0x30] sm:%s1804]
                %1838 = vst [vmem:[%s1812 + $0xc0] sm:%s1804] %v1837
                %v1839 = vld [vmem:[%s1811 + $0x34] sm:%s1804]
                %1840 = vst [vmem:[%s1812 + $0xd0] sm:%s1804] %v1839
                %v1841 = vld [vmem:[%s1811 + $0x38] sm:%s1804]
                %1842 = vst [vmem:[%s1812 + $0xe0] sm:%s1804] %v1841
                %v1843 = vld [vmem:[%s1811 + $0x3c] sm:%s1804]
                %1844 = vst [vmem:[%s1812 + $0xf0] sm:%s1804] %v1843
              $region106: #{deepseek_v2_attention_forward.6} parent=100 // loop_footer
                %s1810 = sadd.s32 1, %s1806
              $region107: #{deepseek_v2_attention_forward.6} parent=100 // loop_footer_branch
                %1805 = sbr.rel target = $region103
              $region108: #{deepseek_v2_attention_forward.6} parent=100 // loop_exit
                _
            $region101: #{deepseek_v2_attention_forward.6} parent=92 // pred_fallthru
              _
          $region93: #{deepseek_v2_attention_forward.6} parent=88 // pred_fallthru
            _
          %1897 = vnop
        $region89: #{deepseek_v2_attention_forward.6} parent=68 // pred_fallthru
          _
      $region69: #{deepseek_v2_attention_forward.6} parent=5 // pred_fallthru
        _
      %p1898 = scmp.le.s32.totalorder 2, %s9
      // Predicated region
      $region127: #{deepseek_v2_attention_forward.6} parent=5 // pred_check
        %p1899 = pneg %p1898
      $region128: #{deepseek_v2_attention_forward.6} parent=5 // pred_check_branch
        %1901 = sbr.rel (%p1899) target = $region130
      $region129: #{deepseek_v2_attention_forward.6} parent=5 // pred_region
        %s1902 = ssub.s32 %s9, 2
        // Predicated region
        $region131: #{deepseek_v2_attention_forward.6} parent=129 // pred_check
          %p1903 = pneg %p141
        $region132: #{deepseek_v2_attention_forward.6} parent=129 // pred_check_branch
          %1905 = sbr.rel (%p1903) target = $region134
        $region133: #{deepseek_v2_attention_forward.6} parent=129 // pred_region
          %s1906 = sand.u32 %s126, 1
          %s1907 = sand.u32 %s126, 1
          %s1908 = smul.addr %s1907, 64
          %s1909 = scalar_lea.vmem [#allocation6], %s1908
        $region134: #{deepseek_v2_attention_forward.6} parent=129 // pred_fallthru
          _
      $region130: #{deepseek_v2_attention_forward.6} parent=5 // pred_fallthru
        _
    $region6: #{deepseek_v2_attention_forward.6} parent=1 // loop_footer
      %s13 = sadd.s32 1, %s9
    $region7: #{deepseek_v2_attention_forward.6} parent=1 // loop_footer_branch
      %8 = sbr.rel target = $region3
    $region8: #{deepseek_v2_attention_forward.6} parent=1 // loop_exit
      _

// kernel: deepseek_v2_attention_forward.4
$region0: #{deepseek_v2_attention_forward.4}
  #allocation0 [shape = 'u32[]', space=smem, size = 0x4, offset = 0x4, fixed_abs, tag = 'smem constant byte address 0x4 - core index']
  #allocation1 [shape = 'u32[144,128]{1,0:T(1,128)}', space=vmem, size = 0x12000, scoped, tag = 'internal scratch']
  %s0 = inlined_call_operand.vmem [shape: bf16[256,256], index: 0, kind: input, shape index: {}]
  %s1 = inlined_call_operand.vmem [shape: bf16[256,128], index: 1, kind: input, shape index: {}]
  %s2 = inlined_call_operand.vmem [shape: f32[1,128], index: 2, kind: input, shape index: {}]
  %s3 = inlined_call_operand.vmem [shape: bf16[128,512], index: 3, kind: input, shape index: {}]
  %s4 = inlined_call_operand.vmem [shape: bf16[128,256], index: 4, kind: input, shape index: {}]
  %s5 = inlined_call_operand.vmem [shape: bf16[128,256], index: 5, kind: input, shape index: {}]
  %s6 = inlined_call_operand.vmem [shape: f32[256,256], index: 6, kind: input, shape index: {}]
  %s7 = inlined_call_operand.vmem [shape: f32[256,256], index: 7, kind: input, shape index: {}]
  %s8 = inlined_call_operand.vmem [shape: bf16[256,512], index: 8, kind: output, shape index: {0}]
  %s9 = inlined_call_operand.vmem [shape: bf16[4,256,64], index: 9, kind: output, shape index: {1}]
  %10 = xla_tuple %s8, %s9
  %s11 = sld [smem:[#allocation0]]
  $region110: #{deepseek_v2_attention_forward.4} parent=0
    _
  %s13 = ssub.s32 1, %s11
  %s14 = scalar_select 0, %s13, %s11
  $region1: #{deepseek_v2_attention_forward.4} parent=0
    #allocation2 [shape = 'u8[262144]{0}', space=vmem, size = 0x40000, scoped, tag = 'output window, operand 1']
    loop: start=0, step=1, limit=4
    $region2: #{deepseek_v2_attention_forward.4} parent=1 // loop_pre_header
      _
    $region3: #{deepseek_v2_attention_forward.4} parent=1 // loop_header
      %s16 = sphi 0, %s20
      %p17 = scmp.ge.s32.totalorder %s16, 4
      %s26 = sphi 0, %s28
      %s29 = sphi 0, %s26
      %s30 = sphi 0, %s29
      %s46 = sphi 0, %s30
      %s50 = sphi 0, %s50
      %s52 = sphi 0, %s50
      %s53 = sphi 0, %s52
      %s67 = sphi 0, %s53
      %s71 = sphi 0, %s71
      %s73 = sphi 0, %s71
      %s74 = sphi 0, %s73
      %s88 = sphi 0, %s74
      %s92 = sphi 0, %s92
      %s94 = sphi 0, %s92
      %s95 = sphi 0, %s94
      %s109 = sphi 0, %s95
      %s113 = sphi 0, %s113
      %s115 = sphi 0, %s113
      %s116 = sphi 0, %s115
      %s130 = sphi 0, %s116
      %s134 = sphi 0, %s134
      %s136 = sphi 0, %s134
      %s137 = sphi 0, %s136
      %s151 = sphi 0, %s137
      %s157 = sphi 0, %s159
      %s160 = sphi 0, %s157
      %s161 = sphi 0, %s160
      %s177 = sphi 0, %s161
      %s183 = sphi 0, %s185
      %s186 = sphi 0, %s183
      %s187 = sphi 0, %s186
      %s203 = sphi 0, %s187
      %s209 = sphi 0, %s211
      %s212 = sphi 0, %s209
      %s213 = sphi 0, %s212
      %s229 = sphi 0, %s213
      %s235 = sphi 0, %s237
      %s238 = sphi 0, %s235
      %s239 = sphi 0, %s238
      %s255 = sphi 0, %s239
    $region4: #{deepseek_v2_attention_forward.4} parent=1 // loop_header_branch
      %19 = sbr.rel (%p17) target = $region8
    $region5: #{deepseek_v2_attention_forward.4} parent=1 // loop_body
      %s21 = ssub.s32 %s16, 1
      %s22 = ssub.s32 %s16, 2
      %s23 = sadd.s32 %s16, 1
      %s24 = ssub.s32 %s16, %s23
      %p25 = scmp.eq.s32.totalorder %s24, 0
      %s27 = sadd.s32 %s26, 1
      %s28 = scalar_select %p25, %s26, %s27
      %p31 = pneg %p25
      %p32 = scmp.eq.s32.totalorder %s16, 1
      %p33 = por %p31, %p32
      %p34 = scmp.ne.s32.totalorder %s26, %s29
      %p35 = scmp.eq.s32.totalorder %s16, 0
      %p36 = por %p34, %p35
      %p37 = scmp.ne.s32.totalorder %s26, %s29
      %p38 = scmp.eq.s32.totalorder %s21, 1
      %p39 = por %p37, %p38
      %p40 = scmp.ne.s32.totalorder %s29, %s30
      %p41 = scmp.eq.s32.totalorder %s21, 0
      %p42 = por %p40, %p41
      %p43 = scmp.ne.s32.totalorder %s29, %s30
      %p44 = scmp.eq.s32.totalorder %s22, 1
      %p45 = por %p43, %p44
      %p47 = scmp.ne.s32.totalorder %s30, %s46
      %p48 = scmp.eq.s32.totalorder %s22, 0
      %p49 = por %p47, %p48
      %s51 = sadd.s32 %s50, 1
      %p54 = scmp.eq.s32.totalorder %s16, 1
      %p55 = scmp.ne.s32.totalorder %s50, %s52
      %p56 = scmp.eq.s32.totalorder %s16, 0
      %p57 = por %p55, %p56
      %p58 = scmp.ne.s32.totalorder %s50, %s52
      %p59 = scmp.eq.s32.totalorder %s21, 1
      %p60 = por %p58, %p59
      %p61 = scmp.ne.s32.totalorder %s52, %s53
      %p62 = scmp.eq.s32.totalorder %s21, 0
      %p63 = por %p61, %p62
      %p64 = scmp.ne.s32.totalorder %s52, %s53
      %p65 = scmp.eq.s32.totalorder %s22, 1
      %p66 = por %p64, %p65
      %p68 = scmp.ne.s32.totalorder %s53, %s67
      %p69 = scmp.eq.s32.totalorder %s22, 0
      %p70 = por %p68, %p69
      %s72 = sadd.s32 %s71, 1
      %p75 = scmp.eq.s32.totalorder %s16, 1
      %p76 = scmp.ne.s32.totalorder %s71, %s73
      %p77 = scmp.eq.s32.totalorder %s16, 0
      %p78 = por %p76, %p77
      %p79 = scmp.ne.s32.totalorder %s71, %s73
      %p80 = scmp.eq.s32.totalorder %s21, 1
      %p81 = por %p79, %p80
      %p82 = scmp.ne.s32.totalorder %s73, %s74
      %p83 = scmp.eq.s32.totalorder %s21, 0
      %p84 = por %p82, %p83
      %p85 = scmp.ne.s32.totalorder %s73, %s74
      %p86 = scmp.eq.s32.totalorder %s22, 1
      %p87 = por %p85, %p86
      %p89 = scmp.ne.s32.totalorder %s74, %s88
      %p90 = scmp.eq.s32.totalorder %s22, 0
      %p91 = por %p89, %p90
      %s93 = sadd.s32 %s92, 1
      %p96 = scmp.eq.s32.totalorder %s16, 1
      %p97 = scmp.ne.s32.totalorder %s92, %s94
      %p98 = scmp.eq.s32.totalorder %s16, 0
      %p99 = por %p97, %p98
      %p100 = scmp.ne.s32.totalorder %s92, %s94
      %p101 = scmp.eq.s32.totalorder %s21, 1
      %p102 = por %p100, %p101
      %p103 = scmp.ne.s32.totalorder %s94, %s95
      %p104 = scmp.eq.s32.totalorder %s21, 0
      %p105 = por %p103, %p104
      %p106 = scmp.ne.s32.totalorder %s94, %s95
      %p107 = scmp.eq.s32.totalorder %s22, 1
      %p108 = por %p106, %p107
      %p110 = scmp.ne.s32.totalorder %s95, %s109
      %p111 = scmp.eq.s32.totalorder %s22, 0
      %p112 = por %p110, %p111
      %s114 = sadd.s32 %s113, 1
      %p117 = scmp.eq.s32.totalorder %s16, 1
      %p118 = scmp.ne.s32.totalorder %s113, %s115
      %p119 = scmp.eq.s32.totalorder %s16, 0
      %p120 = por %p118, %p119
      %p121 = scmp.ne.s32.totalorder %s113, %s115
      %p122 = scmp.eq.s32.totalorder %s21, 1
      %p123 = por %p121, %p122
      %p124 = scmp.ne.s32.totalorder %s115, %s116
      %p125 = scmp.eq.s32.totalorder %s21, 0
      %p126 = por %p124, %p125
      %p127 = scmp.ne.s32.totalorder %s115, %s116
      %p128 = scmp.eq.s32.totalorder %s22, 1
      %p129 = por %p127, %p128
      %p131 = scmp.ne.s32.totalorder %s116, %s130
      %p132 = scmp.eq.s32.totalorder %s22, 0
      %p133 = por %p131, %p132
      %s135 = sadd.s32 %s134, 1
      %p138 = scmp.eq.s32.totalorder %s16, 1
      %p139 = scmp.ne.s32.totalorder %s134, %s136
      %p140 = scmp.eq.s32.totalorder %s16, 0
      %p141 = por %p139, %p140
      %p142 = scmp.ne.s32.totalorder %s134, %s136
      %p143 = scmp.eq.s32.totalorder %s21, 1
      %p144 = por %p142, %p143
      %p145 = scmp.ne.s32.totalorder %s136, %s137
      %p146 = scmp.eq.s32.totalorder %s21, 0
      %p147 = por %p145, %p146
      %p148 = scmp.ne.s32.totalorder %s136, %s137
      %p149 = scmp.eq.s32.totalorder %s22, 1
      %p150 = por %p148, %p149
      %p152 = scmp.ne.s32.totalorder %s137, %s151
      %p153 = scmp.eq.s32.totalorder %s22, 0
      %p154 = por %p152, %p153
      %s155 = ssub.s32 %s16, %s23
      %p156 = scmp.eq.s32.totalorder %s155, 0
      %s158 = sadd.s32 %s157, 1
      %s159 = scalar_select %p156, %s157, %s158
      %p162 = pneg %p156
      %p163 = scmp.eq.s32.totalorder %s16, 1
      %p164 = por %p162, %p163
      %p165 = scmp.ne.s32.totalorder %s157, %s160
      %p166 = scmp.eq.s32.totalorder %s16, 0
      %p167 = por %p165, %p166
      %p168 = scmp.ne.s32.totalorder %s157, %s160
      %p169 = scmp.eq.s32.totalorder %s21, 1
      %p170 = por %p168, %p169
      %p171 = scmp.ne.s32.totalorder %s160, %s161
      %p172 = scmp.eq.s32.totalorder %s21, 0
      %p173 = por %p171, %p172
      %p174 = scmp.ne.s32.totalorder %s160, %s161
      %p175 = scmp.eq.s32.totalorder %s22, 1
      %p176 = por %p174, %p175
      %p178 = scmp.ne.s32.totalorder %s161, %s177
      %p179 = scmp.eq.s32.totalorder %s22, 0
      %p180 = por %p178, %p179
      %s181 = ssub.s32 %s16, %s23
      %p182 = scmp.eq.s32.totalorder %s181, 0
      %s184 = sadd.s32 %s183, 1
      %s185 = scalar_select %p182, %s183, %s184
      %p188 = pneg %p182
      %p189 = scmp.eq.s32.totalorder %s16, 1
      %p190 = por %p188, %p189
      %p191 = scmp.ne.s32.totalorder %s183, %s186
      %p192 = scmp.eq.s32.totalorder %s16, 0
      %p193 = por %p191, %p192
      %p194 = scmp.ne.s32.totalorder %s183, %s186
      %p195 = scmp.eq.s32.totalorder %s21, 1
      %p196 = por %p194, %p195
      %p197 = scmp.ne.s32.totalorder %s186, %s187
      %p198 = scmp.eq.s32.totalorder %s21, 0
      %p199 = por %p197, %p198
      %p200 = scmp.ne.s32.totalorder %s186, %s187
      %p201 = scmp.eq.s32.totalorder %s22, 1
      %p202 = por %p200, %p201
      %p204 = scmp.ne.s32.totalorder %s187, %s203
      %p205 = scmp.eq.s32.totalorder %s22, 0
      %p206 = por %p204, %p205
      %s207 = ssub.s32 %s16, %s23
      %p208 = scmp.eq.s32.totalorder %s207, 0
      %s210 = sadd.s32 %s209, 1
      %s211 = scalar_select %p208, %s209, %s210
      %p214 = pneg %p208
      %p215 = scmp.eq.s32.totalorder %s16, 1
      %p216 = por %p214, %p215
      %p217 = scmp.ne.s32.totalorder %s209, %s212
      %p218 = scmp.eq.s32.totalorder %s16, 0
      %p219 = por %p217, %p218
      %p220 = scmp.ne.s32.totalorder %s209, %s212
      %p221 = scmp.eq.s32.totalorder %s21, 1
      %p222 = por %p220, %p221
      %p223 = scmp.ne.s32.totalorder %s212, %s213
      %p224 = scmp.eq.s32.totalorder %s21, 0
      %p225 = por %p223, %p224
      %p226 = scmp.ne.s32.totalorder %s212, %s213
      %p227 = scmp.eq.s32.totalorder %s22, 1
      %p228 = por %p226, %p227
      %p230 = scmp.ne.s32.totalorder %s213, %s229
      %p231 = scmp.eq.s32.totalorder %s22, 0
      %p232 = por %p230, %p231
      %s233 = ssub.s32 %s16, %s23
      %p234 = scmp.eq.s32.totalorder %s233, 0
      %s236 = sadd.s32 %s235, 1
      %s237 = scalar_select %p234, %s235, %s236
      %p240 = pneg %p234
      %p241 = scmp.eq.s32.totalorder %s16, 1
      %p242 = por %p240, %p241
      %p243 = scmp.ne.s32.totalorder %s235, %s238
      %p244 = scmp.eq.s32.totalorder %s16, 0
      %p245 = por %p243, %p244
      %p246 = scmp.ne.s32.totalorder %s235, %s238
      %p247 = scmp.eq.s32.totalorder %s21, 1
      %p248 = por %p246, %p247
      %p249 = scmp.ne.s32.totalorder %s238, %s239
      %p250 = scmp.eq.s32.totalorder %s21, 0
      %p251 = por %p249, %p250
      %p252 = scmp.ne.s32.totalorder %s238, %s239
      %p253 = scmp.eq.s32.totalorder %s22, 1
      %p254 = por %p252, %p253
      %p256 = scmp.ne.s32.totalorder %s239, %s255
      %p257 = scmp.eq.s32.totalorder %s22, 0
      %p258 = por %p256, %p257
      %p259 = scmp.le.s32.totalorder 1, %s16
      %p260 = scmp.lt.s32.totalorder %s16, 3
      %p261 = pnand %p259, %p260
      %p262 = pneg %p261
      // Predicated region
      $region9: #{deepseek_v2_attention_forward.4} parent=5 // pred_check
        _
      $region10: #{deepseek_v2_attention_forward.4} parent=5 // pred_check_branch
        %264 = sbr.rel (%p261) target = $region12
      $region11: #{deepseek_v2_attention_forward.4} parent=5 // pred_region
        %s265 = ssub.s32 %s16, 1
        // Predicated region
        $region13: #{deepseek_v2_attention_forward.4} parent=11 // pred_check
          %p266 = pneg %p63
        $region14: #{deepseek_v2_attention_forward.4} parent=11 // pred_check_branch
          %268 = sbr.rel (%p266) target = $region16
        $region15: #{deepseek_v2_attention_forward.4} parent=11 // pred_region
          _
        $region16: #{deepseek_v2_attention_forward.4} parent=11 // pred_fallthru
          _
        // Predicated region
        $region17: #{deepseek_v2_attention_forward.4} parent=11 // pred_check
          %p269 = pneg %p84
        $region18: #{deepseek_v2_attention_forward.4} parent=11 // pred_check_branch
          %271 = sbr.rel (%p269) target = $region20
        $region19: #{deepseek_v2_attention_forward.4} parent=11 // pred_region
          _
        $region20: #{deepseek_v2_attention_forward.4} parent=11 // pred_fallthru
          _
        // Predicated region
        $region21: #{deepseek_v2_attention_forward.4} parent=11 // pred_check
          %p272 = pneg %p105
        $region22: #{deepseek_v2_attention_forward.4} parent=11 // pred_check_branch
          %274 = sbr.rel (%p272) target = $region24
        $region23: #{deepseek_v2_attention_forward.4} parent=11 // pred_region
          _
        $region24: #{deepseek_v2_attention_forward.4} parent=11 // pred_fallthru
          _
        // Predicated region
        $region25: #{deepseek_v2_attention_forward.4} parent=11 // pred_check
          %p275 = pneg %p126
        $region26: #{deepseek_v2_attention_forward.4} parent=11 // pred_check_branch
          %277 = sbr.rel (%p275) target = $region28
        $region27: #{deepseek_v2_attention_forward.4} parent=11 // pred_region
          _
        $region28: #{deepseek_v2_attention_forward.4} parent=11 // pred_fallthru
          _
        // Predicated region
        $region29: #{deepseek_v2_attention_forward.4} parent=11 // pred_check
          %p278 = pneg %p147
        $region30: #{deepseek_v2_attention_forward.4} parent=11 // pred_check_branch
          %280 = sbr.rel (%p278) target = $region32
        $region31: #{deepseek_v2_attention_forward.4} parent=11 // pred_region
          _
        $region32: #{deepseek_v2_attention_forward.4} parent=11 // pred_fallthru
          _
      $region12: #{deepseek_v2_attention_forward.4} parent=5 // pred_fallthru
        _
      %p281 = scmp.lt.s32.totalorder %s16, 2
      // Predicated region
      $region33: #{deepseek_v2_attention_forward.4} parent=5 // pred_check
        %p282 = pneg %p281
      $region34: #{deepseek_v2_attention_forward.4} parent=5 // pred_check_branch
        %284 = sbr.rel (%p282) target = $region36
      $region35: #{deepseek_v2_attention_forward.4} parent=5 // pred_region
        // Predicated region
        $region37: #{deepseek_v2_attention_forward.4} parent=35 // pred_check
          %p285 = pneg %p36
        $region38: #{deepseek_v2_attention_forward.4} parent=35 // pred_check_branch
          %287 = sbr.rel (%p285) target = $region40
        $region39: #{deepseek_v2_attention_forward.4} parent=35 // pred_region
          %s288 = smul.u32 16, %s16
          %p289 = scmp.lt.s32.totalorder %s288, 31
          %s290 = scalar_select %p289, %s288, 31
          %s291 = smul.addr %s290, 2
          %s292 = smul.addr %s291, 4
          %s293 = scalar_lea.vmem %s0, %s292
          %s294 = smul.u32 16, %s16
        $region40: #{deepseek_v2_attention_forward.4} parent=35 // pred_fallthru
          _
        // Predicated region
        $region41: #{deepseek_v2_attention_forward.4} parent=35 // pred_check
          %p295 = pneg %p167
        $region42: #{deepseek_v2_attention_forward.4} parent=35 // pred_check_branch
          %297 = sbr.rel (%p295) target = $region44
        $region43: #{deepseek_v2_attention_forward.4} parent=35 // pred_region
          %s298 = smul.u32 16, %s16
          %p299 = scmp.lt.s32.totalorder %s298, 31
          %s300 = scalar_select %p299, %s298, 31
          %s301 = smul.addr %s300, 2
          %s302 = smul.addr %s301, 8
          %s303 = scalar_lea.vmem %s6, %s302
          %s304 = smul.u32 16, %s16
        $region44: #{deepseek_v2_attention_forward.4} parent=35 // pred_fallthru
          _
        // Predicated region
        $region45: #{deepseek_v2_attention_forward.4} parent=35 // pred_check
          %p305 = pneg %p193
        $region46: #{deepseek_v2_attention_forward.4} parent=35 // pred_check_branch
          %307 = sbr.rel (%p305) target = $region48
        $region47: #{deepseek_v2_attention_forward.4} parent=35 // pred_region
          %s308 = smul.u32 16, %s16
          %p309 = scmp.lt.s32.totalorder %s308, 31
          %s310 = scalar_select %p309, %s308, 31
          %s311 = smul.addr %s310, 2
          %s312 = smul.addr %s311, 8
          %s313 = scalar_lea.vmem %s7, %s312
          %s314 = smul.u32 16, %s16
        $region48: #{deepseek_v2_attention_forward.4} parent=35 // pred_fallthru
          _
      $region36: #{deepseek_v2_attention_forward.4} parent=5 // pred_fallthru
        _
      %p315 = scmp.le.s32.totalorder 1, %s16
      %p316 = scmp.lt.s32.totalorder %s16, 3
      %p317 = pnand %p315, %p316
      %p318 = pneg %p317
      // Predicated region
      $region49: #{deepseek_v2_attention_forward.4} parent=5 // pred_check
        _
      $region50: #{deepseek_v2_attention_forward.4} parent=5 // pred_check_branch
        %320 = sbr.rel (%p317) target = $region52
      $region51: #{deepseek_v2_attention_forward.4} parent=5 // pred_region
        %s321 = ssub.s32 %s16, 1
        %s322 = smul.u32 16, %s21
        %p323 = scmp.lt.s32.totalorder %s322, 31
        %s324 = scalar_select %p323, %s322, 31
        %s325 = smul.addr %s324, 2
        %s326 = smul.addr %s325, 4
        %s327 = scalar_lea.vmem %s0, %s326
        %p328 = pneg %p42
        %p329 = pneg %p39
        %p330 = pneg %p63
        %p331 = pneg %p60
        %p332 = pneg %p84
        %p333 = pneg %p81
        %p334 = pneg %p105
        %p335 = pneg %p102
        %p336 = pneg %p126
        %p337 = pneg %p123
        %p338 = pneg %p147
        %p339 = pneg %p144
        %s340 = smul.u32 16, %s21
        %p341 = scmp.lt.s32.totalorder %s340, 31
        %s342 = scalar_select %p341, %s340, 31
        %s343 = smul.addr %s342, 2
        %s344 = smul.addr %s343, 8
        %s345 = scalar_lea.vmem %s6, %s344
        %p346 = pneg %p173
        %p347 = pneg %p170
        %s348 = smul.u32 16, %s21
        %p349 = scmp.lt.s32.totalorder %s348, 31
        %s350 = scalar_select %p349, %s348, 31
        %s351 = smul.addr %s350, 2
        %s352 = smul.addr %s351, 8
        %s353 = scalar_lea.vmem %s7, %s352
        %p354 = pneg %p199
        %p355 = pneg %p196
        %p356 = pneg %p225
        %p357 = pneg %p222
        %s358 = smul.u32 16, %s21
        %p359 = scmp.lt.s32.totalorder %s358, 31
        %s360 = scalar_select %p359, %s358, 31
        %s361 = smul.addr %s360, 4
        %s362 = smul.addr %s361, 4
        %s363 = scalar_lea.vmem %s8, %s362
        %p364 = pneg %p251
        %p365 = pneg %p248
        %s366 = sand.u32 %s238, 1
        %s367 = sand.u32 %s238, 1
        %s368 = smul.addr %s367, 256
        %s369 = scalar_lea.vmem [#allocation2], %s368
        %s370 = smul.u32 16, %s21
        %p371 = scmp.lt.s32.totalorder %s370, 31
        %s372 = scalar_select %p371, %s370, 31
        %s373 = smul.addr %s372, 2
        %s374 = smul.addr %s373, 4
        %s375 = scalar_lea.vmem %s0, %s374
        %s376 = smul.u32 16, %s21
        %s377 = smul.u32 16, %s21
        %p378 = scmp.lt.s32.totalorder %s377, 31
        %s379 = scalar_select %p378, %s377, 31
        %s380 = smul.addr %s379, 2
        %s381 = smul.addr %s380, 8
        %s382 = scalar_lea.vmem %s6, %s381
        %s383 = smul.u32 16, %s21
        %s384 = smul.u32 16, %s21
        %p385 = scmp.lt.s32.totalorder %s384, 31
        %s386 = scalar_select %p385, %s384, 31
        %s387 = smul.addr %s386, 2
        %s388 = smul.addr %s387, 8
        %s389 = scalar_lea.vmem %s7, %s388
        %s390 = smul.u32 16, %s21
        %s391 = smul.u32 16, %s21
        %p392 = scmp.lt.s32.totalorder %s391, 31
        %s393 = scalar_select %p392, %s391, 31
        %s394 = smul.addr %s393, 4
        %s395 = smul.addr %s394, 4
        %s396 = scalar_lea.vmem %s8, %s395
        %s397 = smul.u32 16, %s21
        %s398 = smul.u32 16, %s21
        %v400 = vld [vmem:[%s375] sm:$0xff]
        %v401 = vld [vmem:[%s375 + $0x8] sm:$0xff]
        %v402 = vld [vmem:[%s375 + $0x10] sm:$0xff]
        %v403 = vld [vmem:[%s375 + $0x18] sm:$0xff]
        %v404 = vld [vmem:[%s375 + $0x20] sm:$0xff]
        %v405 = vld [vmem:[%s375 + $0x28] sm:$0xff]
        %v406 = vld [vmem:[%s375 + $0x30] sm:$0xff]
        %v407 = vld [vmem:[%s375 + $0x38] sm:$0xff]
        %v408 = vld [vmem:[%s375 + $0x40] sm:$0xff]
        %v409 = vld [vmem:[%s375 + $0x48] sm:$0xff]
        %v410 = vld [vmem:[%s375 + $0x50] sm:$0xff]
        %v411 = vld [vmem:[%s375 + $0x58] sm:$0xff]
        %v412 = vld [vmem:[%s375 + $0x60] sm:$0xff]
        %v413 = vld [vmem:[%s375 + $0x68] sm:$0xff]
        %v414 = vld [vmem:[%s375 + $0x70] sm:$0xff]
        %v415 = vld [vmem:[%s375 + $0x78] sm:$0xff]
        %v416 = vld [vmem:[%s1] sm:$0xf]
        %v417 = vld [vmem:[%s1 + $0x4] sm:$0xf]
        %v418 = vld [vmem:[%s1 + $0x8] sm:$0xf]
        %v419 = vld [vmem:[%s1 + $0xc] sm:$0xf]
        %v420 = vld [vmem:[%s1 + $0x10] sm:$0xf]
        %v421 = vld [vmem:[%s1 + $0x14] sm:$0xf]
        %v422 = vld [vmem:[%s1 + $0x18] sm:$0xf]
        %v423 = vld [vmem:[%s1 + $0x1c] sm:$0xf]
        %v424 = vld [vmem:[%s1 + $0x20] sm:$0xf]
        %v425 = vld [vmem:[%s1 + $0x24] sm:$0xf]
        %v426 = vld [vmem:[%s1 + $0x28] sm:$0xf]
        %v427 = vld [vmem:[%s1 + $0x2c] sm:$0xf]
        %v428 = vld [vmem:[%s1 + $0x30] sm:$0xf]
        %v429 = vld [vmem:[%s1 + $0x34] sm:$0xf]
        %v430 = vld [vmem:[%s1 + $0x38] sm:$0xf]
        %v431 = vld [vmem:[%s1 + $0x3c] sm:$0xf]
        %v432 = vld [vmem:[%s1 + $0x40] sm:$0xf]
        %v433 = vld [vmem:[%s1 + $0x44] sm:$0xf]
        %v434 = vld [vmem:[%s1 + $0x48] sm:$0xf]
        %v435 = vld [vmem:[%s1 + $0x4c] sm:$0xf]
        %v436 = vld [vmem:[%s1 + $0x50] sm:$0xf]
        %v437 = vld [vmem:[%s1 + $0x54] sm:$0xf]
        %v438 = vld [vmem:[%s1 + $0x58] sm:$0xf]
        %v439 = vld [vmem:[%s1 + $0x5c] sm:$0xf]
        %v440 = vld [vmem:[%s1 + $0x60] sm:$0xf]
        %v441 = vld [vmem:[%s1 + $0x64] sm:$0xf]
        %v442 = vld [vmem:[%s1 + $0x68] sm:$0xf]
        %v443 = vld [vmem:[%s1 + $0x6c] sm:$0xf]
        %v444 = vld [vmem:[%s1 + $0x70] sm:$0xf]
        %v445 = vld [vmem:[%s1 + $0x74] sm:$0xf]
        %v446 = vld [vmem:[%s1 + $0x78] sm:$0xf]
        %v447 = vld [vmem:[%s1 + $0x7c] sm:$0xf]
        %v464 = vunpack.c.l.b16 %v400
        %v465 = vunpack.c.h.b16 %v400
        %v466 = vunpack.c.l.b16 %v401
        %v467 = vunpack.c.h.b16 %v401
        %v468 = vunpack.c.l.b16 %v402
        %v469 = vunpack.c.h.b16 %v402
        %v470 = vunpack.c.l.b16 %v403
        %v471 = vunpack.c.h.b16 %v403
        %v472 = vunpack.c.l.b16 %v404
        %v473 = vunpack.c.h.b16 %v404
        %v474 = vunpack.c.l.b16 %v405
        %v475 = vunpack.c.h.b16 %v405
        %v476 = vunpack.c.l.b16 %v406
        %v477 = vunpack.c.h.b16 %v406
        %v478 = vunpack.c.l.b16 %v407
        %v479 = vunpack.c.h.b16 %v407
        %v480 = vunpack.c.l.b16 %v408
        %v481 = vunpack.c.h.b16 %v408
        %v482 = vunpack.c.l.b16 %v409
        %v483 = vunpack.c.h.b16 %v409
        %v484 = vunpack.c.l.b16 %v410
        %v485 = vunpack.c.h.b16 %v410
        %v486 = vunpack.c.l.b16 %v411
        %v487 = vunpack.c.h.b16 %v411
        %v488 = vunpack.c.l.b16 %v412
        %v489 = vunpack.c.h.b16 %v412
        %v490 = vunpack.c.l.b16 %v413
        %v491 = vunpack.c.h.b16 %v413
        %v492 = vunpack.c.l.b16 %v414
        %v493 = vunpack.c.h.b16 %v414
        %v494 = vunpack.c.l.b16 %v415
        %v495 = vunpack.c.h.b16 %v415
        %v496 = vpack.c.b16 %v466, %v464
        %v497 = vpack.c.b16 %v467, %v465
        %v498 = vpack.c.b16 %v470, %v468
        %v499 = vpack.c.b16 %v471, %v469
        %v500 = vpack.c.b16 %v474, %v472
        %v501 = vpack.c.b16 %v475, %v473
        %v502 = vpack.c.b16 %v478, %v476
        %v503 = vpack.c.b16 %v479, %v477
        %v504 = vpack.c.b16 %v482, %v480
        %v505 = vpack.c.b16 %v483, %v481
        %v506 = vpack.c.b16 %v486, %v484
        %v507 = vpack.c.b16 %v487, %v485
        %v508 = vpack.c.b16 %v490, %v488
        %v509 = vpack.c.b16 %v491, %v489
        %v510 = vpack.c.b16 %v494, %v492
        %v511 = vpack.c.b16 %v495, %v493
        %v560 = vunpack.c.l.b16 %v416
        %v561 = vunpack.c.l.b16 %v417
        %v562 = vunpack.c.l.b16 %v418
        %v563 = vunpack.c.l.b16 %v419
        %v564 = vunpack.c.l.b16 %v420
        %v565 = vunpack.c.l.b16 %v421
        %v566 = vunpack.c.l.b16 %v422
        %v567 = vunpack.c.l.b16 %v423
        %v568 = vunpack.c.l.b16 %v424
        %v569 = vunpack.c.l.b16 %v425
        %v570 = vunpack.c.l.b16 %v426
        %v571 = vunpack.c.l.b16 %v427
        %v572 = vunpack.c.l.b16 %v428
        %v573 = vunpack.c.l.b16 %v429
        %v574 = vunpack.c.l.b16 %v430
        %v575 = vunpack.c.l.b16 %v431
        %v576 = vunpack.c.l.b16 %v432
        %v577 = vunpack.c.l.b16 %v433
        %v578 = vunpack.c.l.b16 %v434
        %v579 = vunpack.c.l.b16 %v435
        %v580 = vunpack.c.l.b16 %v436
        %v581 = vunpack.c.l.b16 %v437
        %v582 = vunpack.c.l.b16 %v438
        %v583 = vunpack.c.l.b16 %v439
        %v584 = vunpack.c.l.b16 %v440
        %v585 = vunpack.c.l.b16 %v441
        %v586 = vunpack.c.l.b16 %v442
        %v587 = vunpack.c.l.b16 %v443
        %v588 = vunpack.c.l.b16 %v444
        %v589 = vunpack.c.l.b16 %v445
        %v590 = vunpack.c.l.b16 %v446
        %v591 = vunpack.c.l.b16 %v447
        %v592 = vpack.c.b16 %v561, %v560
        %v593 = vpack.c.b16 %v563, %v562
        %v594 = vpack.c.b16 %v565, %v564
        %v595 = vpack.c.b16 %v567, %v566
        %v596 = vpack.c.b16 %v569, %v568
        %v597 = vpack.c.b16 %v571, %v570
        %v598 = vpack.c.b16 %v573, %v572
        %v599 = vpack.c.b16 %v575, %v574
        %v600 = vpack.c.b16 %v577, %v576
        %v601 = vpack.c.b16 %v579, %v578
        %v602 = vpack.c.b16 %v581, %v580
        %v603 = vpack.c.b16 %v583, %v582
        %v604 = vpack.c.b16 %v585, %v584
        %v605 = vpack.c.b16 %v587, %v586
        %v606 = vpack.c.b16 %v589, %v588
        %v607 = vpack.c.b16 %v591, %v590
        %624 = vmatprep.subr.bf16.mxu0 0
        %625 = vmatpush1.bf16.msra.mxu0 %v599
        %626 = vmatprep.subr.bf16.mxu0 0
        %627 = vmatpush1.bf16.msra.mxu0 %v598
        %628 = vmatprep.subr.bf16.mxu0 0
        %629 = vmatpush1.bf16.msra.mxu0 %v597
        %630 = vmatprep.subr.bf16.mxu0 0
        %631 = vmatpush1.bf16.msra.mxu0 %v596
        %632 = vmatprep.subr.bf16.mxu0 0
        %633 = vmatpush1.bf16.msra.mxu0 %v595
        %634 = vmatprep.subr.bf16.mxu0 0
        %635 = vmatpush1.bf16.msra.mxu0 %v594
        %636 = vmatprep.subr.bf16.mxu0 0
        %637 = vmatpush1.bf16.msra.mxu0 %v593
        %638 = vmatprep.subr.bf16.mxu0 0
        %639 = vmatpush1.bf16.msra.mxu0 %v592
        %640 = vmatprep.subr.bf16.mxu0 0
        %641 = vmatpush2.bf16.msra.mxu0 %v607
        %642 = vmatprep.subr.bf16.mxu0 0
        %643 = vmatpush2.bf16.msra.mxu0 %v606
        %644 = vmatprep.subr.bf16.mxu0 0
        %645 = vmatpush2.bf16.msra.mxu0 %v605
        %646 = vmatprep.subr.bf16.mxu0 0
        %647 = vmatpush2.bf16.msra.mxu0 %v604
        %648 = vmatprep.subr.bf16.mxu0 0
        %649 = vmatpush2.bf16.msra.mxu0 %v603
        %650 = vmatprep.subr.bf16.mxu0 0
        %651 = vmatpush2.bf16.msra.mxu0 %v602
        %652 = vmatprep.subr.bf16.mxu0 0
        %653 = vmatpush2.bf16.msra.mxu0 %v601
        %654 = vmatprep.subr.bf16.mxu0 0
        %655 = vmatpush2.bf16.msra.mxu0 %v600
        %656 = vmatprep.mubr.bf16.mxu0 %v497
        %657 = vmatmul.mubr.bf16.gmra.mxu0 %v496
        %v658 = vpop.f32.mrf.mxu0
        %v659 = vadd.f32 0.0, %v658
        %v660 = vpop.f32.mrf.mxu0
        %v661 = vpop.f32.mrf.mxu0
        %v662 = vadd.f32 0.0, %v661
        %v663 = vpop.f32.mrf.mxu0
        %664 = vmatprep.mubr.bf16.mxu0 %v499
        %665 = vmatmul.mubr.bf16.gmra.mxu0 %v498
        %v666 = vpop.f32.mrf.mxu0
        %v667 = vadd.f32 0.0, %v666
        %v668 = vpop.f32.mrf.mxu0
        %v669 = vpop.f32.mrf.mxu0
        %v670 = vadd.f32 0.0, %v669
        %v671 = vpop.f32.mrf.mxu0
        %672 = vmatprep.mubr.bf16.mxu0 %v501
        %673 = vmatmul.mubr.bf16.gmra.mxu0 %v500
        %v674 = vpop.f32.mrf.mxu0
        %v675 = vadd.f32 0.0, %v674
        %v676 = vpop.f32.mrf.mxu0
        %v677 = vpop.f32.mrf.mxu0
        %v678 = vadd.f32 0.0, %v677
        %v679 = vpop.f32.mrf.mxu0
        %680 = vmatprep.mubr.bf16.mxu0 %v503
        %681 = vmatmul.mubr.bf16.gmra.mxu0 %v502
        %v682 = vpop.f32.mrf.mxu0
        %v683 = vadd.f32 0.0, %v682
        %v684 = vpop.f32.mrf.mxu0
        %v685 = vpop.f32.mrf.mxu0
        %v686 = vadd.f32 0.0, %v685
        %v687 = vpop.f32.mrf.mxu0
        %688 = vmatprep.mubr.bf16.mxu0 %v505
        %689 = vmatmul.mubr.bf16.gmra.mxu0 %v504
        %v690 = vpop.f32.mrf.mxu0
        %v691 = vadd.f32 0.0, %v690
        %v692 = vpop.f32.mrf.mxu0
        %v693 = vpop.f32.mrf.mxu0
        %v694 = vadd.f32 0.0, %v693
        %v695 = vpop.f32.mrf.mxu0
        %696 = vmatprep.mubr.bf16.mxu0 %v507
        %697 = vmatmul.mubr.bf16.gmra.mxu0 %v506
        %v698 = vpop.f32.mrf.mxu0
        %v699 = vadd.f32 0.0, %v698
        %v700 = vpop.f32.mrf.mxu0
        %v701 = vpop.f32.mrf.mxu0
        %v702 = vadd.f32 0.0, %v701
        %v703 = vpop.f32.mrf.mxu0
        %704 = vmatprep.mubr.bf16.mxu0 %v509
        %705 = vmatmul.mubr.bf16.gmra.mxu0 %v508
        %v706 = vpop.f32.mrf.mxu0
        %v707 = vadd.f32 0.0, %v706
        %v708 = vpop.f32.mrf.mxu0
        %v709 = vpop.f32.mrf.mxu0
        %v710 = vadd.f32 0.0, %v709
        %v711 = vpop.f32.mrf.mxu0
        %712 = vmatprep.mubr.bf16.mxu0 %v511
        %713 = vmatmul.mubr.bf16.gmra.mxu0 %v510
        %v714 = vpop.f32.mrf.mxu0
        %v715 = vadd.f32 0.0, %v714
        %v716 = vpop.f32.mrf.mxu0
        %v717 = vpop.f32.mrf.mxu0
        %v718 = vadd.f32 0.0, %v717
        %v719 = vpop.f32.mrf.mxu0
        %720 = vdwg.mxu0
        %v721 = vmul.f32 %v659, %v659
        %v722 = vmul.f32 %v662, %v662
        %v723 = vmul.f32 %v667, %v667
        %v724 = vmul.f32 %v670, %v670
        %v725 = vmul.f32 %v675, %v675
        %v726 = vmul.f32 %v678, %v678
        %v727 = vmul.f32 %v683, %v683
        %v728 = vmul.f32 %v686, %v686
        %v729 = vmul.f32 %v691, %v691
        %v730 = vmul.f32 %v694, %v694
        %v731 = vmul.f32 %v699, %v699
        %v732 = vmul.f32 %v702, %v702
        %v733 = vmul.f32 %v707, %v707
        %v734 = vmul.f32 %v710, %v710
        %v735 = vmul.f32 %v715, %v715
        %v736 = vmul.f32 %v718, %v718
        %737 = vadd.xlane.f32.xlu0 %v721
        %v738 = vpop.xlane.xlu0 %737
        %739 = vadd.xlane.f32.xlu0 %v722
        %v740 = vpop.xlane.xlu0 %739
        %741 = vadd.xlane.f32.xlu0 %v723
        %v742 = vpop.xlane.xlu0 %741
        %743 = vadd.xlane.f32.xlu0 %v724
        %v744 = vpop.xlane.xlu0 %743
        %745 = vadd.xlane.f32.xlu0 %v725
        %v746 = vpop.xlane.xlu0 %745
        %747 = vadd.xlane.f32.xlu0 %v726
        %v748 = vpop.xlane.xlu0 %747
        %749 = vadd.xlane.f32.xlu0 %v727
        %v750 = vpop.xlane.xlu0 %749
        %751 = vadd.xlane.f32.xlu0 %v728
        %v752 = vpop.xlane.xlu0 %751
        %753 = vadd.xlane.f32.xlu0 %v729
        %v754 = vpop.xlane.xlu0 %753
        %755 = vadd.xlane.f32.xlu0 %v730
        %v756 = vpop.xlane.xlu0 %755
        %757 = vadd.xlane.f32.xlu0 %v731
        %v758 = vpop.xlane.xlu0 %757
        %759 = vadd.xlane.f32.xlu0 %v732
        %v760 = vpop.xlane.xlu0 %759
        %761 = vadd.xlane.f32.xlu0 %v733
        %v762 = vpop.xlane.xlu0 %761
        %763 = vadd.xlane.f32.xlu0 %v734
        %v764 = vpop.xlane.xlu0 %763
        %765 = vadd.xlane.f32.xlu0 %v735
        %v766 = vpop.xlane.xlu0 %765
        %767 = vadd.xlane.f32.xlu0 %v736
        %v768 = vpop.xlane.xlu0 %767
        %v769 = vrcp.pop 128.0
        %v770 = vmul.f32 %v738, %v769
        %v771 = vmul.f32 %v740, %v769
        %v772 = vmul.f32 %v742, %v769
        %v773 = vmul.f32 %v744, %v769
        %v774 = vmul.f32 %v746, %v769
        %v775 = vmul.f32 %v748, %v769
        %v776 = vmul.f32 %v750, %v769
        %v777 = vmul.f32 %v752, %v769
        %v778 = vmul.f32 %v754, %v769
        %v779 = vmul.f32 %v756, %v769
        %v780 = vmul.f32 %v758, %v769
        %v781 = vmul.f32 %v760, %v769
        %v782 = vmul.f32 %v762, %v769
        %v783 = vmul.f32 %v764, %v769
        %v784 = vmul.f32 %v766, %v769
        %v785 = vmul.f32 %v768, %v769
        %v786 = vadd.f32 %v770, 1e-06
        %v787 = vadd.f32 %v771, 1e-06
        %v788 = vadd.f32 %v772, 1e-06
        %v789 = vadd.f32 %v773, 1e-06
        %v790 = vadd.f32 %v774, 1e-06
        %v791 = vadd.f32 %v775, 1e-06
        %v792 = vadd.f32 %v776, 1e-06
        %v793 = vadd.f32 %v777, 1e-06
        %v794 = vadd.f32 %v778, 1e-06
        %v795 = vadd.f32 %v779, 1e-06
        %v796 = vadd.f32 %v780, 1e-06
        %v797 = vadd.f32 %v781, 1e-06
        %v798 = vadd.f32 %v782, 1e-06
        %v799 = vadd.f32 %v783, 1e-06
        %v800 = vadd.f32 %v784, 1e-06
        %v801 = vadd.f32 %v785, 1e-06
        %v802 = vrsqrt.pop %v786
        %v803 = vrsqrt.pop %v787
        %v804 = vrsqrt.pop %v788
        %v805 = vrsqrt.pop %v789
        %v806 = vrsqrt.pop %v790
        %v807 = vrsqrt.pop %v791
        %v808 = vrsqrt.pop %v792
        %v809 = vrsqrt.pop %v793
        %v810 = vrsqrt.pop %v794
        %v811 = vrsqrt.pop %v795
        %v812 = vrsqrt.pop %v796
        %v813 = vrsqrt.pop %v797
        %v814 = vrsqrt.pop %v798
        %v815 = vrsqrt.pop %v799
        %v816 = vrsqrt.pop %v800
        %v817 = vrsqrt.pop %v801
        %v818 = vmul.f32 %v659, %v802
        %v819 = vmul.f32 %v662, %v803
        %v820 = vmul.f32 %v667, %v804
        %v821 = vmul.f32 %v670, %v805
        %v822 = vmul.f32 %v675, %v806
        %v823 = vmul.f32 %v678, %v807
        %v824 = vmul.f32 %v683, %v808
        %v825 = vmul.f32 %v686, %v809
        %v826 = vmul.f32 %v691, %v810
        %v827 = vmul.f32 %v694, %v811
        %v828 = vmul.f32 %v699, %v812
        %v829 = vmul.f32 %v702, %v813
        %v830 = vmul.f32 %v707, %v814
        %v831 = vmul.f32 %v710, %v815
        %v832 = vmul.f32 %v715, %v816
        %v833 = vmul.f32 %v718, %v817
        %v834 = vld [vmem:[%s2] sm:$0x1]
        %v836 = vlaneseq
        %v837 = vshrl.u32 %v836, 7
        %v838 = vsub.s32 0, %v837
        %v839 = vrot.slane %v834, %v838
        %v841 = vmul.f32 %v818, %v839
        %v842 = vmul.f32 %v819, %v839
        %v843 = vmul.f32 %v820, %v839
        %v844 = vmul.f32 %v821, %v839
        %v845 = vmul.f32 %v822, %v839
        %v846 = vmul.f32 %v823, %v839
        %v847 = vmul.f32 %v824, %v839
        %v848 = vmul.f32 %v825, %v839
        %v849 = vmul.f32 %v826, %v839
        %v850 = vmul.f32 %v827, %v839
        %v851 = vmul.f32 %v828, %v839
        %v852 = vmul.f32 %v829, %v839
        %v853 = vmul.f32 %v830, %v839
        %v854 = vmul.f32 %v831, %v839
        %v855 = vmul.f32 %v832, %v839
        %v856 = vmul.f32 %v833, %v839
        %v857 = vpack.c.bf16 %v842, %v841
        %v858 = vpack.c.bf16 %v844, %v843
        %v859 = vpack.c.bf16 %v846, %v845
        %v860 = vpack.c.bf16 %v848, %v847
        %v861 = vpack.c.bf16 %v850, %v849
        %v862 = vpack.c.bf16 %v852, %v851
        %v863 = vpack.c.bf16 %v854, %v853
        %v864 = vpack.c.bf16 %v856, %v855
        %v865 = vld [vmem:[%s3] sm:$0xff]
        %v866 = vld [vmem:[%s3 + $0x8] sm:$0xff]
        %v867 = vld [vmem:[%s3 + $0x10] sm:$0xff]
        %v868 = vld [vmem:[%s3 + $0x18] sm:$0xff]
        %v869 = vld [vmem:[%s3 + $0x20] sm:$0xff]
        %v870 = vld [vmem:[%s3 + $0x28] sm:$0xff]
        %v871 = vld [vmem:[%s3 + $0x30] sm:$0xff]
        %v872 = vld [vmem:[%s3 + $0x38] sm:$0xff]
        %v873 = vld [vmem:[%s3 + $0x40] sm:$0xff]
        %v874 = vld [vmem:[%s3 + $0x48] sm:$0xff]
        %v875 = vld [vmem:[%s3 + $0x50] sm:$0xff]
        %v876 = vld [vmem:[%s3 + $0x58] sm:$0xff]
        %v877 = vld [vmem:[%s3 + $0x60] sm:$0xff]
        %v878 = vld [vmem:[%s3 + $0x68] sm:$0xff]
        %v879 = vld [vmem:[%s3 + $0x70] sm:$0xff]
        %v880 = vld [vmem:[%s3 + $0x78] sm:$0xff]
        %v881 = vld [vmem:[%s3 + $0x80] sm:$0xff]
        %v882 = vld [vmem:[%s3 + $0x88] sm:$0xff]
        %v883 = vld [vmem:[%s3 + $0x90] sm:$0xff]
        %v884 = vld [vmem:[%s3 + $0x98] sm:$0xff]
        %v885 = vld [vmem:[%s3 + $0xa0] sm:$0xff]
        %v886 = vld [vmem:[%s3 + $0xa8] sm:$0xff]
        %v887 = vld [vmem:[%s3 + $0xb0] sm:$0xff]
        %v888 = vld [vmem:[%s3 + $0xb8] sm:$0xff]
        %v889 = vld [vmem:[%s3 + $0xc0] sm:$0xff]
        %v890 = vld [vmem:[%s3 + $0xc8] sm:$0xff]
        %v891 = vld [vmem:[%s3 + $0xd0] sm:$0xff]
        %v892 = vld [vmem:[%s3 + $0xd8] sm:$0xff]
        %v893 = vld [vmem:[%s3 + $0xe0] sm:$0xff]
        %v894 = vld [vmem:[%s3 + $0xe8] sm:$0xff]
        %v895 = vld [vmem:[%s3 + $0xf0] sm:$0xff]
        %v896 = vld [vmem:[%s3 + $0xf8] sm:$0xff]
        %v929 = vunpack.c.l.b16 %v865
        %v930 = vunpack.c.h.b16 %v865
        %v931 = vunpack.c.l.b16 %v866
        %v932 = vunpack.c.h.b16 %v866
        %v933 = vunpack.c.l.b16 %v867
        %v934 = vunpack.c.h.b16 %v867
        %v935 = vunpack.c.l.b16 %v868
        %v936 = vunpack.c.h.b16 %v868
        %v937 = vunpack.c.l.b16 %v869
        %v938 = vunpack.c.h.b16 %v869
        %v939 = vunpack.c.l.b16 %v870
        %v940 = vunpack.c.h.b16 %v870
        %v941 = vunpack.c.l.b16 %v871
        %v942 = vunpack.c.h.b16 %v871
        %v943 = vunpack.c.l.b16 %v872
        %v944 = vunpack.c.h.b16 %v872
        %v945 = vunpack.c.l.b16 %v873
        %v946 = vunpack.c.h.b16 %v873
        %v947 = vunpack.c.l.b16 %v874
        %v948 = vunpack.c.h.b16 %v874
        %v949 = vunpack.c.l.b16 %v875
        %v950 = vunpack.c.h.b16 %v875
        %v951 = vunpack.c.l.b16 %v876
        %v952 = vunpack.c.h.b16 %v876
        %v953 = vunpack.c.l.b16 %v877
        %v954 = vunpack.c.h.b16 %v877
        %v955 = vunpack.c.l.b16 %v878
        %v956 = vunpack.c.h.b16 %v878
        %v957 = vunpack.c.l.b16 %v879
        %v958 = vunpack.c.h.b16 %v879
        %v959 = vunpack.c.l.b16 %v880
        %v960 = vunpack.c.h.b16 %v880
        %v961 = vunpack.c.l.b16 %v881
        %v962 = vunpack.c.h.b16 %v881
        %v963 = vunpack.c.l.b16 %v882
        %v964 = vunpack.c.h.b16 %v882
        %v965 = vunpack.c.l.b16 %v883
        %v966 = vunpack.c.h.b16 %v883
        %v967 = vunpack.c.l.b16 %v884
        %v968 = vunpack.c.h.b16 %v884
        %v969 = vunpack.c.l.b16 %v885
        %v970 = vunpack.c.h.b16 %v885
        %v971 = vunpack.c.l.b16 %v886
        %v972 = vunpack.c.h.b16 %v886
        %v973 = vunpack.c.l.b16 %v887
        %v974 = vunpack.c.h.b16 %v887
        %v975 = vunpack.c.l.b16 %v888
        %v976 = vunpack.c.h.b16 %v888
        %v977 = vunpack.c.l.b16 %v889
        %v978 = vunpack.c.h.b16 %v889
        %v979 = vunpack.c.l.b16 %v890
        %v980 = vunpack.c.h.b16 %v890
        %v981 = vunpack.c.l.b16 %v891
        %v982 = vunpack.c.h.b16 %v891
        %v983 = vunpack.c.l.b16 %v892
        %v984 = vunpack.c.h.b16 %v892
        %v985 = vunpack.c.l.b16 %v893
        %v986 = vunpack.c.h.b16 %v893
        %v987 = vunpack.c.l.b16 %v894
        %v988 = vunpack.c.h.b16 %v894
        %v989 = vunpack.c.l.b16 %v895
        %v990 = vunpack.c.h.b16 %v895
        %v991 = vunpack.c.l.b16 %v896
        %v992 = vunpack.c.h.b16 %v896
        %v993 = vpack.c.b16 %v933, %v929
        %v994 = vpack.c.b16 %v934, %v930
        %v995 = vpack.c.b16 %v935, %v931
        %v996 = vpack.c.b16 %v936, %v932
        %v997 = vpack.c.b16 %v941, %v937
        %v998 = vpack.c.b16 %v942, %v938
        %v999 = vpack.c.b16 %v943, %v939
        %v1000 = vpack.c.b16 %v944, %v940
        %v1001 = vpack.c.b16 %v949, %v945
        %v1002 = vpack.c.b16 %v950, %v946
        %v1003 = vpack.c.b16 %v951, %v947
        %v1004 = vpack.c.b16 %v952, %v948
        %v1005 = vpack.c.b16 %v957, %v953
        %v1006 = vpack.c.b16 %v958, %v954
        %v1007 = vpack.c.b16 %v959, %v955
        %v1008 = vpack.c.b16 %v960, %v956
        %v1009 = vpack.c.b16 %v965, %v961
        %v1010 = vpack.c.b16 %v966, %v962
        %v1011 = vpack.c.b16 %v967, %v963
        %v1012 = vpack.c.b16 %v968, %v964
        %v1013 = vpack.c.b16 %v973, %v969
        %v1014 = vpack.c.b16 %v974, %v970
        %v1015 = vpack.c.b16 %v975, %v971
        %v1016 = vpack.c.b16 %v976, %v972
        %v1017 = vpack.c.b16 %v981, %v977
        %v1018 = vpack.c.b16 %v982, %v978
        %v1019 = vpack.c.b16 %v983, %v979
        %v1020 = vpack.c.b16 %v984, %v980
        %v1021 = vpack.c.b16 %v989, %v985
        %v1022 = vpack.c.b16 %v990, %v986
        %v1023 = vpack.c.b16 %v991, %v987
        %v1024 = vpack.c.b16 %v992, %v988
        %1057 = vmatprep.subr.bf16.mxu0 %v1022
        %1058 = vmatpush1.bf16.msra.mxu0 %v1021
        %1059 = vmatprep.subr.bf16.mxu0 %v1018
        %1060 = vmatpush1.bf16.msra.mxu0 %v1017
        %1061 = vmatprep.subr.bf16.mxu0 %v1014
        %1062 = vmatpush1.bf16.msra.mxu0 %v1013
        %1063 = vmatprep.subr.bf16.mxu0 %v1010
        %1064 = vmatpush1.bf16.msra.mxu0 %v1009
        %1065 = vmatprep.subr.bf16.mxu0 %v1006
        %1066 = vmatpush1.bf16.msra.mxu0 %v1005
        %1067 = vmatprep.subr.bf16.mxu0 %v1002
        %1068 = vmatpush1.bf16.msra.mxu0 %v1001
        %1069 = vmatprep.subr.bf16.mxu0 %v998
        %1070 = vmatpush1.bf16.msra.mxu0 %v997
        %1071 = vmatprep.subr.bf16.mxu0 %v994
        %1072 = vmatpush1.bf16.msra.mxu0 %v993
        %1073 = vmatprep.subr.bf16.mxu0 0
        %1074 = vmatpush2.bf16.msra.mxu0 0
        %1075 = vmatprep.subr.bf16.mxu0 0
        %1076 = vmatpush2.bf16.msra.mxu0 0
        %1077 = vmatprep.subr.bf16.mxu0 0
        %1078 = vmatpush2.bf16.msra.mxu0 0
        %1079 = vmatprep.subr.bf16.mxu0 0
        %1080 = vmatpush2.bf16.msra.mxu0 0
        %1081 = vmatprep.subr.bf16.mxu0 0
        %1082 = vmatpush2.bf16.msra.mxu0 0
        %1083 = vmatprep.subr.bf16.mxu0 0
        %1084 = vmatpush2.bf16.msra.mxu0 0
        %1085 = vmatprep.subr.bf16.mxu0 0
        %1086 = vmatpush2.bf16.msra.mxu0 0
        %1087 = vmatprep.subr.bf16.mxu0 0
        %1088 = vmatpush2.bf16.msra.mxu0 0
        %1089 = vmatprep.mubr.bf16.mxu0 0
        %1090 = vmatmul.mubr.bf16.gmra.mxu0 %v857
        %v1091 = vpop.f32.mrf.mxu0
        %v1092 = vadd.f32 0.0, %v1091
        %v1093 = vpop.f32.mrf.mxu0
        %v1094 = vadd.f32 0.0, %v1093
        %v1095 = vpop.f32.mrf.mxu0
        %v1096 = vadd.f32 0.0, %v1095
        %v1097 = vpop.f32.mrf.mxu0
        %v1098 = vadd.f32 0.0, %v1097
        %1099 = vmatprep.mubr.bf16.mxu0 0
        %1100 = vmatmul.mubr.bf16.gmra.mxu0 %v858
        %v1101 = vpop.f32.mrf.mxu0
        %v1102 = vadd.f32 0.0, %v1101
        %v1103 = vpop.f32.mrf.mxu0
        %v1104 = vadd.f32 0.0, %v1103
        %v1105 = vpop.f32.mrf.mxu0
        %v1106 = vadd.f32 0.0, %v1105
        %v1107 = vpop.f32.mrf.mxu0
        %v1108 = vadd.f32 0.0, %v1107
        %1109 = vmatprep.mubr.bf16.mxu0 0
        %1110 = vmatmul.mubr.bf16.gmra.mxu0 %v859
        %v1111 = vpop.f32.mrf.mxu0
        %v1112 = vadd.f32 0.0, %v1111
        %v1113 = vpop.f32.mrf.mxu0
        %v1114 = vadd.f32 0.0, %v1113
        %v1115 = vpop.f32.mrf.mxu0
        %v1116 = vadd.f32 0.0, %v1115
        %v1117 = vpop.f32.mrf.mxu0
        %v1118 = vadd.f32 0.0, %v1117
        %1119 = vmatprep.mubr.bf16.mxu0 0
        %1120 = vmatmul.mubr.bf16.gmra.mxu0 %v860
        %v1121 = vpop.f32.mrf.mxu0
        %v1122 = vadd.f32 0.0, %v1121
        %v1123 = vpop.f32.mrf.mxu0
        %v1124 = vadd.f32 0.0, %v1123
        %v1125 = vpop.f32.mrf.mxu0
        %v1126 = vadd.f32 0.0, %v1125
        %v1127 = vpop.f32.mrf.mxu0
        %v1128 = vadd.f32 0.0, %v1127
        %1129 = vmatprep.mubr.bf16.mxu0 0
        %1130 = vmatmul.mubr.bf16.gmra.mxu0 %v861
        %v1131 = vpop.f32.mrf.mxu0
        %v1132 = vadd.f32 0.0, %v1131
        %v1133 = vpop.f32.mrf.mxu0
        %v1134 = vadd.f32 0.0, %v1133
        %v1135 = vpop.f32.mrf.mxu0
        %v1136 = vadd.f32 0.0, %v1135
        %v1137 = vpop.f32.mrf.mxu0
        %v1138 = vadd.f32 0.0, %v1137
        %1139 = vmatprep.mubr.bf16.mxu0 0
        %1140 = vmatmul.mubr.bf16.gmra.mxu0 %v862
        %v1141 = vpop.f32.mrf.mxu0
        %v1142 = vadd.f32 0.0, %v1141
        %v1143 = vpop.f32.mrf.mxu0
        %v1144 = vadd.f32 0.0, %v1143
        %v1145 = vpop.f32.mrf.mxu0
        %v1146 = vadd.f32 0.0, %v1145
        %v1147 = vpop.f32.mrf.mxu0
        %v1148 = vadd.f32 0.0, %v1147
        %1149 = vmatprep.mubr.bf16.mxu0 0
        %1150 = vmatmul.mubr.bf16.gmra.mxu0 %v863
        %v1151 = vpop.f32.mrf.mxu0
        %v1152 = vadd.f32 0.0, %v1151
        %v1153 = vpop.f32.mrf.mxu0
        %v1154 = vadd.f32 0.0, %v1153
        %v1155 = vpop.f32.mrf.mxu0
        %v1156 = vadd.f32 0.0, %v1155
        %v1157 = vpop.f32.mrf.mxu0
        %v1158 = vadd.f32 0.0, %v1157
        %1159 = vmatprep.mubr.bf16.mxu0 0
        %1160 = vmatmul.mubr.bf16.gmra.mxu0 %v864
        %v1161 = vpop.f32.mrf.mxu0
        %v1162 = vadd.f32 0.0, %v1161
        %v1163 = vpop.f32.mrf.mxu0
        %v1164 = vadd.f32 0.0, %v1163
        %v1165 = vpop.f32.mrf.mxu0
        %v1166 = vadd.f32 0.0, %v1165
        %v1167 = vpop.f32.mrf.mxu0
        %v1168 = vadd.f32 0.0, %v1167
        %1169 = vdwg.mxu0
        %1170 = vmatprep.subr.bf16.mxu0 %v1024
        %1171 = vmatpush1.bf16.msra.mxu0 %v1023
        %1172 = vmatprep.subr.bf16.mxu0 %v1020
        %1173 = vmatpush1.bf16.msra.mxu0 %v1019
        %1174 = vmatprep.subr.bf16.mxu0 %v1016
        %1175 = vmatpush1.bf16.msra.mxu0 %v1015
        %1176 = vmatprep.subr.bf16.mxu0 %v1012
        %1177 = vmatpush1.bf16.msra.mxu0 %v1011
        %1178 = vmatprep.subr.bf16.mxu0 %v1008
        %1179 = vmatpush1.bf16.msra.mxu0 %v1007
        %1180 = vmatprep.subr.bf16.mxu0 %v1004
        %1181 = vmatpush1.bf16.msra.mxu0 %v1003
        %1182 = vmatprep.subr.bf16.mxu0 %v1000
        %1183 = vmatpush1.bf16.msra.mxu0 %v999
        %1184 = vmatprep.subr.bf16.mxu0 %v996
        %1185 = vmatpush1.bf16.msra.mxu0 %v995
        %1186 = vmatprep.subr.bf16.mxu0 0
        %1187 = vmatpush2.bf16.msra.mxu0 0
        %1188 = vmatprep.subr.bf16.mxu0 0
        %1189 = vmatpush2.bf16.msra.mxu0 0
        %1190 = vmatprep.subr.bf16.mxu0 0
        %1191 = vmatpush2.bf16.msra.mxu0 0
        %1192 = vmatprep.subr.bf16.mxu0 0
        %1193 = vmatpush2.bf16.msra.mxu0 0
        %1194 = vmatprep.subr.bf16.mxu0 0
        %1195 = vmatpush2.bf16.msra.mxu0 0
        %1196 = vmatprep.subr.bf16.mxu0 0
        %1197 = vmatpush2.bf16.msra.mxu0 0
        %1198 = vmatprep.subr.bf16.mxu0 0
        %1199 = vmatpush2.bf16.msra.mxu0 0
        %1200 = vmatprep.subr.bf16.mxu0 0
        %1201 = vmatpush2.bf16.msra.mxu0 0
        %1202 = vmatprep.mubr.bf16.mxu0 0
        %1203 = vmatmul.mubr.bf16.gmra.mxu0 %v857
        %v1204 = vpop.f32.mrf.mxu0
        %v1205 = vadd.f32 0.0, %v1204
        %v1206 = vpop.f32.mrf.mxu0
        %v1207 = vadd.f32 0.0, %v1206
        %v1208 = vpop.f32.mrf.mxu0
        %v1209 = vadd.f32 0.0, %v1208
        %v1210 = vpop.f32.mrf.mxu0
        %v1211 = vadd.f32 0.0, %v1210
        %1212 = vmatprep.mubr.bf16.mxu0 0
        %1213 = vmatmul.mubr.bf16.gmra.mxu0 %v858
        %v1214 = vpop.f32.mrf.mxu0
        %v1215 = vadd.f32 0.0, %v1214
        %v1216 = vpop.f32.mrf.mxu0
        %v1217 = vadd.f32 0.0, %v1216
        %v1218 = vpop.f32.mrf.mxu0
        %v1219 = vadd.f32 0.0, %v1218
        %v1220 = vpop.f32.mrf.mxu0
        %v1221 = vadd.f32 0.0, %v1220
        %1222 = vmatprep.mubr.bf16.mxu0 0
        %1223 = vmatmul.mubr.bf16.gmra.mxu0 %v859
        %v1224 = vpop.f32.mrf.mxu0
        %v1225 = vadd.f32 0.0, %v1224
        %v1226 = vpop.f32.mrf.mxu0
        %v1227 = vadd.f32 0.0, %v1226
        %v1228 = vpop.f32.mrf.mxu0
        %v1229 = vadd.f32 0.0, %v1228
        %v1230 = vpop.f32.mrf.mxu0
        %v1231 = vadd.f32 0.0, %v1230
        %1232 = vmatprep.mubr.bf16.mxu0 0
        %1233 = vmatmul.mubr.bf16.gmra.mxu0 %v860
        %v1234 = vpop.f32.mrf.mxu0
        %v1235 = vadd.f32 0.0, %v1234
        %v1236 = vpop.f32.mrf.mxu0
        %v1237 = vadd.f32 0.0, %v1236
        %v1238 = vpop.f32.mrf.mxu0
        %v1239 = vadd.f32 0.0, %v1238
        %v1240 = vpop.f32.mrf.mxu0
        %v1241 = vadd.f32 0.0, %v1240
        %1242 = vmatprep.mubr.bf16.mxu0 0
        %1243 = vmatmul.mubr.bf16.gmra.mxu0 %v861
        %v1244 = vpop.f32.mrf.mxu0
        %v1245 = vadd.f32 0.0, %v1244
        %v1246 = vpop.f32.mrf.mxu0
        %v1247 = vadd.f32 0.0, %v1246
        %v1248 = vpop.f32.mrf.mxu0
        %v1249 = vadd.f32 0.0, %v1248
        %v1250 = vpop.f32.mrf.mxu0
        %v1251 = vadd.f32 0.0, %v1250
        %1252 = vmatprep.mubr.bf16.mxu0 0
        %1253 = vmatmul.mubr.bf16.gmra.mxu0 %v862
        %v1254 = vpop.f32.mrf.mxu0
        %v1255 = vadd.f32 0.0, %v1254
        %v1256 = vpop.f32.mrf.mxu0
        %v1257 = vadd.f32 0.0, %v1256
        %v1258 = vpop.f32.mrf.mxu0
        %v1259 = vadd.f32 0.0, %v1258
        %v1260 = vpop.f32.mrf.mxu0
        %v1261 = vadd.f32 0.0, %v1260
        %1262 = vmatprep.mubr.bf16.mxu0 0
        %1263 = vmatmul.mubr.bf16.gmra.mxu0 %v863
        %v1264 = vpop.f32.mrf.mxu0
        %v1265 = vadd.f32 0.0, %v1264
        %v1266 = vpop.f32.mrf.mxu0
        %v1267 = vadd.f32 0.0, %v1266
        %v1268 = vpop.f32.mrf.mxu0
        %v1269 = vadd.f32 0.0, %v1268
        %v1270 = vpop.f32.mrf.mxu0
        %v1271 = vadd.f32 0.0, %v1270
        %1272 = vmatprep.mubr.bf16.mxu0 0
        %1273 = vmatmul.mubr.bf16.gmra.mxu0 %v864
        %v1274 = vpop.f32.mrf.mxu0
        %v1275 = vadd.f32 0.0, %v1274
        %v1276 = vpop.f32.mrf.mxu0
        %v1277 = vadd.f32 0.0, %v1276
        %v1278 = vpop.f32.mrf.mxu0
        %v1279 = vadd.f32 0.0, %v1278
        %v1280 = vpop.f32.mrf.mxu0
        %v1281 = vadd.f32 0.0, %v1280
        %1282 = vdwg.mxu0
        %v1283 = vpack.c.bf16 %v1096, %v1092
        %v1284 = vpack.c.bf16 %v1098, %v1094
        %v1285 = vpack.c.bf16 %v1209, %v1205
        %v1286 = vpack.c.bf16 %v1211, %v1207
        %v1287 = vpack.c.bf16 %v1106, %v1102
        %v1288 = vpack.c.bf16 %v1108, %v1104
        %v1289 = vpack.c.bf16 %v1219, %v1215
        %v1290 = vpack.c.bf16 %v1221, %v1217
        %v1291 = vpack.c.bf16 %v1116, %v1112
        %v1292 = vpack.c.bf16 %v1118, %v1114
        %v1293 = vpack.c.bf16 %v1229, %v1225
        %v1294 = vpack.c.bf16 %v1231, %v1227
        %v1295 = vpack.c.bf16 %v1126, %v1122
        %v1296 = vpack.c.bf16 %v1128, %v1124
        %v1297 = vpack.c.bf16 %v1239, %v1235
        %v1298 = vpack.c.bf16 %v1241, %v1237
        %v1299 = vpack.c.bf16 %v1136, %v1132
        %v1300 = vpack.c.bf16 %v1138, %v1134
        %v1301 = vpack.c.bf16 %v1249, %v1245
        %v1302 = vpack.c.bf16 %v1251, %v1247
        %v1303 = vpack.c.bf16 %v1146, %v1142
        %v1304 = vpack.c.bf16 %v1148, %v1144
        %v1305 = vpack.c.bf16 %v1259, %v1255
        %v1306 = vpack.c.bf16 %v1261, %v1257
        %v1307 = vpack.c.bf16 %v1156, %v1152
        %v1308 = vpack.c.bf16 %v1158, %v1154
        %v1309 = vpack.c.bf16 %v1269, %v1265
        %v1310 = vpack.c.bf16 %v1271, %v1267
        %v1311 = vpack.c.bf16 %v1166, %v1162
        %v1312 = vpack.c.bf16 %v1168, %v1164
        %v1313 = vpack.c.bf16 %v1279, %v1275
        %v1314 = vpack.c.bf16 %v1281, %v1277
        %v1347 = vunpack.c.l.b16 %v1283
        %v1348 = vunpack.c.l.b16 %v1284
        %v1349 = vunpack.c.l.b16 %v1285
        %v1350 = vunpack.c.l.b16 %v1286
        %v1351 = vunpack.c.h.b16 %v1283
        %v1352 = vunpack.c.h.b16 %v1284
        %v1353 = vunpack.c.h.b16 %v1285
        %v1354 = vunpack.c.h.b16 %v1286
        %v1355 = vunpack.c.l.b16 %v1287
        %v1356 = vunpack.c.l.b16 %v1288
        %v1357 = vunpack.c.l.b16 %v1289
        %v1358 = vunpack.c.l.b16 %v1290
        %v1359 = vunpack.c.h.b16 %v1287
        %v1360 = vunpack.c.h.b16 %v1288
        %v1361 = vunpack.c.h.b16 %v1289
        %v1362 = vunpack.c.h.b16 %v1290
        %v1363 = vunpack.c.l.b16 %v1291
        %v1364 = vunpack.c.l.b16 %v1292
        %v1365 = vunpack.c.l.b16 %v1293
        %v1366 = vunpack.c.l.b16 %v1294
        %v1367 = vunpack.c.h.b16 %v1291
        %v1368 = vunpack.c.h.b16 %v1292
        %v1369 = vunpack.c.h.b16 %v1293
        %v1370 = vunpack.c.h.b16 %v1294
        %v1371 = vunpack.c.l.b16 %v1295
        %v1372 = vunpack.c.l.b16 %v1296
        %v1373 = vunpack.c.l.b16 %v1297
        %v1374 = vunpack.c.l.b16 %v1298
        %v1375 = vunpack.c.h.b16 %v1295
        %v1376 = vunpack.c.h.b16 %v1296
        %v1377 = vunpack.c.h.b16 %v1297
        %v1378 = vunpack.c.h.b16 %v1298
        %v1379 = vunpack.c.l.b16 %v1299
        %v1380 = vunpack.c.l.b16 %v1300
        %v1381 = vunpack.c.l.b16 %v1301
        %v1382 = vunpack.c.l.b16 %v1302
        %v1383 = vunpack.c.h.b16 %v1299
        %v1384 = vunpack.c.h.b16 %v1300
        %v1385 = vunpack.c.h.b16 %v1301
        %v1386 = vunpack.c.h.b16 %v1302
        %v1387 = vunpack.c.l.b16 %v1303
        %v1388 = vunpack.c.l.b16 %v1304
        %v1389 = vunpack.c.l.b16 %v1305
        %v1390 = vunpack.c.l.b16 %v1306
        %v1391 = vunpack.c.h.b16 %v1303
        %v1392 = vunpack.c.h.b16 %v1304
        %v1393 = vunpack.c.h.b16 %v1305
        %v1394 = vunpack.c.h.b16 %v1306
        %v1395 = vunpack.c.l.b16 %v1307
        %v1396 = vunpack.c.l.b16 %v1308
        %v1397 = vunpack.c.l.b16 %v1309
        %v1398 = vunpack.c.l.b16 %v1310
        %v1399 = vunpack.c.h.b16 %v1307
        %v1400 = vunpack.c.h.b16 %v1308
        %v1401 = vunpack.c.h.b16 %v1309
        %v1402 = vunpack.c.h.b16 %v1310
        %v1403 = vunpack.c.l.b16 %v1311
        %v1404 = vunpack.c.l.b16 %v1312
        %v1405 = vunpack.c.l.b16 %v1313
        %v1406 = vunpack.c.l.b16 %v1314
        %v1407 = vunpack.c.h.b16 %v1311
        %v1408 = vunpack.c.h.b16 %v1312
        %v1409 = vunpack.c.h.b16 %v1313
        %v1410 = vunpack.c.h.b16 %v1314
        %v1411 = vpack.c.b16 %v1348, %v1347
        %v1412 = vpack.c.b16 %v1350, %v1349
        %v1413 = vpack.c.b16 %v1352, %v1351
        %v1414 = vpack.c.b16 %v1354, %v1353
        %v1415 = vpack.c.b16 %v1356, %v1355
        %v1416 = vpack.c.b16 %v1358, %v1357
        %v1417 = vpack.c.b16 %v1360, %v1359
        %v1418 = vpack.c.b16 %v1362, %v1361
        %v1419 = vpack.c.b16 %v1364, %v1363
        %v1420 = vpack.c.b16 %v1366, %v1365
        %v1421 = vpack.c.b16 %v1368, %v1367
        %v1422 = vpack.c.b16 %v1370, %v1369
        %v1423 = vpack.c.b16 %v1372, %v1371
        %v1424 = vpack.c.b16 %v1374, %v1373
        %v1425 = vpack.c.b16 %v1376, %v1375
        %v1426 = vpack.c.b16 %v1378, %v1377
        %v1427 = vpack.c.b16 %v1380, %v1379
        %v1428 = vpack.c.b16 %v1382, %v1381
        %v1429 = vpack.c.b16 %v1384, %v1383
        %v1430 = vpack.c.b16 %v1386, %v1385
        %v1431 = vpack.c.b16 %v1388, %v1387
        %v1432 = vpack.c.b16 %v1390, %v1389
        %v1433 = vpack.c.b16 %v1392, %v1391
        %v1434 = vpack.c.b16 %v1394, %v1393
        %v1435 = vpack.c.b16 %v1396, %v1395
        %v1436 = vpack.c.b16 %v1398, %v1397
        %v1437 = vpack.c.b16 %v1400, %v1399
        %v1438 = vpack.c.b16 %v1402, %v1401
        %v1439 = vpack.c.b16 %v1404, %v1403
        %v1440 = vpack.c.b16 %v1406, %v1405
        %v1441 = vpack.c.b16 %v1408, %v1407
        %v1442 = vpack.c.b16 %v1410, %v1409
        %1475 = vst [vmem:[%s396] sm:$0xff] %v1411
        %1476 = vst [vmem:[%s396 + $0x8] sm:$0xff] %v1412
        %1477 = vst [vmem:[%s396 + $0x10] sm:$0xff] %v1413
        %1478 = vst [vmem:[%s396 + $0x18] sm:$0xff] %v1414
        %1479 = vst [vmem:[%s396 + $0x20] sm:$0xff] %v1415
        %1480 = vst [vmem:[%s396 + $0x28] sm:$0xff] %v1416
        %1481 = vst [vmem:[%s396 + $0x30] sm:$0xff] %v1417
        %1482 = vst [vmem:[%s396 + $0x38] sm:$0xff] %v1418
        %1483 = vst [vmem:[%s396 + $0x40] sm:$0xff] %v1419
        %1484 = vst [vmem:[%s396 + $0x48] sm:$0xff] %v1420
        %1485 = vst [vmem:[%s396 + $0x50] sm:$0xff] %v1421
        %1486 = vst [vmem:[%s396 + $0x58] sm:$0xff] %v1422
        %1487 = vst [vmem:[%s396 + $0x60] sm:$0xff] %v1423
        %1488 = vst [vmem:[%s396 + $0x68] sm:$0xff] %v1424
        %1489 = vst [vmem:[%s396 + $0x70] sm:$0xff] %v1425
        %1490 = vst [vmem:[%s396 + $0x78] sm:$0xff] %v1426
        %1491 = vst [vmem:[%s396 + $0x80] sm:$0xff] %v1427
        %1492 = vst [vmem:[%s396 + $0x88] sm:$0xff] %v1428
        %1493 = vst [vmem:[%s396 + $0x90] sm:$0xff] %v1429
        %1494 = vst [vmem:[%s396 + $0x98] sm:$0xff] %v1430
        %1495 = vst [vmem:[%s396 + $0xa0] sm:$0xff] %v1431
        %1496 = vst [vmem:[%s396 + $0xa8] sm:$0xff] %v1432
        %1497 = vst [vmem:[%s396 + $0xb0] sm:$0xff] %v1433
        %1498 = vst [vmem:[%s396 + $0xb8] sm:$0xff] %v1434
        %1499 = vst [vmem:[%s396 + $0xc0] sm:$0xff] %v1435
        %1500 = vst [vmem:[%s396 + $0xc8] sm:$0xff] %v1436
        %1501 = vst [vmem:[%s396 + $0xd0] sm:$0xff] %v1437
        %1502 = vst [vmem:[%s396 + $0xd8] sm:$0xff] %v1438
        %1503 = vst [vmem:[%s396 + $0xe0] sm:$0xff] %v1439
        %1504 = vst [vmem:[%s396 + $0xe8] sm:$0xff] %v1440
        %1505 = vst [vmem:[%s396 + $0xf0] sm:$0xff] %v1441
        %1506 = vst [vmem:[%s396 + $0xf8] sm:$0xff] %v1442
        %v1507 = vld [vmem:[%s4] sm:$0xff]
        %v1508 = vld [vmem:[%s4 + $0x8] sm:$0xff]
        %v1509 = vld [vmem:[%s4 + $0x10] sm:$0xff]
        %v1510 = vld [vmem:[%s4 + $0x18] sm:$0xff]
        %v1511 = vld [vmem:[%s4 + $0x20] sm:$0xff]
        %v1512 = vld [vmem:[%s4 + $0x28] sm:$0xff]
        %v1513 = vld [vmem:[%s4 + $0x30] sm:$0xff]
        %v1514 = vld [vmem:[%s4 + $0x38] sm:$0xff]
        %v1515 = vld [vmem:[%s4 + $0x40] sm:$0xff]
        %v1516 = vld [vmem:[%s4 + $0x48] sm:$0xff]
        %v1517 = vld [vmem:[%s4 + $0x50] sm:$0xff]
        %v1518 = vld [vmem:[%s4 + $0x58] sm:$0xff]
        %v1519 = vld [vmem:[%s4 + $0x60] sm:$0xff]
        %v1520 = vld [vmem:[%s4 + $0x68] sm:$0xff]
        %v1521 = vld [vmem:[%s4 + $0x70] sm:$0xff]
        %v1522 = vld [vmem:[%s4 + $0x78] sm:$0xff]
        %v1539 = vunpack.c.l.b16 %v1507
        %v1540 = vunpack.c.h.b16 %v1507
        %v1541 = vunpack.c.l.b16 %v1508
        %v1542 = vunpack.c.h.b16 %v1508
        %v1543 = vunpack.c.l.b16 %v1509
        %v1544 = vunpack.c.h.b16 %v1509
        %v1545 = vunpack.c.l.b16 %v1510
        %v1546 = vunpack.c.h.b16 %v1510
        %v1547 = vunpack.c.l.b16 %v1511
        %v1548 = vunpack.c.h.b16 %v1511
        %v1549 = vunpack.c.l.b16 %v1512
        %v1550 = vunpack.c.h.b16 %v1512
        %v1551 = vunpack.c.l.b16 %v1513
        %v1552 = vunpack.c.h.b16 %v1513
        %v1553 = vunpack.c.l.b16 %v1514
        %v1554 = vunpack.c.h.b16 %v1514
        %v1555 = vunpack.c.l.b16 %v1515
        %v1556 = vunpack.c.h.b16 %v1515
        %v1557 = vunpack.c.l.b16 %v1516
        %v1558 = vunpack.c.h.b16 %v1516
        %v1559 = vunpack.c.l.b16 %v1517
        %v1560 = vunpack.c.h.b16 %v1517
        %v1561 = vunpack.c.l.b16 %v1518
        %v1562 = vunpack.c.h.b16 %v1518
        %v1563 = vunpack.c.l.b16 %v1519
        %v1564 = vunpack.c.h.b16 %v1519
        %v1565 = vunpack.c.l.b16 %v1520
        %v1566 = vunpack.c.h.b16 %v1520
        %v1567 = vunpack.c.l.b16 %v1521
        %v1568 = vunpack.c.h.b16 %v1521
        %v1569 = vunpack.c.l.b16 %v1522
        %v1570 = vunpack.c.h.b16 %v1522
        %v1571 = vpack.c.b16 %v1541, %v1539
        %v1572 = vpack.c.b16 %v1542, %v1540
        %v1573 = vpack.c.b16 %v1545, %v1543
        %v1574 = vpack.c.b16 %v1546, %v1544
        %v1575 = vpack.c.b16 %v1549, %v1547
        %v1576 = vpack.c.b16 %v1550, %v1548
        %v1577 = vpack.c.b16 %v1553, %v1551
        %v1578 = vpack.c.b16 %v1554, %v1552
        %v1579 = vpack.c.b16 %v1557, %v1555
        %v1580 = vpack.c.b16 %v1558, %v1556
        %v1581 = vpack.c.b16 %v1561, %v1559
        %v1582 = vpack.c.b16 %v1562, %v1560
        %v1583 = vpack.c.b16 %v1565, %v1563
        %v1584 = vpack.c.b16 %v1566, %v1564
        %v1585 = vpack.c.b16 %v1569, %v1567
        %v1586 = vpack.c.b16 %v1570, %v1568
        %1603 = vmatprep.subr.bf16.mxu0 %v1586
        %1604 = vmatpush1.bf16.msra.mxu0 %v1585
        %1605 = vmatprep.subr.bf16.mxu0 %v1584
        %1606 = vmatpush1.bf16.msra.mxu0 %v1583
        %1607 = vmatprep.subr.bf16.mxu0 %v1582
        %1608 = vmatpush1.bf16.msra.mxu0 %v1581
        %1609 = vmatprep.subr.bf16.mxu0 %v1580
        %1610 = vmatpush1.bf16.msra.mxu0 %v1579
        %1611 = vmatprep.subr.bf16.mxu0 %v1578
        %1612 = vmatpush1.bf16.msra.mxu0 %v1577
        %1613 = vmatprep.subr.bf16.mxu0 %v1576
        %1614 = vmatpush1.bf16.msra.mxu0 %v1575
        %1615 = vmatprep.subr.bf16.mxu0 %v1574
        %1616 = vmatpush1.bf16.msra.mxu0 %v1573
        %1617 = vmatprep.subr.bf16.mxu0 %v1572
        %1618 = vmatpush1.bf16.msra.mxu0 %v1571
        %1619 = vmatprep.subr.bf16.mxu0 0
        %1620 = vmatpush2.bf16.msra.mxu0 0
        %1621 = vmatprep.subr.bf16.mxu0 0
        %1622 = vmatpush2.bf16.msra.mxu0 0
        %1623 = vmatprep.subr.bf16.mxu0 0
        %1624 = vmatpush2.bf16.msra.mxu0 0
        %1625 = vmatprep.subr.bf16.mxu0 0
        %1626 = vmatpush2.bf16.msra.mxu0 0
        %1627 = vmatprep.subr.bf16.mxu0 0
        %1628 = vmatpush2.bf16.msra.mxu0 0
        %1629 = vmatprep.subr.bf16.mxu0 0
        %1630 = vmatpush2.bf16.msra.mxu0 0
        %1631 = vmatprep.subr.bf16.mxu0 0
        %1632 = vmatpush2.bf16.msra.mxu0 0
        %1633 = vmatprep.subr.bf16.mxu0 0
        %1634 = vmatpush2.bf16.msra.mxu0 0
        %1635 = vmatprep.mubr.bf16.mxu0 0
        %1636 = vmatmul.mubr.bf16.gmra.mxu0 %v857
        %v1637 = vpop.f32.mrf.mxu0
        %v1638 = vadd.f32 0.0, %v1637
        %v1639 = vpop.f32.mrf.mxu0
        %v1640 = vadd.f32 0.0, %v1639
        %v1641 = vpop.f32.mrf.mxu0
        %v1642 = vadd.f32 0.0, %v1641
        %v1643 = vpop.f32.mrf.mxu0
        %v1644 = vadd.f32 0.0, %v1643
        %1645 = vmatprep.mubr.bf16.mxu0 0
        %1646 = vmatmul.mubr.bf16.gmra.mxu0 %v858
        %v1647 = vpop.f32.mrf.mxu0
        %v1648 = vadd.f32 0.0, %v1647
        %v1649 = vpop.f32.mrf.mxu0
        %v1650 = vadd.f32 0.0, %v1649
        %v1651 = vpop.f32.mrf.mxu0
        %v1652 = vadd.f32 0.0, %v1651
        %v1653 = vpop.f32.mrf.mxu0
        %v1654 = vadd.f32 0.0, %v1653
        %1655 = vmatprep.mubr.bf16.mxu0 0
        %1656 = vmatmul.mubr.bf16.gmra.mxu0 %v859
        %v1657 = vpop.f32.mrf.mxu0
        %v1658 = vadd.f32 0.0, %v1657
        %v1659 = vpop.f32.mrf.mxu0
        %v1660 = vadd.f32 0.0, %v1659
        %v1661 = vpop.f32.mrf.mxu0
        %v1662 = vadd.f32 0.0, %v1661
        %v1663 = vpop.f32.mrf.mxu0
        %v1664 = vadd.f32 0.0, %v1663
        %1665 = vmatprep.mubr.bf16.mxu0 0
        %1666 = vmatmul.mubr.bf16.gmra.mxu0 %v860
        %v1667 = vpop.f32.mrf.mxu0
        %v1668 = vadd.f32 0.0, %v1667
        %v1669 = vpop.f32.mrf.mxu0
        %v1670 = vadd.f32 0.0, %v1669
        %v1671 = vpop.f32.mrf.mxu0
        %v1672 = vadd.f32 0.0, %v1671
        %v1673 = vpop.f32.mrf.mxu0
        %v1674 = vadd.f32 0.0, %v1673
        %1675 = vmatprep.mubr.bf16.mxu0 0
        %1676 = vmatmul.mubr.bf16.gmra.mxu0 %v861
        %v1677 = vpop.f32.mrf.mxu0
        %v1678 = vadd.f32 0.0, %v1677
        %v1679 = vpop.f32.mrf.mxu0
        %v1680 = vadd.f32 0.0, %v1679
        %v1681 = vpop.f32.mrf.mxu0
        %v1682 = vadd.f32 0.0, %v1681
        %v1683 = vpop.f32.mrf.mxu0
        %v1684 = vadd.f32 0.0, %v1683
        %1685 = vmatprep.mubr.bf16.mxu0 0
        %1686 = vmatmul.mubr.bf16.gmra.mxu0 %v862
        %v1687 = vpop.f32.mrf.mxu0
        %v1688 = vadd.f32 0.0, %v1687
        %v1689 = vpop.f32.mrf.mxu0
        %v1690 = vadd.f32 0.0, %v1689
        %v1691 = vpop.f32.mrf.mxu0
        %v1692 = vadd.f32 0.0, %v1691
        %v1693 = vpop.f32.mrf.mxu0
        %v1694 = vadd.f32 0.0, %v1693
        %1695 = vmatprep.mubr.bf16.mxu0 0
        %1696 = vmatmul.mubr.bf16.gmra.mxu0 %v863
        %v1697 = vpop.f32.mrf.mxu0
        %v1698 = vadd.f32 0.0, %v1697
        %v1699 = vpop.f32.mrf.mxu0
        %v1700 = vadd.f32 0.0, %v1699
        %v1701 = vpop.f32.mrf.mxu0
        %v1702 = vadd.f32 0.0, %v1701
        %v1703 = vpop.f32.mrf.mxu0
        %v1704 = vadd.f32 0.0, %v1703
        %1705 = vmatprep.mubr.bf16.mxu0 0
        %1706 = vmatmul.mubr.bf16.gmra.mxu0 %v864
        %v1707 = vpop.f32.mrf.mxu0
        %v1708 = vadd.f32 0.0, %v1707
        %v1709 = vpop.f32.mrf.mxu0
        %v1710 = vadd.f32 0.0, %v1709
        %v1711 = vpop.f32.mrf.mxu0
        %v1712 = vadd.f32 0.0, %v1711
        %v1713 = vpop.f32.mrf.mxu0
        %v1714 = vadd.f32 0.0, %v1713
        %1715 = vdwg.mxu0
        %v1716 = vld [vmem:[%s5] sm:$0xff]
        %v1717 = vld [vmem:[%s5 + $0x8] sm:$0xff]
        %v1718 = vld [vmem:[%s5 + $0x10] sm:$0xff]
        %v1719 = vld [vmem:[%s5 + $0x18] sm:$0xff]
        %v1720 = vld [vmem:[%s5 + $0x20] sm:$0xff]
        %v1721 = vld [vmem:[%s5 + $0x28] sm:$0xff]
        %v1722 = vld [vmem:[%s5 + $0x30] sm:$0xff]
        %v1723 = vld [vmem:[%s5 + $0x38] sm:$0xff]
        %v1724 = vld [vmem:[%s5 + $0x40] sm:$0xff]
        %v1725 = vld [vmem:[%s5 + $0x48] sm:$0xff]
        %v1726 = vld [vmem:[%s5 + $0x50] sm:$0xff]
        %v1727 = vld [vmem:[%s5 + $0x58] sm:$0xff]
        %v1728 = vld [vmem:[%s5 + $0x60] sm:$0xff]
        %v1729 = vld [vmem:[%s5 + $0x68] sm:$0xff]
        %v1730 = vld [vmem:[%s5 + $0x70] sm:$0xff]
        %v1731 = vld [vmem:[%s5 + $0x78] sm:$0xff]
        %v1748 = vunpack.c.l.b16 %v1716
        %v1749 = vunpack.c.h.b16 %v1716
        %v1750 = vunpack.c.l.b16 %v1717
        %v1751 = vunpack.c.h.b16 %v1717
        %v1752 = vunpack.c.l.b16 %v1718
        %v1753 = vunpack.c.h.b16 %v1718
        %v1754 = vunpack.c.l.b16 %v1719
        %v1755 = vunpack.c.h.b16 %v1719
        %v1756 = vunpack.c.l.b16 %v1720
        %v1757 = vunpack.c.h.b16 %v1720
        %v1758 = vunpack.c.l.b16 %v1721
        %v1759 = vunpack.c.h.b16 %v1721
        %v1760 = vunpack.c.l.b16 %v1722
        %v1761 = vunpack.c.h.b16 %v1722
        %v1762 = vunpack.c.l.b16 %v1723
        %v1763 = vunpack.c.h.b16 %v1723
        %v1764 = vunpack.c.l.b16 %v1724
        %v1765 = vunpack.c.h.b16 %v1724
        %v1766 = vunpack.c.l.b16 %v1725
        %v1767 = vunpack.c.h.b16 %v1725
        %v1768 = vunpack.c.l.b16 %v1726
        %v1769 = vunpack.c.h.b16 %v1726
        %v1770 = vunpack.c.l.b16 %v1727
        %v1771 = vunpack.c.h.b16 %v1727
        %v1772 = vunpack.c.l.b16 %v1728
        %v1773 = vunpack.c.h.b16 %v1728
        %v1774 = vunpack.c.l.b16 %v1729
        %v1775 = vunpack.c.h.b16 %v1729
        %v1776 = vunpack.c.l.b16 %v1730
        %v1777 = vunpack.c.h.b16 %v1730
        %v1778 = vunpack.c.l.b16 %v1731
        %v1779 = vunpack.c.h.b16 %v1731
        %v1780 = vpack.c.b16 %v1750, %v1748
        %v1781 = vpack.c.b16 %v1751, %v1749
        %v1782 = vpack.c.b16 %v1754, %v1752
        %v1783 = vpack.c.b16 %v1755, %v1753
        %v1784 = vpack.c.b16 %v1758, %v1756
        %v1785 = vpack.c.b16 %v1759, %v1757
        %v1786 = vpack.c.b16 %v1762, %v1760
        %v1787 = vpack.c.b16 %v1763, %v1761
        %v1788 = vpack.c.b16 %v1766, %v1764
        %v1789 = vpack.c.b16 %v1767, %v1765
        %v1790 = vpack.c.b16 %v1770, %v1768
        %v1791 = vpack.c.b16 %v1771, %v1769
        %v1792 = vpack.c.b16 %v1774, %v1772
        %v1793 = vpack.c.b16 %v1775, %v1773
        %v1794 = vpack.c.b16 %v1778, %v1776
        %v1795 = vpack.c.b16 %v1779, %v1777
        %1812 = vmatprep.subr.bf16.mxu0 %v1795
        %1813 = vmatpush1.bf16.msra.mxu0 %v1794
        %1814 = vmatprep.subr.bf16.mxu0 %v1793
        %1815 = vmatpush1.bf16.msra.mxu0 %v1792
        %1816 = vmatprep.subr.bf16.mxu0 %v1791
        %1817 = vmatpush1.bf16.msra.mxu0 %v1790
        %1818 = vmatprep.subr.bf16.mxu0 %v1789
        %1819 = vmatpush1.bf16.msra.mxu0 %v1788
        %1820 = vmatprep.subr.bf16.mxu0 %v1787
        %1821 = vmatpush1.bf16.msra.mxu0 %v1786
        %1822 = vmatprep.subr.bf16.mxu0 %v1785
        %1823 = vmatpush1.bf16.msra.mxu0 %v1784
        %1824 = vmatprep.subr.bf16.mxu0 %v1783
        %1825 = vmatpush1.bf16.msra.mxu0 %v1782
        %1826 = vmatprep.subr.bf16.mxu0 %v1781
        %1827 = vmatpush1.bf16.msra.mxu0 %v1780
        %1828 = vmatprep.subr.bf16.mxu0 0
        %1829 = vmatpush2.bf16.msra.mxu0 0
        %1830 = vmatprep.subr.bf16.mxu0 0
        %1831 = vmatpush2.bf16.msra.mxu0 0
        %1832 = vmatprep.subr.bf16.mxu0 0
        %1833 = vmatpush2.bf16.msra.mxu0 0
        %1834 = vmatprep.subr.bf16.mxu0 0
        %1835 = vmatpush2.bf16.msra.mxu0 0
        %1836 = vmatprep.subr.bf16.mxu0 0
        %1837 = vmatpush2.bf16.msra.mxu0 0
        %1838 = vmatprep.subr.bf16.mxu0 0
        %1839 = vmatpush2.bf16.msra.mxu0 0
        %1840 = vmatprep.subr.bf16.mxu0 0
        %1841 = vmatpush2.bf16.msra.mxu0 0
        %1842 = vmatprep.subr.bf16.mxu0 0
        %1843 = vmatpush2.bf16.msra.mxu0 0
        %1844 = vmatprep.mubr.bf16.mxu0 0
        %1845 = vmatmul.mubr.bf16.gmra.mxu0 %v857
        %v1846 = vpop.f32.mrf.mxu0
        %v1847 = vadd.f32 0.0, %v1846
        %v1848 = vpop.f32.mrf.mxu0
        %v1849 = vadd.f32 0.0, %v1848
        %v1850 = vpop.f32.mrf.mxu0
        %v1851 = vadd.f32 0.0, %v1850
        %v1852 = vpop.f32.mrf.mxu0
        %v1853 = vadd.f32 0.0, %v1852
        %1854 = vmatprep.mubr.bf16.mxu0 0
        %1855 = vmatmul.mubr.bf16.gmra.mxu0 %v858
        %v1856 = vpop.f32.mrf.mxu0
        %v1857 = vadd.f32 0.0, %v1856
        %v1858 = vpop.f32.mrf.mxu0
        %v1859 = vadd.f32 0.0, %v1858
        %v1860 = vpop.f32.mrf.mxu0
        %v1861 = vadd.f32 0.0, %v1860
        %v1862 = vpop.f32.mrf.mxu0
        %v1863 = vadd.f32 0.0, %v1862
        %1864 = vmatprep.mubr.bf16.mxu0 0
        %1865 = vmatmul.mubr.bf16.gmra.mxu0 %v859
        %v1866 = vpop.f32.mrf.mxu0
        %v1867 = vadd.f32 0.0, %v1866
        %v1868 = vpop.f32.mrf.mxu0
        %v1869 = vadd.f32 0.0, %v1868
        %v1870 = vpop.f32.mrf.mxu0
        %v1871 = vadd.f32 0.0, %v1870
        %v1872 = vpop.f32.mrf.mxu0
        %v1873 = vadd.f32 0.0, %v1872
        %1874 = vmatprep.mubr.bf16.mxu0 0
        %1875 = vmatmul.mubr.bf16.gmra.mxu0 %v860
        %v1876 = vpop.f32.mrf.mxu0
        %v1877 = vadd.f32 0.0, %v1876
        %v1878 = vpop.f32.mrf.mxu0
        %v1879 = vadd.f32 0.0, %v1878
        %v1880 = vpop.f32.mrf.mxu0
        %v1881 = vadd.f32 0.0, %v1880
        %v1882 = vpop.f32.mrf.mxu0
        %v1883 = vadd.f32 0.0, %v1882
        %1884 = vmatprep.mubr.bf16.mxu0 0
        %1885 = vmatmul.mubr.bf16.gmra.mxu0 %v861
        %v1886 = vpop.f32.mrf.mxu0
        %v1887 = vadd.f32 0.0, %v1886
        %v1888 = vpop.f32.mrf.mxu0
        %v1889 = vadd.f32 0.0, %v1888
        %v1890 = vpop.f32.mrf.mxu0
        %v1891 = vadd.f32 0.0, %v1890
        %v1892 = vpop.f32.mrf.mxu0
        %v1893 = vadd.f32 0.0, %v1892
        %1894 = vmatprep.mubr.bf16.mxu0 0
        %1895 = vmatmul.mubr.bf16.gmra.mxu0 %v862
        %v1896 = vpop.f32.mrf.mxu0
        %v1897 = vadd.f32 0.0, %v1896
        %v1898 = vpop.f32.mrf.mxu0
        %v1899 = vadd.f32 0.0, %v1898
        %v1900 = vpop.f32.mrf.mxu0
        %v1901 = vadd.f32 0.0, %v1900
        %v1902 = vpop.f32.mrf.mxu0
        %v1903 = vadd.f32 0.0, %v1902
        %1904 = vmatprep.mubr.bf16.mxu0 0
        %1905 = vmatmul.mubr.bf16.gmra.mxu0 %v863
        %v1906 = vpop.f32.mrf.mxu0
        %v1907 = vadd.f32 0.0, %v1906
        %v1908 = vpop.f32.mrf.mxu0
        %v1909 = vadd.f32 0.0, %v1908
        %v1910 = vpop.f32.mrf.mxu0
        %v1911 = vadd.f32 0.0, %v1910
        %v1912 = vpop.f32.mrf.mxu0
        %v1913 = vadd.f32 0.0, %v1912
        %1914 = vmatprep.mubr.bf16.mxu0 0
        %1915 = vmatmul.mubr.bf16.gmra.mxu0 %v864
        %v1916 = vpop.f32.mrf.mxu0
        %v1917 = vadd.f32 0.0, %v1916
        %v1918 = vpop.f32.mrf.mxu0
        %v1919 = vadd.f32 0.0, %v1918
        %v1920 = vpop.f32.mrf.mxu0
        %v1921 = vadd.f32 0.0, %v1920
        %v1922 = vpop.f32.mrf.mxu0
        %v1923 = vadd.f32 0.0, %v1922
        %1924 = vdwg.mxu0
        %v1925 = vld [vmem:[%s382] sm:$0xff]
        %v1926 = vld [vmem:[%s382 + $0x8] sm:$0xff]
        %v1927 = vld [vmem:[%s382 + $0x10] sm:$0xff]
        %v1928 = vld [vmem:[%s382 + $0x18] sm:$0xff]
        %v1929 = vld [vmem:[%s382 + $0x20] sm:$0xff]
        %v1930 = vld [vmem:[%s382 + $0x28] sm:$0xff]
        %v1931 = vld [vmem:[%s382 + $0x30] sm:$0xff]
        %v1932 = vld [vmem:[%s382 + $0x38] sm:$0xff]
        %v1933 = vld [vmem:[%s382 + $0x40] sm:$0xff]
        %v1934 = vld [vmem:[%s382 + $0x48] sm:$0xff]
        %v1935 = vld [vmem:[%s382 + $0x50] sm:$0xff]
        %v1936 = vld [vmem:[%s382 + $0x58] sm:$0xff]
        %v1937 = vld [vmem:[%s382 + $0x60] sm:$0xff]
        %v1938 = vld [vmem:[%s382 + $0x68] sm:$0xff]
        %v1939 = vld [vmem:[%s382 + $0x70] sm:$0xff]
        %v1940 = vld [vmem:[%s382 + $0x78] sm:$0xff]
        %v1941 = vld [vmem:[%s382 + $0x80] sm:$0xff]
        %v1942 = vld [vmem:[%s382 + $0x88] sm:$0xff]
        %v1943 = vld [vmem:[%s382 + $0x90] sm:$0xff]
        %v1944 = vld [vmem:[%s382 + $0x98] sm:$0xff]
        %v1945 = vld [vmem:[%s382 + $0xa0] sm:$0xff]
        %v1946 = vld [vmem:[%s382 + $0xa8] sm:$0xff]
        %v1947 = vld [vmem:[%s382 + $0xb0] sm:$0xff]
        %v1948 = vld [vmem:[%s382 + $0xb8] sm:$0xff]
        %v1949 = vld [vmem:[%s382 + $0xc0] sm:$0xff]
        %v1950 = vld [vmem:[%s382 + $0xc8] sm:$0xff]
        %v1951 = vld [vmem:[%s382 + $0xd0] sm:$0xff]
        %v1952 = vld [vmem:[%s382 + $0xd8] sm:$0xff]
        %v1953 = vld [vmem:[%s382 + $0xe0] sm:$0xff]
        %v1954 = vld [vmem:[%s382 + $0xe8] sm:$0xff]
        %v1955 = vld [vmem:[%s382 + $0xf0] sm:$0xff]
        %v1956 = vld [vmem:[%s382 + $0xf8] sm:$0xff]
        %v1957 = vmul.f32 %v1638, %v1925
        %v1958 = vmul.f32 %v1640, %v1926
        %v1959 = vmul.f32 %v1642, %v1927
        %v1960 = vmul.f32 %v1644, %v1928
        %v1961 = vmul.f32 %v1648, %v1929
        %v1962 = vmul.f32 %v1650, %v1930
        %v1963 = vmul.f32 %v1652, %v1931
        %v1964 = vmul.f32 %v1654, %v1932
        %v1965 = vmul.f32 %v1658, %v1933
        %v1966 = vmul.f32 %v1660, %v1934
        %v1967 = vmul.f32 %v1662, %v1935
        %v1968 = vmul.f32 %v1664, %v1936
        %v1969 = vmul.f32 %v1668, %v1937
        %v1970 = vmul.f32 %v1670, %v1938
        %v1971 = vmul.f32 %v1672, %v1939
        %v1972 = vmul.f32 %v1674, %v1940
        %v1973 = vmul.f32 %v1678, %v1941
        %v1974 = vmul.f32 %v1680, %v1942
        %v1975 = vmul.f32 %v1682, %v1943
        %v1976 = vmul.f32 %v1684, %v1944
        %v1977 = vmul.f32 %v1688, %v1945
        %v1978 = vmul.f32 %v1690, %v1946
        %v1979 = vmul.f32 %v1692, %v1947
        %v1980 = vmul.f32 %v1694, %v1948
        %v1981 = vmul.f32 %v1698, %v1949
        %v1982 = vmul.f32 %v1700, %v1950
        %v1983 = vmul.f32 %v1702, %v1951
        %v1984 = vmul.f32 %v1704, %v1952
        %v1985 = vmul.f32 %v1708, %v1953
        %v1986 = vmul.f32 %v1710, %v1954
        %v1987 = vmul.f32 %v1712, %v1955
        %v1988 = vmul.f32 %v1714, %v1956
        %v1989 = vld [vmem:[%s389] sm:$0xff]
        %v1990 = vld [vmem:[%s389 + $0x8] sm:$0xff]
        %v1991 = vld [vmem:[%s389 + $0x10] sm:$0xff]
        %v1992 = vld [vmem:[%s389 + $0x18] sm:$0xff]
        %v1993 = vld [vmem:[%s389 + $0x20] sm:$0xff]
        %v1994 = vld [vmem:[%s389 + $0x28] sm:$0xff]
        %v1995 = vld [vmem:[%s389 + $0x30] sm:$0xff]
        %v1996 = vld [vmem:[%s389 + $0x38] sm:$0xff]
        %v1997 = vld [vmem:[%s389 + $0x40] sm:$0xff]
        %v1998 = vld [vmem:[%s389 + $0x48] sm:$0xff]
        %v1999 = vld [vmem:[%s389 + $0x50] sm:$0xff]
        %v2000 = vld [vmem:[%s389 + $0x58] sm:$0xff]
        %v2001 = vld [vmem:[%s389 + $0x60] sm:$0xff]
        %v2002 = vld [vmem:[%s389 + $0x68] sm:$0xff]
        %v2003 = vld [vmem:[%s389 + $0x70] sm:$0xff]
        %v2004 = vld [vmem:[%s389 + $0x78] sm:$0xff]
        %v2005 = vld [vmem:[%s389 + $0x80] sm:$0xff]
        %v2006 = vld [vmem:[%s389 + $0x88] sm:$0xff]
        %v2007 = vld [vmem:[%s389 + $0x90] sm:$0xff]
        %v2008 = vld [vmem:[%s389 + $0x98] sm:$0xff]
        %v2009 = vld [vmem:[%s389 + $0xa0] sm:$0xff]
        %v2010 = vld [vmem:[%s389 + $0xa8] sm:$0xff]
        %v2011 = vld [vmem:[%s389 + $0xb0] sm:$0xff]
        %v2012 = vld [vmem:[%s389 + $0xb8] sm:$0xff]
        %v2013 = vld [vmem:[%s389 + $0xc0] sm:$0xff]
        %v2014 = vld [vmem:[%s389 + $0xc8] sm:$0xff]
        %v2015 = vld [vmem:[%s389 + $0xd0] sm:$0xff]
        %v2016 = vld [vmem:[%s389 + $0xd8] sm:$0xff]
        %v2017 = vld [vmem:[%s389 + $0xe0] sm:$0xff]
        %v2018 = vld [vmem:[%s389 + $0xe8] sm:$0xff]
        %v2019 = vld [vmem:[%s389 + $0xf0] sm:$0xff]
        %v2020 = vld [vmem:[%s389 + $0xf8] sm:$0xff]
        %v2021 = vmul.f32 %v1847, %v1989
        %v2022 = vmul.f32 %v1849, %v1990
        %v2023 = vmul.f32 %v1851, %v1991
        %v2024 = vmul.f32 %v1853, %v1992
        %v2025 = vmul.f32 %v1857, %v1993
        %v2026 = vmul.f32 %v1859, %v1994
        %v2027 = vmul.f32 %v1861, %v1995
        %v2028 = vmul.f32 %v1863, %v1996
        %v2029 = vmul.f32 %v1867, %v1997
        %v2030 = vmul.f32 %v1869, %v1998
        %v2031 = vmul.f32 %v1871, %v1999
        %v2032 = vmul.f32 %v1873, %v2000
        %v2033 = vmul.f32 %v1877, %v2001
        %v2034 = vmul.f32 %v1879, %v2002
        %v2035 = vmul.f32 %v1881, %v2003
        %v2036 = vmul.f32 %v1883, %v2004
        %v2037 = vmul.f32 %v1887, %v2005
        %v2038 = vmul.f32 %v1889, %v2006
        %v2039 = vmul.f32 %v1891, %v2007
        %v2040 = vmul.f32 %v1893, %v2008
        %v2041 = vmul.f32 %v1897, %v2009
        %v2042 = vmul.f32 %v1899, %v2010
        %v2043 = vmul.f32 %v1901, %v2011
        %v2044 = vmul.f32 %v1903, %v2012
        %v2045 = vmul.f32 %v1907, %v2013
        %v2046 = vmul.f32 %v1909, %v2014
        %v2047 = vmul.f32 %v1911, %v2015
        %v2048 = vmul.f32 %v1913, %v2016
        %v2049 = vmul.f32 %v1917, %v2017
        %v2050 = vmul.f32 %v1919, %v2018
        %v2051 = vmul.f32 %v1921, %v2019
        %v2052 = vmul.f32 %v1923, %v2020
        %v2053 = vadd.f32 %v1957, %v2021
        %v2054 = vadd.f32 %v1958, %v2022
        %v2055 = vadd.f32 %v1959, %v2023
        %v2056 = vadd.f32 %v1960, %v2024
        %v2057 = vadd.f32 %v1961, %v2025
        %v2058 = vadd.f32 %v1962, %v2026
        %v2059 = vadd.f32 %v1963, %v2027
        %v2060 = vadd.f32 %v1964, %v2028
        %v2061 = vadd.f32 %v1965, %v2029
        %v2062 = vadd.f32 %v1966, %v2030
        %v2063 = vadd.f32 %v1967, %v2031
        %v2064 = vadd.f32 %v1968, %v2032
        %v2065 = vadd.f32 %v1969, %v2033
        %v2066 = vadd.f32 %v1970, %v2034
        %v2067 = vadd.f32 %v1971, %v2035
        %v2068 = vadd.f32 %v1972, %v2036
        %v2069 = vadd.f32 %v1973, %v2037
        %v2070 = vadd.f32 %v1974, %v2038
        %v2071 = vadd.f32 %v1975, %v2039
        %v2072 = vadd.f32 %v1976, %v2040
        %v2073 = vadd.f32 %v1977, %v2041
        %v2074 = vadd.f32 %v1978, %v2042
        %v2075 = vadd.f32 %v1979, %v2043
        %v2076 = vadd.f32 %v1980, %v2044
        %v2077 = vadd.f32 %v1981, %v2045
        %v2078 = vadd.f32 %v1982, %v2046
        %v2079 = vadd.f32 %v1983, %v2047
        %v2080 = vadd.f32 %v1984, %v2048
        %v2081 = vadd.f32 %v1985, %v2049
        %v2082 = vadd.f32 %v1986, %v2050
        %v2083 = vadd.f32 %v1987, %v2051
        %v2084 = vadd.f32 %v1988, %v2052
        %v2085 = vpack.c.bf16 %v2055, %v2053
        %v2086 = vpack.c.bf16 %v2056, %v2054
        %v2087 = vpack.c.bf16 %v2059, %v2057
        %v2088 = vpack.c.bf16 %v2060, %v2058
        %v2089 = vpack.c.bf16 %v2063, %v2061
        %v2090 = vpack.c.bf16 %v2064, %v2062
        %v2091 = vpack.c.bf16 %v2067, %v2065
        %v2092 = vpack.c.bf16 %v2068, %v2066
        %v2093 = vpack.c.bf16 %v2071, %v2069
        %v2094 = vpack.c.bf16 %v2072, %v2070
        %v2095 = vpack.c.bf16 %v2075, %v2073
        %v2096 = vpack.c.bf16 %v2076, %v2074
        %v2097 = vpack.c.bf16 %v2079, %v2077
        %v2098 = vpack.c.bf16 %v2080, %v2078
        %v2099 = vpack.c.bf16 %v2083, %v2081
        %v2100 = vpack.c.bf16 %v2084, %v2082
        %v2109 = vunpack.c.l.b16 %v2085
        %v2110 = vunpack.c.h.b16 %v2085
        %v2111 = vunpack.c.l.b16 %v2087
        %v2112 = vunpack.c.h.b16 %v2087
        %v2113 = vunpack.c.l.b16 %v2089
        %v2114 = vunpack.c.h.b16 %v2089
        %v2115 = vunpack.c.l.b16 %v2091
        %v2116 = vunpack.c.h.b16 %v2091
        %v2117 = vunpack.c.l.b16 %v2093
        %v2118 = vunpack.c.h.b16 %v2093
        %v2119 = vunpack.c.l.b16 %v2095
        %v2120 = vunpack.c.h.b16 %v2095
        %v2121 = vunpack.c.l.b16 %v2097
        %v2122 = vunpack.c.h.b16 %v2097
        %v2123 = vunpack.c.l.b16 %v2099
        %v2124 = vunpack.c.h.b16 %v2099
        %v2125 = vpack.c.b16 %v2109, %v2109
        %v2126 = vpack.c.b16 %v2110, %v2110
        %v2127 = vpack.c.b16 %v2111, %v2111
        %v2128 = vpack.c.b16 %v2112, %v2112
        %v2129 = vpack.c.b16 %v2113, %v2113
        %v2130 = vpack.c.b16 %v2114, %v2114
        %v2131 = vpack.c.b16 %v2115, %v2115
        %v2132 = vpack.c.b16 %v2116, %v2116
        %v2133 = vpack.c.b16 %v2117, %v2117
        %v2134 = vpack.c.b16 %v2118, %v2118
        %v2135 = vpack.c.b16 %v2119, %v2119
        %v2136 = vpack.c.b16 %v2120, %v2120
        %v2137 = vpack.c.b16 %v2121, %v2121
        %v2138 = vpack.c.b16 %v2122, %v2122
        %v2139 = vpack.c.b16 %v2123, %v2123
        %v2140 = vpack.c.b16 %v2124, %v2124
        %vm2157 = vcmask 519168
        %2158 = vst.msk [vmem:[%s369] sm:$0xf] %vm2157, %v2125
        %2159 = vst.msk [vmem:[%s369 + $0x4] sm:$0xf] %vm2157, %v2126
        %2160 = vst.msk [vmem:[%s369 + $0x8] sm:$0xf] %vm2157, %v2127
        %2161 = vst.msk [vmem:[%s369 + $0xc] sm:$0xf] %vm2157, %v2128
        %2162 = vst.msk [vmem:[%s369 + $0x10] sm:$0xf] %vm2157, %v2129
        %2163 = vst.msk [vmem:[%s369 + $0x14] sm:$0xf] %vm2157, %v2130
        %2164 = vst.msk [vmem:[%s369 + $0x18] sm:$0xf] %vm2157, %v2131
        %2165 = vst.msk [vmem:[%s369 + $0x1c] sm:$0xf] %vm2157, %v2132
        %2166 = vst.msk [vmem:[%s369 + $0x20] sm:$0xf] %vm2157, %v2133
        %2167 = vst.msk [vmem:[%s369 + $0x24] sm:$0xf] %vm2157, %v2134
        %2168 = vst.msk [vmem:[%s369 + $0x28] sm:$0xf] %vm2157, %v2135
        %2169 = vst.msk [vmem:[%s369 + $0x2c] sm:$0xf] %vm2157, %v2136
        %2170 = vst.msk [vmem:[%s369 + $0x30] sm:$0xf] %vm2157, %v2137
        %2171 = vst.msk [vmem:[%s369 + $0x34] sm:$0xf] %vm2157, %v2138
        %2172 = vst.msk [vmem:[%s369 + $0x38] sm:$0xf] %vm2157, %v2139
        %2173 = vst.msk [vmem:[%s369 + $0x3c] sm:$0xf] %vm2157, %v2140
        %2174 = vrot.lane.b32.xlu0 %v2125, 64
        %v2175 = vpop.permute.xlu0 %2174
        %2176 = vrot.lane.b32.xlu0 %v2126, 64
        %v2177 = vpop.permute.xlu0 %2176
        %2178 = vrot.lane.b32.xlu0 %v2127, 64
        %v2179 = vpop.permute.xlu0 %2178
        %2180 = vrot.lane.b32.xlu0 %v2128, 64
        %v2181 = vpop.permute.xlu0 %2180
        %2182 = vrot.lane.b32.xlu0 %v2129, 64
        %v2183 = vpop.permute.xlu0 %2182
        %2184 = vrot.lane.b32.xlu0 %v2130, 64
        %v2185 = vpop.permute.xlu0 %2184
        %2186 = vrot.lane.b32.xlu0 %v2131, 64
        %v2187 = vpop.permute.xlu0 %2186
        %2188 = vrot.lane.b32.xlu0 %v2132, 64
        %v2189 = vpop.permute.xlu0 %2188
        %2190 = vrot.lane.b32.xlu0 %v2133, 64
        %v2191 = vpop.permute.xlu0 %2190
        %2192 = vrot.lane.b32.xlu0 %v2134, 64
        %v2193 = vpop.permute.xlu0 %2192
        %2194 = vrot.lane.b32.xlu0 %v2135, 64
        %v2195 = vpop.permute.xlu0 %2194
        %2196 = vrot.lane.b32.xlu0 %v2136, 64
        %v2197 = vpop.permute.xlu0 %2196
        %2198 = vrot.lane.b32.xlu0 %v2137, 64
        %v2199 = vpop.permute.xlu0 %2198
        %2200 = vrot.lane.b32.xlu0 %v2138, 64
        %v2201 = vpop.permute.xlu0 %2200
        %2202 = vrot.lane.b32.xlu0 %v2139, 64
        %v2203 = vpop.permute.xlu0 %2202
        %2204 = vrot.lane.b32.xlu0 %v2140, 64
        %v2205 = vpop.permute.xlu0 %2204
        %s2222 = scalar_lea.vmem %s369, 64 [#allocation2]
        %2223 = vst.msk [vmem:[%s2222] sm:$0xf] %vm2157, %v2175
        %2224 = vst.msk [vmem:[%s2222 + $0x4] sm:$0xf] %vm2157, %v2177
        %2225 = vst.msk [vmem:[%s2222 + $0x8] sm:$0xf] %vm2157, %v2179
        %2226 = vst.msk [vmem:[%s2222 + $0xc] sm:$0xf] %vm2157, %v2181
        %2227 = vst.msk [vmem:[%s2222 + $0x10] sm:$0xf] %vm2157, %v2183
        %2228 = vst.msk [vmem:[%s2222 + $0x14] sm:$0xf] %vm2157, %v2185
        %2229 = vst.msk [vmem:[%s2222 + $0x18] sm:$0xf] %vm2157, %v2187
        %2230 = vst.msk [vmem:[%s2222 + $0x1c] sm:$0xf] %vm2157, %v2189
        %2231 = vst.msk [vmem:[%s2222 + $0x20] sm:$0xf] %vm2157, %v2191
        %2232 = vst.msk [vmem:[%s2222 + $0x24] sm:$0xf] %vm2157, %v2193
        %2233 = vst.msk [vmem:[%s2222 + $0x28] sm:$0xf] %vm2157, %v2195
        %2234 = vst.msk [vmem:[%s2222 + $0x2c] sm:$0xf] %vm2157, %v2197
        %2235 = vst.msk [vmem:[%s2222 + $0x30] sm:$0xf] %vm2157, %v2199
        %2236 = vst.msk [vmem:[%s2222 + $0x34] sm:$0xf] %vm2157, %v2201
        %2237 = vst.msk [vmem:[%s2222 + $0x38] sm:$0xf] %vm2157, %v2203
        %2238 = vst.msk [vmem:[%s2222 + $0x3c] sm:$0xf] %vm2157, %v2205
        %v2247 = vunpack.c.l.b16 %v2086
        %v2248 = vunpack.c.h.b16 %v2086
        %v2249 = vunpack.c.l.b16 %v2088
        %v2250 = vunpack.c.h.b16 %v2088
        %v2251 = vunpack.c.l.b16 %v2090
        %v2252 = vunpack.c.h.b16 %v2090
        %v2253 = vunpack.c.l.b16 %v2092
        %v2254 = vunpack.c.h.b16 %v2092
        %v2255 = vunpack.c.l.b16 %v2094
        %v2256 = vunpack.c.h.b16 %v2094
        %v2257 = vunpack.c.l.b16 %v2096
        %v2258 = vunpack.c.h.b16 %v2096
        %v2259 = vunpack.c.l.b16 %v2098
        %v2260 = vunpack.c.h.b16 %v2098
        %v2261 = vunpack.c.l.b16 %v2100
        %v2262 = vunpack.c.h.b16 %v2100
        %v2263 = vpack.c.b16 %v2247, %v2247
        %v2264 = vpack.c.b16 %v2248, %v2248
        %v2265 = vpack.c.b16 %v2249, %v2249
        %v2266 = vpack.c.b16 %v2250, %v2250
        %v2267 = vpack.c.b16 %v2251, %v2251
        %v2268 = vpack.c.b16 %v2252, %v2252
        %v2269 = vpack.c.b16 %v2253, %v2253
        %v2270 = vpack.c.b16 %v2254, %v2254
        %v2271 = vpack.c.b16 %v2255, %v2255
        %v2272 = vpack.c.b16 %v2256, %v2256
        %v2273 = vpack.c.b16 %v2257, %v2257
        %v2274 = vpack.c.b16 %v2258, %v2258
        %v2275 = vpack.c.b16 %v2259, %v2259
        %v2276 = vpack.c.b16 %v2260, %v2260
        %v2277 = vpack.c.b16 %v2261, %v2261
        %v2278 = vpack.c.b16 %v2262, %v2262
        %s2295 = scalar_lea.vmem %s369, 128 [#allocation2]
        %2296 = vst.msk [vmem:[%s2295] sm:$0xf] %vm2157, %v2263
        %2297 = vst.msk [vmem:[%s2295 + $0x4] sm:$0xf] %vm2157, %v2264
        %2298 = vst.msk [vmem:[%s2295 + $0x8] sm:$0xf] %vm2157, %v2265
        %2299 = vst.msk [vmem:[%s2295 + $0xc] sm:$0xf] %vm2157, %v2266
        %2300 = vst.msk [vmem:[%s2295 + $0x10] sm:$0xf] %vm2157, %v2267
        %2301 = vst.msk [vmem:[%s2295 + $0x14] sm:$0xf] %vm2157, %v2268
        %2302 = vst.msk [vmem:[%s2295 + $0x18] sm:$0xf] %vm2157, %v2269
        %2303 = vst.msk [vmem:[%s2295 + $0x1c] sm:$0xf] %vm2157, %v2270
        %2304 = vst.msk [vmem:[%s2295 + $0x20] sm:$0xf] %vm2157, %v2271
        %2305 = vst.msk [vmem:[%s2295 + $0x24] sm:$0xf] %vm2157, %v2272
        %2306 = vst.msk [vmem:[%s2295 + $0x28] sm:$0xf] %vm2157, %v2273
        %2307 = vst.msk [vmem:[%s2295 + $0x2c] sm:$0xf] %vm2157, %v2274
        %2308 = vst.msk [vmem:[%s2295 + $0x30] sm:$0xf] %vm2157, %v2275
        %2309 = vst.msk [vmem:[%s2295 + $0x34] sm:$0xf] %vm2157, %v2276
        %2310 = vst.msk [vmem:[%s2295 + $0x38] sm:$0xf] %vm2157, %v2277
        %2311 = vst.msk [vmem:[%s2295 + $0x3c] sm:$0xf] %vm2157, %v2278
        %2312 = vrot.lane.b32.xlu0 %v2263, 64
        %v2313 = vpop.permute.xlu0 %2312
        %2314 = vrot.lane.b32.xlu0 %v2264, 64
        %v2315 = vpop.permute.xlu0 %2314
        %2316 = vrot.lane.b32.xlu0 %v2265, 64
        %v2317 = vpop.permute.xlu0 %2316
        %2318 = vrot.lane.b32.xlu0 %v2266, 64
        %v2319 = vpop.permute.xlu0 %2318
        %2320 = vrot.lane.b32.xlu0 %v2267, 64
        %v2321 = vpop.permute.xlu0 %2320
        %2322 = vrot.lane.b32.xlu0 %v2268, 64
        %v2323 = vpop.permute.xlu0 %2322
        %2324 = vrot.lane.b32.xlu0 %v2269, 64
        %v2325 = vpop.permute.xlu0 %2324
        %2326 = vrot.lane.b32.xlu0 %v2270, 64
        %v2327 = vpop.permute.xlu0 %2326
        %2328 = vrot.lane.b32.xlu0 %v2271, 64
        %v2329 = vpop.permute.xlu0 %2328
        %2330 = vrot.lane.b32.xlu0 %v2272, 64
        %v2331 = vpop.permute.xlu0 %2330
        %2332 = vrot.lane.b32.xlu0 %v2273, 64
        %v2333 = vpop.permute.xlu0 %2332
        %2334 = vrot.lane.b32.xlu0 %v2274, 64
        %v2335 = vpop.permute.xlu0 %2334
        %2336 = vrot.lane.b32.xlu0 %v2275, 64
        %v2337 = vpop.permute.xlu0 %2336
        %2338 = vrot.lane.b32.xlu0 %v2276, 64
        %v2339 = vpop.permute.xlu0 %2338
        %2340 = vrot.lane.b32.xlu0 %v2277, 64
        %v2341 = vpop.permute.xlu0 %2340
        %2342 = vrot.lane.b32.xlu0 %v2278, 64
        %v2343 = vpop.permute.xlu0 %2342
        %s2360 = scalar_lea.vmem %s369, 192 [#allocation2]
        %2361 = vst.msk [vmem:[%s2360] sm:$0xf] %vm2157, %v2313
        %2362 = vst.msk [vmem:[%s2360 + $0x4] sm:$0xf] %vm2157, %v2315
        %2363 = vst.msk [vmem:[%s2360 + $0x8] sm:$0xf] %vm2157, %v2317
        %2364 = vst.msk [vmem:[%s2360 + $0xc] sm:$0xf] %vm2157, %v2319
        %2365 = vst.msk [vmem:[%s2360 + $0x10] sm:$0xf] %vm2157, %v2321
        %2366 = vst.msk [vmem:[%s2360 + $0x14] sm:$0xf] %vm2157, %v2323
        %2367 = vst.msk [vmem:[%s2360 + $0x18] sm:$0xf] %vm2157, %v2325
        %2368 = vst.msk [vmem:[%s2360 + $0x1c] sm:$0xf] %vm2157, %v2327
        %2369 = vst.msk [vmem:[%s2360 + $0x20] sm:$0xf] %vm2157, %v2329
        %2370 = vst.msk [vmem:[%s2360 + $0x24] sm:$0xf] %vm2157, %v2331
        %2371 = vst.msk [vmem:[%s2360 + $0x28] sm:$0xf] %vm2157, %v2333
        %2372 = vst.msk [vmem:[%s2360 + $0x2c] sm:$0xf] %vm2157, %v2335
        %2373 = vst.msk [vmem:[%s2360 + $0x30] sm:$0xf] %vm2157, %v2337
        %2374 = vst.msk [vmem:[%s2360 + $0x34] sm:$0xf] %vm2157, %v2339
        %2375 = vst.msk [vmem:[%s2360 + $0x38] sm:$0xf] %vm2157, %v2341
        %2376 = vst.msk [vmem:[%s2360 + $0x3c] sm:$0xf] %vm2157, %v2343
        %s2377 = smul.u32 16, %s21
        %p2378 = scmp.lt.s32.totalorder %s2377, 31
        %s2379 = scalar_select %p2378, %s2377, 31
        %s2380 = smul.addr %s2379, 4
        %s2381 = smul.addr %s2380, 4
        %s2382 = scalar_lea.vmem %s8, %s2381
        %s2383 = sand.u32 %s238, 1
        %s2384 = sand.u32 %s238, 1
        %s2385 = smul.addr %s2384, 256
        %s2386 = scalar_lea.vmem [#allocation2], %s2385
        // Predicated region
        $region53: #{deepseek_v2_attention_forward.4} parent=51 // pred_check
          %p2387 = pneg %p222
        $region54: #{deepseek_v2_attention_forward.4} parent=51 // pred_check_branch
          %2389 = sbr.rel (%p2387) target = $region56
        $region55: #{deepseek_v2_attention_forward.4} parent=51 // pred_region
          %s2390 = smul.u32 16, %s21
        $region56: #{deepseek_v2_attention_forward.4} parent=51 // pred_fallthru
          _
        // Predicated region
        $region57: #{deepseek_v2_attention_forward.4} parent=51 // pred_check
          %p2391 = pneg %p248
        $region58: #{deepseek_v2_attention_forward.4} parent=51 // pred_check_branch
          %2393 = sbr.rel (%p2391) target = $region60
        $region59: #{deepseek_v2_attention_forward.4} parent=51 // pred_region
          %s2394 = smul.u32 16, %s21
          %s2395 = smul.addr %s2394, 4
          %s2396 = scalar_lea.vmem %s9, %s2395
          // Predicated region
          $region61: #{deepseek_v2_attention_forward.4} parent=59 // pred_check
            _
          $region62: #{deepseek_v2_attention_forward.4} parent=59 // pred_check_branch
            %2398 = sbr.rel (0) target = $region64
          $region63: #{deepseek_v2_attention_forward.4} parent=59 // pred_region
            // Predicated region
            $region65: #{deepseek_v2_attention_forward.4} parent=63 // pred_check
              _
            $region66: #{deepseek_v2_attention_forward.4} parent=63 // pred_check_branch
              %2400 = sbr.rel target = $region68
            $region67: #{deepseek_v2_attention_forward.4} parent=63 // pred_region
              // Predicated region
              $region80: #{deepseek_v2_attention_forward.4} parent=67 // pred_check
                _
              $region81: #{deepseek_v2_attention_forward.4} parent=67 // pred_check_branch
                %2542 = sbr.rel (0) target = $region83
              $region82: #{deepseek_v2_attention_forward.4} parent=67 // pred_region
                loop: start=0, step=1, limit=1
                $region84: #{deepseek_v2_attention_forward.4} parent=82 // loop_pre_header
                  _
                $region85: #{deepseek_v2_attention_forward.4} parent=82 // loop_header
                  %s2544 = sphi 0, %s2548
                  %p2545 = scmp.ge.s32.totalorder %s2544, 1
                  %s2549 = sphi %s2386, %s2386
                  %s2550 = sphi %s2396, %s2396
                $region86: #{deepseek_v2_attention_forward.4} parent=82 // loop_header_branch
                  %2547 = sbr.rel (%p2545) target = $region90
                $region87: #{deepseek_v2_attention_forward.4} parent=82 // loop_body
                  _
                $region88: #{deepseek_v2_attention_forward.4} parent=82 // loop_footer
                  %s2548 = sadd.s32 1, %s2544
                $region89: #{deepseek_v2_attention_forward.4} parent=82 // loop_footer_branch
                  %2543 = sbr.rel target = $region85
                $region90: #{deepseek_v2_attention_forward.4} parent=82 // loop_exit
                  _
                %s2552 = ssub.s32 16, 1
                loop: start=0, step=1, limit=1
                $region91: #{deepseek_v2_attention_forward.4} parent=82 // loop_pre_header
                  _
                $region92: #{deepseek_v2_attention_forward.4} parent=82 // loop_header
                  %s2554 = sphi 0, %s2558
                  %p2555 = scmp.ge.s32.totalorder %s2554, 1
                  %s2559 = sphi %s2386, %s2386
                  %s2560 = sphi %s2396, %s2396
                $region93: #{deepseek_v2_attention_forward.4} parent=82 // loop_header_branch
                  %2557 = sbr.rel (%p2555) target = $region97
                $region94: #{deepseek_v2_attention_forward.4} parent=82 // loop_body
                  %v2561 = vld [vmem:[%s2559] sm:%s2552]
                  %2562 = vst [vmem:[%s2560] sm:%s2552] %v2561
                  %v2563 = vld [vmem:[%s2559 + $0x4] sm:%s2552]
                  %2564 = vst [vmem:[%s2560 + $0x4] sm:%s2552] %v2563
                  %v2565 = vld [vmem:[%s2559 + $0x8] sm:%s2552]
                  %2566 = vst [vmem:[%s2560 + $0x8] sm:%s2552] %v2565
                  %v2567 = vld [vmem:[%s2559 + $0xc] sm:%s2552]
                  %2568 = vst [vmem:[%s2560 + $0xc] sm:%s2552] %v2567
                  %v2569 = vld [vmem:[%s2559 + $0x10] sm:%s2552]
                  %2570 = vst [vmem:[%s2560 + $0x10] sm:%s2552] %v2569
                  %v2571 = vld [vmem:[%s2559 + $0x14] sm:%s2552]
                  %2572 = vst [vmem:[%s2560 + $0x14] sm:%s2552] %v2571
                  %v2573 = vld [vmem:[%s2559 + $0x18] sm:%s2552]
                  %2574 = vst [vmem:[%s2560 + $0x18] sm:%s2552] %v2573
                  %v2575 = vld [vmem:[%s2559 + $0x1c] sm:%s2552]
                  %2576 = vst [vmem:[%s2560 + $0x1c] sm:%s2552] %v2575
                  %v2577 = vld [vmem:[%s2559 + $0x20] sm:%s2552]
                  %2578 = vst [vmem:[%s2560 + $0x20] sm:%s2552] %v2577
                  %v2579 = vld [vmem:[%s2559 + $0x24] sm:%s2552]
                  %2580 = vst [vmem:[%s2560 + $0x24] sm:%s2552] %v2579
                  %v2581 = vld [vmem:[%s2559 + $0x28] sm:%s2552]
                  %2582 = vst [vmem:[%s2560 + $0x28] sm:%s2552] %v2581
                  %v2583 = vld [vmem:[%s2559 + $0x2c] sm:%s2552]
                  %2584 = vst [vmem:[%s2560 + $0x2c] sm:%s2552] %v2583
                  %v2585 = vld [vmem:[%s2559 + $0x30] sm:%s2552]
                  %2586 = vst [vmem:[%s2560 + $0x30] sm:%s2552] %v2585
                  %v2587 = vld [vmem:[%s2559 + $0x34] sm:%s2552]
                  %2588 = vst [vmem:[%s2560 + $0x34] sm:%s2552] %v2587
                  %v2589 = vld [vmem:[%s2559 + $0x38] sm:%s2552]
                  %2590 = vst [vmem:[%s2560 + $0x38] sm:%s2552] %v2589
                  %v2591 = vld [vmem:[%s2559 + $0x3c] sm:%s2552]
                  %2592 = vst [vmem:[%s2560 + $0x3c] sm:%s2552] %v2591
                  %v2593 = vld [vmem:[%s2559 + $0x40] sm:%s2552]
                  %2594 = vst [vmem:[%s2560 + $0x80] sm:%s2552] %v2593
                  %v2595 = vld [vmem:[%s2559 + $0x44] sm:%s2552]
                  %2596 = vst [vmem:[%s2560 + $0x84] sm:%s2552] %v2595
                  %v2597 = vld [vmem:[%s2559 + $0x48] sm:%s2552]
                  %2598 = vst [vmem:[%s2560 + $0x88] sm:%s2552] %v2597
                  %v2599 = vld [vmem:[%s2559 + $0x4c] sm:%s2552]
                  %2600 = vst [vmem:[%s2560 + $0x8c] sm:%s2552] %v2599
                  %v2601 = vld [vmem:[%s2559 + $0x50] sm:%s2552]
                  %2602 = vst [vmem:[%s2560 + $0x90] sm:%s2552] %v2601
                  %v2603 = vld [vmem:[%s2559 + $0x54] sm:%s2552]
                  %2604 = vst [vmem:[%s2560 + $0x94] sm:%s2552] %v2603
                  %v2605 = vld [vmem:[%s2559 + $0x58] sm:%s2552]
                  %2606 = vst [vmem:[%s2560 + $0x98] sm:%s2552] %v2605
                  %v2607 = vld [vmem:[%s2559 + $0x5c] sm:%s2552]
                  %2608 = vst [vmem:[%s2560 + $0x9c] sm:%s2552] %v2607
                  %v2609 = vld [vmem:[%s2559 + $0x60] sm:%s2552]
                  %2610 = vst [vmem:[%s2560 + $0xa0] sm:%s2552] %v2609
                  %v2611 = vld [vmem:[%s2559 + $0x64] sm:%s2552]
                  %2612 = vst [vmem:[%s2560 + $0xa4] sm:%s2552] %v2611
                  %v2613 = vld [vmem:[%s2559 + $0x68] sm:%s2552]
                  %2614 = vst [vmem:[%s2560 + $0xa8] sm:%s2552] %v2613
                  %v2615 = vld [vmem:[%s2559 + $0x6c] sm:%s2552]
                  %2616 = vst [vmem:[%s2560 + $0xac] sm:%s2552] %v2615
                  %v2617 = vld [vmem:[%s2559 + $0x70] sm:%s2552]
                  %2618 = vst [vmem:[%s2560 + $0xb0] sm:%s2552] %v2617
                  %v2619 = vld [vmem:[%s2559 + $0x74] sm:%s2552]
                  %2620 = vst [vmem:[%s2560 + $0xb4] sm:%s2552] %v2619
                  %v2621 = vld [vmem:[%s2559 + $0x78] sm:%s2552]
                  %2622 = vst [vmem:[%s2560 + $0xb8] sm:%s2552] %v2621
                  %v2623 = vld [vmem:[%s2559 + $0x7c] sm:%s2552]
                  %2624 = vst [vmem:[%s2560 + $0xbc] sm:%s2552] %v2623
                  %v2625 = vld [vmem:[%s2559 + $0x80] sm:%s2552]
                  %2626 = vst [vmem:[%s2560 + $0x100] sm:%s2552] %v2625
                  %v2627 = vld [vmem:[%s2559 + $0x84] sm:%s2552]
                  %2628 = vst [vmem:[%s2560 + $0x104] sm:%s2552] %v2627
                  %v2629 = vld [vmem:[%s2559 + $0x88] sm:%s2552]
                  %2630 = vst [vmem:[%s2560 + $0x108] sm:%s2552] %v2629
                  %v2631 = vld [vmem:[%s2559 + $0x8c] sm:%s2552]
                  %2632 = vst [vmem:[%s2560 + $0x10c] sm:%s2552] %v2631
                  %v2633 = vld [vmem:[%s2559 + $0x90] sm:%s2552]
                  %2634 = vst [vmem:[%s2560 + $0x110] sm:%s2552] %v2633
                  %v2635 = vld [vmem:[%s2559 + $0x94] sm:%s2552]
                  %2636 = vst [vmem:[%s2560 + $0x114] sm:%s2552] %v2635
                  %v2637 = vld [vmem:[%s2559 + $0x98] sm:%s2552]
                  %2638 = vst [vmem:[%s2560 + $0x118] sm:%s2552] %v2637
                  %v2639 = vld [vmem:[%s2559 + $0x9c] sm:%s2552]
                  %2640 = vst [vmem:[%s2560 + $0x11c] sm:%s2552] %v2639
                  %v2641 = vld [vmem:[%s2559 + $0xa0] sm:%s2552]
                  %2642 = vst [vmem:[%s2560 + $0x120] sm:%s2552] %v2641
                  %v2643 = vld [vmem:[%s2559 + $0xa4] sm:%s2552]
                  %2644 = vst [vmem:[%s2560 + $0x124] sm:%s2552] %v2643
                  %v2645 = vld [vmem:[%s2559 + $0xa8] sm:%s2552]
                  %2646 = vst [vmem:[%s2560 + $0x128] sm:%s2552] %v2645
                  %v2647 = vld [vmem:[%s2559 + $0xac] sm:%s2552]
                  %2648 = vst [vmem:[%s2560 + $0x12c] sm:%s2552] %v2647
                  %v2649 = vld [vmem:[%s2559 + $0xb0] sm:%s2552]
                  %2650 = vst [vmem:[%s2560 + $0x130] sm:%s2552] %v2649
                  %v2651 = vld [vmem:[%s2559 + $0xb4] sm:%s2552]
                  %2652 = vst [vmem:[%s2560 + $0x134] sm:%s2552] %v2651
                  %v2653 = vld [vmem:[%s2559 + $0xb8] sm:%s2552]
                  %2654 = vst [vmem:[%s2560 + $0x138] sm:%s2552] %v2653
                  %v2655 = vld [vmem:[%s2559 + $0xbc] sm:%s2552]
                  %2656 = vst [vmem:[%s2560 + $0x13c] sm:%s2552] %v2655
                  %v2657 = vld [vmem:[%s2559 + $0xc0] sm:%s2552]
                  %2658 = vst [vmem:[%s2560 + $0x180] sm:%s2552] %v2657
                  %v2659 = vld [vmem:[%s2559 + $0xc4] sm:%s2552]
                  %2660 = vst [vmem:[%s2560 + $0x184] sm:%s2552] %v2659
                  %v2661 = vld [vmem:[%s2559 + $0xc8] sm:%s2552]
                  %2662 = vst [vmem:[%s2560 + $0x188] sm:%s2552] %v2661
                  %v2663 = vld [vmem:[%s2559 + $0xcc] sm:%s2552]
                  %2664 = vst [vmem:[%s2560 + $0x18c] sm:%s2552] %v2663
                  %v2665 = vld [vmem:[%s2559 + $0xd0] sm:%s2552]
                  %2666 = vst [vmem:[%s2560 + $0x190] sm:%s2552] %v2665
                  %v2667 = vld [vmem:[%s2559 + $0xd4] sm:%s2552]
                  %2668 = vst [vmem:[%s2560 + $0x194] sm:%s2552] %v2667
                  %v2669 = vld [vmem:[%s2559 + $0xd8] sm:%s2552]
                  %2670 = vst [vmem:[%s2560 + $0x198] sm:%s2552] %v2669
                  %v2671 = vld [vmem:[%s2559 + $0xdc] sm:%s2552]
                  %2672 = vst [vmem:[%s2560 + $0x19c] sm:%s2552] %v2671
                  %v2673 = vld [vmem:[%s2559 + $0xe0] sm:%s2552]
                  %2674 = vst [vmem:[%s2560 + $0x1a0] sm:%s2552] %v2673
                  %v2675 = vld [vmem:[%s2559 + $0xe4] sm:%s2552]
                  %2676 = vst [vmem:[%s2560 + $0x1a4] sm:%s2552] %v2675
                  %v2677 = vld [vmem:[%s2559 + $0xe8] sm:%s2552]
                  %2678 = vst [vmem:[%s2560 + $0x1a8] sm:%s2552] %v2677
                  %v2679 = vld [vmem:[%s2559 + $0xec] sm:%s2552]
                  %2680 = vst [vmem:[%s2560 + $0x1ac] sm:%s2552] %v2679
                  %v2681 = vld [vmem:[%s2559 + $0xf0] sm:%s2552]
                  %2682 = vst [vmem:[%s2560 + $0x1b0] sm:%s2552] %v2681
                  %v2683 = vld [vmem:[%s2559 + $0xf4] sm:%s2552]
                  %2684 = vst [vmem:[%s2560 + $0x1b4] sm:%s2552] %v2683
                  %v2685 = vld [vmem:[%s2559 + $0xf8] sm:%s2552]
                  %2686 = vst [vmem:[%s2560 + $0x1b8] sm:%s2552] %v2685
                  %v2687 = vld [vmem:[%s2559 + $0xfc] sm:%s2552]
                  %2688 = vst [vmem:[%s2560 + $0x1bc] sm:%s2552] %v2687
                $region95: #{deepseek_v2_attention_forward.4} parent=82 // loop_footer
                  %s2558 = sadd.s32 1, %s2554
                $region96: #{deepseek_v2_attention_forward.4} parent=82 // loop_footer_branch
                  %2553 = sbr.rel target = $region92
                $region97: #{deepseek_v2_attention_forward.4} parent=82 // loop_exit
                  _
              $region83: #{deepseek_v2_attention_forward.4} parent=67 // pred_fallthru
                _
            $region68: #{deepseek_v2_attention_forward.4} parent=63 // pred_fallthru
              _
            // Predicated region
            $region69: #{deepseek_v2_attention_forward.4} parent=63 // pred_check
              _
            $region70: #{deepseek_v2_attention_forward.4} parent=63 // pred_check_branch
              %2402 = sbr.rel (0) target = $region72
            $region71: #{deepseek_v2_attention_forward.4} parent=63 // pred_region
              %s2404 = ssub.s32 16, 1
              loop: start=0, step=1, limit=1
              $region73: #{deepseek_v2_attention_forward.4} parent=71 // loop_pre_header
                _
              $region74: #{deepseek_v2_attention_forward.4} parent=71 // loop_header
                %s2406 = sphi 0, %s2410
                %p2407 = scmp.ge.s32.totalorder %s2406, 1
                %s2411 = sphi %s2386, %s2386
                %s2412 = sphi %s2396, %s2396
              $region75: #{deepseek_v2_attention_forward.4} parent=71 // loop_header_branch
                %2409 = sbr.rel (%p2407) target = $region79
              $region76: #{deepseek_v2_attention_forward.4} parent=71 // loop_body
                %v2413 = vld [vmem:[%s2411] sm:%s2404]
                %2414 = vst [vmem:[%s2412] sm:%s2404] %v2413
                %v2415 = vld [vmem:[%s2411 + $0x4] sm:%s2404]
                %2416 = vst [vmem:[%s2412 + $0x4] sm:%s2404] %v2415
                %v2417 = vld [vmem:[%s2411 + $0x8] sm:%s2404]
                %2418 = vst [vmem:[%s2412 + $0x8] sm:%s2404] %v2417
                %v2419 = vld [vmem:[%s2411 + $0xc] sm:%s2404]
                %2420 = vst [vmem:[%s2412 + $0xc] sm:%s2404] %v2419
                %v2421 = vld [vmem:[%s2411 + $0x10] sm:%s2404]
                %2422 = vst [vmem:[%s2412 + $0x10] sm:%s2404] %v2421
                %v2423 = vld [vmem:[%s2411 + $0x14] sm:%s2404]
                %2424 = vst [vmem:[%s2412 + $0x14] sm:%s2404] %v2423
                %v2425 = vld [vmem:[%s2411 + $0x18] sm:%s2404]
                %2426 = vst [vmem:[%s2412 + $0x18] sm:%s2404] %v2425
                %v2427 = vld [vmem:[%s2411 + $0x1c] sm:%s2404]
                %2428 = vst [vmem:[%s2412 + $0x1c] sm:%s2404] %v2427
                %v2429 = vld [vmem:[%s2411 + $0x20] sm:%s2404]
                %2430 = vst [vmem:[%s2412 + $0x20] sm:%s2404] %v2429
                %v2431 = vld [vmem:[%s2411 + $0x24] sm:%s2404]
                %2432 = vst [vmem:[%s2412 + $0x24] sm:%s2404] %v2431
                %v2433 = vld [vmem:[%s2411 + $0x28] sm:%s2404]
                %2434 = vst [vmem:[%s2412 + $0x28] sm:%s2404] %v2433
                %v2435 = vld [vmem:[%s2411 + $0x2c] sm:%s2404]
                %2436 = vst [vmem:[%s2412 + $0x2c] sm:%s2404] %v2435
                %v2437 = vld [vmem:[%s2411 + $0x30] sm:%s2404]
                %2438 = vst [vmem:[%s2412 + $0x30] sm:%s2404] %v2437
                %v2439 = vld [vmem:[%s2411 + $0x34] sm:%s2404]
                %2440 = vst [vmem:[%s2412 + $0x34] sm:%s2404] %v2439
                %v2441 = vld [vmem:[%s2411 + $0x38] sm:%s2404]
                %2442 = vst [vmem:[%s2412 + $0x38] sm:%s2404] %v2441
                %v2443 = vld [vmem:[%s2411 + $0x3c] sm:%s2404]
                %2444 = vst [vmem:[%s2412 + $0x3c] sm:%s2404] %v2443
                %v2445 = vld [vmem:[%s2411 + $0x40] sm:%s2404]
                %2446 = vst [vmem:[%s2412 + $0x80] sm:%s2404] %v2445
                %v2447 = vld [vmem:[%s2411 + $0x44] sm:%s2404]
                %2448 = vst [vmem:[%s2412 + $0x84] sm:%s2404] %v2447
                %v2449 = vld [vmem:[%s2411 + $0x48] sm:%s2404]
                %2450 = vst [vmem:[%s2412 + $0x88] sm:%s2404] %v2449
                %v2451 = vld [vmem:[%s2411 + $0x4c] sm:%s2404]
                %2452 = vst [vmem:[%s2412 + $0x8c] sm:%s2404] %v2451
                %v2453 = vld [vmem:[%s2411 + $0x50] sm:%s2404]
                %2454 = vst [vmem:[%s2412 + $0x90] sm:%s2404] %v2453
                %v2455 = vld [vmem:[%s2411 + $0x54] sm:%s2404]
                %2456 = vst [vmem:[%s2412 + $0x94] sm:%s2404] %v2455
                %v2457 = vld [vmem:[%s2411 + $0x58] sm:%s2404]
                %2458 = vst [vmem:[%s2412 + $0x98] sm:%s2404] %v2457
                %v2459 = vld [vmem:[%s2411 + $0x5c] sm:%s2404]
                %2460 = vst [vmem:[%s2412 + $0x9c] sm:%s2404] %v2459
                %v2461 = vld [vmem:[%s2411 + $0x60] sm:%s2404]
                %2462 = vst [vmem:[%s2412 + $0xa0] sm:%s2404] %v2461
                %v2463 = vld [vmem:[%s2411 + $0x64] sm:%s2404]
                %2464 = vst [vmem:[%s2412 + $0xa4] sm:%s2404] %v2463
                %v2465 = vld [vmem:[%s2411 + $0x68] sm:%s2404]
                %2466 = vst [vmem:[%s2412 + $0xa8] sm:%s2404] %v2465
                %v2467 = vld [vmem:[%s2411 + $0x6c] sm:%s2404]
                %2468 = vst [vmem:[%s2412 + $0xac] sm:%s2404] %v2467
                %v2469 = vld [vmem:[%s2411 + $0x70] sm:%s2404]
                %2470 = vst [vmem:[%s2412 + $0xb0] sm:%s2404] %v2469
                %v2471 = vld [vmem:[%s2411 + $0x74] sm:%s2404]
                %2472 = vst [vmem:[%s2412 + $0xb4] sm:%s2404] %v2471
                %v2473 = vld [vmem:[%s2411 + $0x78] sm:%s2404]
                %2474 = vst [vmem:[%s2412 + $0xb8] sm:%s2404] %v2473
                %v2475 = vld [vmem:[%s2411 + $0x7c] sm:%s2404]
                %2476 = vst [vmem:[%s2412 + $0xbc] sm:%s2404] %v2475
                %v2477 = vld [vmem:[%s2411 + $0x80] sm:%s2404]
                %2478 = vst [vmem:[%s2412 + $0x100] sm:%s2404] %v2477
                %v2479 = vld [vmem:[%s2411 + $0x84] sm:%s2404]
                %2480 = vst [vmem:[%s2412 + $0x104] sm:%s2404] %v2479
                %v2481 = vld [vmem:[%s2411 + $0x88] sm:%s2404]
                %2482 = vst [vmem:[%s2412 + $0x108] sm:%s2404] %v2481
                %v2483 = vld [vmem:[%s2411 + $0x8c] sm:%s2404]
                %2484 = vst [vmem:[%s2412 + $0x10c] sm:%s2404] %v2483
                %v2485 = vld [vmem:[%s2411 + $0x90] sm:%s2404]
                %2486 = vst [vmem:[%s2412 + $0x110] sm:%s2404] %v2485
                %v2487 = vld [vmem:[%s2411 + $0x94] sm:%s2404]
                %2488 = vst [vmem:[%s2412 + $0x114] sm:%s2404] %v2487
                %v2489 = vld [vmem:[%s2411 + $0x98] sm:%s2404]
                %2490 = vst [vmem:[%s2412 + $0x118] sm:%s2404] %v2489
                %v2491 = vld [vmem:[%s2411 + $0x9c] sm:%s2404]
                %2492 = vst [vmem:[%s2412 + $0x11c] sm:%s2404] %v2491
                %v2493 = vld [vmem:[%s2411 + $0xa0] sm:%s2404]
                %2494 = vst [vmem:[%s2412 + $0x120] sm:%s2404] %v2493
                %v2495 = vld [vmem:[%s2411 + $0xa4] sm:%s2404]
                %2496 = vst [vmem:[%s2412 + $0x124] sm:%s2404] %v2495
                %v2497 = vld [vmem:[%s2411 + $0xa8] sm:%s2404]
                %2498 = vst [vmem:[%s2412 + $0x128] sm:%s2404] %v2497
                %v2499 = vld [vmem:[%s2411 + $0xac] sm:%s2404]
                %2500 = vst [vmem:[%s2412 + $0x12c] sm:%s2404] %v2499
                %v2501 = vld [vmem:[%s2411 + $0xb0] sm:%s2404]
                %2502 = vst [vmem:[%s2412 + $0x130] sm:%s2404] %v2501
                %v2503 = vld [vmem:[%s2411 + $0xb4] sm:%s2404]
                %2504 = vst [vmem:[%s2412 + $0x134] sm:%s2404] %v2503
                %v2505 = vld [vmem:[%s2411 + $0xb8] sm:%s2404]
                %2506 = vst [vmem:[%s2412 + $0x138] sm:%s2404] %v2505
                %v2507 = vld [vmem:[%s2411 + $0xbc] sm:%s2404]
                %2508 = vst [vmem:[%s2412 + $0x13c] sm:%s2404] %v2507
                %v2509 = vld [vmem:[%s2411 + $0xc0] sm:%s2404]
                %2510 = vst [vmem:[%s2412 + $0x180] sm:%s2404] %v2509
                %v2511 = vld [vmem:[%s2411 + $0xc4] sm:%s2404]
                %2512 = vst [vmem:[%s2412 + $0x184] sm:%s2404] %v2511
                %v2513 = vld [vmem:[%s2411 + $0xc8] sm:%s2404]
                %2514 = vst [vmem:[%s2412 + $0x188] sm:%s2404] %v2513
                %v2515 = vld [vmem:[%s2411 + $0xcc] sm:%s2404]
                %2516 = vst [vmem:[%s2412 + $0x18c] sm:%s2404] %v2515
                %v2517 = vld [vmem:[%s2411 + $0xd0] sm:%s2404]
                %2518 = vst [vmem:[%s2412 + $0x190] sm:%s2404] %v2517
                %v2519 = vld [vmem:[%s2411 + $0xd4] sm:%s2404]
                %2520 = vst [vmem:[%s2412 + $0x194] sm:%s2404] %v2519
                %v2521 = vld [vmem:[%s2411 + $0xd8] sm:%s2404]
                %2522 = vst [vmem:[%s2412 + $0x198] sm:%s2404] %v2521
                %v2523 = vld [vmem:[%s2411 + $0xdc] sm:%s2404]
                %2524 = vst [vmem:[%s2412 + $0x19c] sm:%s2404] %v2523
                %v2525 = vld [vmem:[%s2411 + $0xe0] sm:%s2404]
                %2526 = vst [vmem:[%s2412 + $0x1a0] sm:%s2404] %v2525
                %v2527 = vld [vmem:[%s2411 + $0xe4] sm:%s2404]
                %2528 = vst [vmem:[%s2412 + $0x1a4] sm:%s2404] %v2527
                %v2529 = vld [vmem:[%s2411 + $0xe8] sm:%s2404]
                %2530 = vst [vmem:[%s2412 + $0x1a8] sm:%s2404] %v2529
                %v2531 = vld [vmem:[%s2411 + $0xec] sm:%s2404]
                %2532 = vst [vmem:[%s2412 + $0x1ac] sm:%s2404] %v2531
                %v2533 = vld [vmem:[%s2411 + $0xf0] sm:%s2404]
                %2534 = vst [vmem:[%s2412 + $0x1b0] sm:%s2404] %v2533
                %v2535 = vld [vmem:[%s2411 + $0xf4] sm:%s2404]
                %2536 = vst [vmem:[%s2412 + $0x1b4] sm:%s2404] %v2535
                %v2537 = vld [vmem:[%s2411 + $0xf8] sm:%s2404]
                %2538 = vst [vmem:[%s2412 + $0x1b8] sm:%s2404] %v2537
                %v2539 = vld [vmem:[%s2411 + $0xfc] sm:%s2404]
                %2540 = vst [vmem:[%s2412 + $0x1bc] sm:%s2404] %v2539
              $region77: #{deepseek_v2_attention_forward.4} parent=71 // loop_footer
                %s2410 = sadd.s32 1, %s2406
              $region78: #{deepseek_v2_attention_forward.4} parent=71 // loop_footer_branch
                %2405 = sbr.rel target = $region74
              $region79: #{deepseek_v2_attention_forward.4} parent=71 // loop_exit
                _
            $region72: #{deepseek_v2_attention_forward.4} parent=63 // pred_fallthru
              _
          $region64: #{deepseek_v2_attention_forward.4} parent=59 // pred_fallthru
            _
          %2689 = vnop
        $region60: #{deepseek_v2_attention_forward.4} parent=51 // pred_fallthru
          _
      $region52: #{deepseek_v2_attention_forward.4} parent=5 // pred_fallthru
        _
      %p2690 = scmp.le.s32.totalorder 2, %s16
      // Predicated region
      $region98: #{deepseek_v2_attention_forward.4} parent=5 // pred_check
        %p2691 = pneg %p2690
      $region99: #{deepseek_v2_attention_forward.4} parent=5 // pred_check_branch
        %2693 = sbr.rel (%p2691) target = $region101
      $region100: #{deepseek_v2_attention_forward.4} parent=5 // pred_region
        %s2694 = ssub.s32 %s16, 2
        // Predicated region
        $region102: #{deepseek_v2_attention_forward.4} parent=100 // pred_check
          %p2695 = pneg %p228
        $region103: #{deepseek_v2_attention_forward.4} parent=100 // pred_check_branch
          %2697 = sbr.rel (%p2695) target = $region105
        $region104: #{deepseek_v2_attention_forward.4} parent=100 // pred_region
          %s2698 = smul.u32 16, %s22
          %p2699 = scmp.lt.s32.totalorder %s2698, 31
          %s2700 = scalar_select %p2699, %s2698, 31
          %s2701 = smul.addr %s2700, 4
          %s2702 = smul.addr %s2701, 4
          %s2703 = scalar_lea.vmem %s8, %s2702
        $region105: #{deepseek_v2_attention_forward.4} parent=100 // pred_fallthru
          _
        // Predicated region
        $region106: #{deepseek_v2_attention_forward.4} parent=100 // pred_check
          %p2704 = pneg %p254
        $region107: #{deepseek_v2_attention_forward.4} parent=100 // pred_check_branch
          %2706 = sbr.rel (%p2704) target = $region109
        $region108: #{deepseek_v2_attention_forward.4} parent=100 // pred_region
          %s2707 = sand.u32 %s239, 1
          %s2708 = sand.u32 %s239, 1
          %s2709 = smul.addr %s2708, 256
          %s2710 = scalar_lea.vmem [#allocation2], %s2709
        $region109: #{deepseek_v2_attention_forward.4} parent=100 // pred_fallthru
          _
      $region101: #{deepseek_v2_attention_forward.4} parent=5 // pred_fallthru
        _
    $region6: #{deepseek_v2_attention_forward.4} parent=1 // loop_footer
      %s20 = sadd.s32 1, %s16
    $region7: #{deepseek_v2_attention_forward.4} parent=1 // loop_footer_branch
      %15 = sbr.rel target = $region3
    $region8: #{deepseek_v2_attention_forward.4} parent=1 // loop_exit
      _

// kernel: deepseek_v2_attention_forward.7
$region0: #{deepseek_v2_attention_forward.7}
  #allocation0 [shape = 'u32[]', space=smem, size = 0x4, offset = 0x4, fixed_abs, tag = 'smem constant byte address 0x4 - core index']
  #allocation1 [shape = 'u32[144,128]{1,0:T(1,128)}', space=vmem, size = 0x12000, scoped, tag = 'internal scratch']
  %s0 = inlined_call_operand.vmem [shape: bf16[256,512], index: 0, kind: input, shape index: {}]
  %s1 = inlined_call_operand.vmem [shape: bf16[512,256], index: 1, kind: input, shape index: {}]
  %s2 = inlined_call_operand.hbm [shape: f32[256,256], index: 2, kind: output, shape index: {}]
  %s3 = sld [smem:[#allocation0]]
  $region86: #{deepseek_v2_attention_forward.7} parent=0
    _
  %s5 = ssub.s32 1, %s3
  %s6 = scalar_select 0, %s5, %s3
  $region1: #{deepseek_v2_attention_forward.7} parent=0
    #allocation2 [shape = 'u8[65536]{0}', space=vmem, size = 0x10000, scoped, tag = 'input window, operand 0']
    #allocation3 [shape = 'u8[262144]{0}', space=vmem, size = 0x40000, scoped, tag = 'output window, operand 0']
    #allocation4 [shape = 's32[2]{0}', space=sflag, size = 0x8, scoped, tag = 'scoped memory for deepseek_v2_attention_forward.7']
    %7 = vsyncpa [#allocation4], 0
    %s8 = scalar_lea.sflag [#allocation4], 1
    %9 = vsyncpa %s8, 0
    loop: start=0, step=1, limit=10
    $region2: #{deepseek_v2_attention_forward.7} parent=1 // loop_pre_header
      _
    $region3: #{deepseek_v2_attention_forward.7} parent=1 // loop_header
      %s11 = sphi 0, %s15
      %p12 = scmp.ge.s32.totalorder %s11, 10
      %s18 = sphi 0, %s30
      %s19 = sphi 0, %s26
      %s20 = sphi 0, %s18
      %s21 = sphi 0, %s19
      %s22 = sphi 0, %s20
      %s23 = sphi 0, %s21
      %s35 = sphi 0, %s37
      %s38 = sphi 0, %s35
      %s39 = sphi 0, %s38
      %s55 = sphi 0, %s39
      %s61 = sphi 0, %s63
      %s64 = sphi 0, %s61
      %s65 = sphi 0, %s64
      %s81 = sphi 0, %s65
      %s87 = sphi 0, %s89
      %s90 = sphi 0, %s87
      %s91 = sphi 0, %s90
      %s107 = sphi 0, %s91
    $region4: #{deepseek_v2_attention_forward.7} parent=1 // loop_header_branch
      %14 = sbr.rel (%p12) target = $region8
    $region5: #{deepseek_v2_attention_forward.7} parent=1 // loop_body
      %s16 = ssub.s32 %s11, 1
      %s17 = ssub.s32 %s11, 2
      %s24 = sadd.s32 1, %s19
      %p25 = scmp.ge.s32.totalorder %s24, 4
      %s26 = scalar_select %p25, 0, %s24
      %s27 = sadd.s32 1, %s18
      %s28 = scalar_select %p25, %s27, %s18
      %p29 = scmp.ge.s32.totalorder %s28, 2
      %s30 = scalar_select %p29, 0, %s28
      %s31 = ssub.s32 %s18, %s30
      %s32 = ssub.s32 %s19, %s26
      %s33 = sor.u32 %s31, %s32
      %p34 = scmp.eq.s32.totalorder %s33, 0
      %s36 = sadd.s32 %s35, 1
      %s37 = scalar_select %p34, %s35, %s36
      %p40 = pneg %p34
      %p41 = scmp.eq.s32.totalorder %s11, 7
      %p42 = por %p40, %p41
      %p43 = scmp.ne.s32.totalorder %s35, %s38
      %p44 = scmp.eq.s32.totalorder %s11, 0
      %p45 = por %p43, %p44
      %p46 = scmp.ne.s32.totalorder %s35, %s38
      %p47 = scmp.eq.s32.totalorder %s16, 7
      %p48 = por %p46, %p47
      %p49 = scmp.ne.s32.totalorder %s38, %s39
      %p50 = scmp.eq.s32.totalorder %s16, 0
      %p51 = por %p49, %p50
      %p52 = scmp.ne.s32.totalorder %s38, %s39
      %p53 = scmp.eq.s32.totalorder %s17, 7
      %p54 = por %p52, %p53
      %p56 = scmp.ne.s32.totalorder %s39, %s55
      %p57 = scmp.eq.s32.totalorder %s17, 0
      %p58 = por %p56, %p57
      %s59 = ssub.s32 %s19, %s26
      %p60 = scmp.eq.s32.totalorder %s59, 0
      %s62 = sadd.s32 %s61, 1
      %s63 = scalar_select %p60, %s61, %s62
      %p66 = pneg %p60
      %p67 = scmp.eq.s32.totalorder %s11, 7
      %p68 = por %p66, %p67
      %p69 = scmp.ne.s32.totalorder %s61, %s64
      %p70 = scmp.eq.s32.totalorder %s11, 0
      %p71 = por %p69, %p70
      %p72 = scmp.ne.s32.totalorder %s61, %s64
      %p73 = scmp.eq.s32.totalorder %s16, 7
      %p74 = por %p72, %p73
      %p75 = scmp.ne.s32.totalorder %s64, %s65
      %p76 = scmp.eq.s32.totalorder %s16, 0
      %p77 = por %p75, %p76
      %p78 = scmp.ne.s32.totalorder %s64, %s65
      %p79 = scmp.eq.s32.totalorder %s17, 7
      %p80 = por %p78, %p79
      %p82 = scmp.ne.s32.totalorder %s65, %s81
      %p83 = scmp.eq.s32.totalorder %s17, 0
      %p84 = por %p82, %p83
      %s85 = ssub.s32 %s18, %s30
      %p86 = scmp.eq.s32.totalorder %s85, 0
      %s88 = sadd.s32 %s87, 1
      %s89 = scalar_select %p86, %s87, %s88
      %p92 = pneg %p86
      %p93 = scmp.eq.s32.totalorder %s11, 7
      %p94 = por %p92, %p93
      %p95 = scmp.ne.s32.totalorder %s87, %s90
      %p96 = scmp.eq.s32.totalorder %s11, 0
      %p97 = por %p95, %p96
      %p98 = scmp.ne.s32.totalorder %s87, %s90
      %p99 = scmp.eq.s32.totalorder %s16, 7
      %p100 = por %p98, %p99
      %p101 = scmp.ne.s32.totalorder %s90, %s91
      %p102 = scmp.eq.s32.totalorder %s16, 0
      %p103 = por %p101, %p102
      %p104 = scmp.ne.s32.totalorder %s90, %s91
      %p105 = scmp.eq.s32.totalorder %s17, 7
      %p106 = por %p104, %p105
      %p108 = scmp.ne.s32.totalorder %s91, %s107
      %p109 = scmp.eq.s32.totalorder %s17, 0
      %p110 = por %p108, %p109
      %p111 = scmp.le.s32.totalorder 1, %s11
      %p112 = scmp.lt.s32.totalorder %s11, 9
      %p113 = pnand %p111, %p112
      %p114 = pneg %p113
      // Predicated region
      $region9: #{deepseek_v2_attention_forward.7} parent=5 // pred_check
        _
      $region10: #{deepseek_v2_attention_forward.7} parent=5 // pred_check_branch
        %116 = sbr.rel (%p113) target = $region12
      $region11: #{deepseek_v2_attention_forward.7} parent=5 // pred_region
        %s117 = ssub.s32 %s11, 1
      $region12: #{deepseek_v2_attention_forward.7} parent=5 // pred_fallthru
        _
      %p118 = scmp.lt.s32.totalorder %s11, 8
      // Predicated region
      $region13: #{deepseek_v2_attention_forward.7} parent=5 // pred_check
        %p119 = pneg %p118
      $region14: #{deepseek_v2_attention_forward.7} parent=5 // pred_check_branch
        %121 = sbr.rel (%p119) target = $region16
      $region15: #{deepseek_v2_attention_forward.7} parent=5 // pred_region
        // Predicated region
        $region17: #{deepseek_v2_attention_forward.7} parent=15 // pred_check
          %p122 = pneg %p45
        $region18: #{deepseek_v2_attention_forward.7} parent=15 // pred_check_branch
          %124 = sbr.rel (%p122) target = $region20
        $region19: #{deepseek_v2_attention_forward.7} parent=15 // pred_region
          %s125 = sand.u32 %s35, 1
          %s126 = sand.u32 %s35, 1
          %s127 = smul.addr %s126, 64
          %s128 = scalar_lea.vmem [#allocation2], %s127
          %s129 = smul.u32 16, %s18
          %s130 = smul.addr %s129, 4
          %s131 = sadd.s32 %s19, %s130
          %s132 = smul.addr %s131, 4
          %s133 = scalar_lea.vmem %s0, %s132
          // Predicated region
          $region21: #{deepseek_v2_attention_forward.7} parent=19 // pred_check
            _
          $region22: #{deepseek_v2_attention_forward.7} parent=19 // pred_check_branch
            %135 = sbr.rel (0) target = $region24
          $region23: #{deepseek_v2_attention_forward.7} parent=19 // pred_region
            // Predicated region
            $region25: #{deepseek_v2_attention_forward.7} parent=23 // pred_check
              _
            $region26: #{deepseek_v2_attention_forward.7} parent=23 // pred_check_branch
              %137 = sbr.rel target = $region28
            $region27: #{deepseek_v2_attention_forward.7} parent=23 // pred_region
              // Predicated region
              $region40: #{deepseek_v2_attention_forward.7} parent=27 // pred_check
                _
              $region41: #{deepseek_v2_attention_forward.7} parent=27 // pred_check_branch
                %183 = sbr.rel (0) target = $region43
              $region42: #{deepseek_v2_attention_forward.7} parent=27 // pred_region
                loop: start=0, step=1, limit=1
                $region44: #{deepseek_v2_attention_forward.7} parent=42 // loop_pre_header
                  _
                $region45: #{deepseek_v2_attention_forward.7} parent=42 // loop_header
                  %s185 = sphi 0, %s189
                  %p186 = scmp.ge.s32.totalorder %s185, 1
                  %s190 = sphi %s133, %s133
                  %s191 = sphi %s128, %s128
                $region46: #{deepseek_v2_attention_forward.7} parent=42 // loop_header_branch
                  %188 = sbr.rel (%p186) target = $region50
                $region47: #{deepseek_v2_attention_forward.7} parent=42 // loop_body
                  _
                $region48: #{deepseek_v2_attention_forward.7} parent=42 // loop_footer
                  %s189 = sadd.s32 1, %s185
                $region49: #{deepseek_v2_attention_forward.7} parent=42 // loop_footer_branch
                  %184 = sbr.rel target = $region45
                $region50: #{deepseek_v2_attention_forward.7} parent=42 // loop_exit
                  _
                %s193 = ssub.s32 16, 1
                loop: start=0, step=1, limit=1
                $region51: #{deepseek_v2_attention_forward.7} parent=42 // loop_pre_header
                  _
                $region52: #{deepseek_v2_attention_forward.7} parent=42 // loop_header
                  %s195 = sphi 0, %s199
                  %p196 = scmp.ge.s32.totalorder %s195, 1
                  %s200 = sphi %s133, %s133
                  %s201 = sphi %s128, %s128
                $region53: #{deepseek_v2_attention_forward.7} parent=42 // loop_header_branch
                  %198 = sbr.rel (%p196) target = $region57
                $region54: #{deepseek_v2_attention_forward.7} parent=42 // loop_body
                  %v202 = vld [vmem:[%s200] sm:%s193]
                  %203 = vst [vmem:[%s201] sm:%s193] %v202
                  %v204 = vld [vmem:[%s200 + $0x10] sm:%s193]
                  %205 = vst [vmem:[%s201 + $0x4] sm:%s193] %v204
                  %v206 = vld [vmem:[%s200 + $0x20] sm:%s193]
                  %207 = vst [vmem:[%s201 + $0x8] sm:%s193] %v206
                  %v208 = vld [vmem:[%s200 + $0x30] sm:%s193]
                  %209 = vst [vmem:[%s201 + $0xc] sm:%s193] %v208
                  %v210 = vld [vmem:[%s200 + $0x40] sm:%s193]
                  %211 = vst [vmem:[%s201 + $0x10] sm:%s193] %v210
                  %v212 = vld [vmem:[%s200 + $0x50] sm:%s193]
                  %213 = vst [vmem:[%s201 + $0x14] sm:%s193] %v212
                  %v214 = vld [vmem:[%s200 + $0x60] sm:%s193]
                  %215 = vst [vmem:[%s201 + $0x18] sm:%s193] %v214
                  %v216 = vld [vmem:[%s200 + $0x70] sm:%s193]
                  %217 = vst [vmem:[%s201 + $0x1c] sm:%s193] %v216
                  %v218 = vld [vmem:[%s200 + $0x80] sm:%s193]
                  %219 = vst [vmem:[%s201 + $0x20] sm:%s193] %v218
                  %v220 = vld [vmem:[%s200 + $0x90] sm:%s193]
                  %221 = vst [vmem:[%s201 + $0x24] sm:%s193] %v220
                  %v222 = vld [vmem:[%s200 + $0xa0] sm:%s193]
                  %223 = vst [vmem:[%s201 + $0x28] sm:%s193] %v222
                  %v224 = vld [vmem:[%s200 + $0xb0] sm:%s193]
                  %225 = vst [vmem:[%s201 + $0x2c] sm:%s193] %v224
                  %v226 = vld [vmem:[%s200 + $0xc0] sm:%s193]
                  %227 = vst [vmem:[%s201 + $0x30] sm:%s193] %v226
                  %v228 = vld [vmem:[%s200 + $0xd0] sm:%s193]
                  %229 = vst [vmem:[%s201 + $0x34] sm:%s193] %v228
                  %v230 = vld [vmem:[%s200 + $0xe0] sm:%s193]
                  %231 = vst [vmem:[%s201 + $0x38] sm:%s193] %v230
                  %v232 = vld [vmem:[%s200 + $0xf0] sm:%s193]
                  %233 = vst [vmem:[%s201 + $0x3c] sm:%s193] %v232
                $region55: #{deepseek_v2_attention_forward.7} parent=42 // loop_footer
                  %s199 = sadd.s32 1, %s195
                $region56: #{deepseek_v2_attention_forward.7} parent=42 // loop_footer_branch
                  %194 = sbr.rel target = $region52
                $region57: #{deepseek_v2_attention_forward.7} parent=42 // loop_exit
                  _
              $region43: #{deepseek_v2_attention_forward.7} parent=27 // pred_fallthru
                _
            $region28: #{deepseek_v2_attention_forward.7} parent=23 // pred_fallthru
              _
            // Predicated region
            $region29: #{deepseek_v2_attention_forward.7} parent=23 // pred_check
              _
            $region30: #{deepseek_v2_attention_forward.7} parent=23 // pred_check_branch
              %139 = sbr.rel (0) target = $region32
            $region31: #{deepseek_v2_attention_forward.7} parent=23 // pred_region
              %s141 = ssub.s32 16, 1
              loop: start=0, step=1, limit=1
              $region33: #{deepseek_v2_attention_forward.7} parent=31 // loop_pre_header
                _
              $region34: #{deepseek_v2_attention_forward.7} parent=31 // loop_header
                %s143 = sphi 0, %s147
                %p144 = scmp.ge.s32.totalorder %s143, 1
                %s148 = sphi %s133, %s133
                %s149 = sphi %s128, %s128
              $region35: #{deepseek_v2_attention_forward.7} parent=31 // loop_header_branch
                %146 = sbr.rel (%p144) target = $region39
              $region36: #{deepseek_v2_attention_forward.7} parent=31 // loop_body
                %v150 = vld [vmem:[%s148] sm:%s141]
                %151 = vst [vmem:[%s149] sm:%s141] %v150
                %v152 = vld [vmem:[%s148 + $0x10] sm:%s141]
                %153 = vst [vmem:[%s149 + $0x4] sm:%s141] %v152
                %v154 = vld [vmem:[%s148 + $0x20] sm:%s141]
                %155 = vst [vmem:[%s149 + $0x8] sm:%s141] %v154
                %v156 = vld [vmem:[%s148 + $0x30] sm:%s141]
                %157 = vst [vmem:[%s149 + $0xc] sm:%s141] %v156
                %v158 = vld [vmem:[%s148 + $0x40] sm:%s141]
                %159 = vst [vmem:[%s149 + $0x10] sm:%s141] %v158
                %v160 = vld [vmem:[%s148 + $0x50] sm:%s141]
                %161 = vst [vmem:[%s149 + $0x14] sm:%s141] %v160
                %v162 = vld [vmem:[%s148 + $0x60] sm:%s141]
                %163 = vst [vmem:[%s149 + $0x18] sm:%s141] %v162
                %v164 = vld [vmem:[%s148 + $0x70] sm:%s141]
                %165 = vst [vmem:[%s149 + $0x1c] sm:%s141] %v164
                %v166 = vld [vmem:[%s148 + $0x80] sm:%s141]
                %167 = vst [vmem:[%s149 + $0x20] sm:%s141] %v166
                %v168 = vld [vmem:[%s148 + $0x90] sm:%s141]
                %169 = vst [vmem:[%s149 + $0x24] sm:%s141] %v168
                %v170 = vld [vmem:[%s148 + $0xa0] sm:%s141]
                %171 = vst [vmem:[%s149 + $0x28] sm:%s141] %v170
                %v172 = vld [vmem:[%s148 + $0xb0] sm:%s141]
                %173 = vst [vmem:[%s149 + $0x2c] sm:%s141] %v172
                %v174 = vld [vmem:[%s148 + $0xc0] sm:%s141]
                %175 = vst [vmem:[%s149 + $0x30] sm:%s141] %v174
                %v176 = vld [vmem:[%s148 + $0xd0] sm:%s141]
                %177 = vst [vmem:[%s149 + $0x34] sm:%s141] %v176
                %v178 = vld [vmem:[%s148 + $0xe0] sm:%s141]
                %179 = vst [vmem:[%s149 + $0x38] sm:%s141] %v178
                %v180 = vld [vmem:[%s148 + $0xf0] sm:%s141]
                %181 = vst [vmem:[%s149 + $0x3c] sm:%s141] %v180
              $region37: #{deepseek_v2_attention_forward.7} parent=31 // loop_footer
                %s147 = sadd.s32 1, %s143
              $region38: #{deepseek_v2_attention_forward.7} parent=31 // loop_footer_branch
                %142 = sbr.rel target = $region34
              $region39: #{deepseek_v2_attention_forward.7} parent=31 // loop_exit
                _
            $region32: #{deepseek_v2_attention_forward.7} parent=23 // pred_fallthru
              _
          $region24: #{deepseek_v2_attention_forward.7} parent=19 // pred_fallthru
            _
          %234 = vnop
        $region20: #{deepseek_v2_attention_forward.7} parent=15 // pred_fallthru
          _
        // Predicated region
        $region58: #{deepseek_v2_attention_forward.7} parent=15 // pred_check
          %p235 = pneg %p71
        $region59: #{deepseek_v2_attention_forward.7} parent=15 // pred_check_branch
          %237 = sbr.rel (%p235) target = $region61
        $region60: #{deepseek_v2_attention_forward.7} parent=15 // pred_region
          %s238 = smul.u32 16, %s19
          %p239 = scmp.lt.s32.totalorder %s238, 63
          %s240 = scalar_select %p239, %s238, 63
          %s241 = smul.addr %s240, 2
          %s242 = smul.addr %s241, 4
          %s243 = scalar_lea.vmem %s1, %s242
          %s244 = smul.u32 16, %s19
        $region61: #{deepseek_v2_attention_forward.7} parent=15 // pred_fallthru
          _
      $region16: #{deepseek_v2_attention_forward.7} parent=5 // pred_fallthru
        _
      %p245 = scmp.le.s32.totalorder 1, %s11
      %p246 = scmp.lt.s32.totalorder %s11, 9
      %p247 = pnand %p245, %p246
      %p248 = pneg %p247
      // Predicated region
      $region62: #{deepseek_v2_attention_forward.7} parent=5 // pred_check
        _
      $region63: #{deepseek_v2_attention_forward.7} parent=5 // pred_check_branch
        %250 = sbr.rel (%p247) target = $region65
      $region64: #{deepseek_v2_attention_forward.7} parent=5 // pred_region
        %s251 = ssub.s32 %s11, 1
        %s252 = sand.u32 %s38, 1
        %s253 = sand.u32 %s38, 1
        %s254 = smul.addr %s253, 64
        %s255 = scalar_lea.vmem [#allocation2], %s254
        // Predicated region
        $region66: #{deepseek_v2_attention_forward.7} parent=64 // pred_check
          %p256 = pneg %p51
        $region67: #{deepseek_v2_attention_forward.7} parent=64 // pred_check_branch
          %258 = sbr.rel (%p256) target = $region69
        $region68: #{deepseek_v2_attention_forward.7} parent=64 // pred_region
          _
        $region69: #{deepseek_v2_attention_forward.7} parent=64 // pred_fallthru
          _
        %s259 = sand.u32 %s38, 1
        %s260 = sand.u32 %s38, 1
        %s261 = smul.addr %s260, 64
        %s262 = scalar_lea.vmem [#allocation2], %s261
        %p263 = pneg %p51
        %p264 = pneg %p48
        %s265 = smul.u32 16, %s21
        %p266 = scmp.lt.s32.totalorder %s265, 63
        %s267 = scalar_select %p266, %s265, 63
        %s268 = smul.addr %s267, 2
        %s269 = smul.addr %s268, 4
        %s270 = scalar_lea.vmem %s1, %s269
        %p271 = pneg %p77
        %p272 = pneg %p74
        %p273 = pneg %p103
        %p274 = pneg %p100
        %s275 = sand.u32 %s90, 1
        %s276 = scalar_lea.sflag [#allocation4], %s275
        %s277 = sand.u32 %s90, 1
        %s278 = smul.addr %s277, 256
        %s279 = scalar_lea.vmem [#allocation3], %s278
        %s280 = smul.u32 16, %s20
        %s281 = smul.u32 16, %s21
        %p282 = scmp.lt.s32.totalorder %s281, 63
        %s283 = scalar_select %p282, %s281, 63
        %s284 = smul.addr %s283, 2
        %s285 = smul.addr %s284, 4
        %s286 = scalar_lea.vmem %s1, %s285
        %s287 = smul.u32 16, %s21
        %s288 = smul.u32 16, %s20
        %p290 = scmp.eq.s32.totalorder %s21, 0
        // Predicated region
        $region70: #{deepseek_v2_attention_forward.7} parent=64 // pred_check
          %p291 = pneg %p290
        $region71: #{deepseek_v2_attention_forward.7} parent=64 // pred_check_branch
          %293 = sbr.rel (%p291) target = $region73
        $region72: #{deepseek_v2_attention_forward.7} parent=64 // pred_region
          %294 = vst [vmem:[%s279] sm:$0xff] 0.0
          %295 = vst [vmem:[%s279 + $0x8] sm:$0xff] 0.0
          %296 = vst [vmem:[%s279 + $0x10] sm:$0xff] 0.0
          %297 = vst [vmem:[%s279 + $0x18] sm:$0xff] 0.0
          %298 = vst [vmem:[%s279 + $0x20] sm:$0xff] 0.0
          %299 = vst [vmem:[%s279 + $0x28] sm:$0xff] 0.0
          %300 = vst [vmem:[%s279 + $0x30] sm:$0xff] 0.0
          %301 = vst [vmem:[%s279 + $0x38] sm:$0xff] 0.0
          %302 = vst [vmem:[%s279 + $0x40] sm:$0xff] 0.0
          %303 = vst [vmem:[%s279 + $0x48] sm:$0xff] 0.0
          %304 = vst [vmem:[%s279 + $0x50] sm:$0xff] 0.0
          %305 = vst [vmem:[%s279 + $0x58] sm:$0xff] 0.0
          %306 = vst [vmem:[%s279 + $0x60] sm:$0xff] 0.0
          %307 = vst [vmem:[%s279 + $0x68] sm:$0xff] 0.0
          %308 = vst [vmem:[%s279 + $0x70] sm:$0xff] 0.0
          %309 = vst [vmem:[%s279 + $0x78] sm:$0xff] 0.0
          %310 = vst [vmem:[%s279 + $0x80] sm:$0xff] 0.0
          %311 = vst [vmem:[%s279 + $0x88] sm:$0xff] 0.0
          %312 = vst [vmem:[%s279 + $0x90] sm:$0xff] 0.0
          %313 = vst [vmem:[%s279 + $0x98] sm:$0xff] 0.0
          %314 = vst [vmem:[%s279 + $0xa0] sm:$0xff] 0.0
          %315 = vst [vmem:[%s279 + $0xa8] sm:$0xff] 0.0
          %316 = vst [vmem:[%s279 + $0xb0] sm:$0xff] 0.0
          %317 = vst [vmem:[%s279 + $0xb8] sm:$0xff] 0.0
          %318 = vst [vmem:[%s279 + $0xc0] sm:$0xff] 0.0
          %319 = vst [vmem:[%s279 + $0xc8] sm:$0xff] 0.0
          %320 = vst [vmem:[%s279 + $0xd0] sm:$0xff] 0.0
          %321 = vst [vmem:[%s279 + $0xd8] sm:$0xff] 0.0
          %322 = vst [vmem:[%s279 + $0xe0] sm:$0xff] 0.0
          %323 = vst [vmem:[%s279 + $0xe8] sm:$0xff] 0.0
          %324 = vst [vmem:[%s279 + $0xf0] sm:$0xff] 0.0
          %325 = vst [vmem:[%s279 + $0xf8] sm:$0xff] 0.0
        $region73: #{deepseek_v2_attention_forward.7} parent=64 // pred_fallthru
          _
        %v326 = vld [vmem:[%s279] sm:$0xff]
        %v327 = vld [vmem:[%s279 + $0x8] sm:$0xff]
        %v328 = vld [vmem:[%s279 + $0x10] sm:$0xff]
        %v329 = vld [vmem:[%s279 + $0x18] sm:$0xff]
        %v330 = vld [vmem:[%s279 + $0x20] sm:$0xff]
        %v331 = vld [vmem:[%s279 + $0x28] sm:$0xff]
        %v332 = vld [vmem:[%s279 + $0x30] sm:$0xff]
        %v333 = vld [vmem:[%s279 + $0x38] sm:$0xff]
        %v334 = vld [vmem:[%s279 + $0x40] sm:$0xff]
        %v335 = vld [vmem:[%s279 + $0x48] sm:$0xff]
        %v336 = vld [vmem:[%s279 + $0x50] sm:$0xff]
        %v337 = vld [vmem:[%s279 + $0x58] sm:$0xff]
        %v338 = vld [vmem:[%s279 + $0x60] sm:$0xff]
        %v339 = vld [vmem:[%s279 + $0x68] sm:$0xff]
        %v340 = vld [vmem:[%s279 + $0x70] sm:$0xff]
        %v341 = vld [vmem:[%s279 + $0x78] sm:$0xff]
        %v342 = vld [vmem:[%s279 + $0x80] sm:$0xff]
        %v343 = vld [vmem:[%s279 + $0x88] sm:$0xff]
        %v344 = vld [vmem:[%s279 + $0x90] sm:$0xff]
        %v345 = vld [vmem:[%s279 + $0x98] sm:$0xff]
        %v346 = vld [vmem:[%s279 + $0xa0] sm:$0xff]
        %v347 = vld [vmem:[%s279 + $0xa8] sm:$0xff]
        %v348 = vld [vmem:[%s279 + $0xb0] sm:$0xff]
        %v349 = vld [vmem:[%s279 + $0xb8] sm:$0xff]
        %v350 = vld [vmem:[%s279 + $0xc0] sm:$0xff]
        %v351 = vld [vmem:[%s279 + $0xc8] sm:$0xff]
        %v352 = vld [vmem:[%s279 + $0xd0] sm:$0xff]
        %v353 = vld [vmem:[%s279 + $0xd8] sm:$0xff]
        %v354 = vld [vmem:[%s279 + $0xe0] sm:$0xff]
        %v355 = vld [vmem:[%s279 + $0xe8] sm:$0xff]
        %v356 = vld [vmem:[%s279 + $0xf0] sm:$0xff]
        %v357 = vld [vmem:[%s279 + $0xf8] sm:$0xff]
        %v358 = vld [vmem:[%s255] sm:$0xf]
        %v359 = vld [vmem:[%s255 + $0x4] sm:$0xf]
        %v360 = vld [vmem:[%s255 + $0x8] sm:$0xf]
        %v361 = vld [vmem:[%s255 + $0xc] sm:$0xf]
        %v362 = vld [vmem:[%s255 + $0x10] sm:$0xf]
        %v363 = vld [vmem:[%s255 + $0x14] sm:$0xf]
        %v364 = vld [vmem:[%s255 + $0x18] sm:$0xf]
        %v365 = vld [vmem:[%s255 + $0x1c] sm:$0xf]
        %v366 = vld [vmem:[%s255 + $0x20] sm:$0xf]
        %v367 = vld [vmem:[%s255 + $0x24] sm:$0xf]
        %v368 = vld [vmem:[%s255 + $0x28] sm:$0xf]
        %v369 = vld [vmem:[%s255 + $0x2c] sm:$0xf]
        %v370 = vld [vmem:[%s255 + $0x30] sm:$0xf]
        %v371 = vld [vmem:[%s255 + $0x34] sm:$0xf]
        %v372 = vld [vmem:[%s255 + $0x38] sm:$0xf]
        %v373 = vld [vmem:[%s255 + $0x3c] sm:$0xf]
        %v374 = vld [vmem:[%s286] sm:$0xff]
        %v375 = vld [vmem:[%s286 + $0x8] sm:$0xff]
        %v376 = vld [vmem:[%s286 + $0x10] sm:$0xff]
        %v377 = vld [vmem:[%s286 + $0x18] sm:$0xff]
        %v378 = vld [vmem:[%s286 + $0x20] sm:$0xff]
        %v379 = vld [vmem:[%s286 + $0x28] sm:$0xff]
        %v380 = vld [vmem:[%s286 + $0x30] sm:$0xff]
        %v381 = vld [vmem:[%s286 + $0x38] sm:$0xff]
        %v382 = vld [vmem:[%s286 + $0x40] sm:$0xff]
        %v383 = vld [vmem:[%s286 + $0x48] sm:$0xff]
        %v384 = vld [vmem:[%s286 + $0x50] sm:$0xff]
        %v385 = vld [vmem:[%s286 + $0x58] sm:$0xff]
        %v386 = vld [vmem:[%s286 + $0x60] sm:$0xff]
        %v387 = vld [vmem:[%s286 + $0x68] sm:$0xff]
        %v388 = vld [vmem:[%s286 + $0x70] sm:$0xff]
        %v389 = vld [vmem:[%s286 + $0x78] sm:$0xff]
        %v406 = vunpack.c.l.b16 %v358
        %v407 = vunpack.c.l.b16 %v359
        %v408 = vunpack.c.l.b16 %v360
        %v409 = vunpack.c.l.b16 %v361
        %v410 = vunpack.c.l.b16 %v362
        %v411 = vunpack.c.l.b16 %v363
        %v412 = vunpack.c.l.b16 %v364
        %v413 = vunpack.c.l.b16 %v365
        %v414 = vunpack.c.l.b16 %v366
        %v415 = vunpack.c.l.b16 %v367
        %v416 = vunpack.c.l.b16 %v368
        %v417 = vunpack.c.l.b16 %v369
        %v418 = vunpack.c.l.b16 %v370
        %v419 = vunpack.c.l.b16 %v371
        %v420 = vunpack.c.l.b16 %v372
        %v421 = vunpack.c.l.b16 %v373
        %v422 = vpack.c.b16 %v407, %v406
        %v423 = vpack.c.b16 %v409, %v408
        %v424 = vpack.c.b16 %v411, %v410
        %v425 = vpack.c.b16 %v413, %v412
        %v426 = vpack.c.b16 %v415, %v414
        %v427 = vpack.c.b16 %v417, %v416
        %v428 = vpack.c.b16 %v419, %v418
        %v429 = vpack.c.b16 %v421, %v420
        %v454 = vunpack.c.l.b16 %v374
        %v455 = vunpack.c.h.b16 %v374
        %v456 = vunpack.c.l.b16 %v375
        %v457 = vunpack.c.h.b16 %v375
        %v458 = vunpack.c.l.b16 %v376
        %v459 = vunpack.c.h.b16 %v376
        %v460 = vunpack.c.l.b16 %v377
        %v461 = vunpack.c.h.b16 %v377
        %v462 = vunpack.c.l.b16 %v378
        %v463 = vunpack.c.h.b16 %v378
        %v464 = vunpack.c.l.b16 %v379
        %v465 = vunpack.c.h.b16 %v379
        %v466 = vunpack.c.l.b16 %v380
        %v467 = vunpack.c.h.b16 %v380
        %v468 = vunpack.c.l.b16 %v381
        %v469 = vunpack.c.h.b16 %v381
        %v470 = vunpack.c.l.b16 %v382
        %v471 = vunpack.c.h.b16 %v382
        %v472 = vunpack.c.l.b16 %v383
        %v473 = vunpack.c.h.b16 %v383
        %v474 = vunpack.c.l.b16 %v384
        %v475 = vunpack.c.h.b16 %v384
        %v476 = vunpack.c.l.b16 %v385
        %v477 = vunpack.c.h.b16 %v385
        %v478 = vunpack.c.l.b16 %v386
        %v479 = vunpack.c.h.b16 %v386
        %v480 = vunpack.c.l.b16 %v387
        %v481 = vunpack.c.h.b16 %v387
        %v482 = vunpack.c.l.b16 %v388
        %v483 = vunpack.c.h.b16 %v388
        %v484 = vunpack.c.l.b16 %v389
        %v485 = vunpack.c.h.b16 %v389
        %v486 = vpack.c.b16 %v456, %v454
        %v487 = vpack.c.b16 %v457, %v455
        %v488 = vpack.c.b16 %v460, %v458
        %v489 = vpack.c.b16 %v461, %v459
        %v490 = vpack.c.b16 %v464, %v462
        %v491 = vpack.c.b16 %v465, %v463
        %v492 = vpack.c.b16 %v468, %v466
        %v493 = vpack.c.b16 %v469, %v467
        %v494 = vpack.c.b16 %v472, %v470
        %v495 = vpack.c.b16 %v473, %v471
        %v496 = vpack.c.b16 %v476, %v474
        %v497 = vpack.c.b16 %v477, %v475
        %v498 = vpack.c.b16 %v480, %v478
        %v499 = vpack.c.b16 %v481, %v479
        %v500 = vpack.c.b16 %v484, %v482
        %v501 = vpack.c.b16 %v485, %v483
        %518 = vmatprep.subr.bf16.mxu0 %v501
        %519 = vmatpush1.bf16.msra.mxu0 %v500
        %520 = vmatprep.subr.bf16.mxu0 %v499
        %521 = vmatpush1.bf16.msra.mxu0 %v498
        %522 = vmatprep.subr.bf16.mxu0 %v497
        %523 = vmatpush1.bf16.msra.mxu0 %v496
        %524 = vmatprep.subr.bf16.mxu0 %v495
        %525 = vmatpush1.bf16.msra.mxu0 %v494
        %526 = vmatprep.subr.bf16.mxu0 %v493
        %527 = vmatpush1.bf16.msra.mxu0 %v492
        %528 = vmatprep.subr.bf16.mxu0 %v491
        %529 = vmatpush1.bf16.msra.mxu0 %v490
        %530 = vmatprep.subr.bf16.mxu0 %v489
        %531 = vmatpush1.bf16.msra.mxu0 %v488
        %532 = vmatprep.subr.bf16.mxu0 %v487
        %533 = vmatpush1.bf16.msra.mxu0 %v486
        %534 = vmatprep.subr.bf16.mxu0 0
        %535 = vmatpush2.bf16.msra.mxu0 0
        %536 = vmatprep.subr.bf16.mxu0 0
        %537 = vmatpush2.bf16.msra.mxu0 0
        %538 = vmatprep.subr.bf16.mxu0 0
        %539 = vmatpush2.bf16.msra.mxu0 0
        %540 = vmatprep.subr.bf16.mxu0 0
        %541 = vmatpush2.bf16.msra.mxu0 0
        %542 = vmatprep.subr.bf16.mxu0 0
        %543 = vmatpush2.bf16.msra.mxu0 0
        %544 = vmatprep.subr.bf16.mxu0 0
        %545 = vmatpush2.bf16.msra.mxu0 0
        %546 = vmatprep.subr.bf16.mxu0 0
        %547 = vmatpush2.bf16.msra.mxu0 0
        %548 = vmatprep.subr.bf16.mxu0 0
        %549 = vmatpush2.bf16.msra.mxu0 0
        %550 = vmatprep.mubr.bf16.mxu0 0
        %551 = vmatmul.mubr.bf16.gmra.mxu0 %v422
        %v552 = vpop.f32.mrf.mxu0
        %v553 = vadd.f32 0.0, %v552
        %v554 = vpop.f32.mrf.mxu0
        %v555 = vadd.f32 0.0, %v554
        %v556 = vpop.f32.mrf.mxu0
        %v557 = vadd.f32 0.0, %v556
        %v558 = vpop.f32.mrf.mxu0
        %v559 = vadd.f32 0.0, %v558
        %560 = vmatprep.mubr.bf16.mxu0 0
        %561 = vmatmul.mubr.bf16.gmra.mxu0 %v423
        %v562 = vpop.f32.mrf.mxu0
        %v563 = vadd.f32 0.0, %v562
        %v564 = vpop.f32.mrf.mxu0
        %v565 = vadd.f32 0.0, %v564
        %v566 = vpop.f32.mrf.mxu0
        %v567 = vadd.f32 0.0, %v566
        %v568 = vpop.f32.mrf.mxu0
        %v569 = vadd.f32 0.0, %v568
        %570 = vmatprep.mubr.bf16.mxu0 0
        %571 = vmatmul.mubr.bf16.gmra.mxu0 %v424
        %v572 = vpop.f32.mrf.mxu0
        %v573 = vadd.f32 0.0, %v572
        %v574 = vpop.f32.mrf.mxu0
        %v575 = vadd.f32 0.0, %v574
        %v576 = vpop.f32.mrf.mxu0
        %v577 = vadd.f32 0.0, %v576
        %v578 = vpop.f32.mrf.mxu0
        %v579 = vadd.f32 0.0, %v578
        %580 = vmatprep.mubr.bf16.mxu0 0
        %581 = vmatmul.mubr.bf16.gmra.mxu0 %v425
        %v582 = vpop.f32.mrf.mxu0
        %v583 = vadd.f32 0.0, %v582
        %v584 = vpop.f32.mrf.mxu0
        %v585 = vadd.f32 0.0, %v584
        %v586 = vpop.f32.mrf.mxu0
        %v587 = vadd.f32 0.0, %v586
        %v588 = vpop.f32.mrf.mxu0
        %v589 = vadd.f32 0.0, %v588
        %590 = vmatprep.mubr.bf16.mxu0 0
        %591 = vmatmul.mubr.bf16.gmra.mxu0 %v426
        %v592 = vpop.f32.mrf.mxu0
        %v593 = vadd.f32 0.0, %v592
        %v594 = vpop.f32.mrf.mxu0
        %v595 = vadd.f32 0.0, %v594
        %v596 = vpop.f32.mrf.mxu0
        %v597 = vadd.f32 0.0, %v596
        %v598 = vpop.f32.mrf.mxu0
        %v599 = vadd.f32 0.0, %v598
        %600 = vmatprep.mubr.bf16.mxu0 0
        %601 = vmatmul.mubr.bf16.gmra.mxu0 %v427
        %v602 = vpop.f32.mrf.mxu0
        %v603 = vadd.f32 0.0, %v602
        %v604 = vpop.f32.mrf.mxu0
        %v605 = vadd.f32 0.0, %v604
        %v606 = vpop.f32.mrf.mxu0
        %v607 = vadd.f32 0.0, %v606
        %v608 = vpop.f32.mrf.mxu0
        %v609 = vadd.f32 0.0, %v608
        %610 = vmatprep.mubr.bf16.mxu0 0
        %611 = vmatmul.mubr.bf16.gmra.mxu0 %v428
        %v612 = vpop.f32.mrf.mxu0
        %v613 = vadd.f32 0.0, %v612
        %v614 = vpop.f32.mrf.mxu0
        %v615 = vadd.f32 0.0, %v614
        %v616 = vpop.f32.mrf.mxu0
        %v617 = vadd.f32 0.0, %v616
        %v618 = vpop.f32.mrf.mxu0
        %v619 = vadd.f32 0.0, %v618
        %620 = vmatprep.mubr.bf16.mxu0 0
        %621 = vmatmul.mubr.bf16.gmra.mxu0 %v429
        %v622 = vpop.f32.mrf.mxu0
        %v623 = vadd.f32 0.0, %v622
        %v624 = vpop.f32.mrf.mxu0
        %v625 = vadd.f32 0.0, %v624
        %v626 = vpop.f32.mrf.mxu0
        %v627 = vadd.f32 0.0, %v626
        %v628 = vpop.f32.mrf.mxu0
        %v629 = vadd.f32 0.0, %v628
        %630 = vdwg.mxu0
        %v631 = vadd.f32 %v326, %v553
        %v632 = vadd.f32 %v327, %v555
        %v633 = vadd.f32 %v328, %v557
        %v634 = vadd.f32 %v329, %v559
        %v635 = vadd.f32 %v330, %v563
        %v636 = vadd.f32 %v331, %v565
        %v637 = vadd.f32 %v332, %v567
        %v638 = vadd.f32 %v333, %v569
        %v639 = vadd.f32 %v334, %v573
        %v640 = vadd.f32 %v335, %v575
        %v641 = vadd.f32 %v336, %v577
        %v642 = vadd.f32 %v337, %v579
        %v643 = vadd.f32 %v338, %v583
        %v644 = vadd.f32 %v339, %v585
        %v645 = vadd.f32 %v340, %v587
        %v646 = vadd.f32 %v341, %v589
        %v647 = vadd.f32 %v342, %v593
        %v648 = vadd.f32 %v343, %v595
        %v649 = vadd.f32 %v344, %v597
        %v650 = vadd.f32 %v345, %v599
        %v651 = vadd.f32 %v346, %v603
        %v652 = vadd.f32 %v347, %v605
        %v653 = vadd.f32 %v348, %v607
        %v654 = vadd.f32 %v349, %v609
        %v655 = vadd.f32 %v350, %v613
        %v656 = vadd.f32 %v351, %v615
        %v657 = vadd.f32 %v352, %v617
        %v658 = vadd.f32 %v353, %v619
        %v659 = vadd.f32 %v354, %v623
        %v660 = vadd.f32 %v355, %v625
        %v661 = vadd.f32 %v356, %v627
        %v662 = vadd.f32 %v357, %v629
        %663 = vst [vmem:[%s279] sm:$0xff] %v631
        %664 = vst [vmem:[%s279 + $0x8] sm:$0xff] %v632
        %665 = vst [vmem:[%s279 + $0x10] sm:$0xff] %v633
        %666 = vst [vmem:[%s279 + $0x18] sm:$0xff] %v634
        %667 = vst [vmem:[%s279 + $0x20] sm:$0xff] %v635
        %668 = vst [vmem:[%s279 + $0x28] sm:$0xff] %v636
        %669 = vst [vmem:[%s279 + $0x30] sm:$0xff] %v637
        %670 = vst [vmem:[%s279 + $0x38] sm:$0xff] %v638
        %671 = vst [vmem:[%s279 + $0x40] sm:$0xff] %v639
        %672 = vst [vmem:[%s279 + $0x48] sm:$0xff] %v640
        %673 = vst [vmem:[%s279 + $0x50] sm:$0xff] %v641
        %674 = vst [vmem:[%s279 + $0x58] sm:$0xff] %v642
        %675 = vst [vmem:[%s279 + $0x60] sm:$0xff] %v643
        %676 = vst [vmem:[%s279 + $0x68] sm:$0xff] %v644
        %677 = vst [vmem:[%s279 + $0x70] sm:$0xff] %v645
        %678 = vst [vmem:[%s279 + $0x78] sm:$0xff] %v646
        %679 = vst [vmem:[%s279 + $0x80] sm:$0xff] %v647
        %680 = vst [vmem:[%s279 + $0x88] sm:$0xff] %v648
        %681 = vst [vmem:[%s279 + $0x90] sm:$0xff] %v649
        %682 = vst [vmem:[%s279 + $0x98] sm:$0xff] %v650
        %683 = vst [vmem:[%s279 + $0xa0] sm:$0xff] %v651
        %684 = vst [vmem:[%s279 + $0xa8] sm:$0xff] %v652
        %685 = vst [vmem:[%s279 + $0xb0] sm:$0xff] %v653
        %686 = vst [vmem:[%s279 + $0xb8] sm:$0xff] %v654
        %687 = vst [vmem:[%s279 + $0xc0] sm:$0xff] %v655
        %688 = vst [vmem:[%s279 + $0xc8] sm:$0xff] %v656
        %689 = vst [vmem:[%s279 + $0xd0] sm:$0xff] %v657
        %690 = vst [vmem:[%s279 + $0xd8] sm:$0xff] %v658
        %691 = vst [vmem:[%s279 + $0xe0] sm:$0xff] %v659
        %692 = vst [vmem:[%s279 + $0xe8] sm:$0xff] %v660
        %693 = vst [vmem:[%s279 + $0xf0] sm:$0xff] %v661
        %694 = vst [vmem:[%s279 + $0xf8] sm:$0xff] %v662
        %s695 = sand.u32 %s90, 1
        %s696 = scalar_lea.sflag [#allocation4], %s695
        %s697 = sand.u32 %s90, 1
        %s698 = smul.addr %s697, 256
        %s699 = scalar_lea.vmem [#allocation3], %s698
        // Predicated region
        $region74: #{deepseek_v2_attention_forward.7} parent=64 // pred_check
          %p700 = pneg %p100
        $region75: #{deepseek_v2_attention_forward.7} parent=64 // pred_check_branch
          %702 = sbr.rel (%p700) target = $region77
        $region76: #{deepseek_v2_attention_forward.7} parent=64 // pred_region
          %s703 = smul.u32 16, %s20
          %s705 = ssub.s32 4096, 4096
          %706 = vsyncadd %s696, %s705
          %s707 = smul.addr %s703, 2
          %s708 = smul.addr %s707, 128
          %s709 = scalar_lea.hbm %s2, %s708
          %s710 = sshll.u32 %s699, 4
          %s711 = int_to_ptr.vmem [resolvable:$true] %s710
          %716 = dma.vmem_to_hbm [thread:$0]  %s711, 4096, %s709, %s696, 256, 256, 16
        $region77: #{deepseek_v2_attention_forward.7} parent=64 // pred_fallthru
          _
      $region65: #{deepseek_v2_attention_forward.7} parent=5 // pred_fallthru
        _
      %p717 = scmp.le.s32.totalorder 2, %s11
      // Predicated region
      $region78: #{deepseek_v2_attention_forward.7} parent=5 // pred_check
        %p718 = pneg %p717
      $region79: #{deepseek_v2_attention_forward.7} parent=5 // pred_check_branch
        %720 = sbr.rel (%p718) target = $region81
      $region80: #{deepseek_v2_attention_forward.7} parent=5 // pred_region
        %s721 = ssub.s32 %s11, 2
        // Predicated region
        $region82: #{deepseek_v2_attention_forward.7} parent=80 // pred_check
          %p722 = pneg %p106
        $region83: #{deepseek_v2_attention_forward.7} parent=80 // pred_check_branch
          %724 = sbr.rel (%p722) target = $region85
        $region84: #{deepseek_v2_attention_forward.7} parent=80 // pred_region
          %s725 = sand.u32 %s91, 1
          %s726 = scalar_lea.sflag [#allocation4], %s725
          %s727 = sand.u32 %s91, 1
          %s728 = smul.addr %s727, 256
          %s729 = scalar_lea.vmem [#allocation3], %s728
          %730 = dma.done %s726, 4096
        $region85: #{deepseek_v2_attention_forward.7} parent=80 // pred_fallthru
          _
      $region81: #{deepseek_v2_attention_forward.7} parent=5 // pred_fallthru
        _
    $region6: #{deepseek_v2_attention_forward.7} parent=1 // loop_footer
      %s15 = sadd.s32 1, %s11
    $region7: #{deepseek_v2_attention_forward.7} parent=1 // loop_footer_branch
      %10 = sbr.rel target = $region3
    $region8: #{deepseek_v2_attention_forward.7} parent=1 // loop_exit
      _
    %731 = vsyncpa [#allocation4], 1
    %s732 = scalar_lea.sflag [#allocation4], 1
    %733 = vsyncpa %s732, 1

</llo_original>
